<compile_context>
chip_gen: v6e
topology: v6e:2x2x1
jax: 0.10.0
libtpu: 0.0.40
codegen_flags: <defaults>
</compile_context>

<pallas_src>
import jax
import jax.numpy as jnp
import numpy as np
from jax.experimental import pallas as pl
from jax.experimental.pallas import tpu as pltpu

EPS = 1e-3           # nn.BatchNorm2d(..., eps=0.001)
NEG_SLOPE = 0.1      # nn.LeakyReLU(negative_slope=0.1)
# MXU input dtype.  Keep f32 here for a tight correctness check; on v6e / v7x
# set to jnp.bfloat16 for ~2x MXU rate and half the weight VMEM/HBM traffic
# (accumulation stays f32 via preferred_element_type either way).
MATMUL_DTYPE = jnp.float32


def _round_up(x, m):
    return ((x + m - 1) // m) * m


def _bn_fold(gamma, beta, mean, var):
    scale = gamma / jnp.sqrt(var + EPS)
    shift = beta - mean * scale
    return scale.reshape(1, -1), shift.reshape(1, -1)


def _conv_taps(stride, wo):
    """Tap plan for a 3x3, pad=1 conv on flattened (rows = Ho*Wo) images.

    Returns [(phase_idx, [(row_offset, col_mask, tap_idx), ...]), ...].
    `row_offset` is the shift (in flattened output-resolution rows) used to
    read from the zero-halo scratch; `col_mask` in {None, 'lo', 'hi'} marks
    taps that must be zeroed at the left/right image border (top/bottom
    borders are handled for free by the zero halo rows).
    """
    def axis_plan(k):
        if stride == 1:
            return 0, k - 1                       # (phase parity, offset)
        # stride 2, even spatial dims: source index 2*o + k - 1
        return (0, 0) if k == 1 else (1, -1 if k == 0 else 0)

    plan = {}
    for kh in range(3):
        pr, di = axis_plan(kh)
        for kw in range(3):
            pc, dj = axis_plan(kw)
            phase = pr * 2 + pc if stride == 2 else 0
            mask = 'lo' if dj < 0 else ('hi' if dj > 0 else None)
            plan.setdefault(phase, []).append((di * wo + dj, mask, kh * 3 + kw))
    return sorted(plan.items())


# --------------------------- fused BasicBlock kernel -------------------------

def _make_basic_block_kernel(*, H, W, Cin, Cout, stride, equal, abr):
    Ho, Wo = H // stride, W // stride
    Mo = Ho * Wo
    n_phase = 1 if stride == 1 else 4
    pad = _round_up(Wo + 1, 8)          # zero-halo rows on each side of scratch
    act_in = equal or abr               # does conv1 consume the BN1 activation?
    taps1 = _conv_taps(stride, Wo)
    taps2 = _conv_taps(1, Wo)

    def lrelu(t):
        return jnp.where(t >= 0, t, NEG_SLOPE * t)

    def conv3x3(phases, w_ref, sc_ref, c_out, taps, m_lo, m_hi):
        # Direct 3x3 conv: write each phase into the zero-halo scratch once,
        # then accumulate 9 statically shifted (Mo, c_in) @ (c_in, c_out) dots.
        acc = jnp.zeros((Mo, c_out), jnp.float32)
        for phase_idx, tap_list in taps:
            sc_ref[pl.ds(pad, Mo), :] = phases[phase_idx]
            for off, col_mask, tap in tap_list:
                v = sc_ref[pl.ds(pad + off, Mo), :]
                if col_mask == 'lo':
                    v = jnp.where(m_lo, v, 0.0)
                elif col_mask == 'hi':
                    v = jnp.where(m_hi, v, 0.0)
                acc = acc + jnp.dot(v.astype(MATMUL_DTYPE),
                                    w_ref[tap].astype(MATMUL_DTYPE),
                                    preferred_element_type=jnp.float32)
        return acc

    def kernel(*args):
        *in_refs, o_ref, sc_in_ref, sc_h_ref = args
        ph_refs = in_refs[:n_phase]
        (cc_ref, s1_ref, b1_ref, s2_ref, b2_ref,
         w1_ref, w2_ref) = in_refs[n_phase:n_phase + 7]
        ws_ref = None if equal else in_refs[n_phase + 7]

        # zero the halos once per image (they implement the conv zero padding)
        sc_in_ref[...] = jnp.zeros_like(sc_in_ref)
        sc_h_ref[...] = jnp.zeros_like(sc_h_ref)

        cc = cc_ref[...]                         # (Mo, 1) column index (float)
        m_lo = cc >= 0.5                         # column >= 1     (taps dj=-1)
        m_hi = cc <= (Wo - 1.5)                  # column <= Wo-2  (taps dj=+1)

        s1, b1 = s1_ref[...], b1_ref[...]        # folded BN1 (1, Cin)
        s2, b2 = s2_ref[...], b2_ref[...]        # folded BN2 (1, Cout)

        raw = [r[...] for r in ph_refs]          # (Mo, Cin) per phase, raw x
        # BN1 + LeakyReLU fused (the torch module discards it when
        # not equalInOut and not activate_before_residual -> use raw).
        a = [lrelu(p * s1 + b1) for p in raw] if act_in else raw

        # ---- conv1: 3x3 / stride, fused BN2 + LeakyReLU epilogue ----
        acc1 = conv3x3(a, w1_ref, sc_in_ref, Cout, taps1, m_lo, m_hi)
        h = lrelu(acc1 * s2 + b2)
        # TODO(synk): dropout (drop_rate > 0, training mode) not implemented.

        # ---- shortcut: identity, or fused 1x1 conv on the strided source ----
        if equal:
            res = raw[0]                         # identity on raw x (stride 1)
        else:
            # phase 0 == even/even pixels == exactly what a 1x1/stride conv reads
            res = jnp.dot(a[0].astype(MATMUL_DTYPE),
                          ws_ref[...].astype(MATMUL_DTYPE),
                          preferred_element_type=jnp.float32)

        # ---- conv2: 3x3 / stride 1, fused residual add ----
        acc2 = conv3x3([h], w2_ref, sc_h_ref, Cout, taps2, m_lo, m_hi)
        o_ref[...] = (acc2 + res).astype(o_ref.dtype)

    return kernel, pad


def basic_block_forward(x, p, stride, activate_before_residual):
    """x: (N, H, W, Cin) NHWC.  Returns (N, Ho, Wo, Cout).  One pallas_call."""
    N, H, W, Cin = x.shape
    Cout = p["w1"].shape[-1]
    equal = (Cin == Cout)
    assert stride in (1, 2), "WRN only uses stride 1 or 2"
    if equal:
        assert stride == 1, "identity shortcut requires stride 1 (as in torch)"
    if stride == 2:
        assert H % 2 == 0 and W % 2 == 0, "stride-2 path assumes even H, W"
    Ho, Wo = H // stride, W // stride
    Mo = Ho * Wo
    assert Mo % 8 == 0, "Ho*Wo must be a multiple of 8 (TPU sublane tiling)"

    kernel, pad = _make_basic_block_kernel(
        H=H, W=W, Cin=Cin, Cout=Cout, stride=stride, equal=equal,
        abr=activate_before_residual)
    Mh = Mo + 2 * pad

    s1, b1 = _bn_fold(p["bn1_gamma"], p["bn1_beta"], p["bn1_mean"], p["bn1_var"])
    s2, b2 = _bn_fold(p["bn2_gamma"], p["bn2_beta"], p["bn2_mean"], p["bn2_var"])

    # Activation phases: 1 (stride 1) or 4 even/odd sub-images (stride 2).
    # Same total bytes as x -> no im2col-style HBM blow-up.
    if stride == 1:
        phases = [x.reshape(N * Mo, Cin)]
    else:
        phases = [x[:, pr::2, pc::2, :].reshape(N * Mo, Cin)
                  for pr in (0, 1) for pc in (0, 1)]
    # per-row column index (output resolution) for the left/right border masks
    cc = jnp.tile(jnp.arange(Wo, dtype=jnp.float32), Ho).reshape(Mo, 1)

    w1 = p["w1"].reshape(9, Cin, Cout)           # (3,3,Cin,Cout) -> tap-major
    w2 = p["w2"].reshape(9, Cout, Cout)

    inputs = list(phases) + [cc, s1, b1, s2, b2, w1, w2]
    in_specs = ([pl.BlockSpec((Mo, Cin), lambda n: (n, 0))] * len(phases) +
                [pl.BlockSpec((Mo, 1), lambda n: (0, 0)),
                 pl.BlockSpec((1, Cin), lambda n: (0, 0)),
                 pl.BlockSpec((1, Cin), lambda n: (0, 0)),
                 pl.BlockSpec((1, Cout), lambda n: (0, 0)),
                 pl.BlockSpec((1, Cout), lambda n: (0, 0)),
                 pl.BlockSpec((9, Cin, Cout), lambda n: (0, 0, 0)),
                 pl.BlockSpec((9, Cout, Cout), lambda n: (0, 0, 0))])
    if not equal:
        inputs.append(p["ws"].reshape(Cin, Cout))
        in_specs.append(pl.BlockSpec((Cin, Cout), lambda n: (0, 0)))

    # NOTE: for real WRN widths (Cout up to 640) cast weights to bf16 and raise
    # pltpu.CompilerParams(vmem_limit_bytes=...) -- unnecessary at these sizes.
    y2d = pl.pallas_call(
        kernel,
        out_shape=jax.ShapeDtypeStruct((N * Mo, Cout), x.dtype),
        grid_spec=pltpu.PrefetchScalarGridSpec(
            num_scalar_prefetch=0,
            grid=(N,),                                  # one image per grid step
            in_specs=in_specs,
            out_specs=pl.BlockSpec((Mo, Cout), lambda n: (n, 0)),
            scratch_shapes=[pltpu.VMEM((Mh, Cin), jnp.float32),   # conv1 halo
                            pltpu.VMEM((Mh, Cout), jnp.float32)], # conv2 halo
        ),
        compiler_params=pltpu.CompilerParams(
            dimension_semantics=("parallel",)),   # pipeline / megacore over N
    )(*inputs)
    return y2d.reshape(N, Ho, Wo, Cout)


def network_block_forward(x_nhwc, layer_params, strides, activate_before_residual):
    y = x_nhwc
    for p, s in zip(layer_params, strides):
        y = basic_block_forward(y, p, s, activate_before_residual)
    return y


# --------------------------- reference (pure JAX) -----------------------------

def _conv_ref(x, w, stride, padding):
    return jax.lax.conv_general_dilated(
        x, w, window_strides=(stride, stride), padding=padding,
        dimension_numbers=("NHWC", "HWIO", "NHWC"))


def basic_block_ref(x, p, stride, activate_before_residual):
    Cin, Cout = x.shape[-1], p["w1"].shape[-1]
    equal = (Cin == Cout)
    bn = lambda t, g, b, m, v: (t - m) / jnp.sqrt(v + EPS) * g + b
    lrelu = lambda t: jnp.where(t >= 0, t, NEG_SLOPE * t)
    a = lrelu(bn(x, p["bn1_gamma"], p["bn1_beta"], p["bn1_mean"], p["bn1_var"]))
    if (not equal) and activate_before_residual:
        x = a
    conv1_in = a if equal else x
    h = _conv_ref(conv1_in, p["w1"], stride, ((1, 1), (1, 1)))
    h = lrelu(bn(h, p["bn2_gamma"], p["bn2_beta"], p["bn2_mean"], p["bn2_var"]))
    out = _conv_ref(h, p["w2"], 1, ((1, 1), (1, 1)))
    res = x if equal else _conv_ref(x, p["ws"], stride, "VALID")
    return res + out


# ------------------------------ params ----------------------------------------

def init_basic_block_params(key, cin, cout):
    ks = jax.random.split(key, 12)
    std3 = float(np.sqrt(2.0 / (9 * cout)))   # kaiming: n = k*k*out_planes
    std1 = float(np.sqrt(2.0 / (1 * cout)))
    p = {
        "bn1_gamma": jax.random.uniform(ks[0], (cin,), jnp.float32, 0.5, 1.5),
        "bn1_beta": 0.1 * jax.random.normal(ks[1], (cin,), jnp.float32),
        "bn1_mean": 0.1 * jax.random.normal(ks[2], (cin,), jnp.float32),
        "bn1_var": jax.random.uniform(ks[3], (cin,), jnp.float32, 0.5, 1.5),
        "w1": std3 * jax.random.normal(ks[4], (3, 3, cin, cout), jnp.float32),
        "bn2_gamma": jax.random.uniform(ks[5], (cout,), jnp.float32, 0.5, 1.5),
        "bn2_beta": 0.1 * jax.random.normal(ks[6], (cout,), jnp.float32),
        "bn2_mean": 0.1 * jax.random.normal(ks[7], (cout,), jnp.float32),
        "bn2_var": jax.random.uniform(ks[8], (cout,), jnp.float32, 0.5, 1.5),
        "w2": std3 * jax.random.normal(ks[9], (3, 3, cout, cout), jnp.float32),
    }
    if cin != cout:
        p["ws"] = std1 * jax.random.normal(ks[10], (1, 1, cin, cout), jnp.float32)
    return p


# ------------------------------- main ------------------------------------------

if __name__ == "__main__":
    # NetworkBlock(nb_layers=2, in_planes=4, out_planes=8, block=BasicBlock,
    #              stride=2, drop_rate=0.0, activate_before_residual=True)
    key = jax.random.PRNGKey(0)
    kx, k0, k1 = jax.random.split(key, 3)

    N, Cin, H, W = 2, 4, 16, 16
    Cout, stride, abr = 8, 2, True

    x_nchw = jax.random.normal(kx, (N, Cin, H, W), jnp.float32)

    layer_params = [init_basic_block_params(k0, Cin, Cout),   # layer 0: 4->8, s=2
                    init_basic_block_params(k1, Cout, Cout)]  # layer 1: 8->8, s=1
    strides = [stride, 1]

    # layout: NCHW (torch) -> NHWC for the kernels -> back to NCHW.
    x_nhwc = jnp.transpose(x_nchw, (0, 2, 3, 1))

    fwd = jax.jit(lambda xx, pp: network_block_forward(xx, pp, strides, abr))
    y_nhwc = jax.block_until_ready(fwd(x_nhwc, layer_params))

    # correctness check against a pure-JAX (lax.conv) reference
    yr = x_nhwc
    for p, s in zip(layer_params, strides):
        yr = basic_block_ref(yr, p, s, abr)
    err = float(jnp.max(jnp.abs(y_nhwc - yr)))
    assert err < 1e-2 * (1.0 + float(jnp.max(jnp.abs(yr)))), f"mismatch: {err}"

    y_nchw = jnp.transpose(y_nhwc, (0, 3, 1, 2))
    assert y_nchw.shape == (N, Cout, H // stride, W // stride)
    print("KERNEL_OK")
</pallas_src>

<mosaic_0001>
module attributes {stable_mosaic.version = 11 : i64} {
  func.func @kernel(%arg0: i32, %arg1: memref<64x4xf32, #tpu.memory_space<vmem>>, %arg2: memref<64x4xf32, #tpu.memory_space<vmem>>, %arg3: memref<64x4xf32, #tpu.memory_space<vmem>>, %arg4: memref<64x4xf32, #tpu.memory_space<vmem>>, %arg5: memref<64x1xf32, #tpu.memory_space<vmem>>, %arg6: memref<1x4xf32, #tpu.memory_space<vmem>>, %arg7: memref<1x4xf32, #tpu.memory_space<vmem>>, %arg8: memref<1x8xf32, #tpu.memory_space<vmem>>, %arg9: memref<1x8xf32, #tpu.memory_space<vmem>>, %arg10: memref<9x4x8xf32, #tpu.memory_space<vmem>>, %arg11: memref<9x8x8xf32, #tpu.memory_space<vmem>>, %arg12: memref<4x8xf32, #tpu.memory_space<vmem>>, %arg13: memref<64x8xf32, #tpu.memory_space<vmem>>, %arg14: memref<96x4xf32, #tpu.memory_space<vmem>>, %arg15: memref<96x8xf32, #tpu.memory_space<vmem>>) attributes {dimension_semantics = [#tpu.dimension_semantics<parallel>], iteration_bounds = array<i64: 2>, scalar_prefetch = 0 : i64, scratch_operands = 2 : i64, tpu.core_type = #tpu.core_type<tc>, window_params = [{transform_indices = @transform_0, window_bounds = array<i64: 64, 4>}, {transform_indices = @transform_1, window_bounds = array<i64: 64, 4>}, {transform_indices = @transform_2, window_bounds = array<i64: 64, 4>}, {transform_indices = @transform_3, window_bounds = array<i64: 64, 4>}, {pipeline_mode = #tpu.pipeline_mode<synchronous>, transform_indices = @transform_4, window_bounds = array<i64: 64, 1>}, {pipeline_mode = #tpu.pipeline_mode<synchronous>, transform_indices = @transform_5, window_bounds = array<i64: 1, 4>}, {pipeline_mode = #tpu.pipeline_mode<synchronous>, transform_indices = @transform_6, window_bounds = array<i64: 1, 4>}, {pipeline_mode = #tpu.pipeline_mode<synchronous>, transform_indices = @transform_7, window_bounds = array<i64: 1, 8>}, {pipeline_mode = #tpu.pipeline_mode<synchronous>, transform_indices = @transform_8, window_bounds = array<i64: 1, 8>}, {pipeline_mode = #tpu.pipeline_mode<synchronous>, transform_indices = @transform_9, window_bounds = array<i64: 9, 4, 8>}, {pipeline_mode = #tpu.pipeline_mode<synchronous>, transform_indices = @transform_10, window_bounds = array<i64: 9, 8, 8>}, {pipeline_mode = #tpu.pipeline_mode<synchronous>, transform_indices = @transform_11, window_bounds = array<i64: 4, 8>}, {transform_indices = @transform_12, window_bounds = array<i64: 64, 8>}]} {
    %cst = arith.constant 0.000000e+00 : f32
    %0 = vector.broadcast %cst : f32 to vector<96x4xf32>
    %c0 = arith.constant 0 : index
    %c0_0 = arith.constant 0 : index
    %1 = vector.load %arg14[%c0, %c0_0] : memref<96x4xf32, #tpu.memory_space<vmem>>, vector<96x4xf32>
    tpu.vector_store %arg14[%c0, %c0_0], %0 {strides = array<i32>} : memref<96x4xf32, #tpu.memory_space<vmem>>, vector<96x4xf32>,
    %cst_1 = arith.constant 0.000000e+00 : f32
    %2 = vector.broadcast %cst_1 : f32 to vector<96x8xf32>
    %c0_2 = arith.constant 0 : index
    %c0_3 = arith.constant 0 : index
    %3 = vector.load %arg15[%c0_2, %c0_3] : memref<96x8xf32, #tpu.memory_space<vmem>>, vector<96x8xf32>
    tpu.vector_store %arg15[%c0_2, %c0_3], %2 {strides = array<i32>} : memref<96x8xf32, #tpu.memory_space<vmem>>, vector<96x8xf32>,
    %c0_4 = arith.constant 0 : index
    %c0_5 = arith.constant 0 : index
    %4 = vector.load %arg5[%c0_4, %c0_5] : memref<64x1xf32, #tpu.memory_space<vmem>>, vector<64x1xf32>
    %cst_6 = arith.constant 5.000000e-01 : f32
    %5 = vector.broadcast %cst_6 : f32 to vector<64x1xf32>
    %6 = arith.cmpf oge, %4, %5 : vector<64x1xf32>
    %cst_7 = arith.constant 6.500000e+00 : f32
    %7 = vector.broadcast %cst_7 : f32 to vector<64x1xf32>
    %8 = arith.cmpf ole, %4, %7 : vector<64x1xf32>
    %c0_8 = arith.constant 0 : index
    %c0_9 = arith.constant 0 : index
    %9 = vector.load %arg6[%c0_8, %c0_9] : memref<1x4xf32, #tpu.memory_space<vmem>>, vector<1x4xf32>
    %c0_10 = arith.constant 0 : index
    %c0_11 = arith.constant 0 : index
    %10 = vector.load %arg7[%c0_10, %c0_11] : memref<1x4xf32, #tpu.memory_space<vmem>>, vector<1x4xf32>
    %c0_12 = arith.constant 0 : index
    %c0_13 = arith.constant 0 : index
    %11 = vector.load %arg8[%c0_12, %c0_13] : memref<1x8xf32, #tpu.memory_space<vmem>>, vector<1x8xf32>
    %c0_14 = arith.constant 0 : index
    %c0_15 = arith.constant 0 : index
    %12 = vector.load %arg9[%c0_14, %c0_15] : memref<1x8xf32, #tpu.memory_space<vmem>>, vector<1x8xf32>
    %c0_16 = arith.constant 0 : index
    %c0_17 = arith.constant 0 : index
    %13 = vector.load %arg1[%c0_16, %c0_17] : memref<64x4xf32, #tpu.memory_space<vmem>>, vector<64x4xf32>
    %c0_18 = arith.constant 0 : index
    %c0_19 = arith.constant 0 : index
    %14 = vector.load %arg2[%c0_18, %c0_19] : memref<64x4xf32, #tpu.memory_space<vmem>>, vector<64x4xf32>
    %c0_20 = arith.constant 0 : index
    %c0_21 = arith.constant 0 : index
    %15 = vector.load %arg3[%c0_20, %c0_21] : memref<64x4xf32, #tpu.memory_space<vmem>>, vector<64x4xf32>
    %c0_22 = arith.constant 0 : index
    %c0_23 = arith.constant 0 : index
    %16 = vector.load %arg4[%c0_22, %c0_23] : memref<64x4xf32, #tpu.memory_space<vmem>>, vector<64x4xf32>
    %17 = vector.broadcast %9 : vector<1x4xf32> to vector<64x4xf32>
    %18 = arith.mulf %13, %17 : vector<64x4xf32>
    %19 = vector.broadcast %10 : vector<1x4xf32> to vector<64x4xf32>
    %20 = arith.addf %18, %19 : vector<64x4xf32>
    %cst_24 = arith.constant 0.000000e+00 : f32
    %21 = vector.broadcast %cst_24 : f32 to vector<64x4xf32>
    %22 = arith.cmpf oge, %20, %21 : vector<64x4xf32>
    %cst_25 = arith.constant 1.000000e-01 : f32
    %23 = vector.broadcast %cst_25 : f32 to vector<64x4xf32>
    %24 = arith.mulf %23, %20 : vector<64x4xf32>
    %25 = arith.select %22, %20, %24 : vector<64x4xi1>, vector<64x4xf32>
    %26 = vector.broadcast %9 : vector<1x4xf32> to vector<64x4xf32>
    %27 = arith.mulf %14, %26 : vector<64x4xf32>
    %28 = vector.broadcast %10 : vector<1x4xf32> to vector<64x4xf32>
    %29 = arith.addf %27, %28 : vector<64x4xf32>
    %cst_26 = arith.constant 0.000000e+00 : f32
    %30 = vector.broadcast %cst_26 : f32 to vector<64x4xf32>
    %31 = arith.cmpf oge, %29, %30 : vector<64x4xf32>
    %cst_27 = arith.constant 1.000000e-01 : f32
    %32 = vector.broadcast %cst_27 : f32 to vector<64x4xf32>
    %33 = arith.mulf %32, %29 : vector<64x4xf32>
    %34 = arith.select %31, %29, %33 : vector<64x4xi1>, vector<64x4xf32>
    %35 = vector.broadcast %9 : vector<1x4xf32> to vector<64x4xf32>
    %36 = arith.mulf %15, %35 : vector<64x4xf32>
    %37 = vector.broadcast %10 : vector<1x4xf32> to vector<64x4xf32>
    %38 = arith.addf %36, %37 : vector<64x4xf32>
    %cst_28 = arith.constant 0.000000e+00 : f32
    %39 = vector.broadcast %cst_28 : f32 to vector<64x4xf32>
    %40 = arith.cmpf oge, %38, %39 : vector<64x4xf32>
    %cst_29 = arith.constant 1.000000e-01 : f32
    %41 = vector.broadcast %cst_29 : f32 to vector<64x4xf32>
    %42 = arith.mulf %41, %38 : vector<64x4xf32>
    %43 = arith.select %40, %38, %42 : vector<64x4xi1>, vector<64x4xf32>
    %44 = vector.broadcast %9 : vector<1x4xf32> to vector<64x4xf32>
    %45 = arith.mulf %16, %44 : vector<64x4xf32>
    %46 = vector.broadcast %10 : vector<1x4xf32> to vector<64x4xf32>
    %47 = arith.addf %45, %46 : vector<64x4xf32>
    %cst_30 = arith.constant 0.000000e+00 : f32
    %48 = vector.broadcast %cst_30 : f32 to vector<64x4xf32>
    %49 = arith.cmpf oge, %47, %48 : vector<64x4xf32>
    %cst_31 = arith.constant 1.000000e-01 : f32
    %50 = vector.broadcast %cst_31 : f32 to vector<64x4xf32>
    %51 = arith.mulf %50, %47 : vector<64x4xf32>
    %52 = arith.select %49, %47, %51 : vector<64x4xi1>, vector<64x4xf32>
    %cst_32 = arith.constant 0.000000e+00 : f32
    %53 = vector.broadcast %cst_32 : f32 to vector<64x8xf32>
    %c16 = arith.constant 16 : index
    %c0_33 = arith.constant 0 : index
    %54 = vector.load %arg14[%c16, %c0_33] : memref<96x4xf32, #tpu.memory_space<vmem>>, vector<64x4xf32>
    tpu.vector_store %arg14[%c16, %c0_33], %25 {strides = array<i32>} : memref<96x4xf32, #tpu.memory_space<vmem>>, vector<64x4xf32>,
    %c16_34 = arith.constant 16 : index
    %c0_35 = arith.constant 0 : index
    %55 = vector.load %arg14[%c16_34, %c0_35] : memref<96x4xf32, #tpu.memory_space<vmem>>, vector<64x4xf32>
    %c4 = arith.constant 4 : index
    %c0_36 = arith.constant 0 : index
    %c0_37 = arith.constant 0 : index
    %56 = vector.load %arg10[%c4, %c0_36, %c0_37] : memref<9x4x8xf32, #tpu.memory_space<vmem>>, vector<1x4x8xf32>
    %57 = vector.shape_cast %56 : vector<1x4x8xf32> to vector<4x8xf32>
    %cst_38 = arith.constant dense<0.000000e+00> : vector<64x8xf32>
    %58 = tpu.matmul %55, %57, %cst_38 {dimension_numbers = #tpu.dot_dimension_numbers<[1], [0], [0], [1], [0, 0, 1, 1], [], []>} : vector<64x4xf32>, vector<4x8xf32>, vector<64x8xf32> -> vector<64x8xf32>
    %59 = arith.addf %53, %58 : vector<64x8xf32>
    %c16_39 = arith.constant 16 : index
    %c0_40 = arith.constant 0 : index
    %60 = vector.load %arg14[%c16_39, %c0_40] : memref<96x4xf32, #tpu.memory_space<vmem>>, vector<64x4xf32>
    tpu.vector_store %arg14[%c16_39, %c0_40], %34 {strides = array<i32>} : memref<96x4xf32, #tpu.memory_space<vmem>>, vector<64x4xf32>,
    %c15 = arith.constant 15 : index
    %c0_41 = arith.constant 0 : index
    %61 = vector.load %arg14[%c15, %c0_41] : memref<96x4xf32, #tpu.memory_space<vmem>>, vector<64x4xf32>
    %cst_42 = arith.constant 0.000000e+00 : f32
    %62 = vector.shape_cast %6 : vector<64x1xi1> to vector<64x1xi1>
    %63 = vector.broadcast %62 : vector<64x1xi1> to vector<64x4xi1>
    %64 = vector.broadcast %cst_42 : f32 to vector<64x4xf32>
    %65 = arith.select %63, %61, %64 : vector<64x4xi1>, vector<64x4xf32>
    %c3 = arith.constant 3 : index
    %c0_43 = arith.constant 0 : index
    %c0_44 = arith.constant 0 : index
    %66 = vector.load %arg10[%c3, %c0_43, %c0_44] : memref<9x4x8xf32, #tpu.memory_space<vmem>>, vector<1x4x8xf32>
    %67 = vector.shape_cast %66 : vector<1x4x8xf32> to vector<4x8xf32>
    %cst_45 = arith.constant dense<0.000000e+00> : vector<64x8xf32>
    %68 = tpu.matmul %65, %67, %cst_45 {dimension_numbers = #tpu.dot_dimension_numbers<[1], [0], [0], [1], [0, 0, 1, 1], [], []>} : vector<64x4xf32>, vector<4x8xf32>, vector<64x8xf32> -> vector<64x8xf32>
    %69 = arith.addf %59, %68 : vector<64x8xf32>
    %c16_46 = arith.constant 16 : index
    %c0_47 = arith.constant 0 : index
    %70 = vector.load %arg14[%c16_46, %c0_47] : memref<96x4xf32, #tpu.memory_space<vmem>>, vector<64x4xf32>
    %c5 = arith.constant 5 : index
    %c0_48 = arith.constant 0 : index
    %c0_49 = arith.constant 0 : index
    %71 = vector.load %arg10[%c5, %c0_48, %c0_49] : memref<9x4x8xf32, #tpu.memory_space<vmem>>, vector<1x4x8xf32>
    %72 = vector.shape_cast %71 : vector<1x4x8xf32> to vector<4x8xf32>
    %cst_50 = arith.constant dense<0.000000e+00> : vector<64x8xf32>
    %73 = tpu.matmul %70, %72, %cst_50 {dimension_numbers = #tpu.dot_dimension_numbers<[1], [0], [0], [1], [0, 0, 1, 1], [], []>} : vector<64x4xf32>, vector<4x8xf32>, vector<64x8xf32> -> vector<64x8xf32>
    %74 = arith.addf %69, %73 : vector<64x8xf32>
    %c16_51 = arith.constant 16 : index
    %c0_52 = arith.constant 0 : index
    %75 = vector.load %arg14[%c16_51, %c0_52] : memref<96x4xf32, #tpu.memory_space<vmem>>, vector<64x4xf32>
    tpu.vector_store %arg14[%c16_51, %c0_52], %43 {strides = array<i32>} : memref<96x4xf32, #tpu.memory_space<vmem>>, vector<64x4xf32>,
    %c8 = arith.constant 8 : index
    %c0_53 = arith.constant 0 : index
    %76 = vector.load %arg14[%c8, %c0_53] : memref<96x4xf32, #tpu.memory_space<vmem>>, vector<64x4xf32>
    %c1 = arith.constant 1 : index
    %c0_54 = arith.constant 0 : index
    %c0_55 = arith.constant 0 : index
    %77 = vector.load %arg10[%c1, %c0_54, %c0_55] : memref<9x4x8xf32, #tpu.memory_space<vmem>>, vector<1x4x8xf32>
    %78 = vector.shape_cast %77 : vector<1x4x8xf32> to vector<4x8xf32>
    %cst_56 = arith.constant dense<0.000000e+00> : vector<64x8xf32>
    %79 = tpu.matmul %76, %78, %cst_56 {dimension_numbers = #tpu.dot_dimension_numbers<[1], [0], [0], [1], [0, 0, 1, 1], [], []>} : vector<64x4xf32>, vector<4x8xf32>, vector<64x8xf32> -> vector<64x8xf32>
    %80 = arith.addf %74, %79 : vector<64x8xf32>
    %c16_57 = arith.constant 16 : index
    %c0_58 = arith.constant 0 : index
    %81 = vector.load %arg14[%c16_57, %c0_58] : memref<96x4xf32, #tpu.memory_space<vmem>>, vector<64x4xf32>
    %c7 = arith.constant 7 : index
    %c0_59 = arith.constant 0 : index
    %c0_60 = arith.constant 0 : index
    %82 = vector.load %arg10[%c7, %c0_59, %c0_60] : memref<9x4x8xf32, #tpu.memory_space<vmem>>, vector<1x4x8xf32>
    %83 = vector.shape_cast %82 : vector<1x4x8xf32> to vector<4x8xf32>
    %cst_61 = arith.constant dense<0.000000e+00> : vector<64x8xf32>
    %84 = tpu.matmul %81, %83, %cst_61 {dimension_numbers = #tpu.dot_dimension_numbers<[1], [0], [0], [1], [0, 0, 1, 1], [], []>} : vector<64x4xf32>, vector<4x8xf32>, vector<64x8xf32> -> vector<64x8xf32>
    %85 = arith.addf %80, %84 : vector<64x8xf32>
    %c16_62 = arith.constant 16 : index
    %c0_63 = arith.constant 0 : index
    %86 = vector.load %arg14[%c16_62, %c0_63] : memref<96x4xf32, #tpu.memory_space<vmem>>, vector<64x4xf32>
    tpu.vector_store %arg14[%c16_62, %c0_63], %52 {strides = array<i32>} : memref<96x4xf32, #tpu.memory_space<vmem>>, vector<64x4xf32>,
    %c7_64 = arith.constant 7 : index
    %c0_65 = arith.constant 0 : index
    %87 = vector.load %arg14[%c7_64, %c0_65] : memref<96x4xf32, #tpu.memory_space<vmem>>, vector<64x4xf32>
    %cst_66 = arith.constant 0.000000e+00 : f32
    %88 = vector.shape_cast %6 : vector<64x1xi1> to vector<64x1xi1>
    %89 = vector.broadcast %88 : vector<64x1xi1> to vector<64x4xi1>
    %90 = vector.broadcast %cst_66 : f32 to vector<64x4xf32>
    %91 = arith.select %89, %87, %90 : vector<64x4xi1>, vector<64x4xf32>
    %c0_67 = arith.constant 0 : index
    %c0_68 = arith.constant 0 : index
    %c0_69 = arith.constant 0 : index
    %92 = vector.load %arg10[%c0_67, %c0_68, %c0_69] : memref<9x4x8xf32, #tpu.memory_space<vmem>>, vector<1x4x8xf32>
    %93 = vector.shape_cast %92 : vector<1x4x8xf32> to vector<4x8xf32>
    %cst_70 = arith.constant dense<0.000000e+00> : vector<64x8xf32>
    %94 = tpu.matmul %91, %93, %cst_70 {dimension_numbers = #tpu.dot_dimension_numbers<[1], [0], [0], [1], [0, 0, 1, 1], [], []>} : vector<64x4xf32>, vector<4x8xf32>, vector<64x8xf32> -> vector<64x8xf32>
    %95 = arith.addf %85, %94 : vector<64x8xf32>
    %c8_71 = arith.constant 8 : index
    %c0_72 = arith.constant 0 : index
    %96 = vector.load %arg14[%c8_71, %c0_72] : memref<96x4xf32, #tpu.memory_space<vmem>>, vector<64x4xf32>
    %c2 = arith.constant 2 : index
    %c0_73 = arith.constant 0 : index
    %c0_74 = arith.constant 0 : index
    %97 = vector.load %arg10[%c2, %c0_73, %c0_74] : memref<9x4x8xf32, #tpu.memory_space<vmem>>, vector<1x4x8xf32>
    %98 = vector.shape_cast %97 : vector<1x4x8xf32> to vector<4x8xf32>
    %cst_75 = arith.constant dense<0.000000e+00> : vector<64x8xf32>
    %99 = tpu.matmul %96, %98, %cst_75 {dimension_numbers = #tpu.dot_dimension_numbers<[1], [0], [0], [1], [0, 0, 1, 1], [], []>} : vector<64x4xf32>, vector<4x8xf32>, vector<64x8xf32> -> vector<64x8xf32>
    %100 = arith.addf %95, %99 : vector<64x8xf32>
    %c15_76 = arith.constant 15 : index
    %c0_77 = arith.constant 0 : index
    %101 = vector.load %arg14[%c15_76, %c0_77] : memref<96x4xf32, #tpu.memory_space<vmem>>, vector<64x4xf32>
    %cst_78 = arith.constant 0.000000e+00 : f32
    %102 = vector.shape_cast %6 : vector<64x1xi1> to vector<64x1xi1>
    %103 = vector.broadcast %102 : vector<64x1xi1> to vector<64x4xi1>
    %104 = vector.broadcast %cst_78 : f32 to vector<64x4xf32>
    %105 = arith.select %103, %101, %104 : vector<64x4xi1>, vector<64x4xf32>
    %c6 = arith.constant 6 : index
    %c0_79 = arith.constant 0 : index
    %c0_80 = arith.constant 0 : index
    %106 = vector.load %arg10[%c6, %c0_79, %c0_80] : memref<9x4x8xf32, #tpu.memory_space<vmem>>, vector<1x4x8xf32>
    %107 = vector.shape_cast %106 : vector<1x4x8xf32> to vector<4x8xf32>
    %cst_81 = arith.constant dense<0.000000e+00> : vector<64x8xf32>
    %108 = tpu.matmul %105, %107, %cst_81 {dimension_numbers = #tpu.dot_dimension_numbers<[1], [0], [0], [1], [0, 0, 1, 1], [], []>} : vector<64x4xf32>, vector<4x8xf32>, vector<64x8xf32> -> vector<64x8xf32>
    %109 = arith.addf %100, %108 : vector<64x8xf32>
    %c16_82 = arith.constant 16 : index
    %c0_83 = arith.constant 0 : index
    %110 = vector.load %arg14[%c16_82, %c0_83] : memref<96x4xf32, #tpu.memory_space<vmem>>, vector<64x4xf32>
    %c8_84 = arith.constant 8 : index
    %c0_85 = arith.constant 0 : index
    %c0_86 = arith.constant 0 : index
    %111 = vector.load %arg10[%c8_84, %c0_85, %c0_86] : memref<9x4x8xf32, #tpu.memory_space<vmem>>, vector<1x4x8xf32>
    %112 = vector.shape_cast %111 : vector<1x4x8xf32> to vector<4x8xf32>
    %cst_87 = arith.constant dense<0.000000e+00> : vector<64x8xf32>
    %113 = tpu.matmul %110, %112, %cst_87 {dimension_numbers = #tpu.dot_dimension_numbers<[1], [0], [0], [1], [0, 0, 1, 1], [], []>} : vector<64x4xf32>, vector<4x8xf32>, vector<64x8xf32> -> vector<64x8xf32>
    %114 = arith.addf %109, %113 : vector<64x8xf32>
    %115 = vector.broadcast %11 : vector<1x8xf32> to vector<64x8xf32>
    %116 = arith.mulf %114, %115 : vector<64x8xf32>
    %117 = vector.broadcast %12 : vector<1x8xf32> to vector<64x8xf32>
    %118 = arith.addf %116, %117 : vector<64x8xf32>
    %cst_88 = arith.constant 0.000000e+00 : f32
    %119 = vector.broadcast %cst_88 : f32 to vector<64x8xf32>
    %120 = arith.cmpf oge, %118, %119 : vector<64x8xf32>
    %cst_89 = arith.constant 1.000000e-01 : f32
    %121 = vector.broadcast %cst_89 : f32 to vector<64x8xf32>
    %122 = arith.mulf %121, %118 : vector<64x8xf32>
    %123 = arith.select %120, %118, %122 : vector<64x8xi1>, vector<64x8xf32>
    %c0_90 = arith.constant 0 : index
    %c0_91 = arith.constant 0 : index
    %124 = vector.load %arg12[%c0_90, %c0_91] : memref<4x8xf32, #tpu.memory_space<vmem>>, vector<4x8xf32>
    %cst_92 = arith.constant dense<0.000000e+00> : vector<64x8xf32>
    %125 = tpu.matmul %25, %124, %cst_92 {dimension_numbers = #tpu.dot_dimension_numbers<[1], [0], [0], [1], [0, 0, 1, 1], [], []>} : vector<64x4xf32>, vector<4x8xf32>, vector<64x8xf32> -> vector<64x8xf32>
    %cst_93 = arith.constant 0.000000e+00 : f32
    %126 = vector.broadcast %cst_93 : f32 to vector<64x8xf32>
    %c16_94 = arith.constant 16 : index
    %c0_95 = arith.constant 0 : index
    %127 = vector.load %arg15[%c16_94, %c0_95] : memref<96x8xf32, #tpu.memory_space<vmem>>, vector<64x8xf32>
    tpu.vector_store %arg15[%c16_94, %c0_95], %123 {strides = array<i32>} : memref<96x8xf32, #tpu.memory_space<vmem>>, vector<64x8xf32>,
    %c7_96 = arith.constant 7 : index
    %c0_97 = arith.constant 0 : index
    %128 = vector.load %arg15[%c7_96, %c0_97] : memref<96x8xf32, #tpu.memory_space<vmem>>, vector<64x8xf32>
    %cst_98 = arith.constant 0.000000e+00 : f32
    %129 = vector.shape_cast %6 : vector<64x1xi1> to vector<64x1xi1>
    %130 = vector.broadcast %129 : vector<64x1xi1> to vector<64x8xi1>
    %131 = vector.broadcast %cst_98 : f32 to vector<64x8xf32>
    %132 = arith.select %130, %128, %131 : vector<64x8xi1>, vector<64x8xf32>
    %c0_99 = arith.constant 0 : index
    %c0_100 = arith.constant 0 : index
    %c0_101 = arith.constant 0 : index
    %133 = vector.load %arg11[%c0_99, %c0_100, %c0_101] : memref<9x8x8xf32, #tpu.memory_space<vmem>>, vector<1x8x8xf32>
    %134 = vector.shape_cast %133 : vector<1x8x8xf32> to vector<8x8xf32>
    %cst_102 = arith.constant dense<0.000000e+00> : vector<64x8xf32>
    %135 = tpu.matmul %132, %134, %cst_102 {dimension_numbers = #tpu.dot_dimension_numbers<[1], [0], [0], [1], [0, 0, 1, 1], [], []>} : vector<64x8xf32>, vector<8x8xf32>, vector<64x8xf32> -> vector<64x8xf32>
    %136 = arith.addf %126, %135 : vector<64x8xf32>
    %c8_103 = arith.constant 8 : index
    %c0_104 = arith.constant 0 : index
    %137 = vector.load %arg15[%c8_103, %c0_104] : memref<96x8xf32, #tpu.memory_space<vmem>>, vector<64x8xf32>
    %c1_105 = arith.constant 1 : index
    %c0_106 = arith.constant 0 : index
    %c0_107 = arith.constant 0 : index
    %138 = vector.load %arg11[%c1_105, %c0_106, %c0_107] : memref<9x8x8xf32, #tpu.memory_space<vmem>>, vector<1x8x8xf32>
    %139 = vector.shape_cast %138 : vector<1x8x8xf32> to vector<8x8xf32>
    %cst_108 = arith.constant dense<0.000000e+00> : vector<64x8xf32>
    %140 = tpu.matmul %137, %139, %cst_108 {dimension_numbers = #tpu.dot_dimension_numbers<[1], [0], [0], [1], [0, 0, 1, 1], [], []>} : vector<64x8xf32>, vector<8x8xf32>, vector<64x8xf32> -> vector<64x8xf32>
    %141 = arith.addf %136, %140 : vector<64x8xf32>
    %c9 = arith.constant 9 : index
    %c0_109 = arith.constant 0 : index
    %142 = vector.load %arg15[%c9, %c0_109] : memref<96x8xf32, #tpu.memory_space<vmem>>, vector<64x8xf32>
    %cst_110 = arith.constant 0.000000e+00 : f32
    %143 = vector.shape_cast %8 : vector<64x1xi1> to vector<64x1xi1>
    %144 = vector.broadcast %143 : vector<64x1xi1> to vector<64x8xi1>
    %145 = vector.broadcast %cst_110 : f32 to vector<64x8xf32>
    %146 = arith.select %144, %142, %145 : vector<64x8xi1>, vector<64x8xf32>
    %c2_111 = arith.constant 2 : index
    %c0_112 = arith.constant 0 : index
    %c0_113 = arith.constant 0 : index
    %147 = vector.load %arg11[%c2_111, %c0_112, %c0_113] : memref<9x8x8xf32, #tpu.memory_space<vmem>>, vector<1x8x8xf32>
    %148 = vector.shape_cast %147 : vector<1x8x8xf32> to vector<8x8xf32>
    %cst_114 = arith.constant dense<0.000000e+00> : vector<64x8xf32>
    %149 = tpu.matmul %146, %148, %cst_114 {dimension_numbers = #tpu.dot_dimension_numbers<[1], [0], [0], [1], [0, 0, 1, 1], [], []>} : vector<64x8xf32>, vector<8x8xf32>, vector<64x8xf32> -> vector<64x8xf32>
    %150 = arith.addf %141, %149 : vector<64x8xf32>
    %c15_115 = arith.constant 15 : index
    %c0_116 = arith.constant 0 : index
    %151 = vector.load %arg15[%c15_115, %c0_116] : memref<96x8xf32, #tpu.memory_space<vmem>>, vector<64x8xf32>
    %cst_117 = arith.constant 0.000000e+00 : f32
    %152 = vector.shape_cast %6 : vector<64x1xi1> to vector<64x1xi1>
    %153 = vector.broadcast %152 : vector<64x1xi1> to vector<64x8xi1>
    %154 = vector.broadcast %cst_117 : f32 to vector<64x8xf32>
    %155 = arith.select %153, %151, %154 : vector<64x8xi1>, vector<64x8xf32>
    %c3_118 = arith.constant 3 : index
    %c0_119 = arith.constant 0 : index
    %c0_120 = arith.constant 0 : index
    %156 = vector.load %arg11[%c3_118, %c0_119, %c0_120] : memref<9x8x8xf32, #tpu.memory_space<vmem>>, vector<1x8x8xf32>
    %157 = vector.shape_cast %156 : vector<1x8x8xf32> to vector<8x8xf32>
    %cst_121 = arith.constant dense<0.000000e+00> : vector<64x8xf32>
    %158 = tpu.matmul %155, %157, %cst_121 {dimension_numbers = #tpu.dot_dimension_numbers<[1], [0], [0], [1], [0, 0, 1, 1], [], []>} : vector<64x8xf32>, vector<8x8xf32>, vector<64x8xf32> -> vector<64x8xf32>
    %159 = arith.addf %150, %158 : vector<64x8xf32>
    %c16_122 = arith.constant 16 : index
    %c0_123 = arith.constant 0 : index
    %160 = vector.load %arg15[%c16_122, %c0_123] : memref<96x8xf32, #tpu.memory_space<vmem>>, vector<64x8xf32>
    %c4_124 = arith.constant 4 : index
    %c0_125 = arith.constant 0 : index
    %c0_126 = arith.constant 0 : index
    %161 = vector.load %arg11[%c4_124, %c0_125, %c0_126] : memref<9x8x8xf32, #tpu.memory_space<vmem>>, vector<1x8x8xf32>
    %162 = vector.shape_cast %161 : vector<1x8x8xf32> to vector<8x8xf32>
    %cst_127 = arith.constant dense<0.000000e+00> : vector<64x8xf32>
    %163 = tpu.matmul %160, %162, %cst_127 {dimension_numbers = #tpu.dot_dimension_numbers<[1], [0], [0], [1], [0, 0, 1, 1], [], []>} : vector<64x8xf32>, vector<8x8xf32>, vector<64x8xf32> -> vector<64x8xf32>
    %164 = arith.addf %159, %163 : vector<64x8xf32>
    %c17 = arith.constant 17 : index
    %c0_128 = arith.constant 0 : index
    %165 = vector.load %arg15[%c17, %c0_128] : memref<96x8xf32, #tpu.memory_space<vmem>>, vector<64x8xf32>
    %cst_129 = arith.constant 0.000000e+00 : f32
    %166 = vector.shape_cast %8 : vector<64x1xi1> to vector<64x1xi1>
    %167 = vector.broadcast %166 : vector<64x1xi1> to vector<64x8xi1>
    %168 = vector.broadcast %cst_129 : f32 to vector<64x8xf32>
    %169 = arith.select %167, %165, %168 : vector<64x8xi1>, vector<64x8xf32>
    %c5_130 = arith.constant 5 : index
    %c0_131 = arith.constant 0 : index
    %c0_132 = arith.constant 0 : index
    %170 = vector.load %arg11[%c5_130, %c0_131, %c0_132] : memref<9x8x8xf32, #tpu.memory_space<vmem>>, vector<1x8x8xf32>
    %171 = vector.shape_cast %170 : vector<1x8x8xf32> to vector<8x8xf32>
    %cst_133 = arith.constant dense<0.000000e+00> : vector<64x8xf32>
    %172 = tpu.matmul %169, %171, %cst_133 {dimension_numbers = #tpu.dot_dimension_numbers<[1], [0], [0], [1], [0, 0, 1, 1], [], []>} : vector<64x8xf32>, vector<8x8xf32>, vector<64x8xf32> -> vector<64x8xf32>
    %173 = arith.addf %164, %172 : vector<64x8xf32>
    %c23 = arith.constant 23 : index
    %c0_134 = arith.constant 0 : index
    %174 = vector.load %arg15[%c23, %c0_134] : memref<96x8xf32, #tpu.memory_space<vmem>>, vector<64x8xf32>
    %cst_135 = arith.constant 0.000000e+00 : f32
    %175 = vector.shape_cast %6 : vector<64x1xi1> to vector<64x1xi1>
    %176 = vector.broadcast %175 : vector<64x1xi1> to vector<64x8xi1>
    %177 = vector.broadcast %cst_135 : f32 to vector<64x8xf32>
    %178 = arith.select %176, %174, %177 : vector<64x8xi1>, vector<64x8xf32>
    %c6_136 = arith.constant 6 : index
    %c0_137 = arith.constant 0 : index
    %c0_138 = arith.constant 0 : index
    %179 = vector.load %arg11[%c6_136, %c0_137, %c0_138] : memref<9x8x8xf32, #tpu.memory_space<vmem>>, vector<1x8x8xf32>
    %180 = vector.shape_cast %179 : vector<1x8x8xf32> to vector<8x8xf32>
    %cst_139 = arith.constant dense<0.000000e+00> : vector<64x8xf32>
    %181 = tpu.matmul %178, %180, %cst_139 {dimension_numbers = #tpu.dot_dimension_numbers<[1], [0], [0], [1], [0, 0, 1, 1], [], []>} : vector<64x8xf32>, vector<8x8xf32>, vector<64x8xf32> -> vector<64x8xf32>
    %182 = arith.addf %173, %181 : vector<64x8xf32>
    %c24 = arith.constant 24 : index
    %c0_140 = arith.constant 0 : index
    %183 = vector.load %arg15[%c24, %c0_140] : memref<96x8xf32, #tpu.memory_space<vmem>>, vector<64x8xf32>
    %c7_141 = arith.constant 7 : index
    %c0_142 = arith.constant 0 : index
    %c0_143 = arith.constant 0 : index
    %184 = vector.load %arg11[%c7_141, %c0_142, %c0_143] : memref<9x8x8xf32, #tpu.memory_space<vmem>>, vector<1x8x8xf32>
    %185 = vector.shape_cast %184 : vector<1x8x8xf32> to vector<8x8xf32>
    %cst_144 = arith.constant dense<0.000000e+00> : vector<64x8xf32>
    %186 = tpu.matmul %183, %185, %cst_144 {dimension_numbers = #tpu.dot_dimension_numbers<[1], [0], [0], [1], [0, 0, 1, 1], [], []>} : vector<64x8xf32>, vector<8x8xf32>, vector<64x8xf32> -> vector<64x8xf32>
    %187 = arith.addf %182, %186 : vector<64x8xf32>
    %c25 = arith.constant 25 : index
    %c0_145 = arith.constant 0 : index
    %188 = vector.load %arg15[%c25, %c0_145] : memref<96x8xf32, #tpu.memory_space<vmem>>, vector<64x8xf32>
    %cst_146 = arith.constant 0.000000e+00 : f32
    %189 = vector.shape_cast %8 : vector<64x1xi1> to vector<64x1xi1>
    %190 = vector.broadcast %189 : vector<64x1xi1> to vector<64x8xi1>
    %191 = vector.broadcast %cst_146 : f32 to vector<64x8xf32>
    %192 = arith.select %190, %188, %191 : vector<64x8xi1>, vector<64x8xf32>
    %c8_147 = arith.constant 8 : index
    %c0_148 = arith.constant 0 : index
    %c0_149 = arith.constant 0 : index
    %193 = vector.load %arg11[%c8_147, %c0_148, %c0_149] : memref<9x8x8xf32, #tpu.memory_space<vmem>>, vector<1x8x8xf32>
    %194 = vector.shape_cast %193 : vector<1x8x8xf32> to vector<8x8xf32>
    %cst_150 = arith.constant dense<0.000000e+00> : vector<64x8xf32>
    %195 = tpu.matmul %192, %194, %cst_150 {dimension_numbers = #tpu.dot_dimension_numbers<[1], [0], [0], [1], [0, 0, 1, 1], [], []>} : vector<64x8xf32>, vector<8x8xf32>, vector<64x8xf32> -> vector<64x8xf32>
    %196 = arith.addf %187, %195 : vector<64x8xf32>
    %197 = arith.addf %196, %125 : vector<64x8xf32>
    %c0_151 = arith.constant 0 : index
    %c0_152 = arith.constant 0 : index
    %198 = vector.load %arg13[%c0_151, %c0_152] : memref<64x8xf32, #tpu.memory_space<vmem>>, vector<64x8xf32>
    tpu.vector_store %arg13[%c0_151, %c0_152], %197 {strides = array<i32>} : memref<64x8xf32, #tpu.memory_space<vmem>>, vector<64x8xf32>,
    return
  }
  func.func @transform_0(%arg0: i32) -> (i32, i32) {
    %c0_i32 = arith.constant 0 : i32
    %c0_i32_0 = arith.constant 0 : i32
    return %arg0, %c0_i32 : i32, i32
  }
  func.func @transform_1(%arg0: i32) -> (i32, i32) {
    %c0_i32 = arith.constant 0 : i32
    %c0_i32_0 = arith.constant 0 : i32
    return %arg0, %c0_i32 : i32, i32
  }
  func.func @transform_2(%arg0: i32) -> (i32, i32) {
    %c0_i32 = arith.constant 0 : i32
    %c0_i32_0 = arith.constant 0 : i32
    return %arg0, %c0_i32 : i32, i32
  }
  func.func @transform_3(%arg0: i32) -> (i32, i32) {
    %c0_i32 = arith.constant 0 : i32
    %c0_i32_0 = arith.constant 0 : i32
    return %arg0, %c0_i32 : i32, i32
  }
  func.func @transform_4(%arg0: i32) -> (i32, i32) {
    %c0_i32 = arith.constant 0 : i32
    %c0_i32_0 = arith.constant 0 : i32
    %c0_i32_1 = arith.constant 0 : i32
    return %c0_i32, %c0_i32_0 : i32, i32
  }
  func.func @transform_5(%arg0: i32) -> (i32, i32) {
    %c0_i32 = arith.constant 0 : i32
    %c0_i32_0 = arith.constant 0 : i32
    %c0_i32_1 = arith.constant 0 : i32
    return %c0_i32, %c0_i32_0 : i32, i32
  }
  func.func @transform_6(%arg0: i32) -> (i32, i32) {
    %c0_i32 = arith.constant 0 : i32
    %c0_i32_0 = arith.constant 0 : i32
    %c0_i32_1 = arith.constant 0 : i32
    return %c0_i32, %c0_i32_0 : i32, i32
  }
  func.func @transform_7(%arg0: i32) -> (i32, i32) {
    %c0_i32 = arith.constant 0 : i32
    %c0_i32_0 = arith.constant 0 : i32
    %c0_i32_1 = arith.constant 0 : i32
    return %c0_i32, %c0_i32_0 : i32, i32
  }
  func.func @transform_8(%arg0: i32) -> (i32, i32) {
    %c0_i32 = arith.constant 0 : i32
    %c0_i32_0 = arith.constant 0 : i32
    %c0_i32_1 = arith.constant 0 : i32
    return %c0_i32, %c0_i32_0 : i32, i32
  }
  func.func @transform_9(%arg0: i32) -> (i32, i32, i32) {
    %c0_i32 = arith.constant 0 : i32
    %c0_i32_0 = arith.constant 0 : i32
    %c0_i32_1 = arith.constant 0 : i32
    %c0_i32_2 = arith.constant 0 : i32
    return %c0_i32, %c0_i32_0, %c0_i32_1 : i32, i32, i32
  }
  func.func @transform_10(%arg0: i32) -> (i32, i32, i32) {
    %c0_i32 = arith.constant 0 : i32
    %c0_i32_0 = arith.constant 0 : i32
    %c0_i32_1 = arith.constant 0 : i32
    %c0_i32_2 = arith.constant 0 : i32
    return %c0_i32, %c0_i32_0, %c0_i32_1 : i32, i32, i32
  }
  func.func @transform_11(%arg0: i32) -> (i32, i32) {
    %c0_i32 = arith.constant 0 : i32
    %c0_i32_0 = arith.constant 0 : i32
    %c0_i32_1 = arith.constant 0 : i32
    return %c0_i32, %c0_i32_0 : i32, i32
  }
  func.func @transform_12(%arg0: i32) -> (i32, i32) {
    %c0_i32 = arith.constant 0 : i32
    %c0_i32_0 = arith.constant 0 : i32
    return %arg0, %c0_i32 : i32, i32
  }
}

module attributes {stable_mosaic.version = 11 : i64} {
  func.func @kernel(%arg0: i32, %arg1: memref<64x8xf32, #tpu.memory_space<vmem>>, %arg2: memref<64x1xf32, #tpu.memory_space<vmem>>, %arg3: memref<1x8xf32, #tpu.memory_space<vmem>>, %arg4: memref<1x8xf32, #tpu.memory_space<vmem>>, %arg5: memref<1x8xf32, #tpu.memory_space<vmem>>, %arg6: memref<1x8xf32, #tpu.memory_space<vmem>>, %arg7: memref<9x8x8xf32, #tpu.memory_space<vmem>>, %arg8: memref<9x8x8xf32, #tpu.memory_space<vmem>>, %arg9: memref<64x8xf32, #tpu.memory_space<vmem>>, %arg10: memref<96x8xf32, #tpu.memory_space<vmem>>, %arg11: memref<96x8xf32, #tpu.memory_space<vmem>>) attributes {dimension_semantics = [#tpu.dimension_semantics<parallel>], iteration_bounds = array<i64: 2>, scalar_prefetch = 0 : i64, scratch_operands = 2 : i64, tpu.core_type = #tpu.core_type<tc>, window_params = [{transform_indices = @transform_0, window_bounds = array<i64: 64, 8>}, {pipeline_mode = #tpu.pipeline_mode<synchronous>, transform_indices = @transform_1, window_bounds = array<i64: 64, 1>}, {pipeline_mode = #tpu.pipeline_mode<synchronous>, transform_indices = @transform_2, window_bounds = array<i64: 1, 8>}, {pipeline_mode = #tpu.pipeline_mode<synchronous>, transform_indices = @transform_3, window_bounds = array<i64: 1, 8>}, {pipeline_mode = #tpu.pipeline_mode<synchronous>, transform_indices = @transform_4, window_bounds = array<i64: 1, 8>}, {pipeline_mode = #tpu.pipeline_mode<synchronous>, transform_indices = @transform_5, window_bounds = array<i64: 1, 8>}, {pipeline_mode = #tpu.pipeline_mode<synchronous>, transform_indices = @transform_6, window_bounds = array<i64: 9, 8, 8>}, {pipeline_mode = #tpu.pipeline_mode<synchronous>, transform_indices = @transform_7, window_bounds = array<i64: 9, 8, 8>}, {transform_indices = @transform_8, window_bounds = array<i64: 64, 8>}]} {
    %cst = arith.constant 0.000000e+00 : f32
    %0 = vector.broadcast %cst : f32 to vector<96x8xf32>
    %c0 = arith.constant 0 : index
    %c0_0 = arith.constant 0 : index
    %1 = vector.load %arg10[%c0, %c0_0] : memref<96x8xf32, #tpu.memory_space<vmem>>, vector<96x8xf32>
    tpu.vector_store %arg10[%c0, %c0_0], %0 {strides = array<i32>} : memref<96x8xf32, #tpu.memory_space<vmem>>, vector<96x8xf32>,
    %cst_1 = arith.constant 0.000000e+00 : f32
    %2 = vector.broadcast %cst_1 : f32 to vector<96x8xf32>
    %c0_2 = arith.constant 0 : index
    %c0_3 = arith.constant 0 : index
    %3 = vector.load %arg11[%c0_2, %c0_3] : memref<96x8xf32, #tpu.memory_space<vmem>>, vector<96x8xf32>
    tpu.vector_store %arg11[%c0_2, %c0_3], %2 {strides = array<i32>} : memref<96x8xf32, #tpu.memory_space<vmem>>, vector<96x8xf32>,
    %c0_4 = arith.constant 0 : index
    %c0_5 = arith.constant 0 : index
    %4 = vector.load %arg2[%c0_4, %c0_5] : memref<64x1xf32, #tpu.memory_space<vmem>>, vector<64x1xf32>
    %cst_6 = arith.constant 5.000000e-01 : f32
    %5 = vector.broadcast %cst_6 : f32 to vector<64x1xf32>
    %6 = arith.cmpf oge, %4, %5 : vector<64x1xf32>
    %cst_7 = arith.constant 6.500000e+00 : f32
    %7 = vector.broadcast %cst_7 : f32 to vector<64x1xf32>
    %8 = arith.cmpf ole, %4, %7 : vector<64x1xf32>
    %c0_8 = arith.constant 0 : index
    %c0_9 = arith.constant 0 : index
    %9 = vector.load %arg3[%c0_8, %c0_9] : memref<1x8xf32, #tpu.memory_space<vmem>>, vector<1x8xf32>
    %c0_10 = arith.constant 0 : index
    %c0_11 = arith.constant 0 : index
    %10 = vector.load %arg4[%c0_10, %c0_11] : memref<1x8xf32, #tpu.memory_space<vmem>>, vector<1x8xf32>
    %c0_12 = arith.constant 0 : index
    %c0_13 = arith.constant 0 : index
    %11 = vector.load %arg5[%c0_12, %c0_13] : memref<1x8xf32, #tpu.memory_space<vmem>>, vector<1x8xf32>
    %c0_14 = arith.constant 0 : index
    %c0_15 = arith.constant 0 : index
    %12 = vector.load %arg6[%c0_14, %c0_15] : memref<1x8xf32, #tpu.memory_space<vmem>>, vector<1x8xf32>
    %c0_16 = arith.constant 0 : index
    %c0_17 = arith.constant 0 : index
    %13 = vector.load %arg1[%c0_16, %c0_17] : memref<64x8xf32, #tpu.memory_space<vmem>>, vector<64x8xf32>
    %14 = vector.broadcast %9 : vector<1x8xf32> to vector<64x8xf32>
    %15 = arith.mulf %13, %14 : vector<64x8xf32>
    %16 = vector.broadcast %10 : vector<1x8xf32> to vector<64x8xf32>
    %17 = arith.addf %15, %16 : vector<64x8xf32>
    %cst_18 = arith.constant 0.000000e+00 : f32
    %18 = vector.broadcast %cst_18 : f32 to vector<64x8xf32>
    %19 = arith.cmpf oge, %17, %18 : vector<64x8xf32>
    %cst_19 = arith.constant 1.000000e-01 : f32
    %20 = vector.broadcast %cst_19 : f32 to vector<64x8xf32>
    %21 = arith.mulf %20, %17 : vector<64x8xf32>
    %22 = arith.select %19, %17, %21 : vector<64x8xi1>, vector<64x8xf32>
    %cst_20 = arith.constant 0.000000e+00 : f32
    %23 = vector.broadcast %cst_20 : f32 to vector<64x8xf32>
    %c16 = arith.constant 16 : index
    %c0_21 = arith.constant 0 : index
    %24 = vector.load %arg10[%c16, %c0_21] : memref<96x8xf32, #tpu.memory_space<vmem>>, vector<64x8xf32>
    tpu.vector_store %arg10[%c16, %c0_21], %22 {strides = array<i32>} : memref<96x8xf32, #tpu.memory_space<vmem>>, vector<64x8xf32>,
    %c7 = arith.constant 7 : index
    %c0_22 = arith.constant 0 : index
    %25 = vector.load %arg10[%c7, %c0_22] : memref<96x8xf32, #tpu.memory_space<vmem>>, vector<64x8xf32>
    %cst_23 = arith.constant 0.000000e+00 : f32
    %26 = vector.shape_cast %6 : vector<64x1xi1> to vector<64x1xi1>
    %27 = vector.broadcast %26 : vector<64x1xi1> to vector<64x8xi1>
    %28 = vector.broadcast %cst_23 : f32 to vector<64x8xf32>
    %29 = arith.select %27, %25, %28 : vector<64x8xi1>, vector<64x8xf32>
    %c0_24 = arith.constant 0 : index
    %c0_25 = arith.constant 0 : index
    %c0_26 = arith.constant 0 : index
    %30 = vector.load %arg7[%c0_24, %c0_25, %c0_26] : memref<9x8x8xf32, #tpu.memory_space<vmem>>, vector<1x8x8xf32>
    %31 = vector.shape_cast %30 : vector<1x8x8xf32> to vector<8x8xf32>
    %cst_27 = arith.constant dense<0.000000e+00> : vector<64x8xf32>
    %32 = tpu.matmul %29, %31, %cst_27 {dimension_numbers = #tpu.dot_dimension_numbers<[1], [0], [0], [1], [0, 0, 1, 1], [], []>} : vector<64x8xf32>, vector<8x8xf32>, vector<64x8xf32> -> vector<64x8xf32>
    %33 = arith.addf %23, %32 : vector<64x8xf32>
    %c8 = arith.constant 8 : index
    %c0_28 = arith.constant 0 : index
    %34 = vector.load %arg10[%c8, %c0_28] : memref<96x8xf32, #tpu.memory_space<vmem>>, vector<64x8xf32>
    %c1 = arith.constant 1 : index
    %c0_29 = arith.constant 0 : index
    %c0_30 = arith.constant 0 : index
    %35 = vector.load %arg7[%c1, %c0_29, %c0_30] : memref<9x8x8xf32, #tpu.memory_space<vmem>>, vector<1x8x8xf32>
    %36 = vector.shape_cast %35 : vector<1x8x8xf32> to vector<8x8xf32>
    %cst_31 = arith.constant dense<0.000000e+00> : vector<64x8xf32>
    %37 = tpu.matmul %34, %36, %cst_31 {dimension_numbers = #tpu.dot_dimension_numbers<[1], [0], [0], [1], [0, 0, 1, 1], [], []>} : vector<64x8xf32>, vector<8x8xf32>, vector<64x8xf32> -> vector<64x8xf32>
    %38 = arith.addf %33, %37 : vector<64x8xf32>
    %c9 = arith.constant 9 : index
    %c0_32 = arith.constant 0 : index
    %39 = vector.load %arg10[%c9, %c0_32] : memref<96x8xf32, #tpu.memory_space<vmem>>, vector<64x8xf32>
    %cst_33 = arith.constant 0.000000e+00 : f32
    %40 = vector.shape_cast %8 : vector<64x1xi1> to vector<64x1xi1>
    %41 = vector.broadcast %40 : vector<64x1xi1> to vector<64x8xi1>
    %42 = vector.broadcast %cst_33 : f32 to vector<64x8xf32>
    %43 = arith.select %41, %39, %42 : vector<64x8xi1>, vector<64x8xf32>
    %c2 = arith.constant 2 : index
    %c0_34 = arith.constant 0 : index
    %c0_35 = arith.constant 0 : index
    %44 = vector.load %arg7[%c2, %c0_34, %c0_35] : memref<9x8x8xf32, #tpu.memory_space<vmem>>, vector<1x8x8xf32>
    %45 = vector.shape_cast %44 : vector<1x8x8xf32> to vector<8x8xf32>
    %cst_36 = arith.constant dense<0.000000e+00> : vector<64x8xf32>
    %46 = tpu.matmul %43, %45, %cst_36 {dimension_numbers = #tpu.dot_dimension_numbers<[1], [0], [0], [1], [0, 0, 1, 1], [], []>} : vector<64x8xf32>, vector<8x8xf32>, vector<64x8xf32> -> vector<64x8xf32>
    %47 = arith.addf %38, %46 : vector<64x8xf32>
    %c15 = arith.constant 15 : index
    %c0_37 = arith.constant 0 : index
    %48 = vector.load %arg10[%c15, %c0_37] : memref<96x8xf32, #tpu.memory_space<vmem>>, vector<64x8xf32>
    %cst_38 = arith.constant 0.000000e+00 : f32
    %49 = vector.shape_cast %6 : vector<64x1xi1> to vector<64x1xi1>
    %50 = vector.broadcast %49 : vector<64x1xi1> to vector<64x8xi1>
    %51 = vector.broadcast %cst_38 : f32 to vector<64x8xf32>
    %52 = arith.select %50, %48, %51 : vector<64x8xi1>, vector<64x8xf32>
    %c3 = arith.constant 3 : index
    %c0_39 = arith.constant 0 : index
    %c0_40 = arith.constant 0 : index
    %53 = vector.load %arg7[%c3, %c0_39, %c0_40] : memref<9x8x8xf32, #tpu.memory_space<vmem>>, vector<1x8x8xf32>
    %54 = vector.shape_cast %53 : vector<1x8x8xf32> to vector<8x8xf32>
    %cst_41 = arith.constant dense<0.000000e+00> : vector<64x8xf32>
    %55 = tpu.matmul %52, %54, %cst_41 {dimension_numbers = #tpu.dot_dimension_numbers<[1], [0], [0], [1], [0, 0, 1, 1], [], []>} : vector<64x8xf32>, vector<8x8xf32>, vector<64x8xf32> -> vector<64x8xf32>
    %56 = arith.addf %47, %55 : vector<64x8xf32>
    %c16_42 = arith.constant 16 : index
    %c0_43 = arith.constant 0 : index
    %57 = vector.load %arg10[%c16_42, %c0_43] : memref<96x8xf32, #tpu.memory_space<vmem>>, vector<64x8xf32>
    %c4 = arith.constant 4 : index
    %c0_44 = arith.constant 0 : index
    %c0_45 = arith.constant 0 : index
    %58 = vector.load %arg7[%c4, %c0_44, %c0_45] : memref<9x8x8xf32, #tpu.memory_space<vmem>>, vector<1x8x8xf32>
    %59 = vector.shape_cast %58 : vector<1x8x8xf32> to vector<8x8xf32>
    %cst_46 = arith.constant dense<0.000000e+00> : vector<64x8xf32>
    %60 = tpu.matmul %57, %59, %cst_46 {dimension_numbers = #tpu.dot_dimension_numbers<[1], [0], [0], [1], [0, 0, 1, 1], [], []>} : vector<64x8xf32>, vector<8x8xf32>, vector<64x8xf32> -> vector<64x8xf32>
    %61 = arith.addf %56, %60 : vector<64x8xf32>
    %c17 = arith.constant 17 : index
    %c0_47 = arith.constant 0 : index
    %62 = vector.load %arg10[%c17, %c0_47] : memref<96x8xf32, #tpu.memory_space<vmem>>, vector<64x8xf32>
    %cst_48 = arith.constant 0.000000e+00 : f32
    %63 = vector.shape_cast %8 : vector<64x1xi1> to vector<64x1xi1>
    %64 = vector.broadcast %63 : vector<64x1xi1> to vector<64x8xi1>
    %65 = vector.broadcast %cst_48 : f32 to vector<64x8xf32>
    %66 = arith.select %64, %62, %65 : vector<64x8xi1>, vector<64x8xf32>
    %c5 = arith.constant 5 : index
    %c0_49 = arith.constant 0 : index
    %c0_50 = arith.constant 0 : index
    %67 = vector.load %arg7[%c5, %c0_49, %c0_50] : memref<9x8x8xf32, #tpu.memory_space<vmem>>, vector<1x8x8xf32>
    %68 = vector.shape_cast %67 : vector<1x8x8xf32> to vector<8x8xf32>
    %cst_51 = arith.constant dense<0.000000e+00> : vector<64x8xf32>
    %69 = tpu.matmul %66, %68, %cst_51 {dimension_numbers = #tpu.dot_dimension_numbers<[1], [0], [0], [1], [0, 0, 1, 1], [], []>} : vector<64x8xf32>, vector<8x8xf32>, vector<64x8xf32> -> vector<64x8xf32>
    %70 = arith.addf %61, %69 : vector<64x8xf32>
    %c23 = arith.constant 23 : index
    %c0_52 = arith.constant 0 : index
    %71 = vector.load %arg10[%c23, %c0_52] : memref<96x8xf32, #tpu.memory_space<vmem>>, vector<64x8xf32>
    %cst_53 = arith.constant 0.000000e+00 : f32
    %72 = vector.shape_cast %6 : vector<64x1xi1> to vector<64x1xi1>
    %73 = vector.broadcast %72 : vector<64x1xi1> to vector<64x8xi1>
    %74 = vector.broadcast %cst_53 : f32 to vector<64x8xf32>
    %75 = arith.select %73, %71, %74 : vector<64x8xi1>, vector<64x8xf32>
    %c6 = arith.constant 6 : index
    %c0_54 = arith.constant 0 : index
    %c0_55 = arith.constant 0 : index
    %76 = vector.load %arg7[%c6, %c0_54, %c0_55] : memref<9x8x8xf32, #tpu.memory_space<vmem>>, vector<1x8x8xf32>
    %77 = vector.shape_cast %76 : vector<1x8x8xf32> to vector<8x8xf32>
    %cst_56 = arith.constant dense<0.000000e+00> : vector<64x8xf32>
    %78 = tpu.matmul %75, %77, %cst_56 {dimension_numbers = #tpu.dot_dimension_numbers<[1], [0], [0], [1], [0, 0, 1, 1], [], []>} : vector<64x8xf32>, vector<8x8xf32>, vector<64x8xf32> -> vector<64x8xf32>
    %79 = arith.addf %70, %78 : vector<64x8xf32>
    %c24 = arith.constant 24 : index
    %c0_57 = arith.constant 0 : index
    %80 = vector.load %arg10[%c24, %c0_57] : memref<96x8xf32, #tpu.memory_space<vmem>>, vector<64x8xf32>
    %c7_58 = arith.constant 7 : index
    %c0_59 = arith.constant 0 : index
    %c0_60 = arith.constant 0 : index
    %81 = vector.load %arg7[%c7_58, %c0_59, %c0_60] : memref<9x8x8xf32, #tpu.memory_space<vmem>>, vector<1x8x8xf32>
    %82 = vector.shape_cast %81 : vector<1x8x8xf32> to vector<8x8xf32>
    %cst_61 = arith.constant dense<0.000000e+00> : vector<64x8xf32>
    %83 = tpu.matmul %80, %82, %cst_61 {dimension_numbers = #tpu.dot_dimension_numbers<[1], [0], [0], [1], [0, 0, 1, 1], [], []>} : vector<64x8xf32>, vector<8x8xf32>, vector<64x8xf32> -> vector<64x8xf32>
    %84 = arith.addf %79, %83 : vector<64x8xf32>
    %c25 = arith.constant 25 : index
    %c0_62 = arith.constant 0 : index
    %85 = vector.load %arg10[%c25, %c0_62] : memref<96x8xf32, #tpu.memory_space<vmem>>, vector<64x8xf32>
    %cst_63 = arith.constant 0.000000e+00 : f32
    %86 = vector.shape_cast %8 : vector<64x1xi1> to vector<64x1xi1>
    %87 = vector.broadcast %86 : vector<64x1xi1> to vector<64x8xi1>
    %88 = vector.broadcast %cst_63 : f32 to vector<64x8xf32>
    %89 = arith.select %87, %85, %88 : vector<64x8xi1>, vector<64x8xf32>
    %c8_64 = arith.constant 8 : index
    %c0_65 = arith.constant 0 : index
    %c0_66 = arith.constant 0 : index
    %90 = vector.load %arg7[%c8_64, %c0_65, %c0_66] : memref<9x8x8xf32, #tpu.memory_space<vmem>>, vector<1x8x8xf32>
    %91 = vector.shape_cast %90 : vector<1x8x8xf32> to vector<8x8xf32>
    %cst_67 = arith.constant dense<0.000000e+00> : vector<64x8xf32>
    %92 = tpu.matmul %89, %91, %cst_67 {dimension_numbers = #tpu.dot_dimension_numbers<[1], [0], [0], [1], [0, 0, 1, 1], [], []>} : vector<64x8xf32>, vector<8x8xf32>, vector<64x8xf32> -> vector<64x8xf32>
    %93 = arith.addf %84, %92 : vector<64x8xf32>
    %94 = vector.broadcast %11 : vector<1x8xf32> to vector<64x8xf32>
    %95 = arith.mulf %93, %94 : vector<64x8xf32>
    %96 = vector.broadcast %12 : vector<1x8xf32> to vector<64x8xf32>
    %97 = arith.addf %95, %96 : vector<64x8xf32>
    %cst_68 = arith.constant 0.000000e+00 : f32
    %98 = vector.broadcast %cst_68 : f32 to vector<64x8xf32>
    %99 = arith.cmpf oge, %97, %98 : vector<64x8xf32>
    %cst_69 = arith.constant 1.000000e-01 : f32
    %100 = vector.broadcast %cst_69 : f32 to vector<64x8xf32>
    %101 = arith.mulf %100, %97 : vector<64x8xf32>
    %102 = arith.select %99, %97, %101 : vector<64x8xi1>, vector<64x8xf32>
    %cst_70 = arith.constant 0.000000e+00 : f32
    %103 = vector.broadcast %cst_70 : f32 to vector<64x8xf32>
    %c16_71 = arith.constant 16 : index
    %c0_72 = arith.constant 0 : index
    %104 = vector.load %arg11[%c16_71, %c0_72] : memref<96x8xf32, #tpu.memory_space<vmem>>, vector<64x8xf32>
    tpu.vector_store %arg11[%c16_71, %c0_72], %102 {strides = array<i32>} : memref<96x8xf32, #tpu.memory_space<vmem>>, vector<64x8xf32>,
    %c7_73 = arith.constant 7 : index
    %c0_74 = arith.constant 0 : index
    %105 = vector.load %arg11[%c7_73, %c0_74] : memref<96x8xf32, #tpu.memory_space<vmem>>, vector<64x8xf32>
    %cst_75 = arith.constant 0.000000e+00 : f32
    %106 = vector.shape_cast %6 : vector<64x1xi1> to vector<64x1xi1>
    %107 = vector.broadcast %106 : vector<64x1xi1> to vector<64x8xi1>
    %108 = vector.broadcast %cst_75 : f32 to vector<64x8xf32>
    %109 = arith.select %107, %105, %108 : vector<64x8xi1>, vector<64x8xf32>
    %c0_76 = arith.constant 0 : index
    %c0_77 = arith.constant 0 : index
    %c0_78 = arith.constant 0 : index
    %110 = vector.load %arg8[%c0_76, %c0_77, %c0_78] : memref<9x8x8xf32, #tpu.memory_space<vmem>>, vector<1x8x8xf32>
    %111 = vector.shape_cast %110 : vector<1x8x8xf32> to vector<8x8xf32>
    %cst_79 = arith.constant dense<0.000000e+00> : vector<64x8xf32>
    %112 = tpu.matmul %109, %111, %cst_79 {dimension_numbers = #tpu.dot_dimension_numbers<[1], [0], [0], [1], [0, 0, 1, 1], [], []>} : vector<64x8xf32>, vector<8x8xf32>, vector<64x8xf32> -> vector<64x8xf32>
    %113 = arith.addf %103, %112 : vector<64x8xf32>
    %c8_80 = arith.constant 8 : index
    %c0_81 = arith.constant 0 : index
    %114 = vector.load %arg11[%c8_80, %c0_81] : memref<96x8xf32, #tpu.memory_space<vmem>>, vector<64x8xf32>
    %c1_82 = arith.constant 1 : index
    %c0_83 = arith.constant 0 : index
    %c0_84 = arith.constant 0 : index
    %115 = vector.load %arg8[%c1_82, %c0_83, %c0_84] : memref<9x8x8xf32, #tpu.memory_space<vmem>>, vector<1x8x8xf32>
    %116 = vector.shape_cast %115 : vector<1x8x8xf32> to vector<8x8xf32>
    %cst_85 = arith.constant dense<0.000000e+00> : vector<64x8xf32>
    %117 = tpu.matmul %114, %116, %cst_85 {dimension_numbers = #tpu.dot_dimension_numbers<[1], [0], [0], [1], [0, 0, 1, 1], [], []>} : vector<64x8xf32>, vector<8x8xf32>, vector<64x8xf32> -> vector<64x8xf32>
    %118 = arith.addf %113, %117 : vector<64x8xf32>
    %c9_86 = arith.constant 9 : index
    %c0_87 = arith.constant 0 : index
    %119 = vector.load %arg11[%c9_86, %c0_87] : memref<96x8xf32, #tpu.memory_space<vmem>>, vector<64x8xf32>
    %cst_88 = arith.constant 0.000000e+00 : f32
    %120 = vector.shape_cast %8 : vector<64x1xi1> to vector<64x1xi1>
    %121 = vector.broadcast %120 : vector<64x1xi1> to vector<64x8xi1>
    %122 = vector.broadcast %cst_88 : f32 to vector<64x8xf32>
    %123 = arith.select %121, %119, %122 : vector<64x8xi1>, vector<64x8xf32>
    %c2_89 = arith.constant 2 : index
    %c0_90 = arith.constant 0 : index
    %c0_91 = arith.constant 0 : index
    %124 = vector.load %arg8[%c2_89, %c0_90, %c0_91] : memref<9x8x8xf32, #tpu.memory_space<vmem>>, vector<1x8x8xf32>
    %125 = vector.shape_cast %124 : vector<1x8x8xf32> to vector<8x8xf32>
    %cst_92 = arith.constant dense<0.000000e+00> : vector<64x8xf32>
    %126 = tpu.matmul %123, %125, %cst_92 {dimension_numbers = #tpu.dot_dimension_numbers<[1], [0], [0], [1], [0, 0, 1, 1], [], []>} : vector<64x8xf32>, vector<8x8xf32>, vector<64x8xf32> -> vector<64x8xf32>
    %127 = arith.addf %118, %126 : vector<64x8xf32>
    %c15_93 = arith.constant 15 : index
    %c0_94 = arith.constant 0 : index
    %128 = vector.load %arg11[%c15_93, %c0_94] : memref<96x8xf32, #tpu.memory_space<vmem>>, vector<64x8xf32>
    %cst_95 = arith.constant 0.000000e+00 : f32
    %129 = vector.shape_cast %6 : vector<64x1xi1> to vector<64x1xi1>
    %130 = vector.broadcast %129 : vector<64x1xi1> to vector<64x8xi1>
    %131 = vector.broadcast %cst_95 : f32 to vector<64x8xf32>
    %132 = arith.select %130, %128, %131 : vector<64x8xi1>, vector<64x8xf32>
    %c3_96 = arith.constant 3 : index
    %c0_97 = arith.constant 0 : index
    %c0_98 = arith.constant 0 : index
    %133 = vector.load %arg8[%c3_96, %c0_97, %c0_98] : memref<9x8x8xf32, #tpu.memory_space<vmem>>, vector<1x8x8xf32>
    %134 = vector.shape_cast %133 : vector<1x8x8xf32> to vector<8x8xf32>
    %cst_99 = arith.constant dense<0.000000e+00> : vector<64x8xf32>
    %135 = tpu.matmul %132, %134, %cst_99 {dimension_numbers = #tpu.dot_dimension_numbers<[1], [0], [0], [1], [0, 0, 1, 1], [], []>} : vector<64x8xf32>, vector<8x8xf32>, vector<64x8xf32> -> vector<64x8xf32>
    %136 = arith.addf %127, %135 : vector<64x8xf32>
    %c16_100 = arith.constant 16 : index
    %c0_101 = arith.constant 0 : index
    %137 = vector.load %arg11[%c16_100, %c0_101] : memref<96x8xf32, #tpu.memory_space<vmem>>, vector<64x8xf32>
    %c4_102 = arith.constant 4 : index
    %c0_103 = arith.constant 0 : index
    %c0_104 = arith.constant 0 : index
    %138 = vector.load %arg8[%c4_102, %c0_103, %c0_104] : memref<9x8x8xf32, #tpu.memory_space<vmem>>, vector<1x8x8xf32>
    %139 = vector.shape_cast %138 : vector<1x8x8xf32> to vector<8x8xf32>
    %cst_105 = arith.constant dense<0.000000e+00> : vector<64x8xf32>
    %140 = tpu.matmul %137, %139, %cst_105 {dimension_numbers = #tpu.dot_dimension_numbers<[1], [0], [0], [1], [0, 0, 1, 1], [], []>} : vector<64x8xf32>, vector<8x8xf32>, vector<64x8xf32> -> vector<64x8xf32>
    %141 = arith.addf %136, %140 : vector<64x8xf32>
    %c17_106 = arith.constant 17 : index
    %c0_107 = arith.constant 0 : index
    %142 = vector.load %arg11[%c17_106, %c0_107] : memref<96x8xf32, #tpu.memory_space<vmem>>, vector<64x8xf32>
    %cst_108 = arith.constant 0.000000e+00 : f32
    %143 = vector.shape_cast %8 : vector<64x1xi1> to vector<64x1xi1>
    %144 = vector.broadcast %143 : vector<64x1xi1> to vector<64x8xi1>
    %145 = vector.broadcast %cst_108 : f32 to vector<64x8xf32>
    %146 = arith.select %144, %142, %145 : vector<64x8xi1>, vector<64x8xf32>
    %c5_109 = arith.constant 5 : index
    %c0_110 = arith.constant 0 : index
    %c0_111 = arith.constant 0 : index
    %147 = vector.load %arg8[%c5_109, %c0_110, %c0_111] : memref<9x8x8xf32, #tpu.memory_space<vmem>>, vector<1x8x8xf32>
    %148 = vector.shape_cast %147 : vector<1x8x8xf32> to vector<8x8xf32>
    %cst_112 = arith.constant dense<0.000000e+00> : vector<64x8xf32>
    %149 = tpu.matmul %146, %148, %cst_112 {dimension_numbers = #tpu.dot_dimension_numbers<[1], [0], [0], [1], [0, 0, 1, 1], [], []>} : vector<64x8xf32>, vector<8x8xf32>, vector<64x8xf32> -> vector<64x8xf32>
    %150 = arith.addf %141, %149 : vector<64x8xf32>
    %c23_113 = arith.constant 23 : index
    %c0_114 = arith.constant 0 : index
    %151 = vector.load %arg11[%c23_113, %c0_114] : memref<96x8xf32, #tpu.memory_space<vmem>>, vector<64x8xf32>
    %cst_115 = arith.constant 0.000000e+00 : f32
    %152 = vector.shape_cast %6 : vector<64x1xi1> to vector<64x1xi1>
    %153 = vector.broadcast %152 : vector<64x1xi1> to vector<64x8xi1>
    %154 = vector.broadcast %cst_115 : f32 to vector<64x8xf32>
    %155 = arith.select %153, %151, %154 : vector<64x8xi1>, vector<64x8xf32>
    %c6_116 = arith.constant 6 : index
    %c0_117 = arith.constant 0 : index
    %c0_118 = arith.constant 0 : index
    %156 = vector.load %arg8[%c6_116, %c0_117, %c0_118] : memref<9x8x8xf32, #tpu.memory_space<vmem>>, vector<1x8x8xf32>
    %157 = vector.shape_cast %156 : vector<1x8x8xf32> to vector<8x8xf32>
    %cst_119 = arith.constant dense<0.000000e+00> : vector<64x8xf32>
    %158 = tpu.matmul %155, %157, %cst_119 {dimension_numbers = #tpu.dot_dimension_numbers<[1], [0], [0], [1], [0, 0, 1, 1], [], []>} : vector<64x8xf32>, vector<8x8xf32>, vector<64x8xf32> -> vector<64x8xf32>
    %159 = arith.addf %150, %158 : vector<64x8xf32>
    %c24_120 = arith.constant 24 : index
    %c0_121 = arith.constant 0 : index
    %160 = vector.load %arg11[%c24_120, %c0_121] : memref<96x8xf32, #tpu.memory_space<vmem>>, vector<64x8xf32>
    %c7_122 = arith.constant 7 : index
    %c0_123 = arith.constant 0 : index
    %c0_124 = arith.constant 0 : index
    %161 = vector.load %arg8[%c7_122, %c0_123, %c0_124] : memref<9x8x8xf32, #tpu.memory_space<vmem>>, vector<1x8x8xf32>
    %162 = vector.shape_cast %161 : vector<1x8x8xf32> to vector<8x8xf32>
    %cst_125 = arith.constant dense<0.000000e+00> : vector<64x8xf32>
    %163 = tpu.matmul %160, %162, %cst_125 {dimension_numbers = #tpu.dot_dimension_numbers<[1], [0], [0], [1], [0, 0, 1, 1], [], []>} : vector<64x8xf32>, vector<8x8xf32>, vector<64x8xf32> -> vector<64x8xf32>
    %164 = arith.addf %159, %163 : vector<64x8xf32>
    %c25_126 = arith.constant 25 : index
    %c0_127 = arith.constant 0 : index
    %165 = vector.load %arg11[%c25_126, %c0_127] : memref<96x8xf32, #tpu.memory_space<vmem>>, vector<64x8xf32>
    %cst_128 = arith.constant 0.000000e+00 : f32
    %166 = vector.shape_cast %8 : vector<64x1xi1> to vector<64x1xi1>
    %167 = vector.broadcast %166 : vector<64x1xi1> to vector<64x8xi1>
    %168 = vector.broadcast %cst_128 : f32 to vector<64x8xf32>
    %169 = arith.select %167, %165, %168 : vector<64x8xi1>, vector<64x8xf32>
    %c8_129 = arith.constant 8 : index
    %c0_130 = arith.constant 0 : index
    %c0_131 = arith.constant 0 : index
    %170 = vector.load %arg8[%c8_129, %c0_130, %c0_131] : memref<9x8x8xf32, #tpu.memory_space<vmem>>, vector<1x8x8xf32>
    %171 = vector.shape_cast %170 : vector<1x8x8xf32> to vector<8x8xf32>
    %cst_132 = arith.constant dense<0.000000e+00> : vector<64x8xf32>
    %172 = tpu.matmul %169, %171, %cst_132 {dimension_numbers = #tpu.dot_dimension_numbers<[1], [0], [0], [1], [0, 0, 1, 1], [], []>} : vector<64x8xf32>, vector<8x8xf32>, vector<64x8xf32> -> vector<64x8xf32>
    %173 = arith.addf %164, %172 : vector<64x8xf32>
    %174 = arith.addf %173, %13 : vector<64x8xf32>
    %c0_133 = arith.constant 0 : index
    %c0_134 = arith.constant 0 : index
    %175 = vector.load %arg9[%c0_133, %c0_134] : memref<64x8xf32, #tpu.memory_space<vmem>>, vector<64x8xf32>
    tpu.vector_store %arg9[%c0_133, %c0_134], %174 {strides = array<i32>} : memref<64x8xf32, #tpu.memory_space<vmem>>, vector<64x8xf32>,
    return
  }
  func.func @transform_0(%arg0: i32) -> (i32, i32) {
    %c0_i32 = arith.constant 0 : i32
    %c0_i32_0 = arith.constant 0 : i32
    return %arg0, %c0_i32 : i32, i32
  }
  func.func @transform_1(%arg0: i32) -> (i32, i32) {
    %c0_i32 = arith.constant 0 : i32
    %c0_i32_0 = arith.constant 0 : i32
    %c0_i32_1 = arith.constant 0 : i32
    return %c0_i32, %c0_i32_0 : i32, i32
  }
  func.func @transform_2(%arg0: i32) -> (i32, i32) {
    %c0_i32 = arith.constant 0 : i32
    %c0_i32_0 = arith.constant 0 : i32
    %c0_i32_1 = arith.constant 0 : i32
    return %c0_i32, %c0_i32_0 : i32, i32
  }
  func.func @transform_3(%arg0: i32) -> (i32, i32) {
    %c0_i32 = arith.constant 0 : i32
    %c0_i32_0 = arith.constant 0 : i32
    %c0_i32_1 = arith.constant 0 : i32
    return %c0_i32, %c0_i32_0 : i32, i32
  }
  func.func @transform_4(%arg0: i32) -> (i32, i32) {
    %c0_i32 = arith.constant 0 : i32
    %c0_i32_0 = arith.constant 0 : i32
    %c0_i32_1 = arith.constant 0 : i32
    return %c0_i32, %c0_i32_0 : i32, i32
  }
  func.func @transform_5(%arg0: i32) -> (i32, i32) {
    %c0_i32 = arith.constant 0 : i32
    %c0_i32_0 = arith.constant 0 : i32
    %c0_i32_1 = arith.constant 0 : i32
    return %c0_i32, %c0_i32_0 : i32, i32
  }
  func.func @transform_6(%arg0: i32) -> (i32, i32, i32) {
    %c0_i32 = arith.constant 0 : i32
    %c0_i32_0 = arith.constant 0 : i32
    %c0_i32_1 = arith.constant 0 : i32
    %c0_i32_2 = arith.constant 0 : i32
    return %c0_i32, %c0_i32_0, %c0_i32_1 : i32, i32, i32
  }
  func.func @transform_7(%arg0: i32) -> (i32, i32, i32) {
    %c0_i32 = arith.constant 0 : i32
    %c0_i32_0 = arith.constant 0 : i32
    %c0_i32_1 = arith.constant 0 : i32
    %c0_i32_2 = arith.constant 0 : i32
    return %c0_i32, %c0_i32_0, %c0_i32_1 : i32, i32, i32
  }
  func.func @transform_8(%arg0: i32) -> (i32, i32) {
    %c0_i32 = arith.constant 0 : i32
    %c0_i32_0 = arith.constant 0 : i32
    return %arg0, %c0_i32 : i32, i32
  }
}

</mosaic_0001>

<llo_original>
// kernel: tile.0
$region0: #{tile.0}
  %s0 = inlined_call_operand.vmem [shape: f32[8,8], index: 0, kind: input, shape index: {}]
  %s1 = inlined_call_operand.vmem [shape: f32[64,1], index: 1, kind: output, shape index: {}]
  %v2 = vld [vmem:[%s0] sm:$0xff]
  %vm3 = vcmask 7168
  %4 = vst.msk [vmem:[%s1] ss:$8 sm:$0xf] %vm3, %v2
  %5 = vst.msk [vmem:[%s1] ss:$8 sm:$0xf0] %vm3, %v2
  %v6 = vld [vmem:[%s0] sm:$0xff]
  %7 = vrot.lane.b32.xlu0 %v6, 127
  %v8 = vpop.permute.xlu0 %7
  %vm9 = vcmask 7168
  %s10 = scalar_lea.vmem %s1, 1
  %11 = vst.msk [vmem:[%s10] ss:$8 sm:$0xf] %vm9, %v8
  %s12 = scalar_lea.vmem %s1, 1
  %13 = vst.msk [vmem:[%s12] ss:$8 sm:$0xf0] %vm9, %v8
  %v14 = vld [vmem:[%s0] sm:$0xff]
  %15 = vrot.lane.b32.xlu0 %v14, 126
  %v16 = vpop.permute.xlu0 %15
  %vm17 = vcmask 7168
  %s18 = scalar_lea.vmem %s1, 2
  %19 = vst.msk [vmem:[%s18] ss:$8 sm:$0xf] %vm17, %v16
  %s20 = scalar_lea.vmem %s1, 2
  %21 = vst.msk [vmem:[%s20] ss:$8 sm:$0xf0] %vm17, %v16
  %v22 = vld [vmem:[%s0] sm:$0xff]
  %23 = vrot.lane.b32.xlu0 %v22, 125
  %v24 = vpop.permute.xlu0 %23
  %vm25 = vcmask 7168
  %s26 = scalar_lea.vmem %s1, 3
  %27 = vst.msk [vmem:[%s26] ss:$8 sm:$0xf] %vm25, %v24
  %s28 = scalar_lea.vmem %s1, 3
  %29 = vst.msk [vmem:[%s28] ss:$8 sm:$0xf0] %vm25, %v24
  %v30 = vld [vmem:[%s0] sm:$0xff]
  %31 = vrot.lane.b32.xlu0 %v30, 124
  %v32 = vpop.permute.xlu0 %31
  %vm33 = vcmask 7168
  %s34 = scalar_lea.vmem %s1, 4
  %35 = vst.msk [vmem:[%s34] ss:$8 sm:$0xf] %vm33, %v32
  %s36 = scalar_lea.vmem %s1, 4
  %37 = vst.msk [vmem:[%s36] ss:$8 sm:$0xf0] %vm33, %v32
  %v38 = vld [vmem:[%s0] sm:$0xff]
  %39 = vrot.lane.b32.xlu0 %v38, 123
  %v40 = vpop.permute.xlu0 %39
  %vm41 = vcmask 7168
  %s42 = scalar_lea.vmem %s1, 5
  %43 = vst.msk [vmem:[%s42] ss:$8 sm:$0xf] %vm41, %v40
  %s44 = scalar_lea.vmem %s1, 5
  %45 = vst.msk [vmem:[%s44] ss:$8 sm:$0xf0] %vm41, %v40
  %v46 = vld [vmem:[%s0] sm:$0xff]
  %47 = vrot.lane.b32.xlu0 %v46, 122
  %v48 = vpop.permute.xlu0 %47
  %vm49 = vcmask 7168
  %s50 = scalar_lea.vmem %s1, 6
  %51 = vst.msk [vmem:[%s50] ss:$8 sm:$0xf] %vm49, %v48
  %s52 = scalar_lea.vmem %s1, 6
  %53 = vst.msk [vmem:[%s52] ss:$8 sm:$0xf0] %vm49, %v48
  %v54 = vld [vmem:[%s0] sm:$0xff]
  %55 = vrot.lane.b32.xlu0 %v54, 121
  %v56 = vpop.permute.xlu0 %55
  %vm57 = vcmask 7168
  %s58 = scalar_lea.vmem %s1, 7
  %59 = vst.msk [vmem:[%s58] ss:$8 sm:$0xf] %vm57, %v56
  %s60 = scalar_lea.vmem %s1, 7
  %61 = vst.msk [vmem:[%s60] ss:$8 sm:$0xf0] %vm57, %v56

// kernel: _lambda_.3
$region0: #{_lambda_.3}
  #allocation0 [shape = 'u32[]', space=smem, size = 0x4, offset = 0x4, fixed_abs, tag = 'smem constant byte address 0x4 - core index']
  #allocation1 [shape = 'u32[144,128]{1,0:T(1,128)}', space=vmem, size = 0x12000, scoped, tag = 'internal scratch']
  #allocation2 [shape = 'f32[96,8]{1,0:T(8,128)}', space=vmem, size = 0xc000, scoped, tag = 'scratch operand']
  #allocation3 [shape = 'f32[96,8]{1,0:T(8,128)}', space=vmem, size = 0xc000, scoped, tag = 'scratch operand']
  %s0 = inlined_call_operand.vmem [shape: f32[128,8], index: 0, kind: input, shape index: {}]
  %s1 = inlined_call_operand.vmem [shape: f32[64,1], index: 1, kind: input, shape index: {}]
  %s2 = inlined_call_operand.vmem [shape: f32[1,8], index: 2, kind: input, shape index: {}]
  %s3 = inlined_call_operand.vmem [shape: f32[1,8], index: 3, kind: input, shape index: {}]
  %s4 = inlined_call_operand.vmem [shape: f32[1,8], index: 4, kind: input, shape index: {}]
  %s5 = inlined_call_operand.vmem [shape: f32[1,8], index: 5, kind: input, shape index: {}]
  %s6 = inlined_call_operand.vmem [shape: f32[9,8,8], index: 6, kind: input, shape index: {}]
  %s7 = inlined_call_operand.vmem [shape: f32[9,8,8], index: 7, kind: input, shape index: {}]
  %s8 = inlined_call_operand.hbm [shape: f32[128,8], index: 8, kind: output, shape index: {}]
  %s9 = sld [smem:[#allocation0]]
  $region65: #{_lambda_.3} parent=0
    _
  %s11 = ssub.s32 1, %s9
  %s12 = scalar_select 0, %s11, %s9
  $region1: #{_lambda_.3} parent=0
    #allocation4 [shape = 'u8[65536]{0}', space=vmem, size = 0x10000, scoped, tag = 'output window, operand 0']
    #allocation5 [shape = 's32[2]{0}', space=sflag, size = 0x8, scoped, tag = 'scoped memory for _lambda_.3']
    %13 = vsyncpa [#allocation5], 0
    %s14 = scalar_lea.sflag [#allocation5], 1
    %15 = vsyncpa %s14, 0
    loop: start=0, step=1, limit=4
    $region2: #{_lambda_.3} parent=1 // loop_pre_header
      _
    $region3: #{_lambda_.3} parent=1 // loop_header
      %s17 = sphi 0, %s21
      %p18 = scmp.ge.s32.totalorder %s17, 4
      %s27 = sphi 0, %s29
      %s30 = sphi 0, %s27
      %s31 = sphi 0, %s30
      %s47 = sphi 0, %s31
      %s51 = sphi 0, %s51
      %s53 = sphi 0, %s51
      %s54 = sphi 0, %s53
      %s68 = sphi 0, %s54
      %s72 = sphi 0, %s72
      %s74 = sphi 0, %s72
      %s75 = sphi 0, %s74
      %s89 = sphi 0, %s75
      %s93 = sphi 0, %s93
      %s95 = sphi 0, %s93
      %s96 = sphi 0, %s95
      %s110 = sphi 0, %s96
      %s114 = sphi 0, %s114
      %s116 = sphi 0, %s114
      %s117 = sphi 0, %s116
      %s131 = sphi 0, %s117
      %s135 = sphi 0, %s135
      %s137 = sphi 0, %s135
      %s138 = sphi 0, %s137
      %s152 = sphi 0, %s138
      %s156 = sphi 0, %s156
      %s158 = sphi 0, %s156
      %s159 = sphi 0, %s158
      %s173 = sphi 0, %s159
      %s177 = sphi 0, %s177
      %s179 = sphi 0, %s177
      %s180 = sphi 0, %s179
      %s194 = sphi 0, %s180
      %s200 = sphi 0, %s202
      %s203 = sphi 0, %s200
      %s204 = sphi 0, %s203
      %s220 = sphi 0, %s204
    $region4: #{_lambda_.3} parent=1 // loop_header_branch
      %20 = sbr.rel (%p18) target = $region8
    $region5: #{_lambda_.3} parent=1 // loop_body
      %s22 = ssub.s32 %s17, 1
      %s23 = ssub.s32 %s17, 2
      %s24 = sadd.s32 %s17, 1
      %s25 = ssub.s32 %s17, %s24
      %p26 = scmp.eq.s32.totalorder %s25, 0
      %s28 = sadd.s32 %s27, 1
      %s29 = scalar_select %p26, %s27, %s28
      %p32 = pneg %p26
      %p33 = scmp.eq.s32.totalorder %s17, 1
      %p34 = por %p32, %p33
      %p35 = scmp.ne.s32.totalorder %s27, %s30
      %p36 = scmp.eq.s32.totalorder %s17, 0
      %p37 = por %p35, %p36
      %p38 = scmp.ne.s32.totalorder %s27, %s30
      %p39 = scmp.eq.s32.totalorder %s22, 1
      %p40 = por %p38, %p39
      %p41 = scmp.ne.s32.totalorder %s30, %s31
      %p42 = scmp.eq.s32.totalorder %s22, 0
      %p43 = por %p41, %p42
      %p44 = scmp.ne.s32.totalorder %s30, %s31
      %p45 = scmp.eq.s32.totalorder %s23, 1
      %p46 = por %p44, %p45
      %p48 = scmp.ne.s32.totalorder %s31, %s47
      %p49 = scmp.eq.s32.totalorder %s23, 0
      %p50 = por %p48, %p49
      %s52 = sadd.s32 %s51, 1
      %p55 = scmp.eq.s32.totalorder %s17, 1
      %p56 = scmp.ne.s32.totalorder %s51, %s53
      %p57 = scmp.eq.s32.totalorder %s17, 0
      %p58 = por %p56, %p57
      %p59 = scmp.ne.s32.totalorder %s51, %s53
      %p60 = scmp.eq.s32.totalorder %s22, 1
      %p61 = por %p59, %p60
      %p62 = scmp.ne.s32.totalorder %s53, %s54
      %p63 = scmp.eq.s32.totalorder %s22, 0
      %p64 = por %p62, %p63
      %p65 = scmp.ne.s32.totalorder %s53, %s54
      %p66 = scmp.eq.s32.totalorder %s23, 1
      %p67 = por %p65, %p66
      %p69 = scmp.ne.s32.totalorder %s54, %s68
      %p70 = scmp.eq.s32.totalorder %s23, 0
      %p71 = por %p69, %p70
      %s73 = sadd.s32 %s72, 1
      %p76 = scmp.eq.s32.totalorder %s17, 1
      %p77 = scmp.ne.s32.totalorder %s72, %s74
      %p78 = scmp.eq.s32.totalorder %s17, 0
      %p79 = por %p77, %p78
      %p80 = scmp.ne.s32.totalorder %s72, %s74
      %p81 = scmp.eq.s32.totalorder %s22, 1
      %p82 = por %p80, %p81
      %p83 = scmp.ne.s32.totalorder %s74, %s75
      %p84 = scmp.eq.s32.totalorder %s22, 0
      %p85 = por %p83, %p84
      %p86 = scmp.ne.s32.totalorder %s74, %s75
      %p87 = scmp.eq.s32.totalorder %s23, 1
      %p88 = por %p86, %p87
      %p90 = scmp.ne.s32.totalorder %s75, %s89
      %p91 = scmp.eq.s32.totalorder %s23, 0
      %p92 = por %p90, %p91
      %s94 = sadd.s32 %s93, 1
      %p97 = scmp.eq.s32.totalorder %s17, 1
      %p98 = scmp.ne.s32.totalorder %s93, %s95
      %p99 = scmp.eq.s32.totalorder %s17, 0
      %p100 = por %p98, %p99
      %p101 = scmp.ne.s32.totalorder %s93, %s95
      %p102 = scmp.eq.s32.totalorder %s22, 1
      %p103 = por %p101, %p102
      %p104 = scmp.ne.s32.totalorder %s95, %s96
      %p105 = scmp.eq.s32.totalorder %s22, 0
      %p106 = por %p104, %p105
      %p107 = scmp.ne.s32.totalorder %s95, %s96
      %p108 = scmp.eq.s32.totalorder %s23, 1
      %p109 = por %p107, %p108
      %p111 = scmp.ne.s32.totalorder %s96, %s110
      %p112 = scmp.eq.s32.totalorder %s23, 0
      %p113 = por %p111, %p112
      %s115 = sadd.s32 %s114, 1
      %p118 = scmp.eq.s32.totalorder %s17, 1
      %p119 = scmp.ne.s32.totalorder %s114, %s116
      %p120 = scmp.eq.s32.totalorder %s17, 0
      %p121 = por %p119, %p120
      %p122 = scmp.ne.s32.totalorder %s114, %s116
      %p123 = scmp.eq.s32.totalorder %s22, 1
      %p124 = por %p122, %p123
      %p125 = scmp.ne.s32.totalorder %s116, %s117
      %p126 = scmp.eq.s32.totalorder %s22, 0
      %p127 = por %p125, %p126
      %p128 = scmp.ne.s32.totalorder %s116, %s117
      %p129 = scmp.eq.s32.totalorder %s23, 1
      %p130 = por %p128, %p129
      %p132 = scmp.ne.s32.totalorder %s117, %s131
      %p133 = scmp.eq.s32.totalorder %s23, 0
      %p134 = por %p132, %p133
      %s136 = sadd.s32 %s135, 1
      %p139 = scmp.eq.s32.totalorder %s17, 1
      %p140 = scmp.ne.s32.totalorder %s135, %s137
      %p141 = scmp.eq.s32.totalorder %s17, 0
      %p142 = por %p140, %p141
      %p143 = scmp.ne.s32.totalorder %s135, %s137
      %p144 = scmp.eq.s32.totalorder %s22, 1
      %p145 = por %p143, %p144
      %p146 = scmp.ne.s32.totalorder %s137, %s138
      %p147 = scmp.eq.s32.totalorder %s22, 0
      %p148 = por %p146, %p147
      %p149 = scmp.ne.s32.totalorder %s137, %s138
      %p150 = scmp.eq.s32.totalorder %s23, 1
      %p151 = por %p149, %p150
      %p153 = scmp.ne.s32.totalorder %s138, %s152
      %p154 = scmp.eq.s32.totalorder %s23, 0
      %p155 = por %p153, %p154
      %s157 = sadd.s32 %s156, 1
      %p160 = scmp.eq.s32.totalorder %s17, 1
      %p161 = scmp.ne.s32.totalorder %s156, %s158
      %p162 = scmp.eq.s32.totalorder %s17, 0
      %p163 = por %p161, %p162
      %p164 = scmp.ne.s32.totalorder %s156, %s158
      %p165 = scmp.eq.s32.totalorder %s22, 1
      %p166 = por %p164, %p165
      %p167 = scmp.ne.s32.totalorder %s158, %s159
      %p168 = scmp.eq.s32.totalorder %s22, 0
      %p169 = por %p167, %p168
      %p170 = scmp.ne.s32.totalorder %s158, %s159
      %p171 = scmp.eq.s32.totalorder %s23, 1
      %p172 = por %p170, %p171
      %p174 = scmp.ne.s32.totalorder %s159, %s173
      %p175 = scmp.eq.s32.totalorder %s23, 0
      %p176 = por %p174, %p175
      %s178 = sadd.s32 %s177, 1
      %p181 = scmp.eq.s32.totalorder %s17, 1
      %p182 = scmp.ne.s32.totalorder %s177, %s179
      %p183 = scmp.eq.s32.totalorder %s17, 0
      %p184 = por %p182, %p183
      %p185 = scmp.ne.s32.totalorder %s177, %s179
      %p186 = scmp.eq.s32.totalorder %s22, 1
      %p187 = por %p185, %p186
      %p188 = scmp.ne.s32.totalorder %s179, %s180
      %p189 = scmp.eq.s32.totalorder %s22, 0
      %p190 = por %p188, %p189
      %p191 = scmp.ne.s32.totalorder %s179, %s180
      %p192 = scmp.eq.s32.totalorder %s23, 1
      %p193 = por %p191, %p192
      %p195 = scmp.ne.s32.totalorder %s180, %s194
      %p196 = scmp.eq.s32.totalorder %s23, 0
      %p197 = por %p195, %p196
      %s198 = ssub.s32 %s17, %s24
      %p199 = scmp.eq.s32.totalorder %s198, 0
      %s201 = sadd.s32 %s200, 1
      %s202 = scalar_select %p199, %s200, %s201
      %p205 = pneg %p199
      %p206 = scmp.eq.s32.totalorder %s17, 1
      %p207 = por %p205, %p206
      %p208 = scmp.ne.s32.totalorder %s200, %s203
      %p209 = scmp.eq.s32.totalorder %s17, 0
      %p210 = por %p208, %p209
      %p211 = scmp.ne.s32.totalorder %s200, %s203
      %p212 = scmp.eq.s32.totalorder %s22, 1
      %p213 = por %p211, %p212
      %p214 = scmp.ne.s32.totalorder %s203, %s204
      %p215 = scmp.eq.s32.totalorder %s22, 0
      %p216 = por %p214, %p215
      %p217 = scmp.ne.s32.totalorder %s203, %s204
      %p218 = scmp.eq.s32.totalorder %s23, 1
      %p219 = por %p217, %p218
      %p221 = scmp.ne.s32.totalorder %s204, %s220
      %p222 = scmp.eq.s32.totalorder %s23, 0
      %p223 = por %p221, %p222
      %p224 = scmp.le.s32.totalorder 1, %s17
      %p225 = scmp.lt.s32.totalorder %s17, 3
      %p226 = pnand %p224, %p225
      %p227 = pneg %p226
      // Predicated region
      $region9: #{_lambda_.3} parent=5 // pred_check
        _
      $region10: #{_lambda_.3} parent=5 // pred_check_branch
        %229 = sbr.rel (%p226) target = $region12
      $region11: #{_lambda_.3} parent=5 // pred_region
        %s230 = ssub.s32 %s17, 1
        // Predicated region
        $region13: #{_lambda_.3} parent=11 // pred_check
          %p231 = pneg %p64
        $region14: #{_lambda_.3} parent=11 // pred_check_branch
          %233 = sbr.rel (%p231) target = $region16
        $region15: #{_lambda_.3} parent=11 // pred_region
          _
        $region16: #{_lambda_.3} parent=11 // pred_fallthru
          _
        // Predicated region
        $region17: #{_lambda_.3} parent=11 // pred_check
          %p234 = pneg %p85
        $region18: #{_lambda_.3} parent=11 // pred_check_branch
          %236 = sbr.rel (%p234) target = $region20
        $region19: #{_lambda_.3} parent=11 // pred_region
          _
        $region20: #{_lambda_.3} parent=11 // pred_fallthru
          _
        // Predicated region
        $region21: #{_lambda_.3} parent=11 // pred_check
          %p237 = pneg %p106
        $region22: #{_lambda_.3} parent=11 // pred_check_branch
          %239 = sbr.rel (%p237) target = $region24
        $region23: #{_lambda_.3} parent=11 // pred_region
          _
        $region24: #{_lambda_.3} parent=11 // pred_fallthru
          _
        // Predicated region
        $region25: #{_lambda_.3} parent=11 // pred_check
          %p240 = pneg %p127
        $region26: #{_lambda_.3} parent=11 // pred_check_branch
          %242 = sbr.rel (%p240) target = $region28
        $region27: #{_lambda_.3} parent=11 // pred_region
          _
        $region28: #{_lambda_.3} parent=11 // pred_fallthru
          _
        // Predicated region
        $region29: #{_lambda_.3} parent=11 // pred_check
          %p243 = pneg %p148
        $region30: #{_lambda_.3} parent=11 // pred_check_branch
          %245 = sbr.rel (%p243) target = $region32
        $region31: #{_lambda_.3} parent=11 // pred_region
          _
        $region32: #{_lambda_.3} parent=11 // pred_fallthru
          _
        // Predicated region
        $region33: #{_lambda_.3} parent=11 // pred_check
          %p246 = pneg %p169
        $region34: #{_lambda_.3} parent=11 // pred_check_branch
          %248 = sbr.rel (%p246) target = $region36
        $region35: #{_lambda_.3} parent=11 // pred_region
          _
        $region36: #{_lambda_.3} parent=11 // pred_fallthru
          _
        // Predicated region
        $region37: #{_lambda_.3} parent=11 // pred_check
          %p249 = pneg %p190
        $region38: #{_lambda_.3} parent=11 // pred_check_branch
          %251 = sbr.rel (%p249) target = $region40
        $region39: #{_lambda_.3} parent=11 // pred_region
          _
        $region40: #{_lambda_.3} parent=11 // pred_fallthru
          _
      $region12: #{_lambda_.3} parent=5 // pred_fallthru
        _
      %p252 = scmp.lt.s32.totalorder %s17, 2
      // Predicated region
      $region41: #{_lambda_.3} parent=5 // pred_check
        %p253 = pneg %p252
      $region42: #{_lambda_.3} parent=5 // pred_check_branch
        %255 = sbr.rel (%p253) target = $region44
      $region43: #{_lambda_.3} parent=5 // pred_region
        // Predicated region
        $region45: #{_lambda_.3} parent=43 // pred_check
          %p256 = pneg %p37
        $region46: #{_lambda_.3} parent=43 // pred_check_branch
          %258 = sbr.rel (%p256) target = $region48
        $region47: #{_lambda_.3} parent=43 // pred_region
          %s259 = smul.u32 8, %s17
          %p260 = scmp.lt.s32.totalorder %s259, 15
          %s261 = scalar_select %p260, %s259, 15
          %s262 = smul.addr %s261, 8
          %s263 = scalar_lea.vmem %s0, %s262
          %s264 = smul.u32 8, %s17
        $region48: #{_lambda_.3} parent=43 // pred_fallthru
          _
      $region44: #{_lambda_.3} parent=5 // pred_fallthru
        _
      %p265 = scmp.le.s32.totalorder 1, %s17
      %p266 = scmp.lt.s32.totalorder %s17, 3
      %p267 = pnand %p265, %p266
      %p268 = pneg %p267
      // Predicated region
      $region49: #{_lambda_.3} parent=5 // pred_check
        _
      $region50: #{_lambda_.3} parent=5 // pred_check_branch
        %270 = sbr.rel (%p267) target = $region52
      $region51: #{_lambda_.3} parent=5 // pred_region
        %s271 = ssub.s32 %s17, 1
        %s272 = smul.u32 8, %s22
        %p273 = scmp.lt.s32.totalorder %s272, 15
        %s274 = scalar_select %p273, %s272, 15
        %s275 = smul.addr %s274, 8
        %s276 = scalar_lea.vmem %s0, %s275
        %p277 = pneg %p43
        %p278 = pneg %p40
        %p279 = pneg %p64
        %p280 = pneg %p61
        %p281 = pneg %p85
        %p282 = pneg %p82
        %p283 = pneg %p106
        %p284 = pneg %p103
        %p285 = pneg %p127
        %p286 = pneg %p124
        %p287 = pneg %p148
        %p288 = pneg %p145
        %p289 = pneg %p169
        %p290 = pneg %p166
        %p291 = pneg %p190
        %p292 = pneg %p187
        %p293 = pneg %p216
        %p294 = pneg %p213
        %s295 = sand.u32 %s203, 1
        %s296 = scalar_lea.sflag [#allocation5], %s295
        %s297 = sand.u32 %s203, 1
        %s298 = smul.addr %s297, 64
        %s299 = scalar_lea.vmem [#allocation4], %s298
        %s300 = smul.u32 8, %s22
        %p301 = scmp.lt.s32.totalorder %s300, 15
        %s302 = scalar_select %p301, %s300, 15
        %s303 = smul.addr %s302, 8
        %s304 = scalar_lea.vmem %s0, %s303
        %s305 = smul.u32 8, %s22
        %s306 = smul.u32 8, %s22
        %vm307 = vcmask 64512
        %308 = vst.msk [vmem:[#allocation2] sm:$0xff] %vm307, 0.0
        %309 = vst.msk [vmem:[#allocation2 + $0x8] sm:$0xff] %vm307, 0.0
        %310 = vst.msk [vmem:[#allocation2 + $0x10] sm:$0xff] %vm307, 0.0
        %311 = vst.msk [vmem:[#allocation2 + $0x18] sm:$0xff] %vm307, 0.0
        %312 = vst.msk [vmem:[#allocation2 + $0x20] sm:$0xff] %vm307, 0.0
        %313 = vst.msk [vmem:[#allocation2 + $0x28] sm:$0xff] %vm307, 0.0
        %314 = vst.msk [vmem:[#allocation2 + $0x30] sm:$0xff] %vm307, 0.0
        %315 = vst.msk [vmem:[#allocation2 + $0x38] sm:$0xff] %vm307, 0.0
        %316 = vst.msk [vmem:[#allocation2 + $0x40] sm:$0xff] %vm307, 0.0
        %317 = vst.msk [vmem:[#allocation2 + $0x48] sm:$0xff] %vm307, 0.0
        %318 = vst.msk [vmem:[#allocation2 + $0x50] sm:$0xff] %vm307, 0.0
        %319 = vst.msk [vmem:[#allocation2 + $0x58] sm:$0xff] %vm307, 0.0
        %320 = vst.msk [vmem:[#allocation3] sm:$0xff] %vm307, 0.0
        %321 = vst.msk [vmem:[#allocation3 + $0x8] sm:$0xff] %vm307, 0.0
        %322 = vst.msk [vmem:[#allocation3 + $0x10] sm:$0xff] %vm307, 0.0
        %323 = vst.msk [vmem:[#allocation3 + $0x18] sm:$0xff] %vm307, 0.0
        %324 = vst.msk [vmem:[#allocation3 + $0x20] sm:$0xff] %vm307, 0.0
        %325 = vst.msk [vmem:[#allocation3 + $0x28] sm:$0xff] %vm307, 0.0
        %326 = vst.msk [vmem:[#allocation3 + $0x30] sm:$0xff] %vm307, 0.0
        %327 = vst.msk [vmem:[#allocation3 + $0x38] sm:$0xff] %vm307, 0.0
        %328 = vst.msk [vmem:[#allocation3 + $0x40] sm:$0xff] %vm307, 0.0
        %329 = vst.msk [vmem:[#allocation3 + $0x48] sm:$0xff] %vm307, 0.0
        %330 = vst.msk [vmem:[#allocation3 + $0x50] sm:$0xff] %vm307, 0.0
        %331 = vst.msk [vmem:[#allocation3 + $0x58] sm:$0xff] %vm307, 0.0
        %v332 = vld [vmem:[%s1] sm:$0xff]
        %v333 = vld [vmem:[%s1 + $0x8] sm:$0xff]
        %v334 = vld [vmem:[%s1 + $0x10] sm:$0xff]
        %v335 = vld [vmem:[%s1 + $0x18] sm:$0xff]
        %v336 = vld [vmem:[%s1 + $0x20] sm:$0xff]
        %v337 = vld [vmem:[%s1 + $0x28] sm:$0xff]
        %v338 = vld [vmem:[%s1 + $0x30] sm:$0xff]
        %v339 = vld [vmem:[%s1 + $0x38] sm:$0xff]
        %vm340 = vcmp.ge.f32.partialorder %v332, 0.5
        %vm341 = vcmp.ge.f32.partialorder %v333, 0.5
        %vm342 = vcmp.ge.f32.partialorder %v334, 0.5
        %vm343 = vcmp.ge.f32.partialorder %v335, 0.5
        %vm344 = vcmp.ge.f32.partialorder %v336, 0.5
        %vm345 = vcmp.ge.f32.partialorder %v337, 0.5
        %vm346 = vcmp.ge.f32.partialorder %v338, 0.5
        %vm347 = vcmp.ge.f32.partialorder %v339, 0.5
        %vm348 = vcmp.le.f32.partialorder %v332, 6.5
        %vm349 = vcmp.le.f32.partialorder %v333, 6.5
        %vm350 = vcmp.le.f32.partialorder %v334, 6.5
        %vm351 = vcmp.le.f32.partialorder %v335, 6.5
        %vm352 = vcmp.le.f32.partialorder %v336, 6.5
        %vm353 = vcmp.le.f32.partialorder %v337, 6.5
        %vm354 = vcmp.le.f32.partialorder %v338, 6.5
        %vm355 = vcmp.le.f32.partialorder %v339, 6.5
        %v356 = vld [vmem:[%s2] sm:$0x1]
        %v357 = vld [vmem:[%s3] sm:$0x1]
        %v358 = vld [vmem:[%s4] sm:$0x1]
        %v359 = vld [vmem:[%s5] sm:$0x1]
        %v360 = vld [vmem:[%s304] sm:$0xff]
        %v361 = vld [vmem:[%s304 + $0x8] sm:$0xff]
        %v362 = vld [vmem:[%s304 + $0x10] sm:$0xff]
        %v363 = vld [vmem:[%s304 + $0x18] sm:$0xff]
        %v364 = vld [vmem:[%s304 + $0x20] sm:$0xff]
        %v365 = vld [vmem:[%s304 + $0x28] sm:$0xff]
        %v366 = vld [vmem:[%s304 + $0x30] sm:$0xff]
        %v367 = vld [vmem:[%s304 + $0x38] sm:$0xff]
        %v369 = vlaneseq
        %v370 = vshrl.u32 %v369, 7
        %v371 = vsub.s32 0, %v370
        %v372 = vrot.slane %v356, %v371
        %v374 = vmul.f32 %v360, %v372
        %v375 = vmul.f32 %v361, %v372
        %v376 = vmul.f32 %v362, %v372
        %v377 = vmul.f32 %v363, %v372
        %v378 = vmul.f32 %v364, %v372
        %v379 = vmul.f32 %v365, %v372
        %v380 = vmul.f32 %v366, %v372
        %v381 = vmul.f32 %v367, %v372
        %v383 = vlaneseq
        %v384 = vshrl.u32 %v383, 7
        %v385 = vsub.s32 0, %v384
        %v386 = vrot.slane %v357, %v385
        %v388 = vadd.f32 %v374, %v386
        %v389 = vadd.f32 %v375, %v386
        %v390 = vadd.f32 %v376, %v386
        %v391 = vadd.f32 %v377, %v386
        %v392 = vadd.f32 %v378, %v386
        %v393 = vadd.f32 %v379, %v386
        %v394 = vadd.f32 %v380, %v386
        %v395 = vadd.f32 %v381, %v386
        %vm396 = vcmp.ge.f32.partialorder %v388, 0.0
        %vm397 = vcmp.ge.f32.partialorder %v389, 0.0
        %vm398 = vcmp.ge.f32.partialorder %v390, 0.0
        %vm399 = vcmp.ge.f32.partialorder %v391, 0.0
        %vm400 = vcmp.ge.f32.partialorder %v392, 0.0
        %vm401 = vcmp.ge.f32.partialorder %v393, 0.0
        %vm402 = vcmp.ge.f32.partialorder %v394, 0.0
        %vm403 = vcmp.ge.f32.partialorder %v395, 0.0
        %v404 = vmul.f32 %v388, 0.1
        %v405 = vmul.f32 %v389, 0.1
        %v406 = vmul.f32 %v390, 0.1
        %v407 = vmul.f32 %v391, 0.1
        %v408 = vmul.f32 %v392, 0.1
        %v409 = vmul.f32 %v393, 0.1
        %v410 = vmul.f32 %v394, 0.1
        %v411 = vmul.f32 %v395, 0.1
        %v412 = vsel %vm396, %v388, %v404
        %v413 = vsel %vm397, %v389, %v405
        %v414 = vsel %vm398, %v390, %v406
        %v415 = vsel %vm399, %v391, %v407
        %v416 = vsel %vm400, %v392, %v408
        %v417 = vsel %vm401, %v393, %v409
        %v418 = vsel %vm402, %v394, %v410
        %v419 = vsel %vm403, %v395, %v411
        %420 = vst.msk [vmem:[#allocation2 + $0x10] sm:$0xff] %vm307, %v412
        %421 = vst.msk [vmem:[#allocation2 + $0x18] sm:$0xff] %vm307, %v413
        %422 = vst.msk [vmem:[#allocation2 + $0x20] sm:$0xff] %vm307, %v414
        %423 = vst.msk [vmem:[#allocation2 + $0x28] sm:$0xff] %vm307, %v415
        %424 = vst.msk [vmem:[#allocation2 + $0x30] sm:$0xff] %vm307, %v416
        %425 = vst.msk [vmem:[#allocation2 + $0x38] sm:$0xff] %vm307, %v417
        %426 = vst.msk [vmem:[#allocation2 + $0x40] sm:$0xff] %vm307, %v418
        %427 = vst.msk [vmem:[#allocation2 + $0x48] sm:$0xff] %vm307, %v419
        %v428 = vld [vmem:[#allocation2 + $0x7] sm:$0xff]
        %v429 = vld [vmem:[#allocation2 + $0xf] sm:$0xff]
        %v430 = vld [vmem:[#allocation2 + $0x17] sm:$0xff]
        %v431 = vld [vmem:[#allocation2 + $0x1f] sm:$0xff]
        %v432 = vld [vmem:[#allocation2 + $0x27] sm:$0xff]
        %v433 = vld [vmem:[#allocation2 + $0x2f] sm:$0xff]
        %v434 = vld [vmem:[#allocation2 + $0x37] sm:$0xff]
        %v435 = vld [vmem:[#allocation2 + $0x3f] sm:$0xff]
        %v436 = vsel %vm340, 1, 0
        %v437 = vsel %vm341, 1, 0
        %v438 = vsel %vm342, 1, 0
        %v439 = vsel %vm343, 1, 0
        %v440 = vsel %vm344, 1, 0
        %v441 = vsel %vm345, 1, 0
        %v442 = vsel %vm346, 1, 0
        %v443 = vsel %vm347, 1, 0
        %444 = vset.pattern.permute.xlu0 0
        %445 = vperm.xlu0 %444, %v436
        %v446 = vpop.permute.xlu0 %445
        %447 = vset.pattern.permute.xlu0 0
        %448 = vperm.xlu0 %447, %v437
        %v449 = vpop.permute.xlu0 %448
        %450 = vset.pattern.permute.xlu0 0
        %451 = vperm.xlu0 %450, %v438
        %v452 = vpop.permute.xlu0 %451
        %453 = vset.pattern.permute.xlu0 0
        %454 = vperm.xlu0 %453, %v439
        %v455 = vpop.permute.xlu0 %454
        %456 = vset.pattern.permute.xlu0 0
        %457 = vperm.xlu0 %456, %v440
        %v458 = vpop.permute.xlu0 %457
        %459 = vset.pattern.permute.xlu0 0
        %460 = vperm.xlu0 %459, %v441
        %v461 = vpop.permute.xlu0 %460
        %462 = vset.pattern.permute.xlu0 0
        %463 = vperm.xlu0 %462, %v442
        %v464 = vpop.permute.xlu0 %463
        %465 = vset.pattern.permute.xlu0 0
        %466 = vperm.xlu0 %465, %v443
        %v467 = vpop.permute.xlu0 %466
        %vm468 = vcmp.eq.s32.totalorder %v446, 1
        %vm469 = vcmp.eq.s32.totalorder %v449, 1
        %vm470 = vcmp.eq.s32.totalorder %v452, 1
        %vm471 = vcmp.eq.s32.totalorder %v455, 1
        %vm472 = vcmp.eq.s32.totalorder %v458, 1
        %vm473 = vcmp.eq.s32.totalorder %v461, 1
        %vm474 = vcmp.eq.s32.totalorder %v464, 1
        %vm475 = vcmp.eq.s32.totalorder %v467, 1
        %v476 = vsel %vm468, %v428, 0.0
        %v477 = vsel %vm469, %v429, 0.0
        %v478 = vsel %vm470, %v430, 0.0
        %v479 = vsel %vm471, %v431, 0.0
        %v480 = vsel %vm472, %v432, 0.0
        %v481 = vsel %vm473, %v433, 0.0
        %v482 = vsel %vm474, %v434, 0.0
        %v483 = vsel %vm475, %v435, 0.0
        %v484 = vld [vmem:[%s6] sm:$0xff]
        %v485 = vld [vmem:[#allocation2 + $0x8] sm:$0xff]
        %v486 = vld [vmem:[#allocation2 + $0x10] sm:$0xff]
        %v487 = vld [vmem:[#allocation2 + $0x18] sm:$0xff]
        %v488 = vld [vmem:[#allocation2 + $0x20] sm:$0xff]
        %v489 = vld [vmem:[#allocation2 + $0x28] sm:$0xff]
        %v490 = vld [vmem:[#allocation2 + $0x30] sm:$0xff]
        %v491 = vld [vmem:[#allocation2 + $0x38] sm:$0xff]
        %v492 = vld [vmem:[#allocation2 + $0x40] sm:$0xff]
        %s493 = scalar_lea.vmem %s6, 8
        %v494 = vld [vmem:[%s493] sm:$0xff]
        %v496 = vsel %vm307, %v485, 0
        %v499 = vsel %vm307, %v486, 0
        %v502 = vsel %vm307, %v487, 0
        %v505 = vsel %vm307, %v488, 0
        %v508 = vsel %vm307, %v489, 0
        %v511 = vsel %vm307, %v490, 0
        %v514 = vsel %vm307, %v491, 0
        %v517 = vsel %vm307, %v492, 0
        %519 = vmatprep.subr.mxu0 0.0
        %520 = vmatpush1.msra.mxu0 0.0
        %521 = vmatprep.subr.mxu0 0.0
        %522 = vmatpush1.msra.mxu0 0.0
        %523 = vmatprep.subr.mxu0 0.0
        %524 = vmatpush1.msra.mxu0 0.0
        %525 = vmatprep.subr.mxu0 0.0
        %526 = vmatpush1.msra.mxu0 0.0
        %527 = vmatprep.subr.mxu0 0.0
        %528 = vmatpush1.msra.mxu0 0.0
        %529 = vmatprep.subr.mxu0 0.0
        %530 = vmatpush1.msra.mxu0 0.0
        %531 = vmatprep.subr.mxu0 0.0
        %532 = vmatpush1.msra.mxu0 0.0
        %533 = vmatprep.subr.mxu0 0.0
        %534 = vmatpush1.msra.mxu0 0.0
        %535 = vmatprep.subr.mxu0 0.0
        %536 = vmatpush1.msra.mxu0 0.0
        %537 = vmatprep.subr.mxu0 0.0
        %538 = vmatpush1.msra.mxu0 0.0
        %539 = vmatprep.subr.mxu0 0.0
        %540 = vmatpush1.msra.mxu0 0.0
        %541 = vmatprep.subr.mxu0 0.0
        %542 = vmatpush1.msra.mxu0 0.0
        %543 = vmatprep.subr.mxu0 0.0
        %544 = vmatpush1.msra.mxu0 0.0
        %545 = vmatprep.subr.mxu0 0.0
        %546 = vmatpush1.msra.mxu0 0.0
        %547 = vmatprep.subr.mxu0 0.0
        %548 = vmatpush1.msra.mxu0 0.0
        %549 = vmatprep.subr.mxu0 0.0
        %550 = vmatpush1.msra.mxu0 %v494
        %551 = vmatprep.subr.mxu0 0.0
        %552 = vmatpush2.msra.mxu0 0.0
        %553 = vmatprep.subr.mxu0 0.0
        %554 = vmatpush2.msra.mxu0 0.0
        %555 = vmatprep.subr.mxu0 0.0
        %556 = vmatpush2.msra.mxu0 0.0
        %557 = vmatprep.subr.mxu0 0.0
        %558 = vmatpush2.msra.mxu0 0.0
        %559 = vmatprep.subr.mxu0 0.0
        %560 = vmatpush2.msra.mxu0 0.0
        %561 = vmatprep.subr.mxu0 0.0
        %562 = vmatpush2.msra.mxu0 0.0
        %563 = vmatprep.subr.mxu0 0.0
        %564 = vmatpush2.msra.mxu0 0.0
        %565 = vmatprep.subr.mxu0 0.0
        %566 = vmatpush2.msra.mxu0 0.0
        %567 = vmatprep.subr.mxu0 0.0
        %568 = vmatpush2.msra.mxu0 0.0
        %569 = vmatprep.subr.mxu0 0.0
        %570 = vmatpush2.msra.mxu0 0.0
        %571 = vmatprep.subr.mxu0 0.0
        %572 = vmatpush2.msra.mxu0 0.0
        %573 = vmatprep.subr.mxu0 0.0
        %574 = vmatpush2.msra.mxu0 0.0
        %575 = vmatprep.subr.mxu0 0.0
        %576 = vmatpush2.msra.mxu0 0.0
        %577 = vmatprep.subr.mxu0 0.0
        %578 = vmatpush2.msra.mxu0 0.0
        %579 = vmatprep.subr.mxu0 0.0
        %580 = vmatpush2.msra.mxu0 0.0
        %581 = vmatprep.subr.mxu0 0.0
        %582 = vmatpush2.msra.mxu0 0.0
        %583 = vmatprep.mubr.f32.mxu0 0.0
        %584 = vmatmul.mubr.f32.gmra.mxu0 %v496
        %v585 = vpop.f32.mrf.mxu0
        %v586 = vadd.f32 0.0, %v585
        %v587 = vpop.f32.mrf.mxu0
        %588 = vmatprep.mubr.f32.mxu0 0.0
        %589 = vmatmul.mubr.f32.gmra.mxu0 %v499
        %v590 = vpop.f32.mrf.mxu0
        %v591 = vadd.f32 0.0, %v590
        %v592 = vpop.f32.mrf.mxu0
        %593 = vmatprep.mubr.f32.mxu0 0.0
        %594 = vmatmul.mubr.f32.gmra.mxu0 %v502
        %v595 = vpop.f32.mrf.mxu0
        %v596 = vadd.f32 0.0, %v595
        %v597 = vpop.f32.mrf.mxu0
        %598 = vmatprep.mubr.f32.mxu0 0.0
        %599 = vmatmul.mubr.f32.gmra.mxu0 %v505
        %v600 = vpop.f32.mrf.mxu0
        %v601 = vadd.f32 0.0, %v600
        %v602 = vpop.f32.mrf.mxu0
        %603 = vmatprep.mubr.f32.mxu0 0.0
        %604 = vmatmul.mubr.f32.gmra.mxu0 %v508
        %v605 = vpop.f32.mrf.mxu0
        %v606 = vadd.f32 0.0, %v605
        %v607 = vpop.f32.mrf.mxu0
        %608 = vmatprep.mubr.f32.mxu0 0.0
        %609 = vmatmul.mubr.f32.gmra.mxu0 %v511
        %v610 = vpop.f32.mrf.mxu0
        %v611 = vadd.f32 0.0, %v610
        %v612 = vpop.f32.mrf.mxu0
        %613 = vmatprep.mubr.f32.mxu0 0.0
        %614 = vmatmul.mubr.f32.gmra.mxu0 %v514
        %v615 = vpop.f32.mrf.mxu0
        %v616 = vadd.f32 0.0, %v615
        %v617 = vpop.f32.mrf.mxu0
        %618 = vmatprep.mubr.f32.mxu0 0.0
        %619 = vmatmul.mubr.f32.gmra.mxu0 %v517
        %v620 = vpop.f32.mrf.mxu0
        %v621 = vadd.f32 0.0, %v620
        %v622 = vpop.f32.mrf.mxu0
        %623 = vdwg.mxu0
        %v625 = vsel %vm307, %v476, 0
        %v628 = vsel %vm307, %v477, 0
        %v631 = vsel %vm307, %v478, 0
        %v634 = vsel %vm307, %v479, 0
        %v637 = vsel %vm307, %v480, 0
        %v640 = vsel %vm307, %v481, 0
        %v643 = vsel %vm307, %v482, 0
        %v646 = vsel %vm307, %v483, 0
        %648 = vmatprep.subr.mxu0 0.0
        %649 = vmatpush1.msra.mxu0 0.0
        %650 = vmatprep.subr.mxu0 0.0
        %651 = vmatpush1.msra.mxu0 0.0
        %652 = vmatprep.subr.mxu0 0.0
        %653 = vmatpush1.msra.mxu0 0.0
        %654 = vmatprep.subr.mxu0 0.0
        %655 = vmatpush1.msra.mxu0 0.0
        %656 = vmatprep.subr.mxu0 0.0
        %657 = vmatpush1.msra.mxu0 0.0
        %658 = vmatprep.subr.mxu0 0.0
        %659 = vmatpush1.msra.mxu0 0.0
        %660 = vmatprep.subr.mxu0 0.0
        %661 = vmatpush1.msra.mxu0 0.0
        %662 = vmatprep.subr.mxu0 0.0
        %663 = vmatpush1.msra.mxu0 0.0
        %664 = vmatprep.subr.mxu0 0.0
        %665 = vmatpush1.msra.mxu0 0.0
        %666 = vmatprep.subr.mxu0 0.0
        %667 = vmatpush1.msra.mxu0 0.0
        %668 = vmatprep.subr.mxu0 0.0
        %669 = vmatpush1.msra.mxu0 0.0
        %670 = vmatprep.subr.mxu0 0.0
        %671 = vmatpush1.msra.mxu0 0.0
        %672 = vmatprep.subr.mxu0 0.0
        %673 = vmatpush1.msra.mxu0 0.0
        %674 = vmatprep.subr.mxu0 0.0
        %675 = vmatpush1.msra.mxu0 0.0
        %676 = vmatprep.subr.mxu0 0.0
        %677 = vmatpush1.msra.mxu0 0.0
        %678 = vmatprep.subr.mxu0 0.0
        %679 = vmatpush1.msra.mxu0 %v484
        %680 = vmatprep.subr.mxu0 0.0
        %681 = vmatpush2.msra.mxu0 0.0
        %682 = vmatprep.subr.mxu0 0.0
        %683 = vmatpush2.msra.mxu0 0.0
        %684 = vmatprep.subr.mxu0 0.0
        %685 = vmatpush2.msra.mxu0 0.0
        %686 = vmatprep.subr.mxu0 0.0
        %687 = vmatpush2.msra.mxu0 0.0
        %688 = vmatprep.subr.mxu0 0.0
        %689 = vmatpush2.msra.mxu0 0.0
        %690 = vmatprep.subr.mxu0 0.0
        %691 = vmatpush2.msra.mxu0 0.0
        %692 = vmatprep.subr.mxu0 0.0
        %693 = vmatpush2.msra.mxu0 0.0
        %694 = vmatprep.subr.mxu0 0.0
        %695 = vmatpush2.msra.mxu0 0.0
        %696 = vmatprep.subr.mxu0 0.0
        %697 = vmatpush2.msra.mxu0 0.0
        %698 = vmatprep.subr.mxu0 0.0
        %699 = vmatpush2.msra.mxu0 0.0
        %700 = vmatprep.subr.mxu0 0.0
        %701 = vmatpush2.msra.mxu0 0.0
        %702 = vmatprep.subr.mxu0 0.0
        %703 = vmatpush2.msra.mxu0 0.0
        %704 = vmatprep.subr.mxu0 0.0
        %705 = vmatpush2.msra.mxu0 0.0
        %706 = vmatprep.subr.mxu0 0.0
        %707 = vmatpush2.msra.mxu0 0.0
        %708 = vmatprep.subr.mxu0 0.0
        %709 = vmatpush2.msra.mxu0 0.0
        %710 = vmatprep.subr.mxu0 0.0
        %711 = vmatpush2.msra.mxu0 0.0
        %712 = vmatprep.mubr.f32.mxu0 0.0
        %713 = vmatmul.mubr.f32.gmra.mxu0 %v625
        %v714 = vpop.f32.mrf.mxu0
        %v715 = vadd.f32 %v586, %v714
        %v716 = vpop.f32.mrf.mxu0
        %717 = vmatprep.mubr.f32.mxu0 0.0
        %718 = vmatmul.mubr.f32.gmra.mxu0 %v628
        %v719 = vpop.f32.mrf.mxu0
        %v720 = vadd.f32 %v591, %v719
        %v721 = vpop.f32.mrf.mxu0
        %722 = vmatprep.mubr.f32.mxu0 0.0
        %723 = vmatmul.mubr.f32.gmra.mxu0 %v631
        %v724 = vpop.f32.mrf.mxu0
        %v725 = vadd.f32 %v596, %v724
        %v726 = vpop.f32.mrf.mxu0
        %727 = vmatprep.mubr.f32.mxu0 0.0
        %728 = vmatmul.mubr.f32.gmra.mxu0 %v634
        %v729 = vpop.f32.mrf.mxu0
        %v730 = vadd.f32 %v601, %v729
        %v731 = vpop.f32.mrf.mxu0
        %732 = vmatprep.mubr.f32.mxu0 0.0
        %733 = vmatmul.mubr.f32.gmra.mxu0 %v637
        %v734 = vpop.f32.mrf.mxu0
        %v735 = vadd.f32 %v606, %v734
        %v736 = vpop.f32.mrf.mxu0
        %737 = vmatprep.mubr.f32.mxu0 0.0
        %738 = vmatmul.mubr.f32.gmra.mxu0 %v640
        %v739 = vpop.f32.mrf.mxu0
        %v740 = vadd.f32 %v611, %v739
        %v741 = vpop.f32.mrf.mxu0
        %742 = vmatprep.mubr.f32.mxu0 0.0
        %743 = vmatmul.mubr.f32.gmra.mxu0 %v643
        %v744 = vpop.f32.mrf.mxu0
        %v745 = vadd.f32 %v616, %v744
        %v746 = vpop.f32.mrf.mxu0
        %747 = vmatprep.mubr.f32.mxu0 0.0
        %748 = vmatmul.mubr.f32.gmra.mxu0 %v646
        %v749 = vpop.f32.mrf.mxu0
        %v750 = vadd.f32 %v621, %v749
        %v751 = vpop.f32.mrf.mxu0
        %752 = vdwg.mxu0
        %v753 = vld [vmem:[#allocation2 + $0x9] sm:$0xff]
        %v754 = vld [vmem:[#allocation2 + $0x11] sm:$0xff]
        %v755 = vld [vmem:[#allocation2 + $0x19] sm:$0xff]
        %v756 = vld [vmem:[#allocation2 + $0x21] sm:$0xff]
        %v757 = vld [vmem:[#allocation2 + $0x29] sm:$0xff]
        %v758 = vld [vmem:[#allocation2 + $0x31] sm:$0xff]
        %v759 = vld [vmem:[#allocation2 + $0x39] sm:$0xff]
        %v760 = vld [vmem:[#allocation2 + $0x41] sm:$0xff]
        %v761 = vsel %vm348, 1, 0
        %v762 = vsel %vm349, 1, 0
        %v763 = vsel %vm350, 1, 0
        %v764 = vsel %vm351, 1, 0
        %v765 = vsel %vm352, 1, 0
        %v766 = vsel %vm353, 1, 0
        %v767 = vsel %vm354, 1, 0
        %v768 = vsel %vm355, 1, 0
        %769 = vset.pattern.permute.xlu0 0
        %770 = vperm.xlu0 %769, %v761
        %v771 = vpop.permute.xlu0 %770
        %772 = vset.pattern.permute.xlu0 0
        %773 = vperm.xlu0 %772, %v762
        %v774 = vpop.permute.xlu0 %773
        %775 = vset.pattern.permute.xlu0 0
        %776 = vperm.xlu0 %775, %v763
        %v777 = vpop.permute.xlu0 %776
        %778 = vset.pattern.permute.xlu0 0
        %779 = vperm.xlu0 %778, %v764
        %v780 = vpop.permute.xlu0 %779
        %781 = vset.pattern.permute.xlu0 0
        %782 = vperm.xlu0 %781, %v765
        %v783 = vpop.permute.xlu0 %782
        %784 = vset.pattern.permute.xlu0 0
        %785 = vperm.xlu0 %784, %v766
        %v786 = vpop.permute.xlu0 %785
        %787 = vset.pattern.permute.xlu0 0
        %788 = vperm.xlu0 %787, %v767
        %v789 = vpop.permute.xlu0 %788
        %790 = vset.pattern.permute.xlu0 0
        %791 = vperm.xlu0 %790, %v768
        %v792 = vpop.permute.xlu0 %791
        %vm793 = vcmp.eq.s32.totalorder %v771, 1
        %vm794 = vcmp.eq.s32.totalorder %v774, 1
        %vm795 = vcmp.eq.s32.totalorder %v777, 1
        %vm796 = vcmp.eq.s32.totalorder %v780, 1
        %vm797 = vcmp.eq.s32.totalorder %v783, 1
        %vm798 = vcmp.eq.s32.totalorder %v786, 1
        %vm799 = vcmp.eq.s32.totalorder %v789, 1
        %vm800 = vcmp.eq.s32.totalorder %v792, 1
        %v801 = vsel %vm793, %v753, 0.0
        %v802 = vsel %vm794, %v754, 0.0
        %v803 = vsel %vm795, %v755, 0.0
        %v804 = vsel %vm796, %v756, 0.0
        %v805 = vsel %vm797, %v757, 0.0
        %v806 = vsel %vm798, %v758, 0.0
        %v807 = vsel %vm799, %v759, 0.0
        %v808 = vsel %vm800, %v760, 0.0
        %s809 = scalar_lea.vmem %s6, 16
        %v810 = vld [vmem:[%s809] sm:$0xff]
        %v812 = vsel %vm307, %v801, 0
        %v815 = vsel %vm307, %v802, 0
        %v818 = vsel %vm307, %v803, 0
        %v821 = vsel %vm307, %v804, 0
        %v824 = vsel %vm307, %v805, 0
        %v827 = vsel %vm307, %v806, 0
        %v830 = vsel %vm307, %v807, 0
        %v833 = vsel %vm307, %v808, 0
        %835 = vmatprep.subr.mxu0 0.0
        %836 = vmatpush1.msra.mxu0 0.0
        %837 = vmatprep.subr.mxu0 0.0
        %838 = vmatpush1.msra.mxu0 0.0
        %839 = vmatprep.subr.mxu0 0.0
        %840 = vmatpush1.msra.mxu0 0.0
        %841 = vmatprep.subr.mxu0 0.0
        %842 = vmatpush1.msra.mxu0 0.0
        %843 = vmatprep.subr.mxu0 0.0
        %844 = vmatpush1.msra.mxu0 0.0
        %845 = vmatprep.subr.mxu0 0.0
        %846 = vmatpush1.msra.mxu0 0.0
        %847 = vmatprep.subr.mxu0 0.0
        %848 = vmatpush1.msra.mxu0 0.0
        %849 = vmatprep.subr.mxu0 0.0
        %850 = vmatpush1.msra.mxu0 0.0
        %851 = vmatprep.subr.mxu0 0.0
        %852 = vmatpush1.msra.mxu0 0.0
        %853 = vmatprep.subr.mxu0 0.0
        %854 = vmatpush1.msra.mxu0 0.0
        %855 = vmatprep.subr.mxu0 0.0
        %856 = vmatpush1.msra.mxu0 0.0
        %857 = vmatprep.subr.mxu0 0.0
        %858 = vmatpush1.msra.mxu0 0.0
        %859 = vmatprep.subr.mxu0 0.0
        %860 = vmatpush1.msra.mxu0 0.0
        %861 = vmatprep.subr.mxu0 0.0
        %862 = vmatpush1.msra.mxu0 0.0
        %863 = vmatprep.subr.mxu0 0.0
        %864 = vmatpush1.msra.mxu0 0.0
        %865 = vmatprep.subr.mxu0 0.0
        %866 = vmatpush1.msra.mxu0 %v810
        %867 = vmatprep.subr.mxu0 0.0
        %868 = vmatpush2.msra.mxu0 0.0
        %869 = vmatprep.subr.mxu0 0.0
        %870 = vmatpush2.msra.mxu0 0.0
        %871 = vmatprep.subr.mxu0 0.0
        %872 = vmatpush2.msra.mxu0 0.0
        %873 = vmatprep.subr.mxu0 0.0
        %874 = vmatpush2.msra.mxu0 0.0
        %875 = vmatprep.subr.mxu0 0.0
        %876 = vmatpush2.msra.mxu0 0.0
        %877 = vmatprep.subr.mxu0 0.0
        %878 = vmatpush2.msra.mxu0 0.0
        %879 = vmatprep.subr.mxu0 0.0
        %880 = vmatpush2.msra.mxu0 0.0
        %881 = vmatprep.subr.mxu0 0.0
        %882 = vmatpush2.msra.mxu0 0.0
        %883 = vmatprep.subr.mxu0 0.0
        %884 = vmatpush2.msra.mxu0 0.0
        %885 = vmatprep.subr.mxu0 0.0
        %886 = vmatpush2.msra.mxu0 0.0
        %887 = vmatprep.subr.mxu0 0.0
        %888 = vmatpush2.msra.mxu0 0.0
        %889 = vmatprep.subr.mxu0 0.0
        %890 = vmatpush2.msra.mxu0 0.0
        %891 = vmatprep.subr.mxu0 0.0
        %892 = vmatpush2.msra.mxu0 0.0
        %893 = vmatprep.subr.mxu0 0.0
        %894 = vmatpush2.msra.mxu0 0.0
        %895 = vmatprep.subr.mxu0 0.0
        %896 = vmatpush2.msra.mxu0 0.0
        %897 = vmatprep.subr.mxu0 0.0
        %898 = vmatpush2.msra.mxu0 0.0
        %899 = vmatprep.mubr.f32.mxu0 0.0
        %900 = vmatmul.mubr.f32.gmra.mxu0 %v812
        %v901 = vpop.f32.mrf.mxu0
        %v902 = vadd.f32 0.0, %v901
        %v903 = vpop.f32.mrf.mxu0
        %904 = vmatprep.mubr.f32.mxu0 0.0
        %905 = vmatmul.mubr.f32.gmra.mxu0 %v815
        %v906 = vpop.f32.mrf.mxu0
        %v907 = vadd.f32 0.0, %v906
        %v908 = vpop.f32.mrf.mxu0
        %909 = vmatprep.mubr.f32.mxu0 0.0
        %910 = vmatmul.mubr.f32.gmra.mxu0 %v818
        %v911 = vpop.f32.mrf.mxu0
        %v912 = vadd.f32 0.0, %v911
        %v913 = vpop.f32.mrf.mxu0
        %914 = vmatprep.mubr.f32.mxu0 0.0
        %915 = vmatmul.mubr.f32.gmra.mxu0 %v821
        %v916 = vpop.f32.mrf.mxu0
        %v917 = vadd.f32 0.0, %v916
        %v918 = vpop.f32.mrf.mxu0
        %919 = vmatprep.mubr.f32.mxu0 0.0
        %920 = vmatmul.mubr.f32.gmra.mxu0 %v824
        %v921 = vpop.f32.mrf.mxu0
        %v922 = vadd.f32 0.0, %v921
        %v923 = vpop.f32.mrf.mxu0
        %924 = vmatprep.mubr.f32.mxu0 0.0
        %925 = vmatmul.mubr.f32.gmra.mxu0 %v827
        %v926 = vpop.f32.mrf.mxu0
        %v927 = vadd.f32 0.0, %v926
        %v928 = vpop.f32.mrf.mxu0
        %929 = vmatprep.mubr.f32.mxu0 0.0
        %930 = vmatmul.mubr.f32.gmra.mxu0 %v830
        %v931 = vpop.f32.mrf.mxu0
        %v932 = vadd.f32 0.0, %v931
        %v933 = vpop.f32.mrf.mxu0
        %934 = vmatprep.mubr.f32.mxu0 0.0
        %935 = vmatmul.mubr.f32.gmra.mxu0 %v833
        %v936 = vpop.f32.mrf.mxu0
        %v937 = vadd.f32 0.0, %v936
        %v938 = vpop.f32.mrf.mxu0
        %939 = vdwg.mxu0
        %v940 = vadd.f32 %v715, %v902
        %v941 = vadd.f32 %v720, %v907
        %v942 = vadd.f32 %v725, %v912
        %v943 = vadd.f32 %v730, %v917
        %v944 = vadd.f32 %v735, %v922
        %v945 = vadd.f32 %v740, %v927
        %v946 = vadd.f32 %v745, %v932
        %v947 = vadd.f32 %v750, %v937
        %v948 = vld [vmem:[#allocation2 + $0xf] sm:$0xff]
        %v949 = vld [vmem:[#allocation2 + $0x17] sm:$0xff]
        %v950 = vld [vmem:[#allocation2 + $0x1f] sm:$0xff]
        %v951 = vld [vmem:[#allocation2 + $0x27] sm:$0xff]
        %v952 = vld [vmem:[#allocation2 + $0x2f] sm:$0xff]
        %v953 = vld [vmem:[#allocation2 + $0x37] sm:$0xff]
        %v954 = vld [vmem:[#allocation2 + $0x3f] sm:$0xff]
        %v955 = vld [vmem:[#allocation2 + $0x47] sm:$0xff]
        %v956 = vsel %vm468, %v948, 0.0
        %v957 = vsel %vm469, %v949, 0.0
        %v958 = vsel %vm470, %v950, 0.0
        %v959 = vsel %vm471, %v951, 0.0
        %v960 = vsel %vm472, %v952, 0.0
        %v961 = vsel %vm473, %v953, 0.0
        %v962 = vsel %vm474, %v954, 0.0
        %v963 = vsel %vm475, %v955, 0.0
        %s964 = scalar_lea.vmem %s6, 24
        %v965 = vld [vmem:[%s964] sm:$0xff]
        %v967 = vsel %vm307, %v956, 0
        %v970 = vsel %vm307, %v957, 0
        %v973 = vsel %vm307, %v958, 0
        %v976 = vsel %vm307, %v959, 0
        %v979 = vsel %vm307, %v960, 0
        %v982 = vsel %vm307, %v961, 0
        %v985 = vsel %vm307, %v962, 0
        %v988 = vsel %vm307, %v963, 0
        %990 = vmatprep.subr.mxu0 0.0
        %991 = vmatpush1.msra.mxu0 0.0
        %992 = vmatprep.subr.mxu0 0.0
        %993 = vmatpush1.msra.mxu0 0.0
        %994 = vmatprep.subr.mxu0 0.0
        %995 = vmatpush1.msra.mxu0 0.0
        %996 = vmatprep.subr.mxu0 0.0
        %997 = vmatpush1.msra.mxu0 0.0
        %998 = vmatprep.subr.mxu0 0.0
        %999 = vmatpush1.msra.mxu0 0.0
        %1000 = vmatprep.subr.mxu0 0.0
        %1001 = vmatpush1.msra.mxu0 0.0
        %1002 = vmatprep.subr.mxu0 0.0
        %1003 = vmatpush1.msra.mxu0 0.0
        %1004 = vmatprep.subr.mxu0 0.0
        %1005 = vmatpush1.msra.mxu0 0.0
        %1006 = vmatprep.subr.mxu0 0.0
        %1007 = vmatpush1.msra.mxu0 0.0
        %1008 = vmatprep.subr.mxu0 0.0
        %1009 = vmatpush1.msra.mxu0 0.0
        %1010 = vmatprep.subr.mxu0 0.0
        %1011 = vmatpush1.msra.mxu0 0.0
        %1012 = vmatprep.subr.mxu0 0.0
        %1013 = vmatpush1.msra.mxu0 0.0
        %1014 = vmatprep.subr.mxu0 0.0
        %1015 = vmatpush1.msra.mxu0 0.0
        %1016 = vmatprep.subr.mxu0 0.0
        %1017 = vmatpush1.msra.mxu0 0.0
        %1018 = vmatprep.subr.mxu0 0.0
        %1019 = vmatpush1.msra.mxu0 0.0
        %1020 = vmatprep.subr.mxu0 0.0
        %1021 = vmatpush1.msra.mxu0 %v965
        %1022 = vmatprep.subr.mxu0 0.0
        %1023 = vmatpush2.msra.mxu0 0.0
        %1024 = vmatprep.subr.mxu0 0.0
        %1025 = vmatpush2.msra.mxu0 0.0
        %1026 = vmatprep.subr.mxu0 0.0
        %1027 = vmatpush2.msra.mxu0 0.0
        %1028 = vmatprep.subr.mxu0 0.0
        %1029 = vmatpush2.msra.mxu0 0.0
        %1030 = vmatprep.subr.mxu0 0.0
        %1031 = vmatpush2.msra.mxu0 0.0
        %1032 = vmatprep.subr.mxu0 0.0
        %1033 = vmatpush2.msra.mxu0 0.0
        %1034 = vmatprep.subr.mxu0 0.0
        %1035 = vmatpush2.msra.mxu0 0.0
        %1036 = vmatprep.subr.mxu0 0.0
        %1037 = vmatpush2.msra.mxu0 0.0
        %1038 = vmatprep.subr.mxu0 0.0
        %1039 = vmatpush2.msra.mxu0 0.0
        %1040 = vmatprep.subr.mxu0 0.0
        %1041 = vmatpush2.msra.mxu0 0.0
        %1042 = vmatprep.subr.mxu0 0.0
        %1043 = vmatpush2.msra.mxu0 0.0
        %1044 = vmatprep.subr.mxu0 0.0
        %1045 = vmatpush2.msra.mxu0 0.0
        %1046 = vmatprep.subr.mxu0 0.0
        %1047 = vmatpush2.msra.mxu0 0.0
        %1048 = vmatprep.subr.mxu0 0.0
        %1049 = vmatpush2.msra.mxu0 0.0
        %1050 = vmatprep.subr.mxu0 0.0
        %1051 = vmatpush2.msra.mxu0 0.0
        %1052 = vmatprep.subr.mxu0 0.0
        %1053 = vmatpush2.msra.mxu0 0.0
        %1054 = vmatprep.mubr.f32.mxu0 0.0
        %1055 = vmatmul.mubr.f32.gmra.mxu0 %v967
        %v1056 = vpop.f32.mrf.mxu0
        %v1057 = vadd.f32 0.0, %v1056
        %v1058 = vpop.f32.mrf.mxu0
        %1059 = vmatprep.mubr.f32.mxu0 0.0
        %1060 = vmatmul.mubr.f32.gmra.mxu0 %v970
        %v1061 = vpop.f32.mrf.mxu0
        %v1062 = vadd.f32 0.0, %v1061
        %v1063 = vpop.f32.mrf.mxu0
        %1064 = vmatprep.mubr.f32.mxu0 0.0
        %1065 = vmatmul.mubr.f32.gmra.mxu0 %v973
        %v1066 = vpop.f32.mrf.mxu0
        %v1067 = vadd.f32 0.0, %v1066
        %v1068 = vpop.f32.mrf.mxu0
        %1069 = vmatprep.mubr.f32.mxu0 0.0
        %1070 = vmatmul.mubr.f32.gmra.mxu0 %v976
        %v1071 = vpop.f32.mrf.mxu0
        %v1072 = vadd.f32 0.0, %v1071
        %v1073 = vpop.f32.mrf.mxu0
        %1074 = vmatprep.mubr.f32.mxu0 0.0
        %1075 = vmatmul.mubr.f32.gmra.mxu0 %v979
        %v1076 = vpop.f32.mrf.mxu0
        %v1077 = vadd.f32 0.0, %v1076
        %v1078 = vpop.f32.mrf.mxu0
        %1079 = vmatprep.mubr.f32.mxu0 0.0
        %1080 = vmatmul.mubr.f32.gmra.mxu0 %v982
        %v1081 = vpop.f32.mrf.mxu0
        %v1082 = vadd.f32 0.0, %v1081
        %v1083 = vpop.f32.mrf.mxu0
        %1084 = vmatprep.mubr.f32.mxu0 0.0
        %1085 = vmatmul.mubr.f32.gmra.mxu0 %v985
        %v1086 = vpop.f32.mrf.mxu0
        %v1087 = vadd.f32 0.0, %v1086
        %v1088 = vpop.f32.mrf.mxu0
        %1089 = vmatprep.mubr.f32.mxu0 0.0
        %1090 = vmatmul.mubr.f32.gmra.mxu0 %v988
        %v1091 = vpop.f32.mrf.mxu0
        %v1092 = vadd.f32 0.0, %v1091
        %v1093 = vpop.f32.mrf.mxu0
        %1094 = vdwg.mxu0
        %v1095 = vadd.f32 %v940, %v1057
        %v1096 = vadd.f32 %v941, %v1062
        %v1097 = vadd.f32 %v942, %v1067
        %v1098 = vadd.f32 %v943, %v1072
        %v1099 = vadd.f32 %v944, %v1077
        %v1100 = vadd.f32 %v945, %v1082
        %v1101 = vadd.f32 %v946, %v1087
        %v1102 = vadd.f32 %v947, %v1092
        %v1103 = vld [vmem:[#allocation2 + $0x10] sm:$0xff]
        %v1104 = vld [vmem:[#allocation2 + $0x18] sm:$0xff]
        %v1105 = vld [vmem:[#allocation2 + $0x20] sm:$0xff]
        %v1106 = vld [vmem:[#allocation2 + $0x28] sm:$0xff]
        %v1107 = vld [vmem:[#allocation2 + $0x30] sm:$0xff]
        %v1108 = vld [vmem:[#allocation2 + $0x38] sm:$0xff]
        %v1109 = vld [vmem:[#allocation2 + $0x40] sm:$0xff]
        %v1110 = vld [vmem:[#allocation2 + $0x48] sm:$0xff]
        %s1111 = scalar_lea.vmem %s6, 32
        %v1112 = vld [vmem:[%s1111] sm:$0xff]
        %v1114 = vsel %vm307, %v1103, 0
        %v1117 = vsel %vm307, %v1104, 0
        %v1120 = vsel %vm307, %v1105, 0
        %v1123 = vsel %vm307, %v1106, 0
        %v1126 = vsel %vm307, %v1107, 0
        %v1129 = vsel %vm307, %v1108, 0
        %v1132 = vsel %vm307, %v1109, 0
        %v1135 = vsel %vm307, %v1110, 0
        %1137 = vmatprep.subr.mxu0 0.0
        %1138 = vmatpush1.msra.mxu0 0.0
        %1139 = vmatprep.subr.mxu0 0.0
        %1140 = vmatpush1.msra.mxu0 0.0
        %1141 = vmatprep.subr.mxu0 0.0
        %1142 = vmatpush1.msra.mxu0 0.0
        %1143 = vmatprep.subr.mxu0 0.0
        %1144 = vmatpush1.msra.mxu0 0.0
        %1145 = vmatprep.subr.mxu0 0.0
        %1146 = vmatpush1.msra.mxu0 0.0
        %1147 = vmatprep.subr.mxu0 0.0
        %1148 = vmatpush1.msra.mxu0 0.0
        %1149 = vmatprep.subr.mxu0 0.0
        %1150 = vmatpush1.msra.mxu0 0.0
        %1151 = vmatprep.subr.mxu0 0.0
        %1152 = vmatpush1.msra.mxu0 0.0
        %1153 = vmatprep.subr.mxu0 0.0
        %1154 = vmatpush1.msra.mxu0 0.0
        %1155 = vmatprep.subr.mxu0 0.0
        %1156 = vmatpush1.msra.mxu0 0.0
        %1157 = vmatprep.subr.mxu0 0.0
        %1158 = vmatpush1.msra.mxu0 0.0
        %1159 = vmatprep.subr.mxu0 0.0
        %1160 = vmatpush1.msra.mxu0 0.0
        %1161 = vmatprep.subr.mxu0 0.0
        %1162 = vmatpush1.msra.mxu0 0.0
        %1163 = vmatprep.subr.mxu0 0.0
        %1164 = vmatpush1.msra.mxu0 0.0
        %1165 = vmatprep.subr.mxu0 0.0
        %1166 = vmatpush1.msra.mxu0 0.0
        %1167 = vmatprep.subr.mxu0 0.0
        %1168 = vmatpush1.msra.mxu0 %v1112
        %1169 = vmatprep.subr.mxu0 0.0
        %1170 = vmatpush2.msra.mxu0 0.0
        %1171 = vmatprep.subr.mxu0 0.0
        %1172 = vmatpush2.msra.mxu0 0.0
        %1173 = vmatprep.subr.mxu0 0.0
        %1174 = vmatpush2.msra.mxu0 0.0
        %1175 = vmatprep.subr.mxu0 0.0
        %1176 = vmatpush2.msra.mxu0 0.0
        %1177 = vmatprep.subr.mxu0 0.0
        %1178 = vmatpush2.msra.mxu0 0.0
        %1179 = vmatprep.subr.mxu0 0.0
        %1180 = vmatpush2.msra.mxu0 0.0
        %1181 = vmatprep.subr.mxu0 0.0
        %1182 = vmatpush2.msra.mxu0 0.0
        %1183 = vmatprep.subr.mxu0 0.0
        %1184 = vmatpush2.msra.mxu0 0.0
        %1185 = vmatprep.subr.mxu0 0.0
        %1186 = vmatpush2.msra.mxu0 0.0
        %1187 = vmatprep.subr.mxu0 0.0
        %1188 = vmatpush2.msra.mxu0 0.0
        %1189 = vmatprep.subr.mxu0 0.0
        %1190 = vmatpush2.msra.mxu0 0.0
        %1191 = vmatprep.subr.mxu0 0.0
        %1192 = vmatpush2.msra.mxu0 0.0
        %1193 = vmatprep.subr.mxu0 0.0
        %1194 = vmatpush2.msra.mxu0 0.0
        %1195 = vmatprep.subr.mxu0 0.0
        %1196 = vmatpush2.msra.mxu0 0.0
        %1197 = vmatprep.subr.mxu0 0.0
        %1198 = vmatpush2.msra.mxu0 0.0
        %1199 = vmatprep.subr.mxu0 0.0
        %1200 = vmatpush2.msra.mxu0 0.0
        %1201 = vmatprep.mubr.f32.mxu0 0.0
        %1202 = vmatmul.mubr.f32.gmra.mxu0 %v1114
        %v1203 = vpop.f32.mrf.mxu0
        %v1204 = vadd.f32 0.0, %v1203
        %v1205 = vpop.f32.mrf.mxu0
        %1206 = vmatprep.mubr.f32.mxu0 0.0
        %1207 = vmatmul.mubr.f32.gmra.mxu0 %v1117
        %v1208 = vpop.f32.mrf.mxu0
        %v1209 = vadd.f32 0.0, %v1208
        %v1210 = vpop.f32.mrf.mxu0
        %1211 = vmatprep.mubr.f32.mxu0 0.0
        %1212 = vmatmul.mubr.f32.gmra.mxu0 %v1120
        %v1213 = vpop.f32.mrf.mxu0
        %v1214 = vadd.f32 0.0, %v1213
        %v1215 = vpop.f32.mrf.mxu0
        %1216 = vmatprep.mubr.f32.mxu0 0.0
        %1217 = vmatmul.mubr.f32.gmra.mxu0 %v1123
        %v1218 = vpop.f32.mrf.mxu0
        %v1219 = vadd.f32 0.0, %v1218
        %v1220 = vpop.f32.mrf.mxu0
        %1221 = vmatprep.mubr.f32.mxu0 0.0
        %1222 = vmatmul.mubr.f32.gmra.mxu0 %v1126
        %v1223 = vpop.f32.mrf.mxu0
        %v1224 = vadd.f32 0.0, %v1223
        %v1225 = vpop.f32.mrf.mxu0
        %1226 = vmatprep.mubr.f32.mxu0 0.0
        %1227 = vmatmul.mubr.f32.gmra.mxu0 %v1129
        %v1228 = vpop.f32.mrf.mxu0
        %v1229 = vadd.f32 0.0, %v1228
        %v1230 = vpop.f32.mrf.mxu0
        %1231 = vmatprep.mubr.f32.mxu0 0.0
        %1232 = vmatmul.mubr.f32.gmra.mxu0 %v1132
        %v1233 = vpop.f32.mrf.mxu0
        %v1234 = vadd.f32 0.0, %v1233
        %v1235 = vpop.f32.mrf.mxu0
        %1236 = vmatprep.mubr.f32.mxu0 0.0
        %1237 = vmatmul.mubr.f32.gmra.mxu0 %v1135
        %v1238 = vpop.f32.mrf.mxu0
        %v1239 = vadd.f32 0.0, %v1238
        %v1240 = vpop.f32.mrf.mxu0
        %1241 = vdwg.mxu0
        %v1242 = vadd.f32 %v1095, %v1204
        %v1243 = vadd.f32 %v1096, %v1209
        %v1244 = vadd.f32 %v1097, %v1214
        %v1245 = vadd.f32 %v1098, %v1219
        %v1246 = vadd.f32 %v1099, %v1224
        %v1247 = vadd.f32 %v1100, %v1229
        %v1248 = vadd.f32 %v1101, %v1234
        %v1249 = vadd.f32 %v1102, %v1239
        %v1250 = vld [vmem:[#allocation2 + $0x11] sm:$0xff]
        %v1251 = vld [vmem:[#allocation2 + $0x19] sm:$0xff]
        %v1252 = vld [vmem:[#allocation2 + $0x21] sm:$0xff]
        %v1253 = vld [vmem:[#allocation2 + $0x29] sm:$0xff]
        %v1254 = vld [vmem:[#allocation2 + $0x31] sm:$0xff]
        %v1255 = vld [vmem:[#allocation2 + $0x39] sm:$0xff]
        %v1256 = vld [vmem:[#allocation2 + $0x41] sm:$0xff]
        %v1257 = vld [vmem:[#allocation2 + $0x49] sm:$0xff]
        %v1258 = vsel %vm793, %v1250, 0.0
        %v1259 = vsel %vm794, %v1251, 0.0
        %v1260 = vsel %vm795, %v1252, 0.0
        %v1261 = vsel %vm796, %v1253, 0.0
        %v1262 = vsel %vm797, %v1254, 0.0
        %v1263 = vsel %vm798, %v1255, 0.0
        %v1264 = vsel %vm799, %v1256, 0.0
        %v1265 = vsel %vm800, %v1257, 0.0
        %s1266 = scalar_lea.vmem %s6, 40
        %v1267 = vld [vmem:[%s1266] sm:$0xff]
        %v1269 = vsel %vm307, %v1258, 0
        %v1272 = vsel %vm307, %v1259, 0
        %v1275 = vsel %vm307, %v1260, 0
        %v1278 = vsel %vm307, %v1261, 0
        %v1281 = vsel %vm307, %v1262, 0
        %v1284 = vsel %vm307, %v1263, 0
        %v1287 = vsel %vm307, %v1264, 0
        %v1290 = vsel %vm307, %v1265, 0
        %1292 = vmatprep.subr.mxu0 0.0
        %1293 = vmatpush1.msra.mxu0 0.0
        %1294 = vmatprep.subr.mxu0 0.0
        %1295 = vmatpush1.msra.mxu0 0.0
        %1296 = vmatprep.subr.mxu0 0.0
        %1297 = vmatpush1.msra.mxu0 0.0
        %1298 = vmatprep.subr.mxu0 0.0
        %1299 = vmatpush1.msra.mxu0 0.0
        %1300 = vmatprep.subr.mxu0 0.0
        %1301 = vmatpush1.msra.mxu0 0.0
        %1302 = vmatprep.subr.mxu0 0.0
        %1303 = vmatpush1.msra.mxu0 0.0
        %1304 = vmatprep.subr.mxu0 0.0
        %1305 = vmatpush1.msra.mxu0 0.0
        %1306 = vmatprep.subr.mxu0 0.0
        %1307 = vmatpush1.msra.mxu0 0.0
        %1308 = vmatprep.subr.mxu0 0.0
        %1309 = vmatpush1.msra.mxu0 0.0
        %1310 = vmatprep.subr.mxu0 0.0
        %1311 = vmatpush1.msra.mxu0 0.0
        %1312 = vmatprep.subr.mxu0 0.0
        %1313 = vmatpush1.msra.mxu0 0.0
        %1314 = vmatprep.subr.mxu0 0.0
        %1315 = vmatpush1.msra.mxu0 0.0
        %1316 = vmatprep.subr.mxu0 0.0
        %1317 = vmatpush1.msra.mxu0 0.0
        %1318 = vmatprep.subr.mxu0 0.0
        %1319 = vmatpush1.msra.mxu0 0.0
        %1320 = vmatprep.subr.mxu0 0.0
        %1321 = vmatpush1.msra.mxu0 0.0
        %1322 = vmatprep.subr.mxu0 0.0
        %1323 = vmatpush1.msra.mxu0 %v1267
        %1324 = vmatprep.subr.mxu0 0.0
        %1325 = vmatpush2.msra.mxu0 0.0
        %1326 = vmatprep.subr.mxu0 0.0
        %1327 = vmatpush2.msra.mxu0 0.0
        %1328 = vmatprep.subr.mxu0 0.0
        %1329 = vmatpush2.msra.mxu0 0.0
        %1330 = vmatprep.subr.mxu0 0.0
        %1331 = vmatpush2.msra.mxu0 0.0
        %1332 = vmatprep.subr.mxu0 0.0
        %1333 = vmatpush2.msra.mxu0 0.0
        %1334 = vmatprep.subr.mxu0 0.0
        %1335 = vmatpush2.msra.mxu0 0.0
        %1336 = vmatprep.subr.mxu0 0.0
        %1337 = vmatpush2.msra.mxu0 0.0
        %1338 = vmatprep.subr.mxu0 0.0
        %1339 = vmatpush2.msra.mxu0 0.0
        %1340 = vmatprep.subr.mxu0 0.0
        %1341 = vmatpush2.msra.mxu0 0.0
        %1342 = vmatprep.subr.mxu0 0.0
        %1343 = vmatpush2.msra.mxu0 0.0
        %1344 = vmatprep.subr.mxu0 0.0
        %1345 = vmatpush2.msra.mxu0 0.0
        %1346 = vmatprep.subr.mxu0 0.0
        %1347 = vmatpush2.msra.mxu0 0.0
        %1348 = vmatprep.subr.mxu0 0.0
        %1349 = vmatpush2.msra.mxu0 0.0
        %1350 = vmatprep.subr.mxu0 0.0
        %1351 = vmatpush2.msra.mxu0 0.0
        %1352 = vmatprep.subr.mxu0 0.0
        %1353 = vmatpush2.msra.mxu0 0.0
        %1354 = vmatprep.subr.mxu0 0.0
        %1355 = vmatpush2.msra.mxu0 0.0
        %1356 = vmatprep.mubr.f32.mxu0 0.0
        %1357 = vmatmul.mubr.f32.gmra.mxu0 %v1269
        %v1358 = vpop.f32.mrf.mxu0
        %v1359 = vadd.f32 0.0, %v1358
        %v1360 = vpop.f32.mrf.mxu0
        %1361 = vmatprep.mubr.f32.mxu0 0.0
        %1362 = vmatmul.mubr.f32.gmra.mxu0 %v1272
        %v1363 = vpop.f32.mrf.mxu0
        %v1364 = vadd.f32 0.0, %v1363
        %v1365 = vpop.f32.mrf.mxu0
        %1366 = vmatprep.mubr.f32.mxu0 0.0
        %1367 = vmatmul.mubr.f32.gmra.mxu0 %v1275
        %v1368 = vpop.f32.mrf.mxu0
        %v1369 = vadd.f32 0.0, %v1368
        %v1370 = vpop.f32.mrf.mxu0
        %1371 = vmatprep.mubr.f32.mxu0 0.0
        %1372 = vmatmul.mubr.f32.gmra.mxu0 %v1278
        %v1373 = vpop.f32.mrf.mxu0
        %v1374 = vadd.f32 0.0, %v1373
        %v1375 = vpop.f32.mrf.mxu0
        %1376 = vmatprep.mubr.f32.mxu0 0.0
        %1377 = vmatmul.mubr.f32.gmra.mxu0 %v1281
        %v1378 = vpop.f32.mrf.mxu0
        %v1379 = vadd.f32 0.0, %v1378
        %v1380 = vpop.f32.mrf.mxu0
        %1381 = vmatprep.mubr.f32.mxu0 0.0
        %1382 = vmatmul.mubr.f32.gmra.mxu0 %v1284
        %v1383 = vpop.f32.mrf.mxu0
        %v1384 = vadd.f32 0.0, %v1383
        %v1385 = vpop.f32.mrf.mxu0
        %1386 = vmatprep.mubr.f32.mxu0 0.0
        %1387 = vmatmul.mubr.f32.gmra.mxu0 %v1287
        %v1388 = vpop.f32.mrf.mxu0
        %v1389 = vadd.f32 0.0, %v1388
        %v1390 = vpop.f32.mrf.mxu0
        %1391 = vmatprep.mubr.f32.mxu0 0.0
        %1392 = vmatmul.mubr.f32.gmra.mxu0 %v1290
        %v1393 = vpop.f32.mrf.mxu0
        %v1394 = vadd.f32 0.0, %v1393
        %v1395 = vpop.f32.mrf.mxu0
        %1396 = vdwg.mxu0
        %v1397 = vadd.f32 %v1242, %v1359
        %v1398 = vadd.f32 %v1243, %v1364
        %v1399 = vadd.f32 %v1244, %v1369
        %v1400 = vadd.f32 %v1245, %v1374
        %v1401 = vadd.f32 %v1246, %v1379
        %v1402 = vadd.f32 %v1247, %v1384
        %v1403 = vadd.f32 %v1248, %v1389
        %v1404 = vadd.f32 %v1249, %v1394
        %v1405 = vld [vmem:[#allocation2 + $0x17] sm:$0xff]
        %v1406 = vld [vmem:[#allocation2 + $0x1f] sm:$0xff]
        %v1407 = vld [vmem:[#allocation2 + $0x27] sm:$0xff]
        %v1408 = vld [vmem:[#allocation2 + $0x2f] sm:$0xff]
        %v1409 = vld [vmem:[#allocation2 + $0x37] sm:$0xff]
        %v1410 = vld [vmem:[#allocation2 + $0x3f] sm:$0xff]
        %v1411 = vld [vmem:[#allocation2 + $0x47] sm:$0xff]
        %v1412 = vld [vmem:[#allocation2 + $0x4f] sm:$0xff]
        %v1413 = vsel %vm468, %v1405, 0.0
        %v1414 = vsel %vm469, %v1406, 0.0
        %v1415 = vsel %vm470, %v1407, 0.0
        %v1416 = vsel %vm471, %v1408, 0.0
        %v1417 = vsel %vm472, %v1409, 0.0
        %v1418 = vsel %vm473, %v1410, 0.0
        %v1419 = vsel %vm474, %v1411, 0.0
        %v1420 = vsel %vm475, %v1412, 0.0
        %s1421 = scalar_lea.vmem %s6, 48
        %v1422 = vld [vmem:[%s1421] sm:$0xff]
        %v1424 = vsel %vm307, %v1413, 0
        %v1427 = vsel %vm307, %v1414, 0
        %v1430 = vsel %vm307, %v1415, 0
        %v1433 = vsel %vm307, %v1416, 0
        %v1436 = vsel %vm307, %v1417, 0
        %v1439 = vsel %vm307, %v1418, 0
        %v1442 = vsel %vm307, %v1419, 0
        %v1445 = vsel %vm307, %v1420, 0
        %1447 = vmatprep.subr.mxu0 0.0
        %1448 = vmatpush1.msra.mxu0 0.0
        %1449 = vmatprep.subr.mxu0 0.0
        %1450 = vmatpush1.msra.mxu0 0.0
        %1451 = vmatprep.subr.mxu0 0.0
        %1452 = vmatpush1.msra.mxu0 0.0
        %1453 = vmatprep.subr.mxu0 0.0
        %1454 = vmatpush1.msra.mxu0 0.0
        %1455 = vmatprep.subr.mxu0 0.0
        %1456 = vmatpush1.msra.mxu0 0.0
        %1457 = vmatprep.subr.mxu0 0.0
        %1458 = vmatpush1.msra.mxu0 0.0
        %1459 = vmatprep.subr.mxu0 0.0
        %1460 = vmatpush1.msra.mxu0 0.0
        %1461 = vmatprep.subr.mxu0 0.0
        %1462 = vmatpush1.msra.mxu0 0.0
        %1463 = vmatprep.subr.mxu0 0.0
        %1464 = vmatpush1.msra.mxu0 0.0
        %1465 = vmatprep.subr.mxu0 0.0
        %1466 = vmatpush1.msra.mxu0 0.0
        %1467 = vmatprep.subr.mxu0 0.0
        %1468 = vmatpush1.msra.mxu0 0.0
        %1469 = vmatprep.subr.mxu0 0.0
        %1470 = vmatpush1.msra.mxu0 0.0
        %1471 = vmatprep.subr.mxu0 0.0
        %1472 = vmatpush1.msra.mxu0 0.0
        %1473 = vmatprep.subr.mxu0 0.0
        %1474 = vmatpush1.msra.mxu0 0.0
        %1475 = vmatprep.subr.mxu0 0.0
        %1476 = vmatpush1.msra.mxu0 0.0
        %1477 = vmatprep.subr.mxu0 0.0
        %1478 = vmatpush1.msra.mxu0 %v1422
        %1479 = vmatprep.subr.mxu0 0.0
        %1480 = vmatpush2.msra.mxu0 0.0
        %1481 = vmatprep.subr.mxu0 0.0
        %1482 = vmatpush2.msra.mxu0 0.0
        %1483 = vmatprep.subr.mxu0 0.0
        %1484 = vmatpush2.msra.mxu0 0.0
        %1485 = vmatprep.subr.mxu0 0.0
        %1486 = vmatpush2.msra.mxu0 0.0
        %1487 = vmatprep.subr.mxu0 0.0
        %1488 = vmatpush2.msra.mxu0 0.0
        %1489 = vmatprep.subr.mxu0 0.0
        %1490 = vmatpush2.msra.mxu0 0.0
        %1491 = vmatprep.subr.mxu0 0.0
        %1492 = vmatpush2.msra.mxu0 0.0
        %1493 = vmatprep.subr.mxu0 0.0
        %1494 = vmatpush2.msra.mxu0 0.0
        %1495 = vmatprep.subr.mxu0 0.0
        %1496 = vmatpush2.msra.mxu0 0.0
        %1497 = vmatprep.subr.mxu0 0.0
        %1498 = vmatpush2.msra.mxu0 0.0
        %1499 = vmatprep.subr.mxu0 0.0
        %1500 = vmatpush2.msra.mxu0 0.0
        %1501 = vmatprep.subr.mxu0 0.0
        %1502 = vmatpush2.msra.mxu0 0.0
        %1503 = vmatprep.subr.mxu0 0.0
        %1504 = vmatpush2.msra.mxu0 0.0
        %1505 = vmatprep.subr.mxu0 0.0
        %1506 = vmatpush2.msra.mxu0 0.0
        %1507 = vmatprep.subr.mxu0 0.0
        %1508 = vmatpush2.msra.mxu0 0.0
        %1509 = vmatprep.subr.mxu0 0.0
        %1510 = vmatpush2.msra.mxu0 0.0
        %1511 = vmatprep.mubr.f32.mxu0 0.0
        %1512 = vmatmul.mubr.f32.gmra.mxu0 %v1424
        %v1513 = vpop.f32.mrf.mxu0
        %v1514 = vadd.f32 0.0, %v1513
        %v1515 = vpop.f32.mrf.mxu0
        %1516 = vmatprep.mubr.f32.mxu0 0.0
        %1517 = vmatmul.mubr.f32.gmra.mxu0 %v1427
        %v1518 = vpop.f32.mrf.mxu0
        %v1519 = vadd.f32 0.0, %v1518
        %v1520 = vpop.f32.mrf.mxu0
        %1521 = vmatprep.mubr.f32.mxu0 0.0
        %1522 = vmatmul.mubr.f32.gmra.mxu0 %v1430
        %v1523 = vpop.f32.mrf.mxu0
        %v1524 = vadd.f32 0.0, %v1523
        %v1525 = vpop.f32.mrf.mxu0
        %1526 = vmatprep.mubr.f32.mxu0 0.0
        %1527 = vmatmul.mubr.f32.gmra.mxu0 %v1433
        %v1528 = vpop.f32.mrf.mxu0
        %v1529 = vadd.f32 0.0, %v1528
        %v1530 = vpop.f32.mrf.mxu0
        %1531 = vmatprep.mubr.f32.mxu0 0.0
        %1532 = vmatmul.mubr.f32.gmra.mxu0 %v1436
        %v1533 = vpop.f32.mrf.mxu0
        %v1534 = vadd.f32 0.0, %v1533
        %v1535 = vpop.f32.mrf.mxu0
        %1536 = vmatprep.mubr.f32.mxu0 0.0
        %1537 = vmatmul.mubr.f32.gmra.mxu0 %v1439
        %v1538 = vpop.f32.mrf.mxu0
        %v1539 = vadd.f32 0.0, %v1538
        %v1540 = vpop.f32.mrf.mxu0
        %1541 = vmatprep.mubr.f32.mxu0 0.0
        %1542 = vmatmul.mubr.f32.gmra.mxu0 %v1442
        %v1543 = vpop.f32.mrf.mxu0
        %v1544 = vadd.f32 0.0, %v1543
        %v1545 = vpop.f32.mrf.mxu0
        %1546 = vmatprep.mubr.f32.mxu0 0.0
        %1547 = vmatmul.mubr.f32.gmra.mxu0 %v1445
        %v1548 = vpop.f32.mrf.mxu0
        %v1549 = vadd.f32 0.0, %v1548
        %v1550 = vpop.f32.mrf.mxu0
        %1551 = vdwg.mxu0
        %v1552 = vadd.f32 %v1397, %v1514
        %v1553 = vadd.f32 %v1398, %v1519
        %v1554 = vadd.f32 %v1399, %v1524
        %v1555 = vadd.f32 %v1400, %v1529
        %v1556 = vadd.f32 %v1401, %v1534
        %v1557 = vadd.f32 %v1402, %v1539
        %v1558 = vadd.f32 %v1403, %v1544
        %v1559 = vadd.f32 %v1404, %v1549
        %v1560 = vld [vmem:[#allocation2 + $0x18] sm:$0xff]
        %v1561 = vld [vmem:[#allocation2 + $0x20] sm:$0xff]
        %v1562 = vld [vmem:[#allocation2 + $0x28] sm:$0xff]
        %v1563 = vld [vmem:[#allocation2 + $0x30] sm:$0xff]
        %v1564 = vld [vmem:[#allocation2 + $0x38] sm:$0xff]
        %v1565 = vld [vmem:[#allocation2 + $0x40] sm:$0xff]
        %v1566 = vld [vmem:[#allocation2 + $0x48] sm:$0xff]
        %v1567 = vld [vmem:[#allocation2 + $0x50] sm:$0xff]
        %s1568 = scalar_lea.vmem %s6, 56
        %v1569 = vld [vmem:[%s1568] sm:$0xff]
        %v1571 = vsel %vm307, %v1560, 0
        %v1574 = vsel %vm307, %v1561, 0
        %v1577 = vsel %vm307, %v1562, 0
        %v1580 = vsel %vm307, %v1563, 0
        %v1583 = vsel %vm307, %v1564, 0
        %v1586 = vsel %vm307, %v1565, 0
        %v1589 = vsel %vm307, %v1566, 0
        %v1592 = vsel %vm307, %v1567, 0
        %1594 = vmatprep.subr.mxu0 0.0
        %1595 = vmatpush1.msra.mxu0 0.0
        %1596 = vmatprep.subr.mxu0 0.0
        %1597 = vmatpush1.msra.mxu0 0.0
        %1598 = vmatprep.subr.mxu0 0.0
        %1599 = vmatpush1.msra.mxu0 0.0
        %1600 = vmatprep.subr.mxu0 0.0
        %1601 = vmatpush1.msra.mxu0 0.0
        %1602 = vmatprep.subr.mxu0 0.0
        %1603 = vmatpush1.msra.mxu0 0.0
        %1604 = vmatprep.subr.mxu0 0.0
        %1605 = vmatpush1.msra.mxu0 0.0
        %1606 = vmatprep.subr.mxu0 0.0
        %1607 = vmatpush1.msra.mxu0 0.0
        %1608 = vmatprep.subr.mxu0 0.0
        %1609 = vmatpush1.msra.mxu0 0.0
        %1610 = vmatprep.subr.mxu0 0.0
        %1611 = vmatpush1.msra.mxu0 0.0
        %1612 = vmatprep.subr.mxu0 0.0
        %1613 = vmatpush1.msra.mxu0 0.0
        %1614 = vmatprep.subr.mxu0 0.0
        %1615 = vmatpush1.msra.mxu0 0.0
        %1616 = vmatprep.subr.mxu0 0.0
        %1617 = vmatpush1.msra.mxu0 0.0
        %1618 = vmatprep.subr.mxu0 0.0
        %1619 = vmatpush1.msra.mxu0 0.0
        %1620 = vmatprep.subr.mxu0 0.0
        %1621 = vmatpush1.msra.mxu0 0.0
        %1622 = vmatprep.subr.mxu0 0.0
        %1623 = vmatpush1.msra.mxu0 0.0
        %1624 = vmatprep.subr.mxu0 0.0
        %1625 = vmatpush1.msra.mxu0 %v1569
        %1626 = vmatprep.subr.mxu0 0.0
        %1627 = vmatpush2.msra.mxu0 0.0
        %1628 = vmatprep.subr.mxu0 0.0
        %1629 = vmatpush2.msra.mxu0 0.0
        %1630 = vmatprep.subr.mxu0 0.0
        %1631 = vmatpush2.msra.mxu0 0.0
        %1632 = vmatprep.subr.mxu0 0.0
        %1633 = vmatpush2.msra.mxu0 0.0
        %1634 = vmatprep.subr.mxu0 0.0
        %1635 = vmatpush2.msra.mxu0 0.0
        %1636 = vmatprep.subr.mxu0 0.0
        %1637 = vmatpush2.msra.mxu0 0.0
        %1638 = vmatprep.subr.mxu0 0.0
        %1639 = vmatpush2.msra.mxu0 0.0
        %1640 = vmatprep.subr.mxu0 0.0
        %1641 = vmatpush2.msra.mxu0 0.0
        %1642 = vmatprep.subr.mxu0 0.0
        %1643 = vmatpush2.msra.mxu0 0.0
        %1644 = vmatprep.subr.mxu0 0.0
        %1645 = vmatpush2.msra.mxu0 0.0
        %1646 = vmatprep.subr.mxu0 0.0
        %1647 = vmatpush2.msra.mxu0 0.0
        %1648 = vmatprep.subr.mxu0 0.0
        %1649 = vmatpush2.msra.mxu0 0.0
        %1650 = vmatprep.subr.mxu0 0.0
        %1651 = vmatpush2.msra.mxu0 0.0
        %1652 = vmatprep.subr.mxu0 0.0
        %1653 = vmatpush2.msra.mxu0 0.0
        %1654 = vmatprep.subr.mxu0 0.0
        %1655 = vmatpush2.msra.mxu0 0.0
        %1656 = vmatprep.subr.mxu0 0.0
        %1657 = vmatpush2.msra.mxu0 0.0
        %1658 = vmatprep.mubr.f32.mxu0 0.0
        %1659 = vmatmul.mubr.f32.gmra.mxu0 %v1571
        %v1660 = vpop.f32.mrf.mxu0
        %v1661 = vadd.f32 0.0, %v1660
        %v1662 = vpop.f32.mrf.mxu0
        %1663 = vmatprep.mubr.f32.mxu0 0.0
        %1664 = vmatmul.mubr.f32.gmra.mxu0 %v1574
        %v1665 = vpop.f32.mrf.mxu0
        %v1666 = vadd.f32 0.0, %v1665
        %v1667 = vpop.f32.mrf.mxu0
        %1668 = vmatprep.mubr.f32.mxu0 0.0
        %1669 = vmatmul.mubr.f32.gmra.mxu0 %v1577
        %v1670 = vpop.f32.mrf.mxu0
        %v1671 = vadd.f32 0.0, %v1670
        %v1672 = vpop.f32.mrf.mxu0
        %1673 = vmatprep.mubr.f32.mxu0 0.0
        %1674 = vmatmul.mubr.f32.gmra.mxu0 %v1580
        %v1675 = vpop.f32.mrf.mxu0
        %v1676 = vadd.f32 0.0, %v1675
        %v1677 = vpop.f32.mrf.mxu0
        %1678 = vmatprep.mubr.f32.mxu0 0.0
        %1679 = vmatmul.mubr.f32.gmra.mxu0 %v1583
        %v1680 = vpop.f32.mrf.mxu0
        %v1681 = vadd.f32 0.0, %v1680
        %v1682 = vpop.f32.mrf.mxu0
        %1683 = vmatprep.mubr.f32.mxu0 0.0
        %1684 = vmatmul.mubr.f32.gmra.mxu0 %v1586
        %v1685 = vpop.f32.mrf.mxu0
        %v1686 = vadd.f32 0.0, %v1685
        %v1687 = vpop.f32.mrf.mxu0
        %1688 = vmatprep.mubr.f32.mxu0 0.0
        %1689 = vmatmul.mubr.f32.gmra.mxu0 %v1589
        %v1690 = vpop.f32.mrf.mxu0
        %v1691 = vadd.f32 0.0, %v1690
        %v1692 = vpop.f32.mrf.mxu0
        %1693 = vmatprep.mubr.f32.mxu0 0.0
        %1694 = vmatmul.mubr.f32.gmra.mxu0 %v1592
        %v1695 = vpop.f32.mrf.mxu0
        %v1696 = vadd.f32 0.0, %v1695
        %v1697 = vpop.f32.mrf.mxu0
        %1698 = vdwg.mxu0
        %v1699 = vadd.f32 %v1552, %v1661
        %v1700 = vadd.f32 %v1553, %v1666
        %v1701 = vadd.f32 %v1554, %v1671
        %v1702 = vadd.f32 %v1555, %v1676
        %v1703 = vadd.f32 %v1556, %v1681
        %v1704 = vadd.f32 %v1557, %v1686
        %v1705 = vadd.f32 %v1558, %v1691
        %v1706 = vadd.f32 %v1559, %v1696
        %v1707 = vld [vmem:[#allocation2 + $0x19] sm:$0xff]
        %v1708 = vld [vmem:[#allocation2 + $0x21] sm:$0xff]
        %v1709 = vld [vmem:[#allocation2 + $0x29] sm:$0xff]
        %v1710 = vld [vmem:[#allocation2 + $0x31] sm:$0xff]
        %v1711 = vld [vmem:[#allocation2 + $0x39] sm:$0xff]
        %v1712 = vld [vmem:[#allocation2 + $0x41] sm:$0xff]
        %v1713 = vld [vmem:[#allocation2 + $0x49] sm:$0xff]
        %v1714 = vld [vmem:[#allocation2 + $0x51] sm:$0xff]
        %v1715 = vsel %vm793, %v1707, 0.0
        %v1716 = vsel %vm794, %v1708, 0.0
        %v1717 = vsel %vm795, %v1709, 0.0
        %v1718 = vsel %vm796, %v1710, 0.0
        %v1719 = vsel %vm797, %v1711, 0.0
        %v1720 = vsel %vm798, %v1712, 0.0
        %v1721 = vsel %vm799, %v1713, 0.0
        %v1722 = vsel %vm800, %v1714, 0.0
        %s1723 = scalar_lea.vmem %s6, 64
        %v1724 = vld [vmem:[%s1723] sm:$0xff]
        %v1726 = vsel %vm307, %v1715, 0
        %v1729 = vsel %vm307, %v1716, 0
        %v1732 = vsel %vm307, %v1717, 0
        %v1735 = vsel %vm307, %v1718, 0
        %v1738 = vsel %vm307, %v1719, 0
        %v1741 = vsel %vm307, %v1720, 0
        %v1744 = vsel %vm307, %v1721, 0
        %v1747 = vsel %vm307, %v1722, 0
        %1749 = vmatprep.subr.mxu0 0.0
        %1750 = vmatpush1.msra.mxu0 0.0
        %1751 = vmatprep.subr.mxu0 0.0
        %1752 = vmatpush1.msra.mxu0 0.0
        %1753 = vmatprep.subr.mxu0 0.0
        %1754 = vmatpush1.msra.mxu0 0.0
        %1755 = vmatprep.subr.mxu0 0.0
        %1756 = vmatpush1.msra.mxu0 0.0
        %1757 = vmatprep.subr.mxu0 0.0
        %1758 = vmatpush1.msra.mxu0 0.0
        %1759 = vmatprep.subr.mxu0 0.0
        %1760 = vmatpush1.msra.mxu0 0.0
        %1761 = vmatprep.subr.mxu0 0.0
        %1762 = vmatpush1.msra.mxu0 0.0
        %1763 = vmatprep.subr.mxu0 0.0
        %1764 = vmatpush1.msra.mxu0 0.0
        %1765 = vmatprep.subr.mxu0 0.0
        %1766 = vmatpush1.msra.mxu0 0.0
        %1767 = vmatprep.subr.mxu0 0.0
        %1768 = vmatpush1.msra.mxu0 0.0
        %1769 = vmatprep.subr.mxu0 0.0
        %1770 = vmatpush1.msra.mxu0 0.0
        %1771 = vmatprep.subr.mxu0 0.0
        %1772 = vmatpush1.msra.mxu0 0.0
        %1773 = vmatprep.subr.mxu0 0.0
        %1774 = vmatpush1.msra.mxu0 0.0
        %1775 = vmatprep.subr.mxu0 0.0
        %1776 = vmatpush1.msra.mxu0 0.0
        %1777 = vmatprep.subr.mxu0 0.0
        %1778 = vmatpush1.msra.mxu0 0.0
        %1779 = vmatprep.subr.mxu0 0.0
        %1780 = vmatpush1.msra.mxu0 %v1724
        %1781 = vmatprep.subr.mxu0 0.0
        %1782 = vmatpush2.msra.mxu0 0.0
        %1783 = vmatprep.subr.mxu0 0.0
        %1784 = vmatpush2.msra.mxu0 0.0
        %1785 = vmatprep.subr.mxu0 0.0
        %1786 = vmatpush2.msra.mxu0 0.0
        %1787 = vmatprep.subr.mxu0 0.0
        %1788 = vmatpush2.msra.mxu0 0.0
        %1789 = vmatprep.subr.mxu0 0.0
        %1790 = vmatpush2.msra.mxu0 0.0
        %1791 = vmatprep.subr.mxu0 0.0
        %1792 = vmatpush2.msra.mxu0 0.0
        %1793 = vmatprep.subr.mxu0 0.0
        %1794 = vmatpush2.msra.mxu0 0.0
        %1795 = vmatprep.subr.mxu0 0.0
        %1796 = vmatpush2.msra.mxu0 0.0
        %1797 = vmatprep.subr.mxu0 0.0
        %1798 = vmatpush2.msra.mxu0 0.0
        %1799 = vmatprep.subr.mxu0 0.0
        %1800 = vmatpush2.msra.mxu0 0.0
        %1801 = vmatprep.subr.mxu0 0.0
        %1802 = vmatpush2.msra.mxu0 0.0
        %1803 = vmatprep.subr.mxu0 0.0
        %1804 = vmatpush2.msra.mxu0 0.0
        %1805 = vmatprep.subr.mxu0 0.0
        %1806 = vmatpush2.msra.mxu0 0.0
        %1807 = vmatprep.subr.mxu0 0.0
        %1808 = vmatpush2.msra.mxu0 0.0
        %1809 = vmatprep.subr.mxu0 0.0
        %1810 = vmatpush2.msra.mxu0 0.0
        %1811 = vmatprep.subr.mxu0 0.0
        %1812 = vmatpush2.msra.mxu0 0.0
        %1813 = vmatprep.mubr.f32.mxu0 0.0
        %1814 = vmatmul.mubr.f32.gmra.mxu0 %v1726
        %v1815 = vpop.f32.mrf.mxu0
        %v1816 = vadd.f32 0.0, %v1815
        %v1817 = vpop.f32.mrf.mxu0
        %1818 = vmatprep.mubr.f32.mxu0 0.0
        %1819 = vmatmul.mubr.f32.gmra.mxu0 %v1729
        %v1820 = vpop.f32.mrf.mxu0
        %v1821 = vadd.f32 0.0, %v1820
        %v1822 = vpop.f32.mrf.mxu0
        %1823 = vmatprep.mubr.f32.mxu0 0.0
        %1824 = vmatmul.mubr.f32.gmra.mxu0 %v1732
        %v1825 = vpop.f32.mrf.mxu0
        %v1826 = vadd.f32 0.0, %v1825
        %v1827 = vpop.f32.mrf.mxu0
        %1828 = vmatprep.mubr.f32.mxu0 0.0
        %1829 = vmatmul.mubr.f32.gmra.mxu0 %v1735
        %v1830 = vpop.f32.mrf.mxu0
        %v1831 = vadd.f32 0.0, %v1830
        %v1832 = vpop.f32.mrf.mxu0
        %1833 = vmatprep.mubr.f32.mxu0 0.0
        %1834 = vmatmul.mubr.f32.gmra.mxu0 %v1738
        %v1835 = vpop.f32.mrf.mxu0
        %v1836 = vadd.f32 0.0, %v1835
        %v1837 = vpop.f32.mrf.mxu0
        %1838 = vmatprep.mubr.f32.mxu0 0.0
        %1839 = vmatmul.mubr.f32.gmra.mxu0 %v1741
        %v1840 = vpop.f32.mrf.mxu0
        %v1841 = vadd.f32 0.0, %v1840
        %v1842 = vpop.f32.mrf.mxu0
        %1843 = vmatprep.mubr.f32.mxu0 0.0
        %1844 = vmatmul.mubr.f32.gmra.mxu0 %v1744
        %v1845 = vpop.f32.mrf.mxu0
        %v1846 = vadd.f32 0.0, %v1845
        %v1847 = vpop.f32.mrf.mxu0
        %1848 = vmatprep.mubr.f32.mxu0 0.0
        %1849 = vmatmul.mubr.f32.gmra.mxu0 %v1747
        %v1850 = vpop.f32.mrf.mxu0
        %v1851 = vadd.f32 0.0, %v1850
        %v1852 = vpop.f32.mrf.mxu0
        %1853 = vdwg.mxu0
        %v1854 = vadd.f32 %v1699, %v1816
        %v1855 = vadd.f32 %v1700, %v1821
        %v1856 = vadd.f32 %v1701, %v1826
        %v1857 = vadd.f32 %v1702, %v1831
        %v1858 = vadd.f32 %v1703, %v1836
        %v1859 = vadd.f32 %v1704, %v1841
        %v1860 = vadd.f32 %v1705, %v1846
        %v1861 = vadd.f32 %v1706, %v1851
        %v1863 = vlaneseq
        %v1864 = vshrl.u32 %v1863, 7
        %v1865 = vsub.s32 0, %v1864
        %v1866 = vrot.slane %v358, %v1865
        %v1868 = vmul.f32 %v1854, %v1866
        %v1869 = vmul.f32 %v1855, %v1866
        %v1870 = vmul.f32 %v1856, %v1866
        %v1871 = vmul.f32 %v1857, %v1866
        %v1872 = vmul.f32 %v1858, %v1866
        %v1873 = vmul.f32 %v1859, %v1866
        %v1874 = vmul.f32 %v1860, %v1866
        %v1875 = vmul.f32 %v1861, %v1866
        %v1877 = vlaneseq
        %v1878 = vshrl.u32 %v1877, 7
        %v1879 = vsub.s32 0, %v1878
        %v1880 = vrot.slane %v359, %v1879
        %v1882 = vadd.f32 %v1868, %v1880
        %v1883 = vadd.f32 %v1869, %v1880
        %v1884 = vadd.f32 %v1870, %v1880
        %v1885 = vadd.f32 %v1871, %v1880
        %v1886 = vadd.f32 %v1872, %v1880
        %v1887 = vadd.f32 %v1873, %v1880
        %v1888 = vadd.f32 %v1874, %v1880
        %v1889 = vadd.f32 %v1875, %v1880
        %vm1890 = vcmp.ge.f32.partialorder %v1882, 0.0
        %vm1891 = vcmp.ge.f32.partialorder %v1883, 0.0
        %vm1892 = vcmp.ge.f32.partialorder %v1884, 0.0
        %vm1893 = vcmp.ge.f32.partialorder %v1885, 0.0
        %vm1894 = vcmp.ge.f32.partialorder %v1886, 0.0
        %vm1895 = vcmp.ge.f32.partialorder %v1887, 0.0
        %vm1896 = vcmp.ge.f32.partialorder %v1888, 0.0
        %vm1897 = vcmp.ge.f32.partialorder %v1889, 0.0
        %v1898 = vmul.f32 %v1882, 0.1
        %v1899 = vmul.f32 %v1883, 0.1
        %v1900 = vmul.f32 %v1884, 0.1
        %v1901 = vmul.f32 %v1885, 0.1
        %v1902 = vmul.f32 %v1886, 0.1
        %v1903 = vmul.f32 %v1887, 0.1
        %v1904 = vmul.f32 %v1888, 0.1
        %v1905 = vmul.f32 %v1889, 0.1
        %v1906 = vsel %vm1890, %v1882, %v1898
        %v1907 = vsel %vm1891, %v1883, %v1899
        %v1908 = vsel %vm1892, %v1884, %v1900
        %v1909 = vsel %vm1893, %v1885, %v1901
        %v1910 = vsel %vm1894, %v1886, %v1902
        %v1911 = vsel %vm1895, %v1887, %v1903
        %v1912 = vsel %vm1896, %v1888, %v1904
        %v1913 = vsel %vm1897, %v1889, %v1905
        %1914 = vst.msk [vmem:[#allocation3 + $0x10] sm:$0xff] %vm307, %v1906
        %1915 = vst.msk [vmem:[#allocation3 + $0x18] sm:$0xff] %vm307, %v1907
        %1916 = vst.msk [vmem:[#allocation3 + $0x20] sm:$0xff] %vm307, %v1908
        %1917 = vst.msk [vmem:[#allocation3 + $0x28] sm:$0xff] %vm307, %v1909
        %1918 = vst.msk [vmem:[#allocation3 + $0x30] sm:$0xff] %vm307, %v1910
        %1919 = vst.msk [vmem:[#allocation3 + $0x38] sm:$0xff] %vm307, %v1911
        %1920 = vst.msk [vmem:[#allocation3 + $0x40] sm:$0xff] %vm307, %v1912
        %1921 = vst.msk [vmem:[#allocation3 + $0x48] sm:$0xff] %vm307, %v1913
        %v1922 = vld [vmem:[#allocation3 + $0x7] sm:$0xff]
        %v1923 = vld [vmem:[#allocation3 + $0xf] sm:$0xff]
        %v1924 = vld [vmem:[#allocation3 + $0x17] sm:$0xff]
        %v1925 = vld [vmem:[#allocation3 + $0x1f] sm:$0xff]
        %v1926 = vld [vmem:[#allocation3 + $0x27] sm:$0xff]
        %v1927 = vld [vmem:[#allocation3 + $0x2f] sm:$0xff]
        %v1928 = vld [vmem:[#allocation3 + $0x37] sm:$0xff]
        %v1929 = vld [vmem:[#allocation3 + $0x3f] sm:$0xff]
        %v1930 = vsel %vm468, %v1922, 0.0
        %v1931 = vsel %vm469, %v1923, 0.0
        %v1932 = vsel %vm470, %v1924, 0.0
        %v1933 = vsel %vm471, %v1925, 0.0
        %v1934 = vsel %vm472, %v1926, 0.0
        %v1935 = vsel %vm473, %v1927, 0.0
        %v1936 = vsel %vm474, %v1928, 0.0
        %v1937 = vsel %vm475, %v1929, 0.0
        %v1938 = vld [vmem:[%s7] sm:$0xff]
        %v1939 = vld [vmem:[#allocation3 + $0x8] sm:$0xff]
        %v1940 = vld [vmem:[#allocation3 + $0x10] sm:$0xff]
        %v1941 = vld [vmem:[#allocation3 + $0x18] sm:$0xff]
        %v1942 = vld [vmem:[#allocation3 + $0x20] sm:$0xff]
        %v1943 = vld [vmem:[#allocation3 + $0x28] sm:$0xff]
        %v1944 = vld [vmem:[#allocation3 + $0x30] sm:$0xff]
        %v1945 = vld [vmem:[#allocation3 + $0x38] sm:$0xff]
        %v1946 = vld [vmem:[#allocation3 + $0x40] sm:$0xff]
        %s1947 = scalar_lea.vmem %s7, 8
        %v1948 = vld [vmem:[%s1947] sm:$0xff]
        %v1950 = vsel %vm307, %v1939, 0
        %v1953 = vsel %vm307, %v1940, 0
        %v1956 = vsel %vm307, %v1941, 0
        %v1959 = vsel %vm307, %v1942, 0
        %v1962 = vsel %vm307, %v1943, 0
        %v1965 = vsel %vm307, %v1944, 0
        %v1968 = vsel %vm307, %v1945, 0
        %v1971 = vsel %vm307, %v1946, 0
        %1973 = vmatprep.subr.mxu0 0.0
        %1974 = vmatpush1.msra.mxu0 0.0
        %1975 = vmatprep.subr.mxu0 0.0
        %1976 = vmatpush1.msra.mxu0 0.0
        %1977 = vmatprep.subr.mxu0 0.0
        %1978 = vmatpush1.msra.mxu0 0.0
        %1979 = vmatprep.subr.mxu0 0.0
        %1980 = vmatpush1.msra.mxu0 0.0
        %1981 = vmatprep.subr.mxu0 0.0
        %1982 = vmatpush1.msra.mxu0 0.0
        %1983 = vmatprep.subr.mxu0 0.0
        %1984 = vmatpush1.msra.mxu0 0.0
        %1985 = vmatprep.subr.mxu0 0.0
        %1986 = vmatpush1.msra.mxu0 0.0
        %1987 = vmatprep.subr.mxu0 0.0
        %1988 = vmatpush1.msra.mxu0 0.0
        %1989 = vmatprep.subr.mxu0 0.0
        %1990 = vmatpush1.msra.mxu0 0.0
        %1991 = vmatprep.subr.mxu0 0.0
        %1992 = vmatpush1.msra.mxu0 0.0
        %1993 = vmatprep.subr.mxu0 0.0
        %1994 = vmatpush1.msra.mxu0 0.0
        %1995 = vmatprep.subr.mxu0 0.0
        %1996 = vmatpush1.msra.mxu0 0.0
        %1997 = vmatprep.subr.mxu0 0.0
        %1998 = vmatpush1.msra.mxu0 0.0
        %1999 = vmatprep.subr.mxu0 0.0
        %2000 = vmatpush1.msra.mxu0 0.0
        %2001 = vmatprep.subr.mxu0 0.0
        %2002 = vmatpush1.msra.mxu0 0.0
        %2003 = vmatprep.subr.mxu0 0.0
        %2004 = vmatpush1.msra.mxu0 %v1948
        %2005 = vmatprep.subr.mxu0 0.0
        %2006 = vmatpush2.msra.mxu0 0.0
        %2007 = vmatprep.subr.mxu0 0.0
        %2008 = vmatpush2.msra.mxu0 0.0
        %2009 = vmatprep.subr.mxu0 0.0
        %2010 = vmatpush2.msra.mxu0 0.0
        %2011 = vmatprep.subr.mxu0 0.0
        %2012 = vmatpush2.msra.mxu0 0.0
        %2013 = vmatprep.subr.mxu0 0.0
        %2014 = vmatpush2.msra.mxu0 0.0
        %2015 = vmatprep.subr.mxu0 0.0
        %2016 = vmatpush2.msra.mxu0 0.0
        %2017 = vmatprep.subr.mxu0 0.0
        %2018 = vmatpush2.msra.mxu0 0.0
        %2019 = vmatprep.subr.mxu0 0.0
        %2020 = vmatpush2.msra.mxu0 0.0
        %2021 = vmatprep.subr.mxu0 0.0
        %2022 = vmatpush2.msra.mxu0 0.0
        %2023 = vmatprep.subr.mxu0 0.0
        %2024 = vmatpush2.msra.mxu0 0.0
        %2025 = vmatprep.subr.mxu0 0.0
        %2026 = vmatpush2.msra.mxu0 0.0
        %2027 = vmatprep.subr.mxu0 0.0
        %2028 = vmatpush2.msra.mxu0 0.0
        %2029 = vmatprep.subr.mxu0 0.0
        %2030 = vmatpush2.msra.mxu0 0.0
        %2031 = vmatprep.subr.mxu0 0.0
        %2032 = vmatpush2.msra.mxu0 0.0
        %2033 = vmatprep.subr.mxu0 0.0
        %2034 = vmatpush2.msra.mxu0 0.0
        %2035 = vmatprep.subr.mxu0 0.0
        %2036 = vmatpush2.msra.mxu0 0.0
        %2037 = vmatprep.mubr.f32.mxu0 0.0
        %2038 = vmatmul.mubr.f32.gmra.mxu0 %v1950
        %v2039 = vpop.f32.mrf.mxu0
        %v2040 = vadd.f32 0.0, %v2039
        %v2041 = vpop.f32.mrf.mxu0
        %2042 = vmatprep.mubr.f32.mxu0 0.0
        %2043 = vmatmul.mubr.f32.gmra.mxu0 %v1953
        %v2044 = vpop.f32.mrf.mxu0
        %v2045 = vadd.f32 0.0, %v2044
        %v2046 = vpop.f32.mrf.mxu0
        %2047 = vmatprep.mubr.f32.mxu0 0.0
        %2048 = vmatmul.mubr.f32.gmra.mxu0 %v1956
        %v2049 = vpop.f32.mrf.mxu0
        %v2050 = vadd.f32 0.0, %v2049
        %v2051 = vpop.f32.mrf.mxu0
        %2052 = vmatprep.mubr.f32.mxu0 0.0
        %2053 = vmatmul.mubr.f32.gmra.mxu0 %v1959
        %v2054 = vpop.f32.mrf.mxu0
        %v2055 = vadd.f32 0.0, %v2054
        %v2056 = vpop.f32.mrf.mxu0
        %2057 = vmatprep.mubr.f32.mxu0 0.0
        %2058 = vmatmul.mubr.f32.gmra.mxu0 %v1962
        %v2059 = vpop.f32.mrf.mxu0
        %v2060 = vadd.f32 0.0, %v2059
        %v2061 = vpop.f32.mrf.mxu0
        %2062 = vmatprep.mubr.f32.mxu0 0.0
        %2063 = vmatmul.mubr.f32.gmra.mxu0 %v1965
        %v2064 = vpop.f32.mrf.mxu0
        %v2065 = vadd.f32 0.0, %v2064
        %v2066 = vpop.f32.mrf.mxu0
        %2067 = vmatprep.mubr.f32.mxu0 0.0
        %2068 = vmatmul.mubr.f32.gmra.mxu0 %v1968
        %v2069 = vpop.f32.mrf.mxu0
        %v2070 = vadd.f32 0.0, %v2069
        %v2071 = vpop.f32.mrf.mxu0
        %2072 = vmatprep.mubr.f32.mxu0 0.0
        %2073 = vmatmul.mubr.f32.gmra.mxu0 %v1971
        %v2074 = vpop.f32.mrf.mxu0
        %v2075 = vadd.f32 0.0, %v2074
        %v2076 = vpop.f32.mrf.mxu0
        %2077 = vdwg.mxu0
        %v2079 = vsel %vm307, %v1930, 0
        %v2082 = vsel %vm307, %v1931, 0
        %v2085 = vsel %vm307, %v1932, 0
        %v2088 = vsel %vm307, %v1933, 0
        %v2091 = vsel %vm307, %v1934, 0
        %v2094 = vsel %vm307, %v1935, 0
        %v2097 = vsel %vm307, %v1936, 0
        %v2100 = vsel %vm307, %v1937, 0
        %2102 = vmatprep.subr.mxu0 0.0
        %2103 = vmatpush1.msra.mxu0 0.0
        %2104 = vmatprep.subr.mxu0 0.0
        %2105 = vmatpush1.msra.mxu0 0.0
        %2106 = vmatprep.subr.mxu0 0.0
        %2107 = vmatpush1.msra.mxu0 0.0
        %2108 = vmatprep.subr.mxu0 0.0
        %2109 = vmatpush1.msra.mxu0 0.0
        %2110 = vmatprep.subr.mxu0 0.0
        %2111 = vmatpush1.msra.mxu0 0.0
        %2112 = vmatprep.subr.mxu0 0.0
        %2113 = vmatpush1.msra.mxu0 0.0
        %2114 = vmatprep.subr.mxu0 0.0
        %2115 = vmatpush1.msra.mxu0 0.0
        %2116 = vmatprep.subr.mxu0 0.0
        %2117 = vmatpush1.msra.mxu0 0.0
        %2118 = vmatprep.subr.mxu0 0.0
        %2119 = vmatpush1.msra.mxu0 0.0
        %2120 = vmatprep.subr.mxu0 0.0
        %2121 = vmatpush1.msra.mxu0 0.0
        %2122 = vmatprep.subr.mxu0 0.0
        %2123 = vmatpush1.msra.mxu0 0.0
        %2124 = vmatprep.subr.mxu0 0.0
        %2125 = vmatpush1.msra.mxu0 0.0
        %2126 = vmatprep.subr.mxu0 0.0
        %2127 = vmatpush1.msra.mxu0 0.0
        %2128 = vmatprep.subr.mxu0 0.0
        %2129 = vmatpush1.msra.mxu0 0.0
        %2130 = vmatprep.subr.mxu0 0.0
        %2131 = vmatpush1.msra.mxu0 0.0
        %2132 = vmatprep.subr.mxu0 0.0
        %2133 = vmatpush1.msra.mxu0 %v1938
        %2134 = vmatprep.subr.mxu0 0.0
        %2135 = vmatpush2.msra.mxu0 0.0
        %2136 = vmatprep.subr.mxu0 0.0
        %2137 = vmatpush2.msra.mxu0 0.0
        %2138 = vmatprep.subr.mxu0 0.0
        %2139 = vmatpush2.msra.mxu0 0.0
        %2140 = vmatprep.subr.mxu0 0.0
        %2141 = vmatpush2.msra.mxu0 0.0
        %2142 = vmatprep.subr.mxu0 0.0
        %2143 = vmatpush2.msra.mxu0 0.0
        %2144 = vmatprep.subr.mxu0 0.0
        %2145 = vmatpush2.msra.mxu0 0.0
        %2146 = vmatprep.subr.mxu0 0.0
        %2147 = vmatpush2.msra.mxu0 0.0
        %2148 = vmatprep.subr.mxu0 0.0
        %2149 = vmatpush2.msra.mxu0 0.0
        %2150 = vmatprep.subr.mxu0 0.0
        %2151 = vmatpush2.msra.mxu0 0.0
        %2152 = vmatprep.subr.mxu0 0.0
        %2153 = vmatpush2.msra.mxu0 0.0
        %2154 = vmatprep.subr.mxu0 0.0
        %2155 = vmatpush2.msra.mxu0 0.0
        %2156 = vmatprep.subr.mxu0 0.0
        %2157 = vmatpush2.msra.mxu0 0.0
        %2158 = vmatprep.subr.mxu0 0.0
        %2159 = vmatpush2.msra.mxu0 0.0
        %2160 = vmatprep.subr.mxu0 0.0
        %2161 = vmatpush2.msra.mxu0 0.0
        %2162 = vmatprep.subr.mxu0 0.0
        %2163 = vmatpush2.msra.mxu0 0.0
        %2164 = vmatprep.subr.mxu0 0.0
        %2165 = vmatpush2.msra.mxu0 0.0
        %2166 = vmatprep.mubr.f32.mxu0 0.0
        %2167 = vmatmul.mubr.f32.gmra.mxu0 %v2079
        %v2168 = vpop.f32.mrf.mxu0
        %v2169 = vadd.f32 %v2040, %v2168
        %v2170 = vpop.f32.mrf.mxu0
        %2171 = vmatprep.mubr.f32.mxu0 0.0
        %2172 = vmatmul.mubr.f32.gmra.mxu0 %v2082
        %v2173 = vpop.f32.mrf.mxu0
        %v2174 = vadd.f32 %v2045, %v2173
        %v2175 = vpop.f32.mrf.mxu0
        %2176 = vmatprep.mubr.f32.mxu0 0.0
        %2177 = vmatmul.mubr.f32.gmra.mxu0 %v2085
        %v2178 = vpop.f32.mrf.mxu0
        %v2179 = vadd.f32 %v2050, %v2178
        %v2180 = vpop.f32.mrf.mxu0
        %2181 = vmatprep.mubr.f32.mxu0 0.0
        %2182 = vmatmul.mubr.f32.gmra.mxu0 %v2088
        %v2183 = vpop.f32.mrf.mxu0
        %v2184 = vadd.f32 %v2055, %v2183
        %v2185 = vpop.f32.mrf.mxu0
        %2186 = vmatprep.mubr.f32.mxu0 0.0
        %2187 = vmatmul.mubr.f32.gmra.mxu0 %v2091
        %v2188 = vpop.f32.mrf.mxu0
        %v2189 = vadd.f32 %v2060, %v2188
        %v2190 = vpop.f32.mrf.mxu0
        %2191 = vmatprep.mubr.f32.mxu0 0.0
        %2192 = vmatmul.mubr.f32.gmra.mxu0 %v2094
        %v2193 = vpop.f32.mrf.mxu0
        %v2194 = vadd.f32 %v2065, %v2193
        %v2195 = vpop.f32.mrf.mxu0
        %2196 = vmatprep.mubr.f32.mxu0 0.0
        %2197 = vmatmul.mubr.f32.gmra.mxu0 %v2097
        %v2198 = vpop.f32.mrf.mxu0
        %v2199 = vadd.f32 %v2070, %v2198
        %v2200 = vpop.f32.mrf.mxu0
        %2201 = vmatprep.mubr.f32.mxu0 0.0
        %2202 = vmatmul.mubr.f32.gmra.mxu0 %v2100
        %v2203 = vpop.f32.mrf.mxu0
        %v2204 = vadd.f32 %v2075, %v2203
        %v2205 = vpop.f32.mrf.mxu0
        %2206 = vdwg.mxu0
        %v2207 = vld [vmem:[#allocation3 + $0x9] sm:$0xff]
        %v2208 = vld [vmem:[#allocation3 + $0x11] sm:$0xff]
        %v2209 = vld [vmem:[#allocation3 + $0x19] sm:$0xff]
        %v2210 = vld [vmem:[#allocation3 + $0x21] sm:$0xff]
        %v2211 = vld [vmem:[#allocation3 + $0x29] sm:$0xff]
        %v2212 = vld [vmem:[#allocation3 + $0x31] sm:$0xff]
        %v2213 = vld [vmem:[#allocation3 + $0x39] sm:$0xff]
        %v2214 = vld [vmem:[#allocation3 + $0x41] sm:$0xff]
        %v2215 = vsel %vm793, %v2207, 0.0
        %v2216 = vsel %vm794, %v2208, 0.0
        %v2217 = vsel %vm795, %v2209, 0.0
        %v2218 = vsel %vm796, %v2210, 0.0
        %v2219 = vsel %vm797, %v2211, 0.0
        %v2220 = vsel %vm798, %v2212, 0.0
        %v2221 = vsel %vm799, %v2213, 0.0
        %v2222 = vsel %vm800, %v2214, 0.0
        %s2223 = scalar_lea.vmem %s7, 16
        %v2224 = vld [vmem:[%s2223] sm:$0xff]
        %v2226 = vsel %vm307, %v2215, 0
        %v2229 = vsel %vm307, %v2216, 0
        %v2232 = vsel %vm307, %v2217, 0
        %v2235 = vsel %vm307, %v2218, 0
        %v2238 = vsel %vm307, %v2219, 0
        %v2241 = vsel %vm307, %v2220, 0
        %v2244 = vsel %vm307, %v2221, 0
        %v2247 = vsel %vm307, %v2222, 0
        %2249 = vmatprep.subr.mxu0 0.0
        %2250 = vmatpush1.msra.mxu0 0.0
        %2251 = vmatprep.subr.mxu0 0.0
        %2252 = vmatpush1.msra.mxu0 0.0
        %2253 = vmatprep.subr.mxu0 0.0
        %2254 = vmatpush1.msra.mxu0 0.0
        %2255 = vmatprep.subr.mxu0 0.0
        %2256 = vmatpush1.msra.mxu0 0.0
        %2257 = vmatprep.subr.mxu0 0.0
        %2258 = vmatpush1.msra.mxu0 0.0
        %2259 = vmatprep.subr.mxu0 0.0
        %2260 = vmatpush1.msra.mxu0 0.0
        %2261 = vmatprep.subr.mxu0 0.0
        %2262 = vmatpush1.msra.mxu0 0.0
        %2263 = vmatprep.subr.mxu0 0.0
        %2264 = vmatpush1.msra.mxu0 0.0
        %2265 = vmatprep.subr.mxu0 0.0
        %2266 = vmatpush1.msra.mxu0 0.0
        %2267 = vmatprep.subr.mxu0 0.0
        %2268 = vmatpush1.msra.mxu0 0.0
        %2269 = vmatprep.subr.mxu0 0.0
        %2270 = vmatpush1.msra.mxu0 0.0
        %2271 = vmatprep.subr.mxu0 0.0
        %2272 = vmatpush1.msra.mxu0 0.0
        %2273 = vmatprep.subr.mxu0 0.0
        %2274 = vmatpush1.msra.mxu0 0.0
        %2275 = vmatprep.subr.mxu0 0.0
        %2276 = vmatpush1.msra.mxu0 0.0
        %2277 = vmatprep.subr.mxu0 0.0
        %2278 = vmatpush1.msra.mxu0 0.0
        %2279 = vmatprep.subr.mxu0 0.0
        %2280 = vmatpush1.msra.mxu0 %v2224
        %2281 = vmatprep.subr.mxu0 0.0
        %2282 = vmatpush2.msra.mxu0 0.0
        %2283 = vmatprep.subr.mxu0 0.0
        %2284 = vmatpush2.msra.mxu0 0.0
        %2285 = vmatprep.subr.mxu0 0.0
        %2286 = vmatpush2.msra.mxu0 0.0
        %2287 = vmatprep.subr.mxu0 0.0
        %2288 = vmatpush2.msra.mxu0 0.0
        %2289 = vmatprep.subr.mxu0 0.0
        %2290 = vmatpush2.msra.mxu0 0.0
        %2291 = vmatprep.subr.mxu0 0.0
        %2292 = vmatpush2.msra.mxu0 0.0
        %2293 = vmatprep.subr.mxu0 0.0
        %2294 = vmatpush2.msra.mxu0 0.0
        %2295 = vmatprep.subr.mxu0 0.0
        %2296 = vmatpush2.msra.mxu0 0.0
        %2297 = vmatprep.subr.mxu0 0.0
        %2298 = vmatpush2.msra.mxu0 0.0
        %2299 = vmatprep.subr.mxu0 0.0
        %2300 = vmatpush2.msra.mxu0 0.0
        %2301 = vmatprep.subr.mxu0 0.0
        %2302 = vmatpush2.msra.mxu0 0.0
        %2303 = vmatprep.subr.mxu0 0.0
        %2304 = vmatpush2.msra.mxu0 0.0
        %2305 = vmatprep.subr.mxu0 0.0
        %2306 = vmatpush2.msra.mxu0 0.0
        %2307 = vmatprep.subr.mxu0 0.0
        %2308 = vmatpush2.msra.mxu0 0.0
        %2309 = vmatprep.subr.mxu0 0.0
        %2310 = vmatpush2.msra.mxu0 0.0
        %2311 = vmatprep.subr.mxu0 0.0
        %2312 = vmatpush2.msra.mxu0 0.0
        %2313 = vmatprep.mubr.f32.mxu0 0.0
        %2314 = vmatmul.mubr.f32.gmra.mxu0 %v2226
        %v2315 = vpop.f32.mrf.mxu0
        %v2316 = vadd.f32 0.0, %v2315
        %v2317 = vpop.f32.mrf.mxu0
        %2318 = vmatprep.mubr.f32.mxu0 0.0
        %2319 = vmatmul.mubr.f32.gmra.mxu0 %v2229
        %v2320 = vpop.f32.mrf.mxu0
        %v2321 = vadd.f32 0.0, %v2320
        %v2322 = vpop.f32.mrf.mxu0
        %2323 = vmatprep.mubr.f32.mxu0 0.0
        %2324 = vmatmul.mubr.f32.gmra.mxu0 %v2232
        %v2325 = vpop.f32.mrf.mxu0
        %v2326 = vadd.f32 0.0, %v2325
        %v2327 = vpop.f32.mrf.mxu0
        %2328 = vmatprep.mubr.f32.mxu0 0.0
        %2329 = vmatmul.mubr.f32.gmra.mxu0 %v2235
        %v2330 = vpop.f32.mrf.mxu0
        %v2331 = vadd.f32 0.0, %v2330
        %v2332 = vpop.f32.mrf.mxu0
        %2333 = vmatprep.mubr.f32.mxu0 0.0
        %2334 = vmatmul.mubr.f32.gmra.mxu0 %v2238
        %v2335 = vpop.f32.mrf.mxu0
        %v2336 = vadd.f32 0.0, %v2335
        %v2337 = vpop.f32.mrf.mxu0
        %2338 = vmatprep.mubr.f32.mxu0 0.0
        %2339 = vmatmul.mubr.f32.gmra.mxu0 %v2241
        %v2340 = vpop.f32.mrf.mxu0
        %v2341 = vadd.f32 0.0, %v2340
        %v2342 = vpop.f32.mrf.mxu0
        %2343 = vmatprep.mubr.f32.mxu0 0.0
        %2344 = vmatmul.mubr.f32.gmra.mxu0 %v2244
        %v2345 = vpop.f32.mrf.mxu0
        %v2346 = vadd.f32 0.0, %v2345
        %v2347 = vpop.f32.mrf.mxu0
        %2348 = vmatprep.mubr.f32.mxu0 0.0
        %2349 = vmatmul.mubr.f32.gmra.mxu0 %v2247
        %v2350 = vpop.f32.mrf.mxu0
        %v2351 = vadd.f32 0.0, %v2350
        %v2352 = vpop.f32.mrf.mxu0
        %2353 = vdwg.mxu0
        %v2354 = vadd.f32 %v2169, %v2316
        %v2355 = vadd.f32 %v2174, %v2321
        %v2356 = vadd.f32 %v2179, %v2326
        %v2357 = vadd.f32 %v2184, %v2331
        %v2358 = vadd.f32 %v2189, %v2336
        %v2359 = vadd.f32 %v2194, %v2341
        %v2360 = vadd.f32 %v2199, %v2346
        %v2361 = vadd.f32 %v2204, %v2351
        %v2362 = vld [vmem:[#allocation3 + $0xf] sm:$0xff]
        %v2363 = vld [vmem:[#allocation3 + $0x17] sm:$0xff]
        %v2364 = vld [vmem:[#allocation3 + $0x1f] sm:$0xff]
        %v2365 = vld [vmem:[#allocation3 + $0x27] sm:$0xff]
        %v2366 = vld [vmem:[#allocation3 + $0x2f] sm:$0xff]
        %v2367 = vld [vmem:[#allocation3 + $0x37] sm:$0xff]
        %v2368 = vld [vmem:[#allocation3 + $0x3f] sm:$0xff]
        %v2369 = vld [vmem:[#allocation3 + $0x47] sm:$0xff]
        %v2370 = vsel %vm468, %v2362, 0.0
        %v2371 = vsel %vm469, %v2363, 0.0
        %v2372 = vsel %vm470, %v2364, 0.0
        %v2373 = vsel %vm471, %v2365, 0.0
        %v2374 = vsel %vm472, %v2366, 0.0
        %v2375 = vsel %vm473, %v2367, 0.0
        %v2376 = vsel %vm474, %v2368, 0.0
        %v2377 = vsel %vm475, %v2369, 0.0
        %s2378 = scalar_lea.vmem %s7, 24
        %v2379 = vld [vmem:[%s2378] sm:$0xff]
        %v2381 = vsel %vm307, %v2370, 0
        %v2384 = vsel %vm307, %v2371, 0
        %v2387 = vsel %vm307, %v2372, 0
        %v2390 = vsel %vm307, %v2373, 0
        %v2393 = vsel %vm307, %v2374, 0
        %v2396 = vsel %vm307, %v2375, 0
        %v2399 = vsel %vm307, %v2376, 0
        %v2402 = vsel %vm307, %v2377, 0
        %2404 = vmatprep.subr.mxu0 0.0
        %2405 = vmatpush1.msra.mxu0 0.0
        %2406 = vmatprep.subr.mxu0 0.0
        %2407 = vmatpush1.msra.mxu0 0.0
        %2408 = vmatprep.subr.mxu0 0.0
        %2409 = vmatpush1.msra.mxu0 0.0
        %2410 = vmatprep.subr.mxu0 0.0
        %2411 = vmatpush1.msra.mxu0 0.0
        %2412 = vmatprep.subr.mxu0 0.0
        %2413 = vmatpush1.msra.mxu0 0.0
        %2414 = vmatprep.subr.mxu0 0.0
        %2415 = vmatpush1.msra.mxu0 0.0
        %2416 = vmatprep.subr.mxu0 0.0
        %2417 = vmatpush1.msra.mxu0 0.0
        %2418 = vmatprep.subr.mxu0 0.0
        %2419 = vmatpush1.msra.mxu0 0.0
        %2420 = vmatprep.subr.mxu0 0.0
        %2421 = vmatpush1.msra.mxu0 0.0
        %2422 = vmatprep.subr.mxu0 0.0
        %2423 = vmatpush1.msra.mxu0 0.0
        %2424 = vmatprep.subr.mxu0 0.0
        %2425 = vmatpush1.msra.mxu0 0.0
        %2426 = vmatprep.subr.mxu0 0.0
        %2427 = vmatpush1.msra.mxu0 0.0
        %2428 = vmatprep.subr.mxu0 0.0
        %2429 = vmatpush1.msra.mxu0 0.0
        %2430 = vmatprep.subr.mxu0 0.0
        %2431 = vmatpush1.msra.mxu0 0.0
        %2432 = vmatprep.subr.mxu0 0.0
        %2433 = vmatpush1.msra.mxu0 0.0
        %2434 = vmatprep.subr.mxu0 0.0
        %2435 = vmatpush1.msra.mxu0 %v2379
        %2436 = vmatprep.subr.mxu0 0.0
        %2437 = vmatpush2.msra.mxu0 0.0
        %2438 = vmatprep.subr.mxu0 0.0
        %2439 = vmatpush2.msra.mxu0 0.0
        %2440 = vmatprep.subr.mxu0 0.0
        %2441 = vmatpush2.msra.mxu0 0.0
        %2442 = vmatprep.subr.mxu0 0.0
        %2443 = vmatpush2.msra.mxu0 0.0
        %2444 = vmatprep.subr.mxu0 0.0
        %2445 = vmatpush2.msra.mxu0 0.0
        %2446 = vmatprep.subr.mxu0 0.0
        %2447 = vmatpush2.msra.mxu0 0.0
        %2448 = vmatprep.subr.mxu0 0.0
        %2449 = vmatpush2.msra.mxu0 0.0
        %2450 = vmatprep.subr.mxu0 0.0
        %2451 = vmatpush2.msra.mxu0 0.0
        %2452 = vmatprep.subr.mxu0 0.0
        %2453 = vmatpush2.msra.mxu0 0.0
        %2454 = vmatprep.subr.mxu0 0.0
        %2455 = vmatpush2.msra.mxu0 0.0
        %2456 = vmatprep.subr.mxu0 0.0
        %2457 = vmatpush2.msra.mxu0 0.0
        %2458 = vmatprep.subr.mxu0 0.0
        %2459 = vmatpush2.msra.mxu0 0.0
        %2460 = vmatprep.subr.mxu0 0.0
        %2461 = vmatpush2.msra.mxu0 0.0
        %2462 = vmatprep.subr.mxu0 0.0
        %2463 = vmatpush2.msra.mxu0 0.0
        %2464 = vmatprep.subr.mxu0 0.0
        %2465 = vmatpush2.msra.mxu0 0.0
        %2466 = vmatprep.subr.mxu0 0.0
        %2467 = vmatpush2.msra.mxu0 0.0
        %2468 = vmatprep.mubr.f32.mxu0 0.0
        %2469 = vmatmul.mubr.f32.gmra.mxu0 %v2381
        %v2470 = vpop.f32.mrf.mxu0
        %v2471 = vadd.f32 0.0, %v2470
        %v2472 = vpop.f32.mrf.mxu0
        %2473 = vmatprep.mubr.f32.mxu0 0.0
        %2474 = vmatmul.mubr.f32.gmra.mxu0 %v2384
        %v2475 = vpop.f32.mrf.mxu0
        %v2476 = vadd.f32 0.0, %v2475
        %v2477 = vpop.f32.mrf.mxu0
        %2478 = vmatprep.mubr.f32.mxu0 0.0
        %2479 = vmatmul.mubr.f32.gmra.mxu0 %v2387
        %v2480 = vpop.f32.mrf.mxu0
        %v2481 = vadd.f32 0.0, %v2480
        %v2482 = vpop.f32.mrf.mxu0
        %2483 = vmatprep.mubr.f32.mxu0 0.0
        %2484 = vmatmul.mubr.f32.gmra.mxu0 %v2390
        %v2485 = vpop.f32.mrf.mxu0
        %v2486 = vadd.f32 0.0, %v2485
        %v2487 = vpop.f32.mrf.mxu0
        %2488 = vmatprep.mubr.f32.mxu0 0.0
        %2489 = vmatmul.mubr.f32.gmra.mxu0 %v2393
        %v2490 = vpop.f32.mrf.mxu0
        %v2491 = vadd.f32 0.0, %v2490
        %v2492 = vpop.f32.mrf.mxu0
        %2493 = vmatprep.mubr.f32.mxu0 0.0
        %2494 = vmatmul.mubr.f32.gmra.mxu0 %v2396
        %v2495 = vpop.f32.mrf.mxu0
        %v2496 = vadd.f32 0.0, %v2495
        %v2497 = vpop.f32.mrf.mxu0
        %2498 = vmatprep.mubr.f32.mxu0 0.0
        %2499 = vmatmul.mubr.f32.gmra.mxu0 %v2399
        %v2500 = vpop.f32.mrf.mxu0
        %v2501 = vadd.f32 0.0, %v2500
        %v2502 = vpop.f32.mrf.mxu0
        %2503 = vmatprep.mubr.f32.mxu0 0.0
        %2504 = vmatmul.mubr.f32.gmra.mxu0 %v2402
        %v2505 = vpop.f32.mrf.mxu0
        %v2506 = vadd.f32 0.0, %v2505
        %v2507 = vpop.f32.mrf.mxu0
        %2508 = vdwg.mxu0
        %v2509 = vadd.f32 %v2354, %v2471
        %v2510 = vadd.f32 %v2355, %v2476
        %v2511 = vadd.f32 %v2356, %v2481
        %v2512 = vadd.f32 %v2357, %v2486
        %v2513 = vadd.f32 %v2358, %v2491
        %v2514 = vadd.f32 %v2359, %v2496
        %v2515 = vadd.f32 %v2360, %v2501
        %v2516 = vadd.f32 %v2361, %v2506
        %v2517 = vld [vmem:[#allocation3 + $0x10] sm:$0xff]
        %v2518 = vld [vmem:[#allocation3 + $0x18] sm:$0xff]
        %v2519 = vld [vmem:[#allocation3 + $0x20] sm:$0xff]
        %v2520 = vld [vmem:[#allocation3 + $0x28] sm:$0xff]
        %v2521 = vld [vmem:[#allocation3 + $0x30] sm:$0xff]
        %v2522 = vld [vmem:[#allocation3 + $0x38] sm:$0xff]
        %v2523 = vld [vmem:[#allocation3 + $0x40] sm:$0xff]
        %v2524 = vld [vmem:[#allocation3 + $0x48] sm:$0xff]
        %s2525 = scalar_lea.vmem %s7, 32
        %v2526 = vld [vmem:[%s2525] sm:$0xff]
        %v2528 = vsel %vm307, %v2517, 0
        %v2531 = vsel %vm307, %v2518, 0
        %v2534 = vsel %vm307, %v2519, 0
        %v2537 = vsel %vm307, %v2520, 0
        %v2540 = vsel %vm307, %v2521, 0
        %v2543 = vsel %vm307, %v2522, 0
        %v2546 = vsel %vm307, %v2523, 0
        %v2549 = vsel %vm307, %v2524, 0
        %2551 = vmatprep.subr.mxu0 0.0
        %2552 = vmatpush1.msra.mxu0 0.0
        %2553 = vmatprep.subr.mxu0 0.0
        %2554 = vmatpush1.msra.mxu0 0.0
        %2555 = vmatprep.subr.mxu0 0.0
        %2556 = vmatpush1.msra.mxu0 0.0
        %2557 = vmatprep.subr.mxu0 0.0
        %2558 = vmatpush1.msra.mxu0 0.0
        %2559 = vmatprep.subr.mxu0 0.0
        %2560 = vmatpush1.msra.mxu0 0.0
        %2561 = vmatprep.subr.mxu0 0.0
        %2562 = vmatpush1.msra.mxu0 0.0
        %2563 = vmatprep.subr.mxu0 0.0
        %2564 = vmatpush1.msra.mxu0 0.0
        %2565 = vmatprep.subr.mxu0 0.0
        %2566 = vmatpush1.msra.mxu0 0.0
        %2567 = vmatprep.subr.mxu0 0.0
        %2568 = vmatpush1.msra.mxu0 0.0
        %2569 = vmatprep.subr.mxu0 0.0
        %2570 = vmatpush1.msra.mxu0 0.0
        %2571 = vmatprep.subr.mxu0 0.0
        %2572 = vmatpush1.msra.mxu0 0.0
        %2573 = vmatprep.subr.mxu0 0.0
        %2574 = vmatpush1.msra.mxu0 0.0
        %2575 = vmatprep.subr.mxu0 0.0
        %2576 = vmatpush1.msra.mxu0 0.0
        %2577 = vmatprep.subr.mxu0 0.0
        %2578 = vmatpush1.msra.mxu0 0.0
        %2579 = vmatprep.subr.mxu0 0.0
        %2580 = vmatpush1.msra.mxu0 0.0
        %2581 = vmatprep.subr.mxu0 0.0
        %2582 = vmatpush1.msra.mxu0 %v2526
        %2583 = vmatprep.subr.mxu0 0.0
        %2584 = vmatpush2.msra.mxu0 0.0
        %2585 = vmatprep.subr.mxu0 0.0
        %2586 = vmatpush2.msra.mxu0 0.0
        %2587 = vmatprep.subr.mxu0 0.0
        %2588 = vmatpush2.msra.mxu0 0.0
        %2589 = vmatprep.subr.mxu0 0.0
        %2590 = vmatpush2.msra.mxu0 0.0
        %2591 = vmatprep.subr.mxu0 0.0
        %2592 = vmatpush2.msra.mxu0 0.0
        %2593 = vmatprep.subr.mxu0 0.0
        %2594 = vmatpush2.msra.mxu0 0.0
        %2595 = vmatprep.subr.mxu0 0.0
        %2596 = vmatpush2.msra.mxu0 0.0
        %2597 = vmatprep.subr.mxu0 0.0
        %2598 = vmatpush2.msra.mxu0 0.0
        %2599 = vmatprep.subr.mxu0 0.0
        %2600 = vmatpush2.msra.mxu0 0.0
        %2601 = vmatprep.subr.mxu0 0.0
        %2602 = vmatpush2.msra.mxu0 0.0
        %2603 = vmatprep.subr.mxu0 0.0
        %2604 = vmatpush2.msra.mxu0 0.0
        %2605 = vmatprep.subr.mxu0 0.0
        %2606 = vmatpush2.msra.mxu0 0.0
        %2607 = vmatprep.subr.mxu0 0.0
        %2608 = vmatpush2.msra.mxu0 0.0
        %2609 = vmatprep.subr.mxu0 0.0
        %2610 = vmatpush2.msra.mxu0 0.0
        %2611 = vmatprep.subr.mxu0 0.0
        %2612 = vmatpush2.msra.mxu0 0.0
        %2613 = vmatprep.subr.mxu0 0.0
        %2614 = vmatpush2.msra.mxu0 0.0
        %2615 = vmatprep.mubr.f32.mxu0 0.0
        %2616 = vmatmul.mubr.f32.gmra.mxu0 %v2528
        %v2617 = vpop.f32.mrf.mxu0
        %v2618 = vadd.f32 0.0, %v2617
        %v2619 = vpop.f32.mrf.mxu0
        %2620 = vmatprep.mubr.f32.mxu0 0.0
        %2621 = vmatmul.mubr.f32.gmra.mxu0 %v2531
        %v2622 = vpop.f32.mrf.mxu0
        %v2623 = vadd.f32 0.0, %v2622
        %v2624 = vpop.f32.mrf.mxu0
        %2625 = vmatprep.mubr.f32.mxu0 0.0
        %2626 = vmatmul.mubr.f32.gmra.mxu0 %v2534
        %v2627 = vpop.f32.mrf.mxu0
        %v2628 = vadd.f32 0.0, %v2627
        %v2629 = vpop.f32.mrf.mxu0
        %2630 = vmatprep.mubr.f32.mxu0 0.0
        %2631 = vmatmul.mubr.f32.gmra.mxu0 %v2537
        %v2632 = vpop.f32.mrf.mxu0
        %v2633 = vadd.f32 0.0, %v2632
        %v2634 = vpop.f32.mrf.mxu0
        %2635 = vmatprep.mubr.f32.mxu0 0.0
        %2636 = vmatmul.mubr.f32.gmra.mxu0 %v2540
        %v2637 = vpop.f32.mrf.mxu0
        %v2638 = vadd.f32 0.0, %v2637
        %v2639 = vpop.f32.mrf.mxu0
        %2640 = vmatprep.mubr.f32.mxu0 0.0
        %2641 = vmatmul.mubr.f32.gmra.mxu0 %v2543
        %v2642 = vpop.f32.mrf.mxu0
        %v2643 = vadd.f32 0.0, %v2642
        %v2644 = vpop.f32.mrf.mxu0
        %2645 = vmatprep.mubr.f32.mxu0 0.0
        %2646 = vmatmul.mubr.f32.gmra.mxu0 %v2546
        %v2647 = vpop.f32.mrf.mxu0
        %v2648 = vadd.f32 0.0, %v2647
        %v2649 = vpop.f32.mrf.mxu0
        %2650 = vmatprep.mubr.f32.mxu0 0.0
        %2651 = vmatmul.mubr.f32.gmra.mxu0 %v2549
        %v2652 = vpop.f32.mrf.mxu0
        %v2653 = vadd.f32 0.0, %v2652
        %v2654 = vpop.f32.mrf.mxu0
        %2655 = vdwg.mxu0
        %v2656 = vadd.f32 %v2509, %v2618
        %v2657 = vadd.f32 %v2510, %v2623
        %v2658 = vadd.f32 %v2511, %v2628
        %v2659 = vadd.f32 %v2512, %v2633
        %v2660 = vadd.f32 %v2513, %v2638
        %v2661 = vadd.f32 %v2514, %v2643
        %v2662 = vadd.f32 %v2515, %v2648
        %v2663 = vadd.f32 %v2516, %v2653
        %v2664 = vld [vmem:[#allocation3 + $0x11] sm:$0xff]
        %v2665 = vld [vmem:[#allocation3 + $0x19] sm:$0xff]
        %v2666 = vld [vmem:[#allocation3 + $0x21] sm:$0xff]
        %v2667 = vld [vmem:[#allocation3 + $0x29] sm:$0xff]
        %v2668 = vld [vmem:[#allocation3 + $0x31] sm:$0xff]
        %v2669 = vld [vmem:[#allocation3 + $0x39] sm:$0xff]
        %v2670 = vld [vmem:[#allocation3 + $0x41] sm:$0xff]
        %v2671 = vld [vmem:[#allocation3 + $0x49] sm:$0xff]
        %v2672 = vsel %vm793, %v2664, 0.0
        %v2673 = vsel %vm794, %v2665, 0.0
        %v2674 = vsel %vm795, %v2666, 0.0
        %v2675 = vsel %vm796, %v2667, 0.0
        %v2676 = vsel %vm797, %v2668, 0.0
        %v2677 = vsel %vm798, %v2669, 0.0
        %v2678 = vsel %vm799, %v2670, 0.0
        %v2679 = vsel %vm800, %v2671, 0.0
        %s2680 = scalar_lea.vmem %s7, 40
        %v2681 = vld [vmem:[%s2680] sm:$0xff]
        %v2683 = vsel %vm307, %v2672, 0
        %v2686 = vsel %vm307, %v2673, 0
        %v2689 = vsel %vm307, %v2674, 0
        %v2692 = vsel %vm307, %v2675, 0
        %v2695 = vsel %vm307, %v2676, 0
        %v2698 = vsel %vm307, %v2677, 0
        %v2701 = vsel %vm307, %v2678, 0
        %v2704 = vsel %vm307, %v2679, 0
        %2706 = vmatprep.subr.mxu0 0.0
        %2707 = vmatpush1.msra.mxu0 0.0
        %2708 = vmatprep.subr.mxu0 0.0
        %2709 = vmatpush1.msra.mxu0 0.0
        %2710 = vmatprep.subr.mxu0 0.0
        %2711 = vmatpush1.msra.mxu0 0.0
        %2712 = vmatprep.subr.mxu0 0.0
        %2713 = vmatpush1.msra.mxu0 0.0
        %2714 = vmatprep.subr.mxu0 0.0
        %2715 = vmatpush1.msra.mxu0 0.0
        %2716 = vmatprep.subr.mxu0 0.0
        %2717 = vmatpush1.msra.mxu0 0.0
        %2718 = vmatprep.subr.mxu0 0.0
        %2719 = vmatpush1.msra.mxu0 0.0
        %2720 = vmatprep.subr.mxu0 0.0
        %2721 = vmatpush1.msra.mxu0 0.0
        %2722 = vmatprep.subr.mxu0 0.0
        %2723 = vmatpush1.msra.mxu0 0.0
        %2724 = vmatprep.subr.mxu0 0.0
        %2725 = vmatpush1.msra.mxu0 0.0
        %2726 = vmatprep.subr.mxu0 0.0
        %2727 = vmatpush1.msra.mxu0 0.0
        %2728 = vmatprep.subr.mxu0 0.0
        %2729 = vmatpush1.msra.mxu0 0.0
        %2730 = vmatprep.subr.mxu0 0.0
        %2731 = vmatpush1.msra.mxu0 0.0
        %2732 = vmatprep.subr.mxu0 0.0
        %2733 = vmatpush1.msra.mxu0 0.0
        %2734 = vmatprep.subr.mxu0 0.0
        %2735 = vmatpush1.msra.mxu0 0.0
        %2736 = vmatprep.subr.mxu0 0.0
        %2737 = vmatpush1.msra.mxu0 %v2681
        %2738 = vmatprep.subr.mxu0 0.0
        %2739 = vmatpush2.msra.mxu0 0.0
        %2740 = vmatprep.subr.mxu0 0.0
        %2741 = vmatpush2.msra.mxu0 0.0
        %2742 = vmatprep.subr.mxu0 0.0
        %2743 = vmatpush2.msra.mxu0 0.0
        %2744 = vmatprep.subr.mxu0 0.0
        %2745 = vmatpush2.msra.mxu0 0.0
        %2746 = vmatprep.subr.mxu0 0.0
        %2747 = vmatpush2.msra.mxu0 0.0
        %2748 = vmatprep.subr.mxu0 0.0
        %2749 = vmatpush2.msra.mxu0 0.0
        %2750 = vmatprep.subr.mxu0 0.0
        %2751 = vmatpush2.msra.mxu0 0.0
        %2752 = vmatprep.subr.mxu0 0.0
        %2753 = vmatpush2.msra.mxu0 0.0
        %2754 = vmatprep.subr.mxu0 0.0
        %2755 = vmatpush2.msra.mxu0 0.0
        %2756 = vmatprep.subr.mxu0 0.0
        %2757 = vmatpush2.msra.mxu0 0.0
        %2758 = vmatprep.subr.mxu0 0.0
        %2759 = vmatpush2.msra.mxu0 0.0
        %2760 = vmatprep.subr.mxu0 0.0
        %2761 = vmatpush2.msra.mxu0 0.0
        %2762 = vmatprep.subr.mxu0 0.0
        %2763 = vmatpush2.msra.mxu0 0.0
        %2764 = vmatprep.subr.mxu0 0.0
        %2765 = vmatpush2.msra.mxu0 0.0
        %2766 = vmatprep.subr.mxu0 0.0
        %2767 = vmatpush2.msra.mxu0 0.0
        %2768 = vmatprep.subr.mxu0 0.0
        %2769 = vmatpush2.msra.mxu0 0.0
        %2770 = vmatprep.mubr.f32.mxu0 0.0
        %2771 = vmatmul.mubr.f32.gmra.mxu0 %v2683
        %v2772 = vpop.f32.mrf.mxu0
        %v2773 = vadd.f32 0.0, %v2772
        %v2774 = vpop.f32.mrf.mxu0
        %2775 = vmatprep.mubr.f32.mxu0 0.0
        %2776 = vmatmul.mubr.f32.gmra.mxu0 %v2686
        %v2777 = vpop.f32.mrf.mxu0
        %v2778 = vadd.f32 0.0, %v2777
        %v2779 = vpop.f32.mrf.mxu0
        %2780 = vmatprep.mubr.f32.mxu0 0.0
        %2781 = vmatmul.mubr.f32.gmra.mxu0 %v2689
        %v2782 = vpop.f32.mrf.mxu0
        %v2783 = vadd.f32 0.0, %v2782
        %v2784 = vpop.f32.mrf.mxu0
        %2785 = vmatprep.mubr.f32.mxu0 0.0
        %2786 = vmatmul.mubr.f32.gmra.mxu0 %v2692
        %v2787 = vpop.f32.mrf.mxu0
        %v2788 = vadd.f32 0.0, %v2787
        %v2789 = vpop.f32.mrf.mxu0
        %2790 = vmatprep.mubr.f32.mxu0 0.0
        %2791 = vmatmul.mubr.f32.gmra.mxu0 %v2695
        %v2792 = vpop.f32.mrf.mxu0
        %v2793 = vadd.f32 0.0, %v2792
        %v2794 = vpop.f32.mrf.mxu0
        %2795 = vmatprep.mubr.f32.mxu0 0.0
        %2796 = vmatmul.mubr.f32.gmra.mxu0 %v2698
        %v2797 = vpop.f32.mrf.mxu0
        %v2798 = vadd.f32 0.0, %v2797
        %v2799 = vpop.f32.mrf.mxu0
        %2800 = vmatprep.mubr.f32.mxu0 0.0
        %2801 = vmatmul.mubr.f32.gmra.mxu0 %v2701
        %v2802 = vpop.f32.mrf.mxu0
        %v2803 = vadd.f32 0.0, %v2802
        %v2804 = vpop.f32.mrf.mxu0
        %2805 = vmatprep.mubr.f32.mxu0 0.0
        %2806 = vmatmul.mubr.f32.gmra.mxu0 %v2704
        %v2807 = vpop.f32.mrf.mxu0
        %v2808 = vadd.f32 0.0, %v2807
        %v2809 = vpop.f32.mrf.mxu0
        %2810 = vdwg.mxu0
        %v2811 = vadd.f32 %v2656, %v2773
        %v2812 = vadd.f32 %v2657, %v2778
        %v2813 = vadd.f32 %v2658, %v2783
        %v2814 = vadd.f32 %v2659, %v2788
        %v2815 = vadd.f32 %v2660, %v2793
        %v2816 = vadd.f32 %v2661, %v2798
        %v2817 = vadd.f32 %v2662, %v2803
        %v2818 = vadd.f32 %v2663, %v2808
        %v2819 = vld [vmem:[#allocation3 + $0x17] sm:$0xff]
        %v2820 = vld [vmem:[#allocation3 + $0x1f] sm:$0xff]
        %v2821 = vld [vmem:[#allocation3 + $0x27] sm:$0xff]
        %v2822 = vld [vmem:[#allocation3 + $0x2f] sm:$0xff]
        %v2823 = vld [vmem:[#allocation3 + $0x37] sm:$0xff]
        %v2824 = vld [vmem:[#allocation3 + $0x3f] sm:$0xff]
        %v2825 = vld [vmem:[#allocation3 + $0x47] sm:$0xff]
        %v2826 = vld [vmem:[#allocation3 + $0x4f] sm:$0xff]
        %v2827 = vsel %vm468, %v2819, 0.0
        %v2828 = vsel %vm469, %v2820, 0.0
        %v2829 = vsel %vm470, %v2821, 0.0
        %v2830 = vsel %vm471, %v2822, 0.0
        %v2831 = vsel %vm472, %v2823, 0.0
        %v2832 = vsel %vm473, %v2824, 0.0
        %v2833 = vsel %vm474, %v2825, 0.0
        %v2834 = vsel %vm475, %v2826, 0.0
        %s2835 = scalar_lea.vmem %s7, 48
        %v2836 = vld [vmem:[%s2835] sm:$0xff]
        %v2838 = vsel %vm307, %v2827, 0
        %v2841 = vsel %vm307, %v2828, 0
        %v2844 = vsel %vm307, %v2829, 0
        %v2847 = vsel %vm307, %v2830, 0
        %v2850 = vsel %vm307, %v2831, 0
        %v2853 = vsel %vm307, %v2832, 0
        %v2856 = vsel %vm307, %v2833, 0
        %v2859 = vsel %vm307, %v2834, 0
        %2861 = vmatprep.subr.mxu0 0.0
        %2862 = vmatpush1.msra.mxu0 0.0
        %2863 = vmatprep.subr.mxu0 0.0
        %2864 = vmatpush1.msra.mxu0 0.0
        %2865 = vmatprep.subr.mxu0 0.0
        %2866 = vmatpush1.msra.mxu0 0.0
        %2867 = vmatprep.subr.mxu0 0.0
        %2868 = vmatpush1.msra.mxu0 0.0
        %2869 = vmatprep.subr.mxu0 0.0
        %2870 = vmatpush1.msra.mxu0 0.0
        %2871 = vmatprep.subr.mxu0 0.0
        %2872 = vmatpush1.msra.mxu0 0.0
        %2873 = vmatprep.subr.mxu0 0.0
        %2874 = vmatpush1.msra.mxu0 0.0
        %2875 = vmatprep.subr.mxu0 0.0
        %2876 = vmatpush1.msra.mxu0 0.0
        %2877 = vmatprep.subr.mxu0 0.0
        %2878 = vmatpush1.msra.mxu0 0.0
        %2879 = vmatprep.subr.mxu0 0.0
        %2880 = vmatpush1.msra.mxu0 0.0
        %2881 = vmatprep.subr.mxu0 0.0
        %2882 = vmatpush1.msra.mxu0 0.0
        %2883 = vmatprep.subr.mxu0 0.0
        %2884 = vmatpush1.msra.mxu0 0.0
        %2885 = vmatprep.subr.mxu0 0.0
        %2886 = vmatpush1.msra.mxu0 0.0
        %2887 = vmatprep.subr.mxu0 0.0
        %2888 = vmatpush1.msra.mxu0 0.0
        %2889 = vmatprep.subr.mxu0 0.0
        %2890 = vmatpush1.msra.mxu0 0.0
        %2891 = vmatprep.subr.mxu0 0.0
        %2892 = vmatpush1.msra.mxu0 %v2836
        %2893 = vmatprep.subr.mxu0 0.0
        %2894 = vmatpush2.msra.mxu0 0.0
        %2895 = vmatprep.subr.mxu0 0.0
        %2896 = vmatpush2.msra.mxu0 0.0
        %2897 = vmatprep.subr.mxu0 0.0
        %2898 = vmatpush2.msra.mxu0 0.0
        %2899 = vmatprep.subr.mxu0 0.0
        %2900 = vmatpush2.msra.mxu0 0.0
        %2901 = vmatprep.subr.mxu0 0.0
        %2902 = vmatpush2.msra.mxu0 0.0
        %2903 = vmatprep.subr.mxu0 0.0
        %2904 = vmatpush2.msra.mxu0 0.0
        %2905 = vmatprep.subr.mxu0 0.0
        %2906 = vmatpush2.msra.mxu0 0.0
        %2907 = vmatprep.subr.mxu0 0.0
        %2908 = vmatpush2.msra.mxu0 0.0
        %2909 = vmatprep.subr.mxu0 0.0
        %2910 = vmatpush2.msra.mxu0 0.0
        %2911 = vmatprep.subr.mxu0 0.0
        %2912 = vmatpush2.msra.mxu0 0.0
        %2913 = vmatprep.subr.mxu0 0.0
        %2914 = vmatpush2.msra.mxu0 0.0
        %2915 = vmatprep.subr.mxu0 0.0
        %2916 = vmatpush2.msra.mxu0 0.0
        %2917 = vmatprep.subr.mxu0 0.0
        %2918 = vmatpush2.msra.mxu0 0.0
        %2919 = vmatprep.subr.mxu0 0.0
        %2920 = vmatpush2.msra.mxu0 0.0
        %2921 = vmatprep.subr.mxu0 0.0
        %2922 = vmatpush2.msra.mxu0 0.0
        %2923 = vmatprep.subr.mxu0 0.0
        %2924 = vmatpush2.msra.mxu0 0.0
        %2925 = vmatprep.mubr.f32.mxu0 0.0
        %2926 = vmatmul.mubr.f32.gmra.mxu0 %v2838
        %v2927 = vpop.f32.mrf.mxu0
        %v2928 = vadd.f32 0.0, %v2927
        %v2929 = vpop.f32.mrf.mxu0
        %2930 = vmatprep.mubr.f32.mxu0 0.0
        %2931 = vmatmul.mubr.f32.gmra.mxu0 %v2841
        %v2932 = vpop.f32.mrf.mxu0
        %v2933 = vadd.f32 0.0, %v2932
        %v2934 = vpop.f32.mrf.mxu0
        %2935 = vmatprep.mubr.f32.mxu0 0.0
        %2936 = vmatmul.mubr.f32.gmra.mxu0 %v2844
        %v2937 = vpop.f32.mrf.mxu0
        %v2938 = vadd.f32 0.0, %v2937
        %v2939 = vpop.f32.mrf.mxu0
        %2940 = vmatprep.mubr.f32.mxu0 0.0
        %2941 = vmatmul.mubr.f32.gmra.mxu0 %v2847
        %v2942 = vpop.f32.mrf.mxu0
        %v2943 = vadd.f32 0.0, %v2942
        %v2944 = vpop.f32.mrf.mxu0
        %2945 = vmatprep.mubr.f32.mxu0 0.0
        %2946 = vmatmul.mubr.f32.gmra.mxu0 %v2850
        %v2947 = vpop.f32.mrf.mxu0
        %v2948 = vadd.f32 0.0, %v2947
        %v2949 = vpop.f32.mrf.mxu0
        %2950 = vmatprep.mubr.f32.mxu0 0.0
        %2951 = vmatmul.mubr.f32.gmra.mxu0 %v2853
        %v2952 = vpop.f32.mrf.mxu0
        %v2953 = vadd.f32 0.0, %v2952
        %v2954 = vpop.f32.mrf.mxu0
        %2955 = vmatprep.mubr.f32.mxu0 0.0
        %2956 = vmatmul.mubr.f32.gmra.mxu0 %v2856
        %v2957 = vpop.f32.mrf.mxu0
        %v2958 = vadd.f32 0.0, %v2957
        %v2959 = vpop.f32.mrf.mxu0
        %2960 = vmatprep.mubr.f32.mxu0 0.0
        %2961 = vmatmul.mubr.f32.gmra.mxu0 %v2859
        %v2962 = vpop.f32.mrf.mxu0
        %v2963 = vadd.f32 0.0, %v2962
        %v2964 = vpop.f32.mrf.mxu0
        %2965 = vdwg.mxu0
        %v2966 = vadd.f32 %v2811, %v2928
        %v2967 = vadd.f32 %v2812, %v2933
        %v2968 = vadd.f32 %v2813, %v2938
        %v2969 = vadd.f32 %v2814, %v2943
        %v2970 = vadd.f32 %v2815, %v2948
        %v2971 = vadd.f32 %v2816, %v2953
        %v2972 = vadd.f32 %v2817, %v2958
        %v2973 = vadd.f32 %v2818, %v2963
        %v2974 = vld [vmem:[#allocation3 + $0x18] sm:$0xff]
        %v2975 = vld [vmem:[#allocation3 + $0x20] sm:$0xff]
        %v2976 = vld [vmem:[#allocation3 + $0x28] sm:$0xff]
        %v2977 = vld [vmem:[#allocation3 + $0x30] sm:$0xff]
        %v2978 = vld [vmem:[#allocation3 + $0x38] sm:$0xff]
        %v2979 = vld [vmem:[#allocation3 + $0x40] sm:$0xff]
        %v2980 = vld [vmem:[#allocation3 + $0x48] sm:$0xff]
        %v2981 = vld [vmem:[#allocation3 + $0x50] sm:$0xff]
        %s2982 = scalar_lea.vmem %s7, 56
        %v2983 = vld [vmem:[%s2982] sm:$0xff]
        %v2985 = vsel %vm307, %v2974, 0
        %v2988 = vsel %vm307, %v2975, 0
        %v2991 = vsel %vm307, %v2976, 0
        %v2994 = vsel %vm307, %v2977, 0
        %v2997 = vsel %vm307, %v2978, 0
        %v3000 = vsel %vm307, %v2979, 0
        %v3003 = vsel %vm307, %v2980, 0
        %v3006 = vsel %vm307, %v2981, 0
        %3008 = vmatprep.subr.mxu0 0.0
        %3009 = vmatpush1.msra.mxu0 0.0
        %3010 = vmatprep.subr.mxu0 0.0
        %3011 = vmatpush1.msra.mxu0 0.0
        %3012 = vmatprep.subr.mxu0 0.0
        %3013 = vmatpush1.msra.mxu0 0.0
        %3014 = vmatprep.subr.mxu0 0.0
        %3015 = vmatpush1.msra.mxu0 0.0
        %3016 = vmatprep.subr.mxu0 0.0
        %3017 = vmatpush1.msra.mxu0 0.0
        %3018 = vmatprep.subr.mxu0 0.0
        %3019 = vmatpush1.msra.mxu0 0.0
        %3020 = vmatprep.subr.mxu0 0.0
        %3021 = vmatpush1.msra.mxu0 0.0
        %3022 = vmatprep.subr.mxu0 0.0
        %3023 = vmatpush1.msra.mxu0 0.0
        %3024 = vmatprep.subr.mxu0 0.0
        %3025 = vmatpush1.msra.mxu0 0.0
        %3026 = vmatprep.subr.mxu0 0.0
        %3027 = vmatpush1.msra.mxu0 0.0
        %3028 = vmatprep.subr.mxu0 0.0
        %3029 = vmatpush1.msra.mxu0 0.0
        %3030 = vmatprep.subr.mxu0 0.0
        %3031 = vmatpush1.msra.mxu0 0.0
        %3032 = vmatprep.subr.mxu0 0.0
        %3033 = vmatpush1.msra.mxu0 0.0
        %3034 = vmatprep.subr.mxu0 0.0
        %3035 = vmatpush1.msra.mxu0 0.0
        %3036 = vmatprep.subr.mxu0 0.0
        %3037 = vmatpush1.msra.mxu0 0.0
        %3038 = vmatprep.subr.mxu0 0.0
        %3039 = vmatpush1.msra.mxu0 %v2983
        %3040 = vmatprep.subr.mxu0 0.0
        %3041 = vmatpush2.msra.mxu0 0.0
        %3042 = vmatprep.subr.mxu0 0.0
        %3043 = vmatpush2.msra.mxu0 0.0
        %3044 = vmatprep.subr.mxu0 0.0
        %3045 = vmatpush2.msra.mxu0 0.0
        %3046 = vmatprep.subr.mxu0 0.0
        %3047 = vmatpush2.msra.mxu0 0.0
        %3048 = vmatprep.subr.mxu0 0.0
        %3049 = vmatpush2.msra.mxu0 0.0
        %3050 = vmatprep.subr.mxu0 0.0
        %3051 = vmatpush2.msra.mxu0 0.0
        %3052 = vmatprep.subr.mxu0 0.0
        %3053 = vmatpush2.msra.mxu0 0.0
        %3054 = vmatprep.subr.mxu0 0.0
        %3055 = vmatpush2.msra.mxu0 0.0
        %3056 = vmatprep.subr.mxu0 0.0
        %3057 = vmatpush2.msra.mxu0 0.0
        %3058 = vmatprep.subr.mxu0 0.0
        %3059 = vmatpush2.msra.mxu0 0.0
        %3060 = vmatprep.subr.mxu0 0.0
        %3061 = vmatpush2.msra.mxu0 0.0
        %3062 = vmatprep.subr.mxu0 0.0
        %3063 = vmatpush2.msra.mxu0 0.0
        %3064 = vmatprep.subr.mxu0 0.0
        %3065 = vmatpush2.msra.mxu0 0.0
        %3066 = vmatprep.subr.mxu0 0.0
        %3067 = vmatpush2.msra.mxu0 0.0
        %3068 = vmatprep.subr.mxu0 0.0
        %3069 = vmatpush2.msra.mxu0 0.0
        %3070 = vmatprep.subr.mxu0 0.0
        %3071 = vmatpush2.msra.mxu0 0.0
        %3072 = vmatprep.mubr.f32.mxu0 0.0
        %3073 = vmatmul.mubr.f32.gmra.mxu0 %v2985
        %v3074 = vpop.f32.mrf.mxu0
        %v3075 = vadd.f32 0.0, %v3074
        %v3076 = vpop.f32.mrf.mxu0
        %3077 = vmatprep.mubr.f32.mxu0 0.0
        %3078 = vmatmul.mubr.f32.gmra.mxu0 %v2988
        %v3079 = vpop.f32.mrf.mxu0
        %v3080 = vadd.f32 0.0, %v3079
        %v3081 = vpop.f32.mrf.mxu0
        %3082 = vmatprep.mubr.f32.mxu0 0.0
        %3083 = vmatmul.mubr.f32.gmra.mxu0 %v2991
        %v3084 = vpop.f32.mrf.mxu0
        %v3085 = vadd.f32 0.0, %v3084
        %v3086 = vpop.f32.mrf.mxu0
        %3087 = vmatprep.mubr.f32.mxu0 0.0
        %3088 = vmatmul.mubr.f32.gmra.mxu0 %v2994
        %v3089 = vpop.f32.mrf.mxu0
        %v3090 = vadd.f32 0.0, %v3089
        %v3091 = vpop.f32.mrf.mxu0
        %3092 = vmatprep.mubr.f32.mxu0 0.0
        %3093 = vmatmul.mubr.f32.gmra.mxu0 %v2997
        %v3094 = vpop.f32.mrf.mxu0
        %v3095 = vadd.f32 0.0, %v3094
        %v3096 = vpop.f32.mrf.mxu0
        %3097 = vmatprep.mubr.f32.mxu0 0.0
        %3098 = vmatmul.mubr.f32.gmra.mxu0 %v3000
        %v3099 = vpop.f32.mrf.mxu0
        %v3100 = vadd.f32 0.0, %v3099
        %v3101 = vpop.f32.mrf.mxu0
        %3102 = vmatprep.mubr.f32.mxu0 0.0
        %3103 = vmatmul.mubr.f32.gmra.mxu0 %v3003
        %v3104 = vpop.f32.mrf.mxu0
        %v3105 = vadd.f32 0.0, %v3104
        %v3106 = vpop.f32.mrf.mxu0
        %3107 = vmatprep.mubr.f32.mxu0 0.0
        %3108 = vmatmul.mubr.f32.gmra.mxu0 %v3006
        %v3109 = vpop.f32.mrf.mxu0
        %v3110 = vadd.f32 0.0, %v3109
        %v3111 = vpop.f32.mrf.mxu0
        %3112 = vdwg.mxu0
        %v3113 = vadd.f32 %v2966, %v3075
        %v3114 = vadd.f32 %v2967, %v3080
        %v3115 = vadd.f32 %v2968, %v3085
        %v3116 = vadd.f32 %v2969, %v3090
        %v3117 = vadd.f32 %v2970, %v3095
        %v3118 = vadd.f32 %v2971, %v3100
        %v3119 = vadd.f32 %v2972, %v3105
        %v3120 = vadd.f32 %v2973, %v3110
        %v3121 = vld [vmem:[#allocation3 + $0x19] sm:$0xff]
        %v3122 = vld [vmem:[#allocation3 + $0x21] sm:$0xff]
        %v3123 = vld [vmem:[#allocation3 + $0x29] sm:$0xff]
        %v3124 = vld [vmem:[#allocation3 + $0x31] sm:$0xff]
        %v3125 = vld [vmem:[#allocation3 + $0x39] sm:$0xff]
        %v3126 = vld [vmem:[#allocation3 + $0x41] sm:$0xff]
        %v3127 = vld [vmem:[#allocation3 + $0x49] sm:$0xff]
        %v3128 = vld [vmem:[#allocation3 + $0x51] sm:$0xff]
        %v3129 = vsel %vm793, %v3121, 0.0
        %v3130 = vsel %vm794, %v3122, 0.0
        %v3131 = vsel %vm795, %v3123, 0.0
        %v3132 = vsel %vm796, %v3124, 0.0
        %v3133 = vsel %vm797, %v3125, 0.0
        %v3134 = vsel %vm798, %v3126, 0.0
        %v3135 = vsel %vm799, %v3127, 0.0
        %v3136 = vsel %vm800, %v3128, 0.0
        %s3137 = scalar_lea.vmem %s7, 64
        %v3138 = vld [vmem:[%s3137] sm:$0xff]
        %v3140 = vsel %vm307, %v3129, 0
        %v3143 = vsel %vm307, %v3130, 0
        %v3146 = vsel %vm307, %v3131, 0
        %v3149 = vsel %vm307, %v3132, 0
        %v3152 = vsel %vm307, %v3133, 0
        %v3155 = vsel %vm307, %v3134, 0
        %v3158 = vsel %vm307, %v3135, 0
        %v3161 = vsel %vm307, %v3136, 0
        %3163 = vmatprep.subr.mxu0 0.0
        %3164 = vmatpush1.msra.mxu0 0.0
        %3165 = vmatprep.subr.mxu0 0.0
        %3166 = vmatpush1.msra.mxu0 0.0
        %3167 = vmatprep.subr.mxu0 0.0
        %3168 = vmatpush1.msra.mxu0 0.0
        %3169 = vmatprep.subr.mxu0 0.0
        %3170 = vmatpush1.msra.mxu0 0.0
        %3171 = vmatprep.subr.mxu0 0.0
        %3172 = vmatpush1.msra.mxu0 0.0
        %3173 = vmatprep.subr.mxu0 0.0
        %3174 = vmatpush1.msra.mxu0 0.0
        %3175 = vmatprep.subr.mxu0 0.0
        %3176 = vmatpush1.msra.mxu0 0.0
        %3177 = vmatprep.subr.mxu0 0.0
        %3178 = vmatpush1.msra.mxu0 0.0
        %3179 = vmatprep.subr.mxu0 0.0
        %3180 = vmatpush1.msra.mxu0 0.0
        %3181 = vmatprep.subr.mxu0 0.0
        %3182 = vmatpush1.msra.mxu0 0.0
        %3183 = vmatprep.subr.mxu0 0.0
        %3184 = vmatpush1.msra.mxu0 0.0
        %3185 = vmatprep.subr.mxu0 0.0
        %3186 = vmatpush1.msra.mxu0 0.0
        %3187 = vmatprep.subr.mxu0 0.0
        %3188 = vmatpush1.msra.mxu0 0.0
        %3189 = vmatprep.subr.mxu0 0.0
        %3190 = vmatpush1.msra.mxu0 0.0
        %3191 = vmatprep.subr.mxu0 0.0
        %3192 = vmatpush1.msra.mxu0 0.0
        %3193 = vmatprep.subr.mxu0 0.0
        %3194 = vmatpush1.msra.mxu0 %v3138
        %3195 = vmatprep.subr.mxu0 0.0
        %3196 = vmatpush2.msra.mxu0 0.0
        %3197 = vmatprep.subr.mxu0 0.0
        %3198 = vmatpush2.msra.mxu0 0.0
        %3199 = vmatprep.subr.mxu0 0.0
        %3200 = vmatpush2.msra.mxu0 0.0
        %3201 = vmatprep.subr.mxu0 0.0
        %3202 = vmatpush2.msra.mxu0 0.0
        %3203 = vmatprep.subr.mxu0 0.0
        %3204 = vmatpush2.msra.mxu0 0.0
        %3205 = vmatprep.subr.mxu0 0.0
        %3206 = vmatpush2.msra.mxu0 0.0
        %3207 = vmatprep.subr.mxu0 0.0
        %3208 = vmatpush2.msra.mxu0 0.0
        %3209 = vmatprep.subr.mxu0 0.0
        %3210 = vmatpush2.msra.mxu0 0.0
        %3211 = vmatprep.subr.mxu0 0.0
        %3212 = vmatpush2.msra.mxu0 0.0
        %3213 = vmatprep.subr.mxu0 0.0
        %3214 = vmatpush2.msra.mxu0 0.0
        %3215 = vmatprep.subr.mxu0 0.0
        %3216 = vmatpush2.msra.mxu0 0.0
        %3217 = vmatprep.subr.mxu0 0.0
        %3218 = vmatpush2.msra.mxu0 0.0
        %3219 = vmatprep.subr.mxu0 0.0
        %3220 = vmatpush2.msra.mxu0 0.0
        %3221 = vmatprep.subr.mxu0 0.0
        %3222 = vmatpush2.msra.mxu0 0.0
        %3223 = vmatprep.subr.mxu0 0.0
        %3224 = vmatpush2.msra.mxu0 0.0
        %3225 = vmatprep.subr.mxu0 0.0
        %3226 = vmatpush2.msra.mxu0 0.0
        %3227 = vmatprep.mubr.f32.mxu0 0.0
        %3228 = vmatmul.mubr.f32.gmra.mxu0 %v3140
        %v3229 = vpop.f32.mrf.mxu0
        %v3230 = vadd.f32 0.0, %v3229
        %v3231 = vpop.f32.mrf.mxu0
        %3232 = vmatprep.mubr.f32.mxu0 0.0
        %3233 = vmatmul.mubr.f32.gmra.mxu0 %v3143
        %v3234 = vpop.f32.mrf.mxu0
        %v3235 = vadd.f32 0.0, %v3234
        %v3236 = vpop.f32.mrf.mxu0
        %3237 = vmatprep.mubr.f32.mxu0 0.0
        %3238 = vmatmul.mubr.f32.gmra.mxu0 %v3146
        %v3239 = vpop.f32.mrf.mxu0
        %v3240 = vadd.f32 0.0, %v3239
        %v3241 = vpop.f32.mrf.mxu0
        %3242 = vmatprep.mubr.f32.mxu0 0.0
        %3243 = vmatmul.mubr.f32.gmra.mxu0 %v3149
        %v3244 = vpop.f32.mrf.mxu0
        %v3245 = vadd.f32 0.0, %v3244
        %v3246 = vpop.f32.mrf.mxu0
        %3247 = vmatprep.mubr.f32.mxu0 0.0
        %3248 = vmatmul.mubr.f32.gmra.mxu0 %v3152
        %v3249 = vpop.f32.mrf.mxu0
        %v3250 = vadd.f32 0.0, %v3249
        %v3251 = vpop.f32.mrf.mxu0
        %3252 = vmatprep.mubr.f32.mxu0 0.0
        %3253 = vmatmul.mubr.f32.gmra.mxu0 %v3155
        %v3254 = vpop.f32.mrf.mxu0
        %v3255 = vadd.f32 0.0, %v3254
        %v3256 = vpop.f32.mrf.mxu0
        %3257 = vmatprep.mubr.f32.mxu0 0.0
        %3258 = vmatmul.mubr.f32.gmra.mxu0 %v3158
        %v3259 = vpop.f32.mrf.mxu0
        %v3260 = vadd.f32 0.0, %v3259
        %v3261 = vpop.f32.mrf.mxu0
        %3262 = vmatprep.mubr.f32.mxu0 0.0
        %3263 = vmatmul.mubr.f32.gmra.mxu0 %v3161
        %v3264 = vpop.f32.mrf.mxu0
        %v3265 = vadd.f32 0.0, %v3264
        %v3266 = vpop.f32.mrf.mxu0
        %3267 = vdwg.mxu0
        %v3268 = vadd.f32 %v3113, %v3230
        %v3269 = vadd.f32 %v3114, %v3235
        %v3270 = vadd.f32 %v3115, %v3240
        %v3271 = vadd.f32 %v3116, %v3245
        %v3272 = vadd.f32 %v3117, %v3250
        %v3273 = vadd.f32 %v3118, %v3255
        %v3274 = vadd.f32 %v3119, %v3260
        %v3275 = vadd.f32 %v3120, %v3265
        %v3276 = vadd.f32 %v3268, %v360
        %v3277 = vadd.f32 %v3269, %v361
        %v3278 = vadd.f32 %v3270, %v362
        %v3279 = vadd.f32 %v3271, %v363
        %v3280 = vadd.f32 %v3272, %v364
        %v3281 = vadd.f32 %v3273, %v365
        %v3282 = vadd.f32 %v3274, %v366
        %v3283 = vadd.f32 %v3275, %v367
        %3284 = vst.msk [vmem:[%s299] sm:$0xff] %vm307, %v3276
        %3285 = vst.msk [vmem:[%s299 + $0x8] sm:$0xff] %vm307, %v3277
        %3286 = vst.msk [vmem:[%s299 + $0x10] sm:$0xff] %vm307, %v3278
        %3287 = vst.msk [vmem:[%s299 + $0x18] sm:$0xff] %vm307, %v3279
        %3288 = vst.msk [vmem:[%s299 + $0x20] sm:$0xff] %vm307, %v3280
        %3289 = vst.msk [vmem:[%s299 + $0x28] sm:$0xff] %vm307, %v3281
        %3290 = vst.msk [vmem:[%s299 + $0x30] sm:$0xff] %vm307, %v3282
        %3291 = vst.msk [vmem:[%s299 + $0x38] sm:$0xff] %vm307, %v3283
        %s3292 = sand.u32 %s203, 1
        %s3293 = scalar_lea.sflag [#allocation5], %s3292
        %s3294 = sand.u32 %s203, 1
        %s3295 = smul.addr %s3294, 64
        %s3296 = scalar_lea.vmem [#allocation4], %s3295
        // Predicated region
        $region53: #{_lambda_.3} parent=51 // pred_check
          %p3297 = pneg %p213
        $region54: #{_lambda_.3} parent=51 // pred_check_branch
          %3299 = sbr.rel (%p3297) target = $region56
        $region55: #{_lambda_.3} parent=51 // pred_region
          %s3300 = smul.u32 8, %s22
          %s3302 = ssub.s32 1024, 1024
          %3303 = vsyncadd %s3293, %s3302
          %s3304 = smul.addr %s3300, 128
          %s3305 = scalar_lea.hbm %s8, %s3304
          %s3306 = sshll.u32 %s3296, 4
          %s3307 = int_to_ptr.vmem [resolvable:$true] %s3306
          %3312 = dma.vmem_to_hbm [thread:$0]  %s3307, 1024, %s3305, %s3293, 128, 128, 8
        $region56: #{_lambda_.3} parent=51 // pred_fallthru
          _
      $region52: #{_lambda_.3} parent=5 // pred_fallthru
        _
      %p3313 = scmp.le.s32.totalorder 2, %s17
      // Predicated region
      $region57: #{_lambda_.3} parent=5 // pred_check
        %p3314 = pneg %p3313
      $region58: #{_lambda_.3} parent=5 // pred_check_branch
        %3316 = sbr.rel (%p3314) target = $region60
      $region59: #{_lambda_.3} parent=5 // pred_region
        %s3317 = ssub.s32 %s17, 2
        // Predicated region
        $region61: #{_lambda_.3} parent=59 // pred_check
          %p3318 = pneg %p219
        $region62: #{_lambda_.3} parent=59 // pred_check_branch
          %3320 = sbr.rel (%p3318) target = $region64
        $region63: #{_lambda_.3} parent=59 // pred_region
          %s3321 = sand.u32 %s204, 1
          %s3322 = scalar_lea.sflag [#allocation5], %s3321
          %s3323 = sand.u32 %s204, 1
          %s3324 = smul.addr %s3323, 64
          %s3325 = scalar_lea.vmem [#allocation4], %s3324
          %3326 = dma.done %s3322, 1024
        $region64: #{_lambda_.3} parent=59 // pred_fallthru
          _
      $region60: #{_lambda_.3} parent=5 // pred_fallthru
        _
    $region6: #{_lambda_.3} parent=1 // loop_footer
      %s21 = sadd.s32 1, %s17
    $region7: #{_lambda_.3} parent=1 // loop_footer_branch
      %16 = sbr.rel target = $region3
    $region8: #{_lambda_.3} parent=1 // loop_exit
      _
    %3327 = vsyncpa [#allocation5], 1
    %s3328 = scalar_lea.sflag [#allocation5], 1
    %3329 = vsyncpa %s3328, 1

// kernel: _lambda_.2
$region0: #{_lambda_.2}
  #allocation0 [shape = 'u32[]', space=smem, size = 0x4, offset = 0x4, fixed_abs, tag = 'smem constant byte address 0x4 - core index']
  #allocation1 [shape = 'u32[144,128]{1,0:T(1,128)}', space=vmem, size = 0x12000, scoped, tag = 'internal scratch']
  #allocation2 [shape = 'f32[96,4]{1,0:T(8,128)}', space=vmem, size = 0xc000, scoped, tag = 'scratch operand']
  #allocation3 [shape = 'f32[96,8]{1,0:T(8,128)}', space=vmem, size = 0xc000, scoped, tag = 'scratch operand']
  %s0 = inlined_call_operand.vmem [shape: f32[128,4], index: 0, kind: input, shape index: {}]
  %s1 = inlined_call_operand.vmem [shape: f32[128,4], index: 1, kind: input, shape index: {}]
  %s2 = inlined_call_operand.vmem [shape: f32[128,4], index: 2, kind: input, shape index: {}]
  %s3 = inlined_call_operand.vmem [shape: f32[128,4], index: 3, kind: input, shape index: {}]
  %s4 = inlined_call_operand.vmem [shape: f32[64,1], index: 4, kind: input, shape index: {}]
  %s5 = inlined_call_operand.vmem [shape: f32[1,4], index: 5, kind: input, shape index: {}]
  %s6 = inlined_call_operand.vmem [shape: f32[1,4], index: 6, kind: input, shape index: {}]
  %s7 = inlined_call_operand.vmem [shape: f32[1,8], index: 7, kind: input, shape index: {}]
  %s8 = inlined_call_operand.vmem [shape: f32[1,8], index: 8, kind: input, shape index: {}]
  %s9 = inlined_call_operand.vmem [shape: f32[9,4,8], index: 9, kind: input, shape index: {}]
  %s10 = inlined_call_operand.vmem [shape: f32[9,8,8], index: 10, kind: input, shape index: {}]
  %s11 = inlined_call_operand.vmem [shape: f32[4,8], index: 11, kind: input, shape index: {}]
  %s12 = inlined_call_operand.vmem [shape: f32[128,8], index: 12, kind: output, shape index: {}]
  %s13 = sld [smem:[#allocation0]]
  $region81: #{_lambda_.2} parent=0
    _
  %s15 = ssub.s32 1, %s13
  %s16 = scalar_select 0, %s15, %s13
  loop: start=0, step=1, limit=4
  $region2: #{_lambda_.2} parent=0 // loop_pre_header
    _
  $region3: #{_lambda_.2} parent=0 // loop_header
    %s18 = sphi 0, %s22
    %p19 = scmp.ge.s32.totalorder %s18, 4
    %s28 = sphi 0, %s30
    %s31 = sphi 0, %s28
    %s32 = sphi 0, %s31
    %s48 = sphi 0, %s32
    %s54 = sphi 0, %s56
    %s57 = sphi 0, %s54
    %s58 = sphi 0, %s57
    %s74 = sphi 0, %s58
    %s80 = sphi 0, %s82
    %s83 = sphi 0, %s80
    %s84 = sphi 0, %s83
    %s100 = sphi 0, %s84
    %s106 = sphi 0, %s108
    %s109 = sphi 0, %s106
    %s110 = sphi 0, %s109
    %s126 = sphi 0, %s110
    %s130 = sphi 0, %s130
    %s132 = sphi 0, %s130
    %s133 = sphi 0, %s132
    %s147 = sphi 0, %s133
    %s151 = sphi 0, %s151
    %s153 = sphi 0, %s151
    %s154 = sphi 0, %s153
    %s168 = sphi 0, %s154
    %s172 = sphi 0, %s172
    %s174 = sphi 0, %s172
    %s175 = sphi 0, %s174
    %s189 = sphi 0, %s175
    %s193 = sphi 0, %s193
    %s195 = sphi 0, %s193
    %s196 = sphi 0, %s195
    %s210 = sphi 0, %s196
    %s214 = sphi 0, %s214
    %s216 = sphi 0, %s214
    %s217 = sphi 0, %s216
    %s231 = sphi 0, %s217
    %s235 = sphi 0, %s235
    %s237 = sphi 0, %s235
    %s238 = sphi 0, %s237
    %s252 = sphi 0, %s238
    %s256 = sphi 0, %s256
    %s258 = sphi 0, %s256
    %s259 = sphi 0, %s258
    %s273 = sphi 0, %s259
    %s277 = sphi 0, %s277
    %s279 = sphi 0, %s277
    %s280 = sphi 0, %s279
    %s294 = sphi 0, %s280
    %s300 = sphi 0, %s302
    %s303 = sphi 0, %s300
    %s304 = sphi 0, %s303
    %s320 = sphi 0, %s304
  $region4: #{_lambda_.2} parent=0 // loop_header_branch
    %21 = sbr.rel (%p19) target = $region8
  $region5: #{_lambda_.2} parent=0 // loop_body
    %s23 = ssub.s32 %s18, 1
    %s24 = ssub.s32 %s18, 2
    %s25 = sadd.s32 %s18, 1
    %s26 = ssub.s32 %s18, %s25
    %p27 = scmp.eq.s32.totalorder %s26, 0
    %s29 = sadd.s32 %s28, 1
    %s30 = scalar_select %p27, %s28, %s29
    %p33 = pneg %p27
    %p34 = scmp.eq.s32.totalorder %s18, 1
    %p35 = por %p33, %p34
    %p36 = scmp.ne.s32.totalorder %s28, %s31
    %p37 = scmp.eq.s32.totalorder %s18, 0
    %p38 = por %p36, %p37
    %p39 = scmp.ne.s32.totalorder %s28, %s31
    %p40 = scmp.eq.s32.totalorder %s23, 1
    %p41 = por %p39, %p40
    %p42 = scmp.ne.s32.totalorder %s31, %s32
    %p43 = scmp.eq.s32.totalorder %s23, 0
    %p44 = por %p42, %p43
    %p45 = scmp.ne.s32.totalorder %s31, %s32
    %p46 = scmp.eq.s32.totalorder %s24, 1
    %p47 = por %p45, %p46
    %p49 = scmp.ne.s32.totalorder %s32, %s48
    %p50 = scmp.eq.s32.totalorder %s24, 0
    %p51 = por %p49, %p50
    %s52 = ssub.s32 %s18, %s25
    %p53 = scmp.eq.s32.totalorder %s52, 0
    %s55 = sadd.s32 %s54, 1
    %s56 = scalar_select %p53, %s54, %s55
    %p59 = pneg %p53
    %p60 = scmp.eq.s32.totalorder %s18, 1
    %p61 = por %p59, %p60
    %p62 = scmp.ne.s32.totalorder %s54, %s57
    %p63 = scmp.eq.s32.totalorder %s18, 0
    %p64 = por %p62, %p63
    %p65 = scmp.ne.s32.totalorder %s54, %s57
    %p66 = scmp.eq.s32.totalorder %s23, 1
    %p67 = por %p65, %p66
    %p68 = scmp.ne.s32.totalorder %s57, %s58
    %p69 = scmp.eq.s32.totalorder %s23, 0
    %p70 = por %p68, %p69
    %p71 = scmp.ne.s32.totalorder %s57, %s58
    %p72 = scmp.eq.s32.totalorder %s24, 1
    %p73 = por %p71, %p72
    %p75 = scmp.ne.s32.totalorder %s58, %s74
    %p76 = scmp.eq.s32.totalorder %s24, 0
    %p77 = por %p75, %p76
    %s78 = ssub.s32 %s18, %s25
    %p79 = scmp.eq.s32.totalorder %s78, 0
    %s81 = sadd.s32 %s80, 1
    %s82 = scalar_select %p79, %s80, %s81
    %p85 = pneg %p79
    %p86 = scmp.eq.s32.totalorder %s18, 1
    %p87 = por %p85, %p86
    %p88 = scmp.ne.s32.totalorder %s80, %s83
    %p89 = scmp.eq.s32.totalorder %s18, 0
    %p90 = por %p88, %p89
    %p91 = scmp.ne.s32.totalorder %s80, %s83
    %p92 = scmp.eq.s32.totalorder %s23, 1
    %p93 = por %p91, %p92
    %p94 = scmp.ne.s32.totalorder %s83, %s84
    %p95 = scmp.eq.s32.totalorder %s23, 0
    %p96 = por %p94, %p95
    %p97 = scmp.ne.s32.totalorder %s83, %s84
    %p98 = scmp.eq.s32.totalorder %s24, 1
    %p99 = por %p97, %p98
    %p101 = scmp.ne.s32.totalorder %s84, %s100
    %p102 = scmp.eq.s32.totalorder %s24, 0
    %p103 = por %p101, %p102
    %s104 = ssub.s32 %s18, %s25
    %p105 = scmp.eq.s32.totalorder %s104, 0
    %s107 = sadd.s32 %s106, 1
    %s108 = scalar_select %p105, %s106, %s107
    %p111 = pneg %p105
    %p112 = scmp.eq.s32.totalorder %s18, 1
    %p113 = por %p111, %p112
    %p114 = scmp.ne.s32.totalorder %s106, %s109
    %p115 = scmp.eq.s32.totalorder %s18, 0
    %p116 = por %p114, %p115
    %p117 = scmp.ne.s32.totalorder %s106, %s109
    %p118 = scmp.eq.s32.totalorder %s23, 1
    %p119 = por %p117, %p118
    %p120 = scmp.ne.s32.totalorder %s109, %s110
    %p121 = scmp.eq.s32.totalorder %s23, 0
    %p122 = por %p120, %p121
    %p123 = scmp.ne.s32.totalorder %s109, %s110
    %p124 = scmp.eq.s32.totalorder %s24, 1
    %p125 = por %p123, %p124
    %p127 = scmp.ne.s32.totalorder %s110, %s126
    %p128 = scmp.eq.s32.totalorder %s24, 0
    %p129 = por %p127, %p128
    %s131 = sadd.s32 %s130, 1
    %p134 = scmp.eq.s32.totalorder %s18, 1
    %p135 = scmp.ne.s32.totalorder %s130, %s132
    %p136 = scmp.eq.s32.totalorder %s18, 0
    %p137 = por %p135, %p136
    %p138 = scmp.ne.s32.totalorder %s130, %s132
    %p139 = scmp.eq.s32.totalorder %s23, 1
    %p140 = por %p138, %p139
    %p141 = scmp.ne.s32.totalorder %s132, %s133
    %p142 = scmp.eq.s32.totalorder %s23, 0
    %p143 = por %p141, %p142
    %p144 = scmp.ne.s32.totalorder %s132, %s133
    %p145 = scmp.eq.s32.totalorder %s24, 1
    %p146 = por %p144, %p145
    %p148 = scmp.ne.s32.totalorder %s133, %s147
    %p149 = scmp.eq.s32.totalorder %s24, 0
    %p150 = por %p148, %p149
    %s152 = sadd.s32 %s151, 1
    %p155 = scmp.eq.s32.totalorder %s18, 1
    %p156 = scmp.ne.s32.totalorder %s151, %s153
    %p157 = scmp.eq.s32.totalorder %s18, 0
    %p158 = por %p156, %p157
    %p159 = scmp.ne.s32.totalorder %s151, %s153
    %p160 = scmp.eq.s32.totalorder %s23, 1
    %p161 = por %p159, %p160
    %p162 = scmp.ne.s32.totalorder %s153, %s154
    %p163 = scmp.eq.s32.totalorder %s23, 0
    %p164 = por %p162, %p163
    %p165 = scmp.ne.s32.totalorder %s153, %s154
    %p166 = scmp.eq.s32.totalorder %s24, 1
    %p167 = por %p165, %p166
    %p169 = scmp.ne.s32.totalorder %s154, %s168
    %p170 = scmp.eq.s32.totalorder %s24, 0
    %p171 = por %p169, %p170
    %s173 = sadd.s32 %s172, 1
    %p176 = scmp.eq.s32.totalorder %s18, 1
    %p177 = scmp.ne.s32.totalorder %s172, %s174
    %p178 = scmp.eq.s32.totalorder %s18, 0
    %p179 = por %p177, %p178
    %p180 = scmp.ne.s32.totalorder %s172, %s174
    %p181 = scmp.eq.s32.totalorder %s23, 1
    %p182 = por %p180, %p181
    %p183 = scmp.ne.s32.totalorder %s174, %s175
    %p184 = scmp.eq.s32.totalorder %s23, 0
    %p185 = por %p183, %p184
    %p186 = scmp.ne.s32.totalorder %s174, %s175
    %p187 = scmp.eq.s32.totalorder %s24, 1
    %p188 = por %p186, %p187
    %p190 = scmp.ne.s32.totalorder %s175, %s189
    %p191 = scmp.eq.s32.totalorder %s24, 0
    %p192 = por %p190, %p191
    %s194 = sadd.s32 %s193, 1
    %p197 = scmp.eq.s32.totalorder %s18, 1
    %p198 = scmp.ne.s32.totalorder %s193, %s195
    %p199 = scmp.eq.s32.totalorder %s18, 0
    %p200 = por %p198, %p199
    %p201 = scmp.ne.s32.totalorder %s193, %s195
    %p202 = scmp.eq.s32.totalorder %s23, 1
    %p203 = por %p201, %p202
    %p204 = scmp.ne.s32.totalorder %s195, %s196
    %p205 = scmp.eq.s32.totalorder %s23, 0
    %p206 = por %p204, %p205
    %p207 = scmp.ne.s32.totalorder %s195, %s196
    %p208 = scmp.eq.s32.totalorder %s24, 1
    %p209 = por %p207, %p208
    %p211 = scmp.ne.s32.totalorder %s196, %s210
    %p212 = scmp.eq.s32.totalorder %s24, 0
    %p213 = por %p211, %p212
    %s215 = sadd.s32 %s214, 1
    %p218 = scmp.eq.s32.totalorder %s18, 1
    %p219 = scmp.ne.s32.totalorder %s214, %s216
    %p220 = scmp.eq.s32.totalorder %s18, 0
    %p221 = por %p219, %p220
    %p222 = scmp.ne.s32.totalorder %s214, %s216
    %p223 = scmp.eq.s32.totalorder %s23, 1
    %p224 = por %p222, %p223
    %p225 = scmp.ne.s32.totalorder %s216, %s217
    %p226 = scmp.eq.s32.totalorder %s23, 0
    %p227 = por %p225, %p226
    %p228 = scmp.ne.s32.totalorder %s216, %s217
    %p229 = scmp.eq.s32.totalorder %s24, 1
    %p230 = por %p228, %p229
    %p232 = scmp.ne.s32.totalorder %s217, %s231
    %p233 = scmp.eq.s32.totalorder %s24, 0
    %p234 = por %p232, %p233
    %s236 = sadd.s32 %s235, 1
    %p239 = scmp.eq.s32.totalorder %s18, 1
    %p240 = scmp.ne.s32.totalorder %s235, %s237
    %p241 = scmp.eq.s32.totalorder %s18, 0
    %p242 = por %p240, %p241
    %p243 = scmp.ne.s32.totalorder %s235, %s237
    %p244 = scmp.eq.s32.totalorder %s23, 1
    %p245 = por %p243, %p244
    %p246 = scmp.ne.s32.totalorder %s237, %s238
    %p247 = scmp.eq.s32.totalorder %s23, 0
    %p248 = por %p246, %p247
    %p249 = scmp.ne.s32.totalorder %s237, %s238
    %p250 = scmp.eq.s32.totalorder %s24, 1
    %p251 = por %p249, %p250
    %p253 = scmp.ne.s32.totalorder %s238, %s252
    %p254 = scmp.eq.s32.totalorder %s24, 0
    %p255 = por %p253, %p254
    %s257 = sadd.s32 %s256, 1
    %p260 = scmp.eq.s32.totalorder %s18, 1
    %p261 = scmp.ne.s32.totalorder %s256, %s258
    %p262 = scmp.eq.s32.totalorder %s18, 0
    %p263 = por %p261, %p262
    %p264 = scmp.ne.s32.totalorder %s256, %s258
    %p265 = scmp.eq.s32.totalorder %s23, 1
    %p266 = por %p264, %p265
    %p267 = scmp.ne.s32.totalorder %s258, %s259
    %p268 = scmp.eq.s32.totalorder %s23, 0
    %p269 = por %p267, %p268
    %p270 = scmp.ne.s32.totalorder %s258, %s259
    %p271 = scmp.eq.s32.totalorder %s24, 1
    %p272 = por %p270, %p271
    %p274 = scmp.ne.s32.totalorder %s259, %s273
    %p275 = scmp.eq.s32.totalorder %s24, 0
    %p276 = por %p274, %p275
    %s278 = sadd.s32 %s277, 1
    %p281 = scmp.eq.s32.totalorder %s18, 1
    %p282 = scmp.ne.s32.totalorder %s277, %s279
    %p283 = scmp.eq.s32.totalorder %s18, 0
    %p284 = por %p282, %p283
    %p285 = scmp.ne.s32.totalorder %s277, %s279
    %p286 = scmp.eq.s32.totalorder %s23, 1
    %p287 = por %p285, %p286
    %p288 = scmp.ne.s32.totalorder %s279, %s280
    %p289 = scmp.eq.s32.totalorder %s23, 0
    %p290 = por %p288, %p289
    %p291 = scmp.ne.s32.totalorder %s279, %s280
    %p292 = scmp.eq.s32.totalorder %s24, 1
    %p293 = por %p291, %p292
    %p295 = scmp.ne.s32.totalorder %s280, %s294
    %p296 = scmp.eq.s32.totalorder %s24, 0
    %p297 = por %p295, %p296
    %s298 = ssub.s32 %s18, %s25
    %p299 = scmp.eq.s32.totalorder %s298, 0
    %s301 = sadd.s32 %s300, 1
    %s302 = scalar_select %p299, %s300, %s301
    %p305 = pneg %p299
    %p306 = scmp.eq.s32.totalorder %s18, 1
    %p307 = por %p305, %p306
    %p308 = scmp.ne.s32.totalorder %s300, %s303
    %p309 = scmp.eq.s32.totalorder %s18, 0
    %p310 = por %p308, %p309
    %p311 = scmp.ne.s32.totalorder %s300, %s303
    %p312 = scmp.eq.s32.totalorder %s23, 1
    %p313 = por %p311, %p312
    %p314 = scmp.ne.s32.totalorder %s303, %s304
    %p315 = scmp.eq.s32.totalorder %s23, 0
    %p316 = por %p314, %p315
    %p317 = scmp.ne.s32.totalorder %s303, %s304
    %p318 = scmp.eq.s32.totalorder %s24, 1
    %p319 = por %p317, %p318
    %p321 = scmp.ne.s32.totalorder %s304, %s320
    %p322 = scmp.eq.s32.totalorder %s24, 0
    %p323 = por %p321, %p322
    %p324 = scmp.le.s32.totalorder 1, %s18
    %p325 = scmp.lt.s32.totalorder %s18, 3
    %p326 = pnand %p324, %p325
    %p327 = pneg %p326
    // Predicated region
    $region9: #{_lambda_.2} parent=5 // pred_check
      _
    $region10: #{_lambda_.2} parent=5 // pred_check_branch
      %329 = sbr.rel (%p326) target = $region12
    $region11: #{_lambda_.2} parent=5 // pred_region
      %s330 = ssub.s32 %s18, 1
      // Predicated region
      $region13: #{_lambda_.2} parent=11 // pred_check
        %p331 = pneg %p143
      $region14: #{_lambda_.2} parent=11 // pred_check_branch
        %333 = sbr.rel (%p331) target = $region16
      $region15: #{_lambda_.2} parent=11 // pred_region
        _
      $region16: #{_lambda_.2} parent=11 // pred_fallthru
        _
      // Predicated region
      $region17: #{_lambda_.2} parent=11 // pred_check
        %p334 = pneg %p164
      $region18: #{_lambda_.2} parent=11 // pred_check_branch
        %336 = sbr.rel (%p334) target = $region20
      $region19: #{_lambda_.2} parent=11 // pred_region
        _
      $region20: #{_lambda_.2} parent=11 // pred_fallthru
        _
      // Predicated region
      $region21: #{_lambda_.2} parent=11 // pred_check
        %p337 = pneg %p185
      $region22: #{_lambda_.2} parent=11 // pred_check_branch
        %339 = sbr.rel (%p337) target = $region24
      $region23: #{_lambda_.2} parent=11 // pred_region
        _
      $region24: #{_lambda_.2} parent=11 // pred_fallthru
        _
      // Predicated region
      $region25: #{_lambda_.2} parent=11 // pred_check
        %p340 = pneg %p206
      $region26: #{_lambda_.2} parent=11 // pred_check_branch
        %342 = sbr.rel (%p340) target = $region28
      $region27: #{_lambda_.2} parent=11 // pred_region
        _
      $region28: #{_lambda_.2} parent=11 // pred_fallthru
        _
      // Predicated region
      $region29: #{_lambda_.2} parent=11 // pred_check
        %p343 = pneg %p227
      $region30: #{_lambda_.2} parent=11 // pred_check_branch
        %345 = sbr.rel (%p343) target = $region32
      $region31: #{_lambda_.2} parent=11 // pred_region
        _
      $region32: #{_lambda_.2} parent=11 // pred_fallthru
        _
      // Predicated region
      $region33: #{_lambda_.2} parent=11 // pred_check
        %p346 = pneg %p248
      $region34: #{_lambda_.2} parent=11 // pred_check_branch
        %348 = sbr.rel (%p346) target = $region36
      $region35: #{_lambda_.2} parent=11 // pred_region
        _
      $region36: #{_lambda_.2} parent=11 // pred_fallthru
        _
      // Predicated region
      $region37: #{_lambda_.2} parent=11 // pred_check
        %p349 = pneg %p269
      $region38: #{_lambda_.2} parent=11 // pred_check_branch
        %351 = sbr.rel (%p349) target = $region40
      $region39: #{_lambda_.2} parent=11 // pred_region
        _
      $region40: #{_lambda_.2} parent=11 // pred_fallthru
        _
      // Predicated region
      $region41: #{_lambda_.2} parent=11 // pred_check
        %p352 = pneg %p290
      $region42: #{_lambda_.2} parent=11 // pred_check_branch
        %354 = sbr.rel (%p352) target = $region44
      $region43: #{_lambda_.2} parent=11 // pred_region
        _
      $region44: #{_lambda_.2} parent=11 // pred_fallthru
        _
    $region12: #{_lambda_.2} parent=5 // pred_fallthru
      _
    %p355 = scmp.lt.s32.totalorder %s18, 2
    // Predicated region
    $region45: #{_lambda_.2} parent=5 // pred_check
      %p356 = pneg %p355
    $region46: #{_lambda_.2} parent=5 // pred_check_branch
      %358 = sbr.rel (%p356) target = $region48
    $region47: #{_lambda_.2} parent=5 // pred_region
      // Predicated region
      $region49: #{_lambda_.2} parent=47 // pred_check
        %p359 = pneg %p38
      $region50: #{_lambda_.2} parent=47 // pred_check_branch
        %361 = sbr.rel (%p359) target = $region52
      $region51: #{_lambda_.2} parent=47 // pred_region
        %s362 = smul.u32 8, %s18
        %p363 = scmp.lt.s32.totalorder %s362, 15
        %s364 = scalar_select %p363, %s362, 15
        %s365 = smul.addr %s364, 8
        %s366 = scalar_lea.vmem %s0, %s365
        %s367 = smul.u32 8, %s18
      $region52: #{_lambda_.2} parent=47 // pred_fallthru
        _
      // Predicated region
      $region53: #{_lambda_.2} parent=47 // pred_check
        %p368 = pneg %p64
      $region54: #{_lambda_.2} parent=47 // pred_check_branch
        %370 = sbr.rel (%p368) target = $region56
      $region55: #{_lambda_.2} parent=47 // pred_region
        %s371 = smul.u32 8, %s18
        %p372 = scmp.lt.s32.totalorder %s371, 15
        %s373 = scalar_select %p372, %s371, 15
        %s374 = smul.addr %s373, 8
        %s375 = scalar_lea.vmem %s1, %s374
        %s376 = smul.u32 8, %s18
      $region56: #{_lambda_.2} parent=47 // pred_fallthru
        _
      // Predicated region
      $region57: #{_lambda_.2} parent=47 // pred_check
        %p377 = pneg %p90
      $region58: #{_lambda_.2} parent=47 // pred_check_branch
        %379 = sbr.rel (%p377) target = $region60
      $region59: #{_lambda_.2} parent=47 // pred_region
        %s380 = smul.u32 8, %s18
        %p381 = scmp.lt.s32.totalorder %s380, 15
        %s382 = scalar_select %p381, %s380, 15
        %s383 = smul.addr %s382, 8
        %s384 = scalar_lea.vmem %s2, %s383
        %s385 = smul.u32 8, %s18
      $region60: #{_lambda_.2} parent=47 // pred_fallthru
        _
      // Predicated region
      $region61: #{_lambda_.2} parent=47 // pred_check
        %p386 = pneg %p116
      $region62: #{_lambda_.2} parent=47 // pred_check_branch
        %388 = sbr.rel (%p386) target = $region64
      $region63: #{_lambda_.2} parent=47 // pred_region
        %s389 = smul.u32 8, %s18
        %p390 = scmp.lt.s32.totalorder %s389, 15
        %s391 = scalar_select %p390, %s389, 15
        %s392 = smul.addr %s391, 8
        %s393 = scalar_lea.vmem %s3, %s392
        %s394 = smul.u32 8, %s18
      $region64: #{_lambda_.2} parent=47 // pred_fallthru
        _
    $region48: #{_lambda_.2} parent=5 // pred_fallthru
      _
    %p395 = scmp.le.s32.totalorder 1, %s18
    %p396 = scmp.lt.s32.totalorder %s18, 3
    %p397 = pnand %p395, %p396
    %p398 = pneg %p397
    // Predicated region
    $region65: #{_lambda_.2} parent=5 // pred_check
      _
    $region66: #{_lambda_.2} parent=5 // pred_check_branch
      %400 = sbr.rel (%p397) target = $region68
    $region67: #{_lambda_.2} parent=5 // pred_region
      %s401 = ssub.s32 %s18, 1
      %s402 = smul.u32 8, %s23
      %p403 = scmp.lt.s32.totalorder %s402, 15
      %s404 = scalar_select %p403, %s402, 15
      %s405 = smul.addr %s404, 8
      %s406 = scalar_lea.vmem %s0, %s405
      %p407 = pneg %p44
      %p408 = pneg %p41
      %s409 = smul.u32 8, %s23
      %p410 = scmp.lt.s32.totalorder %s409, 15
      %s411 = scalar_select %p410, %s409, 15
      %s412 = smul.addr %s411, 8
      %s413 = scalar_lea.vmem %s1, %s412
      %p414 = pneg %p70
      %p415 = pneg %p67
      %s416 = smul.u32 8, %s23
      %p417 = scmp.lt.s32.totalorder %s416, 15
      %s418 = scalar_select %p417, %s416, 15
      %s419 = smul.addr %s418, 8
      %s420 = scalar_lea.vmem %s2, %s419
      %p421 = pneg %p96
      %p422 = pneg %p93
      %s423 = smul.u32 8, %s23
      %p424 = scmp.lt.s32.totalorder %s423, 15
      %s425 = scalar_select %p424, %s423, 15
      %s426 = smul.addr %s425, 8
      %s427 = scalar_lea.vmem %s3, %s426
      %p428 = pneg %p122
      %p429 = pneg %p119
      %p430 = pneg %p143
      %p431 = pneg %p140
      %p432 = pneg %p164
      %p433 = pneg %p161
      %p434 = pneg %p185
      %p435 = pneg %p182
      %p436 = pneg %p206
      %p437 = pneg %p203
      %p438 = pneg %p227
      %p439 = pneg %p224
      %p440 = pneg %p248
      %p441 = pneg %p245
      %p442 = pneg %p269
      %p443 = pneg %p266
      %p444 = pneg %p290
      %p445 = pneg %p287
      %p446 = pneg %p316
      %p447 = pneg %p313
      %s448 = smul.u32 8, %s23
      %p449 = scmp.lt.s32.totalorder %s448, 15
      %s450 = scalar_select %p449, %s448, 15
      %s451 = smul.addr %s450, 8
      %s452 = scalar_lea.vmem %s12, %s451
      %s453 = smul.u32 8, %s23
      %p454 = scmp.lt.s32.totalorder %s453, 15
      %s455 = scalar_select %p454, %s453, 15
      %s456 = smul.addr %s455, 8
      %s457 = scalar_lea.vmem %s0, %s456
      %s458 = smul.u32 8, %s23
      %s459 = smul.u32 8, %s23
      %p460 = scmp.lt.s32.totalorder %s459, 15
      %s461 = scalar_select %p460, %s459, 15
      %s462 = smul.addr %s461, 8
      %s463 = scalar_lea.vmem %s1, %s462
      %s464 = smul.u32 8, %s23
      %s465 = smul.u32 8, %s23
      %p466 = scmp.lt.s32.totalorder %s465, 15
      %s467 = scalar_select %p466, %s465, 15
      %s468 = smul.addr %s467, 8
      %s469 = scalar_lea.vmem %s2, %s468
      %s470 = smul.u32 8, %s23
      %s471 = smul.u32 8, %s23
      %p472 = scmp.lt.s32.totalorder %s471, 15
      %s473 = scalar_select %p472, %s471, 15
      %s474 = smul.addr %s473, 8
      %s475 = scalar_lea.vmem %s3, %s474
      %s476 = smul.u32 8, %s23
      %s477 = smul.u32 8, %s23
      %p478 = scmp.lt.s32.totalorder %s477, 15
      %s479 = scalar_select %p478, %s477, 15
      %s480 = smul.addr %s479, 8
      %s481 = scalar_lea.vmem %s12, %s480
      %s482 = smul.u32 8, %s23
      %vm483 = vcmask 31744
      %484 = vst.msk [vmem:[#allocation2] sm:$0xff] %vm483, 0.0
      %485 = vst.msk [vmem:[#allocation2 + $0x8] sm:$0xff] %vm483, 0.0
      %486 = vst.msk [vmem:[#allocation2 + $0x10] sm:$0xff] %vm483, 0.0
      %487 = vst.msk [vmem:[#allocation2 + $0x18] sm:$0xff] %vm483, 0.0
      %488 = vst.msk [vmem:[#allocation2 + $0x20] sm:$0xff] %vm483, 0.0
      %489 = vst.msk [vmem:[#allocation2 + $0x28] sm:$0xff] %vm483, 0.0
      %490 = vst.msk [vmem:[#allocation2 + $0x30] sm:$0xff] %vm483, 0.0
      %491 = vst.msk [vmem:[#allocation2 + $0x38] sm:$0xff] %vm483, 0.0
      %492 = vst.msk [vmem:[#allocation2 + $0x40] sm:$0xff] %vm483, 0.0
      %493 = vst.msk [vmem:[#allocation2 + $0x48] sm:$0xff] %vm483, 0.0
      %494 = vst.msk [vmem:[#allocation2 + $0x50] sm:$0xff] %vm483, 0.0
      %495 = vst.msk [vmem:[#allocation2 + $0x58] sm:$0xff] %vm483, 0.0
      %vm496 = vcmask 64512
      %497 = vst.msk [vmem:[#allocation3] sm:$0xff] %vm496, 0.0
      %498 = vst.msk [vmem:[#allocation3 + $0x8] sm:$0xff] %vm496, 0.0
      %499 = vst.msk [vmem:[#allocation3 + $0x10] sm:$0xff] %vm496, 0.0
      %500 = vst.msk [vmem:[#allocation3 + $0x18] sm:$0xff] %vm496, 0.0
      %501 = vst.msk [vmem:[#allocation3 + $0x20] sm:$0xff] %vm496, 0.0
      %502 = vst.msk [vmem:[#allocation3 + $0x28] sm:$0xff] %vm496, 0.0
      %503 = vst.msk [vmem:[#allocation3 + $0x30] sm:$0xff] %vm496, 0.0
      %504 = vst.msk [vmem:[#allocation3 + $0x38] sm:$0xff] %vm496, 0.0
      %505 = vst.msk [vmem:[#allocation3 + $0x40] sm:$0xff] %vm496, 0.0
      %506 = vst.msk [vmem:[#allocation3 + $0x48] sm:$0xff] %vm496, 0.0
      %507 = vst.msk [vmem:[#allocation3 + $0x50] sm:$0xff] %vm496, 0.0
      %508 = vst.msk [vmem:[#allocation3 + $0x58] sm:$0xff] %vm496, 0.0
      %v509 = vld [vmem:[%s4] sm:$0xff]
      %v510 = vld [vmem:[%s4 + $0x8] sm:$0xff]
      %v511 = vld [vmem:[%s4 + $0x10] sm:$0xff]
      %v512 = vld [vmem:[%s4 + $0x18] sm:$0xff]
      %v513 = vld [vmem:[%s4 + $0x20] sm:$0xff]
      %v514 = vld [vmem:[%s4 + $0x28] sm:$0xff]
      %v515 = vld [vmem:[%s4 + $0x30] sm:$0xff]
      %v516 = vld [vmem:[%s4 + $0x38] sm:$0xff]
      %vm517 = vcmp.ge.f32.partialorder %v509, 0.5
      %vm518 = vcmp.ge.f32.partialorder %v510, 0.5
      %vm519 = vcmp.ge.f32.partialorder %v511, 0.5
      %vm520 = vcmp.ge.f32.partialorder %v512, 0.5
      %vm521 = vcmp.ge.f32.partialorder %v513, 0.5
      %vm522 = vcmp.ge.f32.partialorder %v514, 0.5
      %vm523 = vcmp.ge.f32.partialorder %v515, 0.5
      %vm524 = vcmp.ge.f32.partialorder %v516, 0.5
      %vm525 = vcmp.le.f32.partialorder %v509, 6.5
      %vm526 = vcmp.le.f32.partialorder %v510, 6.5
      %vm527 = vcmp.le.f32.partialorder %v511, 6.5
      %vm528 = vcmp.le.f32.partialorder %v512, 6.5
      %vm529 = vcmp.le.f32.partialorder %v513, 6.5
      %vm530 = vcmp.le.f32.partialorder %v514, 6.5
      %vm531 = vcmp.le.f32.partialorder %v515, 6.5
      %vm532 = vcmp.le.f32.partialorder %v516, 6.5
      %v533 = vld [vmem:[%s5] sm:$0x1]
      %v534 = vld [vmem:[%s6] sm:$0x1]
      %v535 = vld [vmem:[%s7] sm:$0x1]
      %v536 = vld [vmem:[%s8] sm:$0x1]
      %v537 = vld [vmem:[%s457] sm:$0xff]
      %v538 = vld [vmem:[%s457 + $0x8] sm:$0xff]
      %v539 = vld [vmem:[%s457 + $0x10] sm:$0xff]
      %v540 = vld [vmem:[%s457 + $0x18] sm:$0xff]
      %v541 = vld [vmem:[%s457 + $0x20] sm:$0xff]
      %v542 = vld [vmem:[%s457 + $0x28] sm:$0xff]
      %v543 = vld [vmem:[%s457 + $0x30] sm:$0xff]
      %v544 = vld [vmem:[%s457 + $0x38] sm:$0xff]
      %v545 = vld [vmem:[%s463] sm:$0xff]
      %v546 = vld [vmem:[%s463 + $0x8] sm:$0xff]
      %v547 = vld [vmem:[%s463 + $0x10] sm:$0xff]
      %v548 = vld [vmem:[%s463 + $0x18] sm:$0xff]
      %v549 = vld [vmem:[%s463 + $0x20] sm:$0xff]
      %v550 = vld [vmem:[%s463 + $0x28] sm:$0xff]
      %v551 = vld [vmem:[%s463 + $0x30] sm:$0xff]
      %v552 = vld [vmem:[%s463 + $0x38] sm:$0xff]
      %v553 = vld [vmem:[%s469] sm:$0xff]
      %v554 = vld [vmem:[%s469 + $0x8] sm:$0xff]
      %v555 = vld [vmem:[%s469 + $0x10] sm:$0xff]
      %v556 = vld [vmem:[%s469 + $0x18] sm:$0xff]
      %v557 = vld [vmem:[%s469 + $0x20] sm:$0xff]
      %v558 = vld [vmem:[%s469 + $0x28] sm:$0xff]
      %v559 = vld [vmem:[%s469 + $0x30] sm:$0xff]
      %v560 = vld [vmem:[%s469 + $0x38] sm:$0xff]
      %v561 = vld [vmem:[%s475] sm:$0xff]
      %v562 = vld [vmem:[%s475 + $0x8] sm:$0xff]
      %v563 = vld [vmem:[%s475 + $0x10] sm:$0xff]
      %v564 = vld [vmem:[%s475 + $0x18] sm:$0xff]
      %v565 = vld [vmem:[%s475 + $0x20] sm:$0xff]
      %v566 = vld [vmem:[%s475 + $0x28] sm:$0xff]
      %v567 = vld [vmem:[%s475 + $0x30] sm:$0xff]
      %v568 = vld [vmem:[%s475 + $0x38] sm:$0xff]
      %v570 = vlaneseq
      %v571 = vshrl.u32 %v570, 7
      %v572 = vsub.s32 0, %v571
      %v573 = vrot.slane %v533, %v572
      %v575 = vmul.f32 %v537, %v573
      %v576 = vmul.f32 %v538, %v573
      %v577 = vmul.f32 %v539, %v573
      %v578 = vmul.f32 %v540, %v573
      %v579 = vmul.f32 %v541, %v573
      %v580 = vmul.f32 %v542, %v573
      %v581 = vmul.f32 %v543, %v573
      %v582 = vmul.f32 %v544, %v573
      %v584 = vlaneseq
      %v585 = vshrl.u32 %v584, 7
      %v586 = vsub.s32 0, %v585
      %v587 = vrot.slane %v534, %v586
      %v589 = vadd.f32 %v575, %v587
      %v590 = vadd.f32 %v576, %v587
      %v591 = vadd.f32 %v577, %v587
      %v592 = vadd.f32 %v578, %v587
      %v593 = vadd.f32 %v579, %v587
      %v594 = vadd.f32 %v580, %v587
      %v595 = vadd.f32 %v581, %v587
      %v596 = vadd.f32 %v582, %v587
      %vm597 = vcmp.ge.f32.partialorder %v589, 0.0
      %vm598 = vcmp.ge.f32.partialorder %v590, 0.0
      %vm599 = vcmp.ge.f32.partialorder %v591, 0.0
      %vm600 = vcmp.ge.f32.partialorder %v592, 0.0
      %vm601 = vcmp.ge.f32.partialorder %v593, 0.0
      %vm602 = vcmp.ge.f32.partialorder %v594, 0.0
      %vm603 = vcmp.ge.f32.partialorder %v595, 0.0
      %vm604 = vcmp.ge.f32.partialorder %v596, 0.0
      %v605 = vmul.f32 %v589, 0.1
      %v606 = vmul.f32 %v590, 0.1
      %v607 = vmul.f32 %v591, 0.1
      %v608 = vmul.f32 %v592, 0.1
      %v609 = vmul.f32 %v593, 0.1
      %v610 = vmul.f32 %v594, 0.1
      %v611 = vmul.f32 %v595, 0.1
      %v612 = vmul.f32 %v596, 0.1
      %v613 = vsel %vm597, %v589, %v605
      %v614 = vsel %vm598, %v590, %v606
      %v615 = vsel %vm599, %v591, %v607
      %v616 = vsel %vm600, %v592, %v608
      %v617 = vsel %vm601, %v593, %v609
      %v618 = vsel %vm602, %v594, %v610
      %v619 = vsel %vm603, %v595, %v611
      %v620 = vsel %vm604, %v596, %v612
      %v621 = vmul.f32 %v545, %v573
      %v622 = vmul.f32 %v546, %v573
      %v623 = vmul.f32 %v547, %v573
      %v624 = vmul.f32 %v548, %v573
      %v625 = vmul.f32 %v549, %v573
      %v626 = vmul.f32 %v550, %v573
      %v627 = vmul.f32 %v551, %v573
      %v628 = vmul.f32 %v552, %v573
      %v629 = vadd.f32 %v621, %v587
      %v630 = vadd.f32 %v622, %v587
      %v631 = vadd.f32 %v623, %v587
      %v632 = vadd.f32 %v624, %v587
      %v633 = vadd.f32 %v625, %v587
      %v634 = vadd.f32 %v626, %v587
      %v635 = vadd.f32 %v627, %v587
      %v636 = vadd.f32 %v628, %v587
      %vm637 = vcmp.ge.f32.partialorder %v629, 0.0
      %vm638 = vcmp.ge.f32.partialorder %v630, 0.0
      %vm639 = vcmp.ge.f32.partialorder %v631, 0.0
      %vm640 = vcmp.ge.f32.partialorder %v632, 0.0
      %vm641 = vcmp.ge.f32.partialorder %v633, 0.0
      %vm642 = vcmp.ge.f32.partialorder %v634, 0.0
      %vm643 = vcmp.ge.f32.partialorder %v635, 0.0
      %vm644 = vcmp.ge.f32.partialorder %v636, 0.0
      %v645 = vmul.f32 %v629, 0.1
      %v646 = vmul.f32 %v630, 0.1
      %v647 = vmul.f32 %v631, 0.1
      %v648 = vmul.f32 %v632, 0.1
      %v649 = vmul.f32 %v633, 0.1
      %v650 = vmul.f32 %v634, 0.1
      %v651 = vmul.f32 %v635, 0.1
      %v652 = vmul.f32 %v636, 0.1
      %v653 = vsel %vm637, %v629, %v645
      %v654 = vsel %vm638, %v630, %v646
      %v655 = vsel %vm639, %v631, %v647
      %v656 = vsel %vm640, %v632, %v648
      %v657 = vsel %vm641, %v633, %v649
      %v658 = vsel %vm642, %v634, %v650
      %v659 = vsel %vm643, %v635, %v651
      %v660 = vsel %vm644, %v636, %v652
      %v661 = vmul.f32 %v553, %v573
      %v662 = vmul.f32 %v554, %v573
      %v663 = vmul.f32 %v555, %v573
      %v664 = vmul.f32 %v556, %v573
      %v665 = vmul.f32 %v557, %v573
      %v666 = vmul.f32 %v558, %v573
      %v667 = vmul.f32 %v559, %v573
      %v668 = vmul.f32 %v560, %v573
      %v669 = vadd.f32 %v661, %v587
      %v670 = vadd.f32 %v662, %v587
      %v671 = vadd.f32 %v663, %v587
      %v672 = vadd.f32 %v664, %v587
      %v673 = vadd.f32 %v665, %v587
      %v674 = vadd.f32 %v666, %v587
      %v675 = vadd.f32 %v667, %v587
      %v676 = vadd.f32 %v668, %v587
      %vm677 = vcmp.ge.f32.partialorder %v669, 0.0
      %vm678 = vcmp.ge.f32.partialorder %v670, 0.0
      %vm679 = vcmp.ge.f32.partialorder %v671, 0.0
      %vm680 = vcmp.ge.f32.partialorder %v672, 0.0
      %vm681 = vcmp.ge.f32.partialorder %v673, 0.0
      %vm682 = vcmp.ge.f32.partialorder %v674, 0.0
      %vm683 = vcmp.ge.f32.partialorder %v675, 0.0
      %vm684 = vcmp.ge.f32.partialorder %v676, 0.0
      %v685 = vmul.f32 %v669, 0.1
      %v686 = vmul.f32 %v670, 0.1
      %v687 = vmul.f32 %v671, 0.1
      %v688 = vmul.f32 %v672, 0.1
      %v689 = vmul.f32 %v673, 0.1
      %v690 = vmul.f32 %v674, 0.1
      %v691 = vmul.f32 %v675, 0.1
      %v692 = vmul.f32 %v676, 0.1
      %v693 = vsel %vm677, %v669, %v685
      %v694 = vsel %vm678, %v670, %v686
      %v695 = vsel %vm679, %v671, %v687
      %v696 = vsel %vm680, %v672, %v688
      %v697 = vsel %vm681, %v673, %v689
      %v698 = vsel %vm682, %v674, %v690
      %v699 = vsel %vm683, %v675, %v691
      %v700 = vsel %vm684, %v676, %v692
      %v701 = vmul.f32 %v561, %v573
      %v702 = vmul.f32 %v562, %v573
      %v703 = vmul.f32 %v563, %v573
      %v704 = vmul.f32 %v564, %v573
      %v705 = vmul.f32 %v565, %v573
      %v706 = vmul.f32 %v566, %v573
      %v707 = vmul.f32 %v567, %v573
      %v708 = vmul.f32 %v568, %v573
      %v709 = vadd.f32 %v701, %v587
      %v710 = vadd.f32 %v702, %v587
      %v711 = vadd.f32 %v703, %v587
      %v712 = vadd.f32 %v704, %v587
      %v713 = vadd.f32 %v705, %v587
      %v714 = vadd.f32 %v706, %v587
      %v715 = vadd.f32 %v707, %v587
      %v716 = vadd.f32 %v708, %v587
      %vm717 = vcmp.ge.f32.partialorder %v709, 0.0
      %vm718 = vcmp.ge.f32.partialorder %v710, 0.0
      %vm719 = vcmp.ge.f32.partialorder %v711, 0.0
      %vm720 = vcmp.ge.f32.partialorder %v712, 0.0
      %vm721 = vcmp.ge.f32.partialorder %v713, 0.0
      %vm722 = vcmp.ge.f32.partialorder %v714, 0.0
      %vm723 = vcmp.ge.f32.partialorder %v715, 0.0
      %vm724 = vcmp.ge.f32.partialorder %v716, 0.0
      %v725 = vmul.f32 %v709, 0.1
      %v726 = vmul.f32 %v710, 0.1
      %v727 = vmul.f32 %v711, 0.1
      %v728 = vmul.f32 %v712, 0.1
      %v729 = vmul.f32 %v713, 0.1
      %v730 = vmul.f32 %v714, 0.1
      %v731 = vmul.f32 %v715, 0.1
      %v732 = vmul.f32 %v716, 0.1
      %v733 = vsel %vm717, %v709, %v725
      %v734 = vsel %vm718, %v710, %v726
      %v735 = vsel %vm719, %v711, %v727
      %v736 = vsel %vm720, %v712, %v728
      %v737 = vsel %vm721, %v713, %v729
      %v738 = vsel %vm722, %v714, %v730
      %v739 = vsel %vm723, %v715, %v731
      %v740 = vsel %vm724, %v716, %v732
      %741 = vst.msk [vmem:[#allocation2 + $0x10] sm:$0xff] %vm483, %v613
      %742 = vst.msk [vmem:[#allocation2 + $0x18] sm:$0xff] %vm483, %v614
      %743 = vst.msk [vmem:[#allocation2 + $0x20] sm:$0xff] %vm483, %v615
      %744 = vst.msk [vmem:[#allocation2 + $0x28] sm:$0xff] %vm483, %v616
      %745 = vst.msk [vmem:[#allocation2 + $0x30] sm:$0xff] %vm483, %v617
      %746 = vst.msk [vmem:[#allocation2 + $0x38] sm:$0xff] %vm483, %v618
      %747 = vst.msk [vmem:[#allocation2 + $0x40] sm:$0xff] %vm483, %v619
      %748 = vst.msk [vmem:[#allocation2 + $0x48] sm:$0xff] %vm483, %v620
      %v749 = vld [vmem:[#allocation2 + $0x10] sm:$0xff]
      %v750 = vld [vmem:[#allocation2 + $0x18] sm:$0xff]
      %v751 = vld [vmem:[#allocation2 + $0x20] sm:$0xff]
      %v752 = vld [vmem:[#allocation2 + $0x28] sm:$0xff]
      %v753 = vld [vmem:[#allocation2 + $0x30] sm:$0xff]
      %v754 = vld [vmem:[#allocation2 + $0x38] sm:$0xff]
      %v755 = vld [vmem:[#allocation2 + $0x40] sm:$0xff]
      %v756 = vld [vmem:[#allocation2 + $0x48] sm:$0xff]
      %s757 = scalar_lea.vmem %s9, 16
      %v758 = vld [vmem:[%s757] sm:$0xf]
      %759 = vst.msk [vmem:[#allocation2 + $0x10] sm:$0xff] %vm483, %v653
      %760 = vst.msk [vmem:[#allocation2 + $0x18] sm:$0xff] %vm483, %v654
      %761 = vst.msk [vmem:[#allocation2 + $0x20] sm:$0xff] %vm483, %v655
      %762 = vst.msk [vmem:[#allocation2 + $0x28] sm:$0xff] %vm483, %v656
      %763 = vst.msk [vmem:[#allocation2 + $0x30] sm:$0xff] %vm483, %v657
      %764 = vst.msk [vmem:[#allocation2 + $0x38] sm:$0xff] %vm483, %v658
      %765 = vst.msk [vmem:[#allocation2 + $0x40] sm:$0xff] %vm483, %v659
      %766 = vst.msk [vmem:[#allocation2 + $0x48] sm:$0xff] %vm483, %v660
      %v767 = vld [vmem:[#allocation2 + $0xf] sm:$0xff]
      %v768 = vld [vmem:[#allocation2 + $0x17] sm:$0xff]
      %v769 = vld [vmem:[#allocation2 + $0x1f] sm:$0xff]
      %v770 = vld [vmem:[#allocation2 + $0x27] sm:$0xff]
      %v771 = vld [vmem:[#allocation2 + $0x2f] sm:$0xff]
      %v772 = vld [vmem:[#allocation2 + $0x37] sm:$0xff]
      %v773 = vld [vmem:[#allocation2 + $0x3f] sm:$0xff]
      %v774 = vld [vmem:[#allocation2 + $0x47] sm:$0xff]
      %v775 = vsel %vm517, 1, 0
      %v776 = vsel %vm518, 1, 0
      %v777 = vsel %vm519, 1, 0
      %v778 = vsel %vm520, 1, 0
      %v779 = vsel %vm521, 1, 0
      %v780 = vsel %vm522, 1, 0
      %v781 = vsel %vm523, 1, 0
      %v782 = vsel %vm524, 1, 0
      %783 = vset.pattern.permute.xlu0 0
      %784 = vperm.xlu0 %783, %v775
      %v785 = vpop.permute.xlu0 %784
      %786 = vset.pattern.permute.xlu0 0
      %787 = vperm.xlu0 %786, %v776
      %v788 = vpop.permute.xlu0 %787
      %789 = vset.pattern.permute.xlu0 0
      %790 = vperm.xlu0 %789, %v777
      %v791 = vpop.permute.xlu0 %790
      %792 = vset.pattern.permute.xlu0 0
      %793 = vperm.xlu0 %792, %v778
      %v794 = vpop.permute.xlu0 %793
      %795 = vset.pattern.permute.xlu0 0
      %796 = vperm.xlu0 %795, %v779
      %v797 = vpop.permute.xlu0 %796
      %798 = vset.pattern.permute.xlu0 0
      %799 = vperm.xlu0 %798, %v780
      %v800 = vpop.permute.xlu0 %799
      %801 = vset.pattern.permute.xlu0 0
      %802 = vperm.xlu0 %801, %v781
      %v803 = vpop.permute.xlu0 %802
      %804 = vset.pattern.permute.xlu0 0
      %805 = vperm.xlu0 %804, %v782
      %v806 = vpop.permute.xlu0 %805
      %vm807 = vcmp.eq.s32.totalorder %v785, 1
      %vm808 = vcmp.eq.s32.totalorder %v788, 1
      %vm809 = vcmp.eq.s32.totalorder %v791, 1
      %vm810 = vcmp.eq.s32.totalorder %v794, 1
      %vm811 = vcmp.eq.s32.totalorder %v797, 1
      %vm812 = vcmp.eq.s32.totalorder %v800, 1
      %vm813 = vcmp.eq.s32.totalorder %v803, 1
      %vm814 = vcmp.eq.s32.totalorder %v806, 1
      %v815 = vsel %vm807, %v767, 0.0
      %v816 = vsel %vm808, %v768, 0.0
      %v817 = vsel %vm809, %v769, 0.0
      %v818 = vsel %vm810, %v770, 0.0
      %v819 = vsel %vm811, %v771, 0.0
      %v820 = vsel %vm812, %v772, 0.0
      %v821 = vsel %vm813, %v773, 0.0
      %v822 = vsel %vm814, %v774, 0.0
      %s823 = scalar_lea.vmem %s9, 12
      %v824 = vld [vmem:[%s823] sm:$0xf]
      %v826 = vsel %vm483, %v815, 0
      %v829 = vsel %vm483, %v816, 0
      %v832 = vsel %vm483, %v817, 0
      %v835 = vsel %vm483, %v818, 0
      %v838 = vsel %vm483, %v819, 0
      %v841 = vsel %vm483, %v820, 0
      %v844 = vsel %vm483, %v821, 0
      %v847 = vsel %vm483, %v822, 0
      %vm849 = vcmask 1043456
      %v851 = vsel %vm849, %v824, 0
      %853 = vmatprep.subr.mxu0 0.0
      %854 = vmatpush1.msra.mxu0 0.0
      %855 = vmatprep.subr.mxu0 0.0
      %856 = vmatpush1.msra.mxu0 0.0
      %857 = vmatprep.subr.mxu0 0.0
      %858 = vmatpush1.msra.mxu0 0.0
      %859 = vmatprep.subr.mxu0 0.0
      %860 = vmatpush1.msra.mxu0 0.0
      %861 = vmatprep.subr.mxu0 0.0
      %862 = vmatpush1.msra.mxu0 0.0
      %863 = vmatprep.subr.mxu0 0.0
      %864 = vmatpush1.msra.mxu0 0.0
      %865 = vmatprep.subr.mxu0 0.0
      %866 = vmatpush1.msra.mxu0 0.0
      %867 = vmatprep.subr.mxu0 0.0
      %868 = vmatpush1.msra.mxu0 0.0
      %869 = vmatprep.subr.mxu0 0.0
      %870 = vmatpush1.msra.mxu0 0.0
      %871 = vmatprep.subr.mxu0 0.0
      %872 = vmatpush1.msra.mxu0 0.0
      %873 = vmatprep.subr.mxu0 0.0
      %874 = vmatpush1.msra.mxu0 0.0
      %875 = vmatprep.subr.mxu0 0.0
      %876 = vmatpush1.msra.mxu0 0.0
      %877 = vmatprep.subr.mxu0 0.0
      %878 = vmatpush1.msra.mxu0 0.0
      %879 = vmatprep.subr.mxu0 0.0
      %880 = vmatpush1.msra.mxu0 0.0
      %881 = vmatprep.subr.mxu0 0.0
      %882 = vmatpush1.msra.mxu0 0.0
      %883 = vmatprep.subr.mxu0 0.0
      %884 = vmatpush1.msra.mxu0 %v851
      %885 = vmatprep.subr.mxu0 0.0
      %886 = vmatpush2.msra.mxu0 0.0
      %887 = vmatprep.subr.mxu0 0.0
      %888 = vmatpush2.msra.mxu0 0.0
      %889 = vmatprep.subr.mxu0 0.0
      %890 = vmatpush2.msra.mxu0 0.0
      %891 = vmatprep.subr.mxu0 0.0
      %892 = vmatpush2.msra.mxu0 0.0
      %893 = vmatprep.subr.mxu0 0.0
      %894 = vmatpush2.msra.mxu0 0.0
      %895 = vmatprep.subr.mxu0 0.0
      %896 = vmatpush2.msra.mxu0 0.0
      %897 = vmatprep.subr.mxu0 0.0
      %898 = vmatpush2.msra.mxu0 0.0
      %899 = vmatprep.subr.mxu0 0.0
      %900 = vmatpush2.msra.mxu0 0.0
      %901 = vmatprep.subr.mxu0 0.0
      %902 = vmatpush2.msra.mxu0 0.0
      %903 = vmatprep.subr.mxu0 0.0
      %904 = vmatpush2.msra.mxu0 0.0
      %905 = vmatprep.subr.mxu0 0.0
      %906 = vmatpush2.msra.mxu0 0.0
      %907 = vmatprep.subr.mxu0 0.0
      %908 = vmatpush2.msra.mxu0 0.0
      %909 = vmatprep.subr.mxu0 0.0
      %910 = vmatpush2.msra.mxu0 0.0
      %911 = vmatprep.subr.mxu0 0.0
      %912 = vmatpush2.msra.mxu0 0.0
      %913 = vmatprep.subr.mxu0 0.0
      %914 = vmatpush2.msra.mxu0 0.0
      %915 = vmatprep.subr.mxu0 0.0
      %916 = vmatpush2.msra.mxu0 0.0
      %917 = vmatprep.mubr.f32.mxu0 0.0
      %918 = vmatmul.mubr.f32.gmra.mxu0 %v826
      %v919 = vpop.f32.mrf.mxu0
      %v920 = vadd.f32 0.0, %v919
      %v921 = vpop.f32.mrf.mxu0
      %922 = vmatprep.mubr.f32.mxu0 0.0
      %923 = vmatmul.mubr.f32.gmra.mxu0 %v829
      %v924 = vpop.f32.mrf.mxu0
      %v925 = vadd.f32 0.0, %v924
      %v926 = vpop.f32.mrf.mxu0
      %927 = vmatprep.mubr.f32.mxu0 0.0
      %928 = vmatmul.mubr.f32.gmra.mxu0 %v832
      %v929 = vpop.f32.mrf.mxu0
      %v930 = vadd.f32 0.0, %v929
      %v931 = vpop.f32.mrf.mxu0
      %932 = vmatprep.mubr.f32.mxu0 0.0
      %933 = vmatmul.mubr.f32.gmra.mxu0 %v835
      %v934 = vpop.f32.mrf.mxu0
      %v935 = vadd.f32 0.0, %v934
      %v936 = vpop.f32.mrf.mxu0
      %937 = vmatprep.mubr.f32.mxu0 0.0
      %938 = vmatmul.mubr.f32.gmra.mxu0 %v838
      %v939 = vpop.f32.mrf.mxu0
      %v940 = vadd.f32 0.0, %v939
      %v941 = vpop.f32.mrf.mxu0
      %942 = vmatprep.mubr.f32.mxu0 0.0
      %943 = vmatmul.mubr.f32.gmra.mxu0 %v841
      %v944 = vpop.f32.mrf.mxu0
      %v945 = vadd.f32 0.0, %v944
      %v946 = vpop.f32.mrf.mxu0
      %947 = vmatprep.mubr.f32.mxu0 0.0
      %948 = vmatmul.mubr.f32.gmra.mxu0 %v844
      %v949 = vpop.f32.mrf.mxu0
      %v950 = vadd.f32 0.0, %v949
      %v951 = vpop.f32.mrf.mxu0
      %952 = vmatprep.mubr.f32.mxu0 0.0
      %953 = vmatmul.mubr.f32.gmra.mxu0 %v847
      %v954 = vpop.f32.mrf.mxu0
      %v955 = vadd.f32 0.0, %v954
      %v956 = vpop.f32.mrf.mxu0
      %957 = vdwg.mxu0
      %v959 = vsel %vm483, %v749, 0
      %v962 = vsel %vm483, %v750, 0
      %v965 = vsel %vm483, %v751, 0
      %v968 = vsel %vm483, %v752, 0
      %v971 = vsel %vm483, %v753, 0
      %v974 = vsel %vm483, %v754, 0
      %v977 = vsel %vm483, %v755, 0
      %v980 = vsel %vm483, %v756, 0
      %v983 = vsel %vm849, %v758, 0
      %985 = vmatprep.subr.mxu0 0.0
      %986 = vmatpush1.msra.mxu0 0.0
      %987 = vmatprep.subr.mxu0 0.0
      %988 = vmatpush1.msra.mxu0 0.0
      %989 = vmatprep.subr.mxu0 0.0
      %990 = vmatpush1.msra.mxu0 0.0
      %991 = vmatprep.subr.mxu0 0.0
      %992 = vmatpush1.msra.mxu0 0.0
      %993 = vmatprep.subr.mxu0 0.0
      %994 = vmatpush1.msra.mxu0 0.0
      %995 = vmatprep.subr.mxu0 0.0
      %996 = vmatpush1.msra.mxu0 0.0
      %997 = vmatprep.subr.mxu0 0.0
      %998 = vmatpush1.msra.mxu0 0.0
      %999 = vmatprep.subr.mxu0 0.0
      %1000 = vmatpush1.msra.mxu0 0.0
      %1001 = vmatprep.subr.mxu0 0.0
      %1002 = vmatpush1.msra.mxu0 0.0
      %1003 = vmatprep.subr.mxu0 0.0
      %1004 = vmatpush1.msra.mxu0 0.0
      %1005 = vmatprep.subr.mxu0 0.0
      %1006 = vmatpush1.msra.mxu0 0.0
      %1007 = vmatprep.subr.mxu0 0.0
      %1008 = vmatpush1.msra.mxu0 0.0
      %1009 = vmatprep.subr.mxu0 0.0
      %1010 = vmatpush1.msra.mxu0 0.0
      %1011 = vmatprep.subr.mxu0 0.0
      %1012 = vmatpush1.msra.mxu0 0.0
      %1013 = vmatprep.subr.mxu0 0.0
      %1014 = vmatpush1.msra.mxu0 0.0
      %1015 = vmatprep.subr.mxu0 0.0
      %1016 = vmatpush1.msra.mxu0 %v983
      %1017 = vmatprep.subr.mxu0 0.0
      %1018 = vmatpush2.msra.mxu0 0.0
      %1019 = vmatprep.subr.mxu0 0.0
      %1020 = vmatpush2.msra.mxu0 0.0
      %1021 = vmatprep.subr.mxu0 0.0
      %1022 = vmatpush2.msra.mxu0 0.0
      %1023 = vmatprep.subr.mxu0 0.0
      %1024 = vmatpush2.msra.mxu0 0.0
      %1025 = vmatprep.subr.mxu0 0.0
      %1026 = vmatpush2.msra.mxu0 0.0
      %1027 = vmatprep.subr.mxu0 0.0
      %1028 = vmatpush2.msra.mxu0 0.0
      %1029 = vmatprep.subr.mxu0 0.0
      %1030 = vmatpush2.msra.mxu0 0.0
      %1031 = vmatprep.subr.mxu0 0.0
      %1032 = vmatpush2.msra.mxu0 0.0
      %1033 = vmatprep.subr.mxu0 0.0
      %1034 = vmatpush2.msra.mxu0 0.0
      %1035 = vmatprep.subr.mxu0 0.0
      %1036 = vmatpush2.msra.mxu0 0.0
      %1037 = vmatprep.subr.mxu0 0.0
      %1038 = vmatpush2.msra.mxu0 0.0
      %1039 = vmatprep.subr.mxu0 0.0
      %1040 = vmatpush2.msra.mxu0 0.0
      %1041 = vmatprep.subr.mxu0 0.0
      %1042 = vmatpush2.msra.mxu0 0.0
      %1043 = vmatprep.subr.mxu0 0.0
      %1044 = vmatpush2.msra.mxu0 0.0
      %1045 = vmatprep.subr.mxu0 0.0
      %1046 = vmatpush2.msra.mxu0 0.0
      %1047 = vmatprep.subr.mxu0 0.0
      %1048 = vmatpush2.msra.mxu0 0.0
      %1049 = vmatprep.mubr.f32.mxu0 0.0
      %1050 = vmatmul.mubr.f32.gmra.mxu0 %v959
      %v1051 = vpop.f32.mrf.mxu0
      %v1052 = vadd.f32 %v920, %v1051
      %v1053 = vpop.f32.mrf.mxu0
      %1054 = vmatprep.mubr.f32.mxu0 0.0
      %1055 = vmatmul.mubr.f32.gmra.mxu0 %v962
      %v1056 = vpop.f32.mrf.mxu0
      %v1057 = vadd.f32 %v925, %v1056
      %v1058 = vpop.f32.mrf.mxu0
      %1059 = vmatprep.mubr.f32.mxu0 0.0
      %1060 = vmatmul.mubr.f32.gmra.mxu0 %v965
      %v1061 = vpop.f32.mrf.mxu0
      %v1062 = vadd.f32 %v930, %v1061
      %v1063 = vpop.f32.mrf.mxu0
      %1064 = vmatprep.mubr.f32.mxu0 0.0
      %1065 = vmatmul.mubr.f32.gmra.mxu0 %v968
      %v1066 = vpop.f32.mrf.mxu0
      %v1067 = vadd.f32 %v935, %v1066
      %v1068 = vpop.f32.mrf.mxu0
      %1069 = vmatprep.mubr.f32.mxu0 0.0
      %1070 = vmatmul.mubr.f32.gmra.mxu0 %v971
      %v1071 = vpop.f32.mrf.mxu0
      %v1072 = vadd.f32 %v940, %v1071
      %v1073 = vpop.f32.mrf.mxu0
      %1074 = vmatprep.mubr.f32.mxu0 0.0
      %1075 = vmatmul.mubr.f32.gmra.mxu0 %v974
      %v1076 = vpop.f32.mrf.mxu0
      %v1077 = vadd.f32 %v945, %v1076
      %v1078 = vpop.f32.mrf.mxu0
      %1079 = vmatprep.mubr.f32.mxu0 0.0
      %1080 = vmatmul.mubr.f32.gmra.mxu0 %v977
      %v1081 = vpop.f32.mrf.mxu0
      %v1082 = vadd.f32 %v950, %v1081
      %v1083 = vpop.f32.mrf.mxu0
      %1084 = vmatprep.mubr.f32.mxu0 0.0
      %1085 = vmatmul.mubr.f32.gmra.mxu0 %v980
      %v1086 = vpop.f32.mrf.mxu0
      %v1087 = vadd.f32 %v955, %v1086
      %v1088 = vpop.f32.mrf.mxu0
      %1089 = vdwg.mxu0
      %v1090 = vld [vmem:[#allocation2 + $0x10] sm:$0xff]
      %v1091 = vld [vmem:[#allocation2 + $0x18] sm:$0xff]
      %v1092 = vld [vmem:[#allocation2 + $0x20] sm:$0xff]
      %v1093 = vld [vmem:[#allocation2 + $0x28] sm:$0xff]
      %v1094 = vld [vmem:[#allocation2 + $0x30] sm:$0xff]
      %v1095 = vld [vmem:[#allocation2 + $0x38] sm:$0xff]
      %v1096 = vld [vmem:[#allocation2 + $0x40] sm:$0xff]
      %v1097 = vld [vmem:[#allocation2 + $0x48] sm:$0xff]
      %s1098 = scalar_lea.vmem %s9, 20
      %v1099 = vld [vmem:[%s1098] sm:$0xf]
      %v1101 = vsel %vm483, %v1090, 0
      %v1104 = vsel %vm483, %v1091, 0
      %v1107 = vsel %vm483, %v1092, 0
      %v1110 = vsel %vm483, %v1093, 0
      %v1113 = vsel %vm483, %v1094, 0
      %v1116 = vsel %vm483, %v1095, 0
      %v1119 = vsel %vm483, %v1096, 0
      %v1122 = vsel %vm483, %v1097, 0
      %v1125 = vsel %vm849, %v1099, 0
      %1127 = vmatprep.subr.mxu0 0.0
      %1128 = vmatpush1.msra.mxu0 0.0
      %1129 = vmatprep.subr.mxu0 0.0
      %1130 = vmatpush1.msra.mxu0 0.0
      %1131 = vmatprep.subr.mxu0 0.0
      %1132 = vmatpush1.msra.mxu0 0.0
      %1133 = vmatprep.subr.mxu0 0.0
      %1134 = vmatpush1.msra.mxu0 0.0
      %1135 = vmatprep.subr.mxu0 0.0
      %1136 = vmatpush1.msra.mxu0 0.0
      %1137 = vmatprep.subr.mxu0 0.0
      %1138 = vmatpush1.msra.mxu0 0.0
      %1139 = vmatprep.subr.mxu0 0.0
      %1140 = vmatpush1.msra.mxu0 0.0
      %1141 = vmatprep.subr.mxu0 0.0
      %1142 = vmatpush1.msra.mxu0 0.0
      %1143 = vmatprep.subr.mxu0 0.0
      %1144 = vmatpush1.msra.mxu0 0.0
      %1145 = vmatprep.subr.mxu0 0.0
      %1146 = vmatpush1.msra.mxu0 0.0
      %1147 = vmatprep.subr.mxu0 0.0
      %1148 = vmatpush1.msra.mxu0 0.0
      %1149 = vmatprep.subr.mxu0 0.0
      %1150 = vmatpush1.msra.mxu0 0.0
      %1151 = vmatprep.subr.mxu0 0.0
      %1152 = vmatpush1.msra.mxu0 0.0
      %1153 = vmatprep.subr.mxu0 0.0
      %1154 = vmatpush1.msra.mxu0 0.0
      %1155 = vmatprep.subr.mxu0 0.0
      %1156 = vmatpush1.msra.mxu0 0.0
      %1157 = vmatprep.subr.mxu0 0.0
      %1158 = vmatpush1.msra.mxu0 %v1125
      %1159 = vmatprep.subr.mxu0 0.0
      %1160 = vmatpush2.msra.mxu0 0.0
      %1161 = vmatprep.subr.mxu0 0.0
      %1162 = vmatpush2.msra.mxu0 0.0
      %1163 = vmatprep.subr.mxu0 0.0
      %1164 = vmatpush2.msra.mxu0 0.0
      %1165 = vmatprep.subr.mxu0 0.0
      %1166 = vmatpush2.msra.mxu0 0.0
      %1167 = vmatprep.subr.mxu0 0.0
      %1168 = vmatpush2.msra.mxu0 0.0
      %1169 = vmatprep.subr.mxu0 0.0
      %1170 = vmatpush2.msra.mxu0 0.0
      %1171 = vmatprep.subr.mxu0 0.0
      %1172 = vmatpush2.msra.mxu0 0.0
      %1173 = vmatprep.subr.mxu0 0.0
      %1174 = vmatpush2.msra.mxu0 0.0
      %1175 = vmatprep.subr.mxu0 0.0
      %1176 = vmatpush2.msra.mxu0 0.0
      %1177 = vmatprep.subr.mxu0 0.0
      %1178 = vmatpush2.msra.mxu0 0.0
      %1179 = vmatprep.subr.mxu0 0.0
      %1180 = vmatpush2.msra.mxu0 0.0
      %1181 = vmatprep.subr.mxu0 0.0
      %1182 = vmatpush2.msra.mxu0 0.0
      %1183 = vmatprep.subr.mxu0 0.0
      %1184 = vmatpush2.msra.mxu0 0.0
      %1185 = vmatprep.subr.mxu0 0.0
      %1186 = vmatpush2.msra.mxu0 0.0
      %1187 = vmatprep.subr.mxu0 0.0
      %1188 = vmatpush2.msra.mxu0 0.0
      %1189 = vmatprep.subr.mxu0 0.0
      %1190 = vmatpush2.msra.mxu0 0.0
      %1191 = vmatprep.mubr.f32.mxu0 0.0
      %1192 = vmatmul.mubr.f32.gmra.mxu0 %v1101
      %v1193 = vpop.f32.mrf.mxu0
      %v1194 = vadd.f32 0.0, %v1193
      %v1195 = vpop.f32.mrf.mxu0
      %1196 = vmatprep.mubr.f32.mxu0 0.0
      %1197 = vmatmul.mubr.f32.gmra.mxu0 %v1104
      %v1198 = vpop.f32.mrf.mxu0
      %v1199 = vadd.f32 0.0, %v1198
      %v1200 = vpop.f32.mrf.mxu0
      %1201 = vmatprep.mubr.f32.mxu0 0.0
      %1202 = vmatmul.mubr.f32.gmra.mxu0 %v1107
      %v1203 = vpop.f32.mrf.mxu0
      %v1204 = vadd.f32 0.0, %v1203
      %v1205 = vpop.f32.mrf.mxu0
      %1206 = vmatprep.mubr.f32.mxu0 0.0
      %1207 = vmatmul.mubr.f32.gmra.mxu0 %v1110
      %v1208 = vpop.f32.mrf.mxu0
      %v1209 = vadd.f32 0.0, %v1208
      %v1210 = vpop.f32.mrf.mxu0
      %1211 = vmatprep.mubr.f32.mxu0 0.0
      %1212 = vmatmul.mubr.f32.gmra.mxu0 %v1113
      %v1213 = vpop.f32.mrf.mxu0
      %v1214 = vadd.f32 0.0, %v1213
      %v1215 = vpop.f32.mrf.mxu0
      %1216 = vmatprep.mubr.f32.mxu0 0.0
      %1217 = vmatmul.mubr.f32.gmra.mxu0 %v1116
      %v1218 = vpop.f32.mrf.mxu0
      %v1219 = vadd.f32 0.0, %v1218
      %v1220 = vpop.f32.mrf.mxu0
      %1221 = vmatprep.mubr.f32.mxu0 0.0
      %1222 = vmatmul.mubr.f32.gmra.mxu0 %v1119
      %v1223 = vpop.f32.mrf.mxu0
      %v1224 = vadd.f32 0.0, %v1223
      %v1225 = vpop.f32.mrf.mxu0
      %1226 = vmatprep.mubr.f32.mxu0 0.0
      %1227 = vmatmul.mubr.f32.gmra.mxu0 %v1122
      %v1228 = vpop.f32.mrf.mxu0
      %v1229 = vadd.f32 0.0, %v1228
      %v1230 = vpop.f32.mrf.mxu0
      %1231 = vdwg.mxu0
      %v1232 = vadd.f32 %v1052, %v1194
      %v1233 = vadd.f32 %v1057, %v1199
      %v1234 = vadd.f32 %v1062, %v1204
      %v1235 = vadd.f32 %v1067, %v1209
      %v1236 = vadd.f32 %v1072, %v1214
      %v1237 = vadd.f32 %v1077, %v1219
      %v1238 = vadd.f32 %v1082, %v1224
      %v1239 = vadd.f32 %v1087, %v1229
      %1240 = vst.msk [vmem:[#allocation2 + $0x10] sm:$0xff] %vm483, %v693
      %1241 = vst.msk [vmem:[#allocation2 + $0x18] sm:$0xff] %vm483, %v694
      %1242 = vst.msk [vmem:[#allocation2 + $0x20] sm:$0xff] %vm483, %v695
      %1243 = vst.msk [vmem:[#allocation2 + $0x28] sm:$0xff] %vm483, %v696
      %1244 = vst.msk [vmem:[#allocation2 + $0x30] sm:$0xff] %vm483, %v697
      %1245 = vst.msk [vmem:[#allocation2 + $0x38] sm:$0xff] %vm483, %v698
      %1246 = vst.msk [vmem:[#allocation2 + $0x40] sm:$0xff] %vm483, %v699
      %1247 = vst.msk [vmem:[#allocation2 + $0x48] sm:$0xff] %vm483, %v700
      %v1248 = vld [vmem:[#allocation2 + $0x8] sm:$0xff]
      %v1249 = vld [vmem:[#allocation2 + $0x10] sm:$0xff]
      %v1250 = vld [vmem:[#allocation2 + $0x18] sm:$0xff]
      %v1251 = vld [vmem:[#allocation2 + $0x20] sm:$0xff]
      %v1252 = vld [vmem:[#allocation2 + $0x28] sm:$0xff]
      %v1253 = vld [vmem:[#allocation2 + $0x30] sm:$0xff]
      %v1254 = vld [vmem:[#allocation2 + $0x38] sm:$0xff]
      %v1255 = vld [vmem:[#allocation2 + $0x40] sm:$0xff]
      %s1256 = scalar_lea.vmem %s9, 4
      %v1257 = vld [vmem:[%s1256] sm:$0xf]
      %v1259 = vsel %vm483, %v1248, 0
      %v1262 = vsel %vm483, %v1249, 0
      %v1265 = vsel %vm483, %v1250, 0
      %v1268 = vsel %vm483, %v1251, 0
      %v1271 = vsel %vm483, %v1252, 0
      %v1274 = vsel %vm483, %v1253, 0
      %v1277 = vsel %vm483, %v1254, 0
      %v1280 = vsel %vm483, %v1255, 0
      %v1283 = vsel %vm849, %v1257, 0
      %1285 = vmatprep.subr.mxu0 0.0
      %1286 = vmatpush1.msra.mxu0 0.0
      %1287 = vmatprep.subr.mxu0 0.0
      %1288 = vmatpush1.msra.mxu0 0.0
      %1289 = vmatprep.subr.mxu0 0.0
      %1290 = vmatpush1.msra.mxu0 0.0
      %1291 = vmatprep.subr.mxu0 0.0
      %1292 = vmatpush1.msra.mxu0 0.0
      %1293 = vmatprep.subr.mxu0 0.0
      %1294 = vmatpush1.msra.mxu0 0.0
      %1295 = vmatprep.subr.mxu0 0.0
      %1296 = vmatpush1.msra.mxu0 0.0
      %1297 = vmatprep.subr.mxu0 0.0
      %1298 = vmatpush1.msra.mxu0 0.0
      %1299 = vmatprep.subr.mxu0 0.0
      %1300 = vmatpush1.msra.mxu0 0.0
      %1301 = vmatprep.subr.mxu0 0.0
      %1302 = vmatpush1.msra.mxu0 0.0
      %1303 = vmatprep.subr.mxu0 0.0
      %1304 = vmatpush1.msra.mxu0 0.0
      %1305 = vmatprep.subr.mxu0 0.0
      %1306 = vmatpush1.msra.mxu0 0.0
      %1307 = vmatprep.subr.mxu0 0.0
      %1308 = vmatpush1.msra.mxu0 0.0
      %1309 = vmatprep.subr.mxu0 0.0
      %1310 = vmatpush1.msra.mxu0 0.0
      %1311 = vmatprep.subr.mxu0 0.0
      %1312 = vmatpush1.msra.mxu0 0.0
      %1313 = vmatprep.subr.mxu0 0.0
      %1314 = vmatpush1.msra.mxu0 0.0
      %1315 = vmatprep.subr.mxu0 0.0
      %1316 = vmatpush1.msra.mxu0 %v1283
      %1317 = vmatprep.subr.mxu0 0.0
      %1318 = vmatpush2.msra.mxu0 0.0
      %1319 = vmatprep.subr.mxu0 0.0
      %1320 = vmatpush2.msra.mxu0 0.0
      %1321 = vmatprep.subr.mxu0 0.0
      %1322 = vmatpush2.msra.mxu0 0.0
      %1323 = vmatprep.subr.mxu0 0.0
      %1324 = vmatpush2.msra.mxu0 0.0
      %1325 = vmatprep.subr.mxu0 0.0
      %1326 = vmatpush2.msra.mxu0 0.0
      %1327 = vmatprep.subr.mxu0 0.0
      %1328 = vmatpush2.msra.mxu0 0.0
      %1329 = vmatprep.subr.mxu0 0.0
      %1330 = vmatpush2.msra.mxu0 0.0
      %1331 = vmatprep.subr.mxu0 0.0
      %1332 = vmatpush2.msra.mxu0 0.0
      %1333 = vmatprep.subr.mxu0 0.0
      %1334 = vmatpush2.msra.mxu0 0.0
      %1335 = vmatprep.subr.mxu0 0.0
      %1336 = vmatpush2.msra.mxu0 0.0
      %1337 = vmatprep.subr.mxu0 0.0
      %1338 = vmatpush2.msra.mxu0 0.0
      %1339 = vmatprep.subr.mxu0 0.0
      %1340 = vmatpush2.msra.mxu0 0.0
      %1341 = vmatprep.subr.mxu0 0.0
      %1342 = vmatpush2.msra.mxu0 0.0
      %1343 = vmatprep.subr.mxu0 0.0
      %1344 = vmatpush2.msra.mxu0 0.0
      %1345 = vmatprep.subr.mxu0 0.0
      %1346 = vmatpush2.msra.mxu0 0.0
      %1347 = vmatprep.subr.mxu0 0.0
      %1348 = vmatpush2.msra.mxu0 0.0
      %1349 = vmatprep.mubr.f32.mxu0 0.0
      %1350 = vmatmul.mubr.f32.gmra.mxu0 %v1259
      %v1351 = vpop.f32.mrf.mxu0
      %v1352 = vadd.f32 0.0, %v1351
      %v1353 = vpop.f32.mrf.mxu0
      %1354 = vmatprep.mubr.f32.mxu0 0.0
      %1355 = vmatmul.mubr.f32.gmra.mxu0 %v1262
      %v1356 = vpop.f32.mrf.mxu0
      %v1357 = vadd.f32 0.0, %v1356
      %v1358 = vpop.f32.mrf.mxu0
      %1359 = vmatprep.mubr.f32.mxu0 0.0
      %1360 = vmatmul.mubr.f32.gmra.mxu0 %v1265
      %v1361 = vpop.f32.mrf.mxu0
      %v1362 = vadd.f32 0.0, %v1361
      %v1363 = vpop.f32.mrf.mxu0
      %1364 = vmatprep.mubr.f32.mxu0 0.0
      %1365 = vmatmul.mubr.f32.gmra.mxu0 %v1268
      %v1366 = vpop.f32.mrf.mxu0
      %v1367 = vadd.f32 0.0, %v1366
      %v1368 = vpop.f32.mrf.mxu0
      %1369 = vmatprep.mubr.f32.mxu0 0.0
      %1370 = vmatmul.mubr.f32.gmra.mxu0 %v1271
      %v1371 = vpop.f32.mrf.mxu0
      %v1372 = vadd.f32 0.0, %v1371
      %v1373 = vpop.f32.mrf.mxu0
      %1374 = vmatprep.mubr.f32.mxu0 0.0
      %1375 = vmatmul.mubr.f32.gmra.mxu0 %v1274
      %v1376 = vpop.f32.mrf.mxu0
      %v1377 = vadd.f32 0.0, %v1376
      %v1378 = vpop.f32.mrf.mxu0
      %1379 = vmatprep.mubr.f32.mxu0 0.0
      %1380 = vmatmul.mubr.f32.gmra.mxu0 %v1277
      %v1381 = vpop.f32.mrf.mxu0
      %v1382 = vadd.f32 0.0, %v1381
      %v1383 = vpop.f32.mrf.mxu0
      %1384 = vmatprep.mubr.f32.mxu0 0.0
      %1385 = vmatmul.mubr.f32.gmra.mxu0 %v1280
      %v1386 = vpop.f32.mrf.mxu0
      %v1387 = vadd.f32 0.0, %v1386
      %v1388 = vpop.f32.mrf.mxu0
      %1389 = vdwg.mxu0
      %v1390 = vadd.f32 %v1232, %v1352
      %v1391 = vadd.f32 %v1233, %v1357
      %v1392 = vadd.f32 %v1234, %v1362
      %v1393 = vadd.f32 %v1235, %v1367
      %v1394 = vadd.f32 %v1236, %v1372
      %v1395 = vadd.f32 %v1237, %v1377
      %v1396 = vadd.f32 %v1238, %v1382
      %v1397 = vadd.f32 %v1239, %v1387
      %v1398 = vld [vmem:[#allocation2 + $0x10] sm:$0xff]
      %v1399 = vld [vmem:[#allocation2 + $0x18] sm:$0xff]
      %v1400 = vld [vmem:[#allocation2 + $0x20] sm:$0xff]
      %v1401 = vld [vmem:[#allocation2 + $0x28] sm:$0xff]
      %v1402 = vld [vmem:[#allocation2 + $0x30] sm:$0xff]
      %v1403 = vld [vmem:[#allocation2 + $0x38] sm:$0xff]
      %v1404 = vld [vmem:[#allocation2 + $0x40] sm:$0xff]
      %v1405 = vld [vmem:[#allocation2 + $0x48] sm:$0xff]
      %s1406 = scalar_lea.vmem %s9, 28
      %v1407 = vld [vmem:[%s1406] sm:$0xf]
      %v1409 = vsel %vm483, %v1398, 0
      %v1412 = vsel %vm483, %v1399, 0
      %v1415 = vsel %vm483, %v1400, 0
      %v1418 = vsel %vm483, %v1401, 0
      %v1421 = vsel %vm483, %v1402, 0
      %v1424 = vsel %vm483, %v1403, 0
      %v1427 = vsel %vm483, %v1404, 0
      %v1430 = vsel %vm483, %v1405, 0
      %v1433 = vsel %vm849, %v1407, 0
      %1435 = vmatprep.subr.mxu0 0.0
      %1436 = vmatpush1.msra.mxu0 0.0
      %1437 = vmatprep.subr.mxu0 0.0
      %1438 = vmatpush1.msra.mxu0 0.0
      %1439 = vmatprep.subr.mxu0 0.0
      %1440 = vmatpush1.msra.mxu0 0.0
      %1441 = vmatprep.subr.mxu0 0.0
      %1442 = vmatpush1.msra.mxu0 0.0
      %1443 = vmatprep.subr.mxu0 0.0
      %1444 = vmatpush1.msra.mxu0 0.0
      %1445 = vmatprep.subr.mxu0 0.0
      %1446 = vmatpush1.msra.mxu0 0.0
      %1447 = vmatprep.subr.mxu0 0.0
      %1448 = vmatpush1.msra.mxu0 0.0
      %1449 = vmatprep.subr.mxu0 0.0
      %1450 = vmatpush1.msra.mxu0 0.0
      %1451 = vmatprep.subr.mxu0 0.0
      %1452 = vmatpush1.msra.mxu0 0.0
      %1453 = vmatprep.subr.mxu0 0.0
      %1454 = vmatpush1.msra.mxu0 0.0
      %1455 = vmatprep.subr.mxu0 0.0
      %1456 = vmatpush1.msra.mxu0 0.0
      %1457 = vmatprep.subr.mxu0 0.0
      %1458 = vmatpush1.msra.mxu0 0.0
      %1459 = vmatprep.subr.mxu0 0.0
      %1460 = vmatpush1.msra.mxu0 0.0
      %1461 = vmatprep.subr.mxu0 0.0
      %1462 = vmatpush1.msra.mxu0 0.0
      %1463 = vmatprep.subr.mxu0 0.0
      %1464 = vmatpush1.msra.mxu0 0.0
      %1465 = vmatprep.subr.mxu0 0.0
      %1466 = vmatpush1.msra.mxu0 %v1433
      %1467 = vmatprep.subr.mxu0 0.0
      %1468 = vmatpush2.msra.mxu0 0.0
      %1469 = vmatprep.subr.mxu0 0.0
      %1470 = vmatpush2.msra.mxu0 0.0
      %1471 = vmatprep.subr.mxu0 0.0
      %1472 = vmatpush2.msra.mxu0 0.0
      %1473 = vmatprep.subr.mxu0 0.0
      %1474 = vmatpush2.msra.mxu0 0.0
      %1475 = vmatprep.subr.mxu0 0.0
      %1476 = vmatpush2.msra.mxu0 0.0
      %1477 = vmatprep.subr.mxu0 0.0
      %1478 = vmatpush2.msra.mxu0 0.0
      %1479 = vmatprep.subr.mxu0 0.0
      %1480 = vmatpush2.msra.mxu0 0.0
      %1481 = vmatprep.subr.mxu0 0.0
      %1482 = vmatpush2.msra.mxu0 0.0
      %1483 = vmatprep.subr.mxu0 0.0
      %1484 = vmatpush2.msra.mxu0 0.0
      %1485 = vmatprep.subr.mxu0 0.0
      %1486 = vmatpush2.msra.mxu0 0.0
      %1487 = vmatprep.subr.mxu0 0.0
      %1488 = vmatpush2.msra.mxu0 0.0
      %1489 = vmatprep.subr.mxu0 0.0
      %1490 = vmatpush2.msra.mxu0 0.0
      %1491 = vmatprep.subr.mxu0 0.0
      %1492 = vmatpush2.msra.mxu0 0.0
      %1493 = vmatprep.subr.mxu0 0.0
      %1494 = vmatpush2.msra.mxu0 0.0
      %1495 = vmatprep.subr.mxu0 0.0
      %1496 = vmatpush2.msra.mxu0 0.0
      %1497 = vmatprep.subr.mxu0 0.0
      %1498 = vmatpush2.msra.mxu0 0.0
      %1499 = vmatprep.mubr.f32.mxu0 0.0
      %1500 = vmatmul.mubr.f32.gmra.mxu0 %v1409
      %v1501 = vpop.f32.mrf.mxu0
      %v1502 = vadd.f32 0.0, %v1501
      %v1503 = vpop.f32.mrf.mxu0
      %1504 = vmatprep.mubr.f32.mxu0 0.0
      %1505 = vmatmul.mubr.f32.gmra.mxu0 %v1412
      %v1506 = vpop.f32.mrf.mxu0
      %v1507 = vadd.f32 0.0, %v1506
      %v1508 = vpop.f32.mrf.mxu0
      %1509 = vmatprep.mubr.f32.mxu0 0.0
      %1510 = vmatmul.mubr.f32.gmra.mxu0 %v1415
      %v1511 = vpop.f32.mrf.mxu0
      %v1512 = vadd.f32 0.0, %v1511
      %v1513 = vpop.f32.mrf.mxu0
      %1514 = vmatprep.mubr.f32.mxu0 0.0
      %1515 = vmatmul.mubr.f32.gmra.mxu0 %v1418
      %v1516 = vpop.f32.mrf.mxu0
      %v1517 = vadd.f32 0.0, %v1516
      %v1518 = vpop.f32.mrf.mxu0
      %1519 = vmatprep.mubr.f32.mxu0 0.0
      %1520 = vmatmul.mubr.f32.gmra.mxu0 %v1421
      %v1521 = vpop.f32.mrf.mxu0
      %v1522 = vadd.f32 0.0, %v1521
      %v1523 = vpop.f32.mrf.mxu0
      %1524 = vmatprep.mubr.f32.mxu0 0.0
      %1525 = vmatmul.mubr.f32.gmra.mxu0 %v1424
      %v1526 = vpop.f32.mrf.mxu0
      %v1527 = vadd.f32 0.0, %v1526
      %v1528 = vpop.f32.mrf.mxu0
      %1529 = vmatprep.mubr.f32.mxu0 0.0
      %1530 = vmatmul.mubr.f32.gmra.mxu0 %v1427
      %v1531 = vpop.f32.mrf.mxu0
      %v1532 = vadd.f32 0.0, %v1531
      %v1533 = vpop.f32.mrf.mxu0
      %1534 = vmatprep.mubr.f32.mxu0 0.0
      %1535 = vmatmul.mubr.f32.gmra.mxu0 %v1430
      %v1536 = vpop.f32.mrf.mxu0
      %v1537 = vadd.f32 0.0, %v1536
      %v1538 = vpop.f32.mrf.mxu0
      %1539 = vdwg.mxu0
      %v1540 = vadd.f32 %v1390, %v1502
      %v1541 = vadd.f32 %v1391, %v1507
      %v1542 = vadd.f32 %v1392, %v1512
      %v1543 = vadd.f32 %v1393, %v1517
      %v1544 = vadd.f32 %v1394, %v1522
      %v1545 = vadd.f32 %v1395, %v1527
      %v1546 = vadd.f32 %v1396, %v1532
      %v1547 = vadd.f32 %v1397, %v1537
      %1548 = vst.msk [vmem:[#allocation2 + $0x10] sm:$0xff] %vm483, %v733
      %1549 = vst.msk [vmem:[#allocation2 + $0x18] sm:$0xff] %vm483, %v734
      %1550 = vst.msk [vmem:[#allocation2 + $0x20] sm:$0xff] %vm483, %v735
      %1551 = vst.msk [vmem:[#allocation2 + $0x28] sm:$0xff] %vm483, %v736
      %1552 = vst.msk [vmem:[#allocation2 + $0x30] sm:$0xff] %vm483, %v737
      %1553 = vst.msk [vmem:[#allocation2 + $0x38] sm:$0xff] %vm483, %v738
      %1554 = vst.msk [vmem:[#allocation2 + $0x40] sm:$0xff] %vm483, %v739
      %1555 = vst.msk [vmem:[#allocation2 + $0x48] sm:$0xff] %vm483, %v740
      %v1556 = vld [vmem:[#allocation2 + $0x7] sm:$0xff]
      %v1557 = vld [vmem:[#allocation2 + $0xf] sm:$0xff]
      %v1558 = vld [vmem:[#allocation2 + $0x17] sm:$0xff]
      %v1559 = vld [vmem:[#allocation2 + $0x1f] sm:$0xff]
      %v1560 = vld [vmem:[#allocation2 + $0x27] sm:$0xff]
      %v1561 = vld [vmem:[#allocation2 + $0x2f] sm:$0xff]
      %v1562 = vld [vmem:[#allocation2 + $0x37] sm:$0xff]
      %v1563 = vld [vmem:[#allocation2 + $0x3f] sm:$0xff]
      %v1564 = vsel %vm807, %v1556, 0.0
      %v1565 = vsel %vm808, %v1557, 0.0
      %v1566 = vsel %vm809, %v1558, 0.0
      %v1567 = vsel %vm810, %v1559, 0.0
      %v1568 = vsel %vm811, %v1560, 0.0
      %v1569 = vsel %vm812, %v1561, 0.0
      %v1570 = vsel %vm813, %v1562, 0.0
      %v1571 = vsel %vm814, %v1563, 0.0
      %v1572 = vld [vmem:[%s9] sm:$0xf]
      %v1574 = vsel %vm483, %v1564, 0
      %v1577 = vsel %vm483, %v1565, 0
      %v1580 = vsel %vm483, %v1566, 0
      %v1583 = vsel %vm483, %v1567, 0
      %v1586 = vsel %vm483, %v1568, 0
      %v1589 = vsel %vm483, %v1569, 0
      %v1592 = vsel %vm483, %v1570, 0
      %v1595 = vsel %vm483, %v1571, 0
      %v1598 = vsel %vm849, %v1572, 0
      %1600 = vmatprep.subr.mxu0 0.0
      %1601 = vmatpush1.msra.mxu0 0.0
      %1602 = vmatprep.subr.mxu0 0.0
      %1603 = vmatpush1.msra.mxu0 0.0
      %1604 = vmatprep.subr.mxu0 0.0
      %1605 = vmatpush1.msra.mxu0 0.0
      %1606 = vmatprep.subr.mxu0 0.0
      %1607 = vmatpush1.msra.mxu0 0.0
      %1608 = vmatprep.subr.mxu0 0.0
      %1609 = vmatpush1.msra.mxu0 0.0
      %1610 = vmatprep.subr.mxu0 0.0
      %1611 = vmatpush1.msra.mxu0 0.0
      %1612 = vmatprep.subr.mxu0 0.0
      %1613 = vmatpush1.msra.mxu0 0.0
      %1614 = vmatprep.subr.mxu0 0.0
      %1615 = vmatpush1.msra.mxu0 0.0
      %1616 = vmatprep.subr.mxu0 0.0
      %1617 = vmatpush1.msra.mxu0 0.0
      %1618 = vmatprep.subr.mxu0 0.0
      %1619 = vmatpush1.msra.mxu0 0.0
      %1620 = vmatprep.subr.mxu0 0.0
      %1621 = vmatpush1.msra.mxu0 0.0
      %1622 = vmatprep.subr.mxu0 0.0
      %1623 = vmatpush1.msra.mxu0 0.0
      %1624 = vmatprep.subr.mxu0 0.0
      %1625 = vmatpush1.msra.mxu0 0.0
      %1626 = vmatprep.subr.mxu0 0.0
      %1627 = vmatpush1.msra.mxu0 0.0
      %1628 = vmatprep.subr.mxu0 0.0
      %1629 = vmatpush1.msra.mxu0 0.0
      %1630 = vmatprep.subr.mxu0 0.0
      %1631 = vmatpush1.msra.mxu0 %v1598
      %1632 = vmatprep.subr.mxu0 0.0
      %1633 = vmatpush2.msra.mxu0 0.0
      %1634 = vmatprep.subr.mxu0 0.0
      %1635 = vmatpush2.msra.mxu0 0.0
      %1636 = vmatprep.subr.mxu0 0.0
      %1637 = vmatpush2.msra.mxu0 0.0
      %1638 = vmatprep.subr.mxu0 0.0
      %1639 = vmatpush2.msra.mxu0 0.0
      %1640 = vmatprep.subr.mxu0 0.0
      %1641 = vmatpush2.msra.mxu0 0.0
      %1642 = vmatprep.subr.mxu0 0.0
      %1643 = vmatpush2.msra.mxu0 0.0
      %1644 = vmatprep.subr.mxu0 0.0
      %1645 = vmatpush2.msra.mxu0 0.0
      %1646 = vmatprep.subr.mxu0 0.0
      %1647 = vmatpush2.msra.mxu0 0.0
      %1648 = vmatprep.subr.mxu0 0.0
      %1649 = vmatpush2.msra.mxu0 0.0
      %1650 = vmatprep.subr.mxu0 0.0
      %1651 = vmatpush2.msra.mxu0 0.0
      %1652 = vmatprep.subr.mxu0 0.0
      %1653 = vmatpush2.msra.mxu0 0.0
      %1654 = vmatprep.subr.mxu0 0.0
      %1655 = vmatpush2.msra.mxu0 0.0
      %1656 = vmatprep.subr.mxu0 0.0
      %1657 = vmatpush2.msra.mxu0 0.0
      %1658 = vmatprep.subr.mxu0 0.0
      %1659 = vmatpush2.msra.mxu0 0.0
      %1660 = vmatprep.subr.mxu0 0.0
      %1661 = vmatpush2.msra.mxu0 0.0
      %1662 = vmatprep.subr.mxu0 0.0
      %1663 = vmatpush2.msra.mxu0 0.0
      %1664 = vmatprep.mubr.f32.mxu0 0.0
      %1665 = vmatmul.mubr.f32.gmra.mxu0 %v1574
      %v1666 = vpop.f32.mrf.mxu0
      %v1667 = vadd.f32 0.0, %v1666
      %v1668 = vpop.f32.mrf.mxu0
      %1669 = vmatprep.mubr.f32.mxu0 0.0
      %1670 = vmatmul.mubr.f32.gmra.mxu0 %v1577
      %v1671 = vpop.f32.mrf.mxu0
      %v1672 = vadd.f32 0.0, %v1671
      %v1673 = vpop.f32.mrf.mxu0
      %1674 = vmatprep.mubr.f32.mxu0 0.0
      %1675 = vmatmul.mubr.f32.gmra.mxu0 %v1580
      %v1676 = vpop.f32.mrf.mxu0
      %v1677 = vadd.f32 0.0, %v1676
      %v1678 = vpop.f32.mrf.mxu0
      %1679 = vmatprep.mubr.f32.mxu0 0.0
      %1680 = vmatmul.mubr.f32.gmra.mxu0 %v1583
      %v1681 = vpop.f32.mrf.mxu0
      %v1682 = vadd.f32 0.0, %v1681
      %v1683 = vpop.f32.mrf.mxu0
      %1684 = vmatprep.mubr.f32.mxu0 0.0
      %1685 = vmatmul.mubr.f32.gmra.mxu0 %v1586
      %v1686 = vpop.f32.mrf.mxu0
      %v1687 = vadd.f32 0.0, %v1686
      %v1688 = vpop.f32.mrf.mxu0
      %1689 = vmatprep.mubr.f32.mxu0 0.0
      %1690 = vmatmul.mubr.f32.gmra.mxu0 %v1589
      %v1691 = vpop.f32.mrf.mxu0
      %v1692 = vadd.f32 0.0, %v1691
      %v1693 = vpop.f32.mrf.mxu0
      %1694 = vmatprep.mubr.f32.mxu0 0.0
      %1695 = vmatmul.mubr.f32.gmra.mxu0 %v1592
      %v1696 = vpop.f32.mrf.mxu0
      %v1697 = vadd.f32 0.0, %v1696
      %v1698 = vpop.f32.mrf.mxu0
      %1699 = vmatprep.mubr.f32.mxu0 0.0
      %1700 = vmatmul.mubr.f32.gmra.mxu0 %v1595
      %v1701 = vpop.f32.mrf.mxu0
      %v1702 = vadd.f32 0.0, %v1701
      %v1703 = vpop.f32.mrf.mxu0
      %1704 = vdwg.mxu0
      %v1705 = vadd.f32 %v1540, %v1667
      %v1706 = vadd.f32 %v1541, %v1672
      %v1707 = vadd.f32 %v1542, %v1677
      %v1708 = vadd.f32 %v1543, %v1682
      %v1709 = vadd.f32 %v1544, %v1687
      %v1710 = vadd.f32 %v1545, %v1692
      %v1711 = vadd.f32 %v1546, %v1697
      %v1712 = vadd.f32 %v1547, %v1702
      %v1713 = vld [vmem:[#allocation2 + $0x8] sm:$0xff]
      %v1714 = vld [vmem:[#allocation2 + $0x10] sm:$0xff]
      %v1715 = vld [vmem:[#allocation2 + $0x18] sm:$0xff]
      %v1716 = vld [vmem:[#allocation2 + $0x20] sm:$0xff]
      %v1717 = vld [vmem:[#allocation2 + $0x28] sm:$0xff]
      %v1718 = vld [vmem:[#allocation2 + $0x30] sm:$0xff]
      %v1719 = vld [vmem:[#allocation2 + $0x38] sm:$0xff]
      %v1720 = vld [vmem:[#allocation2 + $0x40] sm:$0xff]
      %s1721 = scalar_lea.vmem %s9, 8
      %v1722 = vld [vmem:[%s1721] sm:$0xf]
      %v1724 = vsel %vm483, %v1713, 0
      %v1727 = vsel %vm483, %v1714, 0
      %v1730 = vsel %vm483, %v1715, 0
      %v1733 = vsel %vm483, %v1716, 0
      %v1736 = vsel %vm483, %v1717, 0
      %v1739 = vsel %vm483, %v1718, 0
      %v1742 = vsel %vm483, %v1719, 0
      %v1745 = vsel %vm483, %v1720, 0
      %v1748 = vsel %vm849, %v1722, 0
      %1750 = vmatprep.subr.mxu0 0.0
      %1751 = vmatpush1.msra.mxu0 0.0
      %1752 = vmatprep.subr.mxu0 0.0
      %1753 = vmatpush1.msra.mxu0 0.0
      %1754 = vmatprep.subr.mxu0 0.0
      %1755 = vmatpush1.msra.mxu0 0.0
      %1756 = vmatprep.subr.mxu0 0.0
      %1757 = vmatpush1.msra.mxu0 0.0
      %1758 = vmatprep.subr.mxu0 0.0
      %1759 = vmatpush1.msra.mxu0 0.0
      %1760 = vmatprep.subr.mxu0 0.0
      %1761 = vmatpush1.msra.mxu0 0.0
      %1762 = vmatprep.subr.mxu0 0.0
      %1763 = vmatpush1.msra.mxu0 0.0
      %1764 = vmatprep.subr.mxu0 0.0
      %1765 = vmatpush1.msra.mxu0 0.0
      %1766 = vmatprep.subr.mxu0 0.0
      %1767 = vmatpush1.msra.mxu0 0.0
      %1768 = vmatprep.subr.mxu0 0.0
      %1769 = vmatpush1.msra.mxu0 0.0
      %1770 = vmatprep.subr.mxu0 0.0
      %1771 = vmatpush1.msra.mxu0 0.0
      %1772 = vmatprep.subr.mxu0 0.0
      %1773 = vmatpush1.msra.mxu0 0.0
      %1774 = vmatprep.subr.mxu0 0.0
      %1775 = vmatpush1.msra.mxu0 0.0
      %1776 = vmatprep.subr.mxu0 0.0
      %1777 = vmatpush1.msra.mxu0 0.0
      %1778 = vmatprep.subr.mxu0 0.0
      %1779 = vmatpush1.msra.mxu0 0.0
      %1780 = vmatprep.subr.mxu0 0.0
      %1781 = vmatpush1.msra.mxu0 %v1748
      %1782 = vmatprep.subr.mxu0 0.0
      %1783 = vmatpush2.msra.mxu0 0.0
      %1784 = vmatprep.subr.mxu0 0.0
      %1785 = vmatpush2.msra.mxu0 0.0
      %1786 = vmatprep.subr.mxu0 0.0
      %1787 = vmatpush2.msra.mxu0 0.0
      %1788 = vmatprep.subr.mxu0 0.0
      %1789 = vmatpush2.msra.mxu0 0.0
      %1790 = vmatprep.subr.mxu0 0.0
      %1791 = vmatpush2.msra.mxu0 0.0
      %1792 = vmatprep.subr.mxu0 0.0
      %1793 = vmatpush2.msra.mxu0 0.0
      %1794 = vmatprep.subr.mxu0 0.0
      %1795 = vmatpush2.msra.mxu0 0.0
      %1796 = vmatprep.subr.mxu0 0.0
      %1797 = vmatpush2.msra.mxu0 0.0
      %1798 = vmatprep.subr.mxu0 0.0
      %1799 = vmatpush2.msra.mxu0 0.0
      %1800 = vmatprep.subr.mxu0 0.0
      %1801 = vmatpush2.msra.mxu0 0.0
      %1802 = vmatprep.subr.mxu0 0.0
      %1803 = vmatpush2.msra.mxu0 0.0
      %1804 = vmatprep.subr.mxu0 0.0
      %1805 = vmatpush2.msra.mxu0 0.0
      %1806 = vmatprep.subr.mxu0 0.0
      %1807 = vmatpush2.msra.mxu0 0.0
      %1808 = vmatprep.subr.mxu0 0.0
      %1809 = vmatpush2.msra.mxu0 0.0
      %1810 = vmatprep.subr.mxu0 0.0
      %1811 = vmatpush2.msra.mxu0 0.0
      %1812 = vmatprep.subr.mxu0 0.0
      %1813 = vmatpush2.msra.mxu0 0.0
      %1814 = vmatprep.mubr.f32.mxu0 0.0
      %1815 = vmatmul.mubr.f32.gmra.mxu0 %v1724
      %v1816 = vpop.f32.mrf.mxu0
      %v1817 = vadd.f32 0.0, %v1816
      %v1818 = vpop.f32.mrf.mxu0
      %1819 = vmatprep.mubr.f32.mxu0 0.0
      %1820 = vmatmul.mubr.f32.gmra.mxu0 %v1727
      %v1821 = vpop.f32.mrf.mxu0
      %v1822 = vadd.f32 0.0, %v1821
      %v1823 = vpop.f32.mrf.mxu0
      %1824 = vmatprep.mubr.f32.mxu0 0.0
      %1825 = vmatmul.mubr.f32.gmra.mxu0 %v1730
      %v1826 = vpop.f32.mrf.mxu0
      %v1827 = vadd.f32 0.0, %v1826
      %v1828 = vpop.f32.mrf.mxu0
      %1829 = vmatprep.mubr.f32.mxu0 0.0
      %1830 = vmatmul.mubr.f32.gmra.mxu0 %v1733
      %v1831 = vpop.f32.mrf.mxu0
      %v1832 = vadd.f32 0.0, %v1831
      %v1833 = vpop.f32.mrf.mxu0
      %1834 = vmatprep.mubr.f32.mxu0 0.0
      %1835 = vmatmul.mubr.f32.gmra.mxu0 %v1736
      %v1836 = vpop.f32.mrf.mxu0
      %v1837 = vadd.f32 0.0, %v1836
      %v1838 = vpop.f32.mrf.mxu0
      %1839 = vmatprep.mubr.f32.mxu0 0.0
      %1840 = vmatmul.mubr.f32.gmra.mxu0 %v1739
      %v1841 = vpop.f32.mrf.mxu0
      %v1842 = vadd.f32 0.0, %v1841
      %v1843 = vpop.f32.mrf.mxu0
      %1844 = vmatprep.mubr.f32.mxu0 0.0
      %1845 = vmatmul.mubr.f32.gmra.mxu0 %v1742
      %v1846 = vpop.f32.mrf.mxu0
      %v1847 = vadd.f32 0.0, %v1846
      %v1848 = vpop.f32.mrf.mxu0
      %1849 = vmatprep.mubr.f32.mxu0 0.0
      %1850 = vmatmul.mubr.f32.gmra.mxu0 %v1745
      %v1851 = vpop.f32.mrf.mxu0
      %v1852 = vadd.f32 0.0, %v1851
      %v1853 = vpop.f32.mrf.mxu0
      %1854 = vdwg.mxu0
      %v1855 = vadd.f32 %v1705, %v1817
      %v1856 = vadd.f32 %v1706, %v1822
      %v1857 = vadd.f32 %v1707, %v1827
      %v1858 = vadd.f32 %v1708, %v1832
      %v1859 = vadd.f32 %v1709, %v1837
      %v1860 = vadd.f32 %v1710, %v1842
      %v1861 = vadd.f32 %v1711, %v1847
      %v1862 = vadd.f32 %v1712, %v1852
      %v1863 = vld [vmem:[#allocation2 + $0xf] sm:$0xff]
      %v1864 = vld [vmem:[#allocation2 + $0x17] sm:$0xff]
      %v1865 = vld [vmem:[#allocation2 + $0x1f] sm:$0xff]
      %v1866 = vld [vmem:[#allocation2 + $0x27] sm:$0xff]
      %v1867 = vld [vmem:[#allocation2 + $0x2f] sm:$0xff]
      %v1868 = vld [vmem:[#allocation2 + $0x37] sm:$0xff]
      %v1869 = vld [vmem:[#allocation2 + $0x3f] sm:$0xff]
      %v1870 = vld [vmem:[#allocation2 + $0x47] sm:$0xff]
      %v1871 = vsel %vm807, %v1863, 0.0
      %v1872 = vsel %vm808, %v1864, 0.0
      %v1873 = vsel %vm809, %v1865, 0.0
      %v1874 = vsel %vm810, %v1866, 0.0
      %v1875 = vsel %vm811, %v1867, 0.0
      %v1876 = vsel %vm812, %v1868, 0.0
      %v1877 = vsel %vm813, %v1869, 0.0
      %v1878 = vsel %vm814, %v1870, 0.0
      %s1879 = scalar_lea.vmem %s9, 24
      %v1880 = vld [vmem:[%s1879] sm:$0xf]
      %v1882 = vsel %vm483, %v1871, 0
      %v1885 = vsel %vm483, %v1872, 0
      %v1888 = vsel %vm483, %v1873, 0
      %v1891 = vsel %vm483, %v1874, 0
      %v1894 = vsel %vm483, %v1875, 0
      %v1897 = vsel %vm483, %v1876, 0
      %v1900 = vsel %vm483, %v1877, 0
      %v1903 = vsel %vm483, %v1878, 0
      %v1906 = vsel %vm849, %v1880, 0
      %1908 = vmatprep.subr.mxu0 0.0
      %1909 = vmatpush1.msra.mxu0 0.0
      %1910 = vmatprep.subr.mxu0 0.0
      %1911 = vmatpush1.msra.mxu0 0.0
      %1912 = vmatprep.subr.mxu0 0.0
      %1913 = vmatpush1.msra.mxu0 0.0
      %1914 = vmatprep.subr.mxu0 0.0
      %1915 = vmatpush1.msra.mxu0 0.0
      %1916 = vmatprep.subr.mxu0 0.0
      %1917 = vmatpush1.msra.mxu0 0.0
      %1918 = vmatprep.subr.mxu0 0.0
      %1919 = vmatpush1.msra.mxu0 0.0
      %1920 = vmatprep.subr.mxu0 0.0
      %1921 = vmatpush1.msra.mxu0 0.0
      %1922 = vmatprep.subr.mxu0 0.0
      %1923 = vmatpush1.msra.mxu0 0.0
      %1924 = vmatprep.subr.mxu0 0.0
      %1925 = vmatpush1.msra.mxu0 0.0
      %1926 = vmatprep.subr.mxu0 0.0
      %1927 = vmatpush1.msra.mxu0 0.0
      %1928 = vmatprep.subr.mxu0 0.0
      %1929 = vmatpush1.msra.mxu0 0.0
      %1930 = vmatprep.subr.mxu0 0.0
      %1931 = vmatpush1.msra.mxu0 0.0
      %1932 = vmatprep.subr.mxu0 0.0
      %1933 = vmatpush1.msra.mxu0 0.0
      %1934 = vmatprep.subr.mxu0 0.0
      %1935 = vmatpush1.msra.mxu0 0.0
      %1936 = vmatprep.subr.mxu0 0.0
      %1937 = vmatpush1.msra.mxu0 0.0
      %1938 = vmatprep.subr.mxu0 0.0
      %1939 = vmatpush1.msra.mxu0 %v1906
      %1940 = vmatprep.subr.mxu0 0.0
      %1941 = vmatpush2.msra.mxu0 0.0
      %1942 = vmatprep.subr.mxu0 0.0
      %1943 = vmatpush2.msra.mxu0 0.0
      %1944 = vmatprep.subr.mxu0 0.0
      %1945 = vmatpush2.msra.mxu0 0.0
      %1946 = vmatprep.subr.mxu0 0.0
      %1947 = vmatpush2.msra.mxu0 0.0
      %1948 = vmatprep.subr.mxu0 0.0
      %1949 = vmatpush2.msra.mxu0 0.0
      %1950 = vmatprep.subr.mxu0 0.0
      %1951 = vmatpush2.msra.mxu0 0.0
      %1952 = vmatprep.subr.mxu0 0.0
      %1953 = vmatpush2.msra.mxu0 0.0
      %1954 = vmatprep.subr.mxu0 0.0
      %1955 = vmatpush2.msra.mxu0 0.0
      %1956 = vmatprep.subr.mxu0 0.0
      %1957 = vmatpush2.msra.mxu0 0.0
      %1958 = vmatprep.subr.mxu0 0.0
      %1959 = vmatpush2.msra.mxu0 0.0
      %1960 = vmatprep.subr.mxu0 0.0
      %1961 = vmatpush2.msra.mxu0 0.0
      %1962 = vmatprep.subr.mxu0 0.0
      %1963 = vmatpush2.msra.mxu0 0.0
      %1964 = vmatprep.subr.mxu0 0.0
      %1965 = vmatpush2.msra.mxu0 0.0
      %1966 = vmatprep.subr.mxu0 0.0
      %1967 = vmatpush2.msra.mxu0 0.0
      %1968 = vmatprep.subr.mxu0 0.0
      %1969 = vmatpush2.msra.mxu0 0.0
      %1970 = vmatprep.subr.mxu0 0.0
      %1971 = vmatpush2.msra.mxu0 0.0
      %1972 = vmatprep.mubr.f32.mxu0 0.0
      %1973 = vmatmul.mubr.f32.gmra.mxu0 %v1882
      %v1974 = vpop.f32.mrf.mxu0
      %v1975 = vadd.f32 0.0, %v1974
      %v1976 = vpop.f32.mrf.mxu0
      %1977 = vmatprep.mubr.f32.mxu0 0.0
      %1978 = vmatmul.mubr.f32.gmra.mxu0 %v1885
      %v1979 = vpop.f32.mrf.mxu0
      %v1980 = vadd.f32 0.0, %v1979
      %v1981 = vpop.f32.mrf.mxu0
      %1982 = vmatprep.mubr.f32.mxu0 0.0
      %1983 = vmatmul.mubr.f32.gmra.mxu0 %v1888
      %v1984 = vpop.f32.mrf.mxu0
      %v1985 = vadd.f32 0.0, %v1984
      %v1986 = vpop.f32.mrf.mxu0
      %1987 = vmatprep.mubr.f32.mxu0 0.0
      %1988 = vmatmul.mubr.f32.gmra.mxu0 %v1891
      %v1989 = vpop.f32.mrf.mxu0
      %v1990 = vadd.f32 0.0, %v1989
      %v1991 = vpop.f32.mrf.mxu0
      %1992 = vmatprep.mubr.f32.mxu0 0.0
      %1993 = vmatmul.mubr.f32.gmra.mxu0 %v1894
      %v1994 = vpop.f32.mrf.mxu0
      %v1995 = vadd.f32 0.0, %v1994
      %v1996 = vpop.f32.mrf.mxu0
      %1997 = vmatprep.mubr.f32.mxu0 0.0
      %1998 = vmatmul.mubr.f32.gmra.mxu0 %v1897
      %v1999 = vpop.f32.mrf.mxu0
      %v2000 = vadd.f32 0.0, %v1999
      %v2001 = vpop.f32.mrf.mxu0
      %2002 = vmatprep.mubr.f32.mxu0 0.0
      %2003 = vmatmul.mubr.f32.gmra.mxu0 %v1900
      %v2004 = vpop.f32.mrf.mxu0
      %v2005 = vadd.f32 0.0, %v2004
      %v2006 = vpop.f32.mrf.mxu0
      %2007 = vmatprep.mubr.f32.mxu0 0.0
      %2008 = vmatmul.mubr.f32.gmra.mxu0 %v1903
      %v2009 = vpop.f32.mrf.mxu0
      %v2010 = vadd.f32 0.0, %v2009
      %v2011 = vpop.f32.mrf.mxu0
      %2012 = vdwg.mxu0
      %v2013 = vadd.f32 %v1855, %v1975
      %v2014 = vadd.f32 %v1856, %v1980
      %v2015 = vadd.f32 %v1857, %v1985
      %v2016 = vadd.f32 %v1858, %v1990
      %v2017 = vadd.f32 %v1859, %v1995
      %v2018 = vadd.f32 %v1860, %v2000
      %v2019 = vadd.f32 %v1861, %v2005
      %v2020 = vadd.f32 %v1862, %v2010
      %v2021 = vld [vmem:[#allocation2 + $0x10] sm:$0xff]
      %v2022 = vld [vmem:[#allocation2 + $0x18] sm:$0xff]
      %v2023 = vld [vmem:[#allocation2 + $0x20] sm:$0xff]
      %v2024 = vld [vmem:[#allocation2 + $0x28] sm:$0xff]
      %v2025 = vld [vmem:[#allocation2 + $0x30] sm:$0xff]
      %v2026 = vld [vmem:[#allocation2 + $0x38] sm:$0xff]
      %v2027 = vld [vmem:[#allocation2 + $0x40] sm:$0xff]
      %v2028 = vld [vmem:[#allocation2 + $0x48] sm:$0xff]
      %s2029 = scalar_lea.vmem %s9, 32
      %v2030 = vld [vmem:[%s2029] sm:$0xf]
      %v2032 = vsel %vm483, %v2021, 0
      %v2035 = vsel %vm483, %v2022, 0
      %v2038 = vsel %vm483, %v2023, 0
      %v2041 = vsel %vm483, %v2024, 0
      %v2044 = vsel %vm483, %v2025, 0
      %v2047 = vsel %vm483, %v2026, 0
      %v2050 = vsel %vm483, %v2027, 0
      %v2053 = vsel %vm483, %v2028, 0
      %v2056 = vsel %vm849, %v2030, 0
      %2058 = vmatprep.subr.mxu0 0.0
      %2059 = vmatpush1.msra.mxu0 0.0
      %2060 = vmatprep.subr.mxu0 0.0
      %2061 = vmatpush1.msra.mxu0 0.0
      %2062 = vmatprep.subr.mxu0 0.0
      %2063 = vmatpush1.msra.mxu0 0.0
      %2064 = vmatprep.subr.mxu0 0.0
      %2065 = vmatpush1.msra.mxu0 0.0
      %2066 = vmatprep.subr.mxu0 0.0
      %2067 = vmatpush1.msra.mxu0 0.0
      %2068 = vmatprep.subr.mxu0 0.0
      %2069 = vmatpush1.msra.mxu0 0.0
      %2070 = vmatprep.subr.mxu0 0.0
      %2071 = vmatpush1.msra.mxu0 0.0
      %2072 = vmatprep.subr.mxu0 0.0
      %2073 = vmatpush1.msra.mxu0 0.0
      %2074 = vmatprep.subr.mxu0 0.0
      %2075 = vmatpush1.msra.mxu0 0.0
      %2076 = vmatprep.subr.mxu0 0.0
      %2077 = vmatpush1.msra.mxu0 0.0
      %2078 = vmatprep.subr.mxu0 0.0
      %2079 = vmatpush1.msra.mxu0 0.0
      %2080 = vmatprep.subr.mxu0 0.0
      %2081 = vmatpush1.msra.mxu0 0.0
      %2082 = vmatprep.subr.mxu0 0.0
      %2083 = vmatpush1.msra.mxu0 0.0
      %2084 = vmatprep.subr.mxu0 0.0
      %2085 = vmatpush1.msra.mxu0 0.0
      %2086 = vmatprep.subr.mxu0 0.0
      %2087 = vmatpush1.msra.mxu0 0.0
      %2088 = vmatprep.subr.mxu0 0.0
      %2089 = vmatpush1.msra.mxu0 %v2056
      %2090 = vmatprep.subr.mxu0 0.0
      %2091 = vmatpush2.msra.mxu0 0.0
      %2092 = vmatprep.subr.mxu0 0.0
      %2093 = vmatpush2.msra.mxu0 0.0
      %2094 = vmatprep.subr.mxu0 0.0
      %2095 = vmatpush2.msra.mxu0 0.0
      %2096 = vmatprep.subr.mxu0 0.0
      %2097 = vmatpush2.msra.mxu0 0.0
      %2098 = vmatprep.subr.mxu0 0.0
      %2099 = vmatpush2.msra.mxu0 0.0
      %2100 = vmatprep.subr.mxu0 0.0
      %2101 = vmatpush2.msra.mxu0 0.0
      %2102 = vmatprep.subr.mxu0 0.0
      %2103 = vmatpush2.msra.mxu0 0.0
      %2104 = vmatprep.subr.mxu0 0.0
      %2105 = vmatpush2.msra.mxu0 0.0
      %2106 = vmatprep.subr.mxu0 0.0
      %2107 = vmatpush2.msra.mxu0 0.0
      %2108 = vmatprep.subr.mxu0 0.0
      %2109 = vmatpush2.msra.mxu0 0.0
      %2110 = vmatprep.subr.mxu0 0.0
      %2111 = vmatpush2.msra.mxu0 0.0
      %2112 = vmatprep.subr.mxu0 0.0
      %2113 = vmatpush2.msra.mxu0 0.0
      %2114 = vmatprep.subr.mxu0 0.0
      %2115 = vmatpush2.msra.mxu0 0.0
      %2116 = vmatprep.subr.mxu0 0.0
      %2117 = vmatpush2.msra.mxu0 0.0
      %2118 = vmatprep.subr.mxu0 0.0
      %2119 = vmatpush2.msra.mxu0 0.0
      %2120 = vmatprep.subr.mxu0 0.0
      %2121 = vmatpush2.msra.mxu0 0.0
      %2122 = vmatprep.mubr.f32.mxu0 0.0
      %2123 = vmatmul.mubr.f32.gmra.mxu0 %v2032
      %v2124 = vpop.f32.mrf.mxu0
      %v2125 = vadd.f32 0.0, %v2124
      %v2126 = vpop.f32.mrf.mxu0
      %2127 = vmatprep.mubr.f32.mxu0 0.0
      %2128 = vmatmul.mubr.f32.gmra.mxu0 %v2035
      %v2129 = vpop.f32.mrf.mxu0
      %v2130 = vadd.f32 0.0, %v2129
      %v2131 = vpop.f32.mrf.mxu0
      %2132 = vmatprep.mubr.f32.mxu0 0.0
      %2133 = vmatmul.mubr.f32.gmra.mxu0 %v2038
      %v2134 = vpop.f32.mrf.mxu0
      %v2135 = vadd.f32 0.0, %v2134
      %v2136 = vpop.f32.mrf.mxu0
      %2137 = vmatprep.mubr.f32.mxu0 0.0
      %2138 = vmatmul.mubr.f32.gmra.mxu0 %v2041
      %v2139 = vpop.f32.mrf.mxu0
      %v2140 = vadd.f32 0.0, %v2139
      %v2141 = vpop.f32.mrf.mxu0
      %2142 = vmatprep.mubr.f32.mxu0 0.0
      %2143 = vmatmul.mubr.f32.gmra.mxu0 %v2044
      %v2144 = vpop.f32.mrf.mxu0
      %v2145 = vadd.f32 0.0, %v2144
      %v2146 = vpop.f32.mrf.mxu0
      %2147 = vmatprep.mubr.f32.mxu0 0.0
      %2148 = vmatmul.mubr.f32.gmra.mxu0 %v2047
      %v2149 = vpop.f32.mrf.mxu0
      %v2150 = vadd.f32 0.0, %v2149
      %v2151 = vpop.f32.mrf.mxu0
      %2152 = vmatprep.mubr.f32.mxu0 0.0
      %2153 = vmatmul.mubr.f32.gmra.mxu0 %v2050
      %v2154 = vpop.f32.mrf.mxu0
      %v2155 = vadd.f32 0.0, %v2154
      %v2156 = vpop.f32.mrf.mxu0
      %2157 = vmatprep.mubr.f32.mxu0 0.0
      %2158 = vmatmul.mubr.f32.gmra.mxu0 %v2053
      %v2159 = vpop.f32.mrf.mxu0
      %v2160 = vadd.f32 0.0, %v2159
      %v2161 = vpop.f32.mrf.mxu0
      %2162 = vdwg.mxu0
      %v2163 = vadd.f32 %v2013, %v2125
      %v2164 = vadd.f32 %v2014, %v2130
      %v2165 = vadd.f32 %v2015, %v2135
      %v2166 = vadd.f32 %v2016, %v2140
      %v2167 = vadd.f32 %v2017, %v2145
      %v2168 = vadd.f32 %v2018, %v2150
      %v2169 = vadd.f32 %v2019, %v2155
      %v2170 = vadd.f32 %v2020, %v2160
      %v2172 = vlaneseq
      %v2173 = vshrl.u32 %v2172, 7
      %v2174 = vsub.s32 0, %v2173
      %v2175 = vrot.slane %v535, %v2174
      %v2177 = vmul.f32 %v2163, %v2175
      %v2178 = vmul.f32 %v2164, %v2175
      %v2179 = vmul.f32 %v2165, %v2175
      %v2180 = vmul.f32 %v2166, %v2175
      %v2181 = vmul.f32 %v2167, %v2175
      %v2182 = vmul.f32 %v2168, %v2175
      %v2183 = vmul.f32 %v2169, %v2175
      %v2184 = vmul.f32 %v2170, %v2175
      %v2186 = vlaneseq
      %v2187 = vshrl.u32 %v2186, 7
      %v2188 = vsub.s32 0, %v2187
      %v2189 = vrot.slane %v536, %v2188
      %v2191 = vadd.f32 %v2177, %v2189
      %v2192 = vadd.f32 %v2178, %v2189
      %v2193 = vadd.f32 %v2179, %v2189
      %v2194 = vadd.f32 %v2180, %v2189
      %v2195 = vadd.f32 %v2181, %v2189
      %v2196 = vadd.f32 %v2182, %v2189
      %v2197 = vadd.f32 %v2183, %v2189
      %v2198 = vadd.f32 %v2184, %v2189
      %vm2199 = vcmp.ge.f32.partialorder %v2191, 0.0
      %vm2200 = vcmp.ge.f32.partialorder %v2192, 0.0
      %vm2201 = vcmp.ge.f32.partialorder %v2193, 0.0
      %vm2202 = vcmp.ge.f32.partialorder %v2194, 0.0
      %vm2203 = vcmp.ge.f32.partialorder %v2195, 0.0
      %vm2204 = vcmp.ge.f32.partialorder %v2196, 0.0
      %vm2205 = vcmp.ge.f32.partialorder %v2197, 0.0
      %vm2206 = vcmp.ge.f32.partialorder %v2198, 0.0
      %v2207 = vmul.f32 %v2191, 0.1
      %v2208 = vmul.f32 %v2192, 0.1
      %v2209 = vmul.f32 %v2193, 0.1
      %v2210 = vmul.f32 %v2194, 0.1
      %v2211 = vmul.f32 %v2195, 0.1
      %v2212 = vmul.f32 %v2196, 0.1
      %v2213 = vmul.f32 %v2197, 0.1
      %v2214 = vmul.f32 %v2198, 0.1
      %v2215 = vsel %vm2199, %v2191, %v2207
      %v2216 = vsel %vm2200, %v2192, %v2208
      %v2217 = vsel %vm2201, %v2193, %v2209
      %v2218 = vsel %vm2202, %v2194, %v2210
      %v2219 = vsel %vm2203, %v2195, %v2211
      %v2220 = vsel %vm2204, %v2196, %v2212
      %v2221 = vsel %vm2205, %v2197, %v2213
      %v2222 = vsel %vm2206, %v2198, %v2214
      %v2223 = vld [vmem:[%s11] sm:$0xf]
      %v2225 = vsel %vm483, %v613, 0
      %v2228 = vsel %vm483, %v614, 0
      %v2231 = vsel %vm483, %v615, 0
      %v2234 = vsel %vm483, %v616, 0
      %v2237 = vsel %vm483, %v617, 0
      %v2240 = vsel %vm483, %v618, 0
      %v2243 = vsel %vm483, %v619, 0
      %v2246 = vsel %vm483, %v620, 0
      %v2249 = vsel %vm849, %v2223, 0
      %2251 = vmatprep.subr.mxu0 0.0
      %2252 = vmatpush1.msra.mxu0 0.0
      %2253 = vmatprep.subr.mxu0 0.0
      %2254 = vmatpush1.msra.mxu0 0.0
      %2255 = vmatprep.subr.mxu0 0.0
      %2256 = vmatpush1.msra.mxu0 0.0
      %2257 = vmatprep.subr.mxu0 0.0
      %2258 = vmatpush1.msra.mxu0 0.0
      %2259 = vmatprep.subr.mxu0 0.0
      %2260 = vmatpush1.msra.mxu0 0.0
      %2261 = vmatprep.subr.mxu0 0.0
      %2262 = vmatpush1.msra.mxu0 0.0
      %2263 = vmatprep.subr.mxu0 0.0
      %2264 = vmatpush1.msra.mxu0 0.0
      %2265 = vmatprep.subr.mxu0 0.0
      %2266 = vmatpush1.msra.mxu0 0.0
      %2267 = vmatprep.subr.mxu0 0.0
      %2268 = vmatpush1.msra.mxu0 0.0
      %2269 = vmatprep.subr.mxu0 0.0
      %2270 = vmatpush1.msra.mxu0 0.0
      %2271 = vmatprep.subr.mxu0 0.0
      %2272 = vmatpush1.msra.mxu0 0.0
      %2273 = vmatprep.subr.mxu0 0.0
      %2274 = vmatpush1.msra.mxu0 0.0
      %2275 = vmatprep.subr.mxu0 0.0
      %2276 = vmatpush1.msra.mxu0 0.0
      %2277 = vmatprep.subr.mxu0 0.0
      %2278 = vmatpush1.msra.mxu0 0.0
      %2279 = vmatprep.subr.mxu0 0.0
      %2280 = vmatpush1.msra.mxu0 0.0
      %2281 = vmatprep.subr.mxu0 0.0
      %2282 = vmatpush1.msra.mxu0 %v2249
      %2283 = vmatprep.subr.mxu0 0.0
      %2284 = vmatpush2.msra.mxu0 0.0
      %2285 = vmatprep.subr.mxu0 0.0
      %2286 = vmatpush2.msra.mxu0 0.0
      %2287 = vmatprep.subr.mxu0 0.0
      %2288 = vmatpush2.msra.mxu0 0.0
      %2289 = vmatprep.subr.mxu0 0.0
      %2290 = vmatpush2.msra.mxu0 0.0
      %2291 = vmatprep.subr.mxu0 0.0
      %2292 = vmatpush2.msra.mxu0 0.0
      %2293 = vmatprep.subr.mxu0 0.0
      %2294 = vmatpush2.msra.mxu0 0.0
      %2295 = vmatprep.subr.mxu0 0.0
      %2296 = vmatpush2.msra.mxu0 0.0
      %2297 = vmatprep.subr.mxu0 0.0
      %2298 = vmatpush2.msra.mxu0 0.0
      %2299 = vmatprep.subr.mxu0 0.0
      %2300 = vmatpush2.msra.mxu0 0.0
      %2301 = vmatprep.subr.mxu0 0.0
      %2302 = vmatpush2.msra.mxu0 0.0
      %2303 = vmatprep.subr.mxu0 0.0
      %2304 = vmatpush2.msra.mxu0 0.0
      %2305 = vmatprep.subr.mxu0 0.0
      %2306 = vmatpush2.msra.mxu0 0.0
      %2307 = vmatprep.subr.mxu0 0.0
      %2308 = vmatpush2.msra.mxu0 0.0
      %2309 = vmatprep.subr.mxu0 0.0
      %2310 = vmatpush2.msra.mxu0 0.0
      %2311 = vmatprep.subr.mxu0 0.0
      %2312 = vmatpush2.msra.mxu0 0.0
      %2313 = vmatprep.subr.mxu0 0.0
      %2314 = vmatpush2.msra.mxu0 0.0
      %2315 = vmatprep.mubr.f32.mxu0 0.0
      %2316 = vmatmul.mubr.f32.gmra.mxu0 %v2225
      %v2317 = vpop.f32.mrf.mxu0
      %v2318 = vadd.f32 0.0, %v2317
      %v2319 = vpop.f32.mrf.mxu0
      %2320 = vmatprep.mubr.f32.mxu0 0.0
      %2321 = vmatmul.mubr.f32.gmra.mxu0 %v2228
      %v2322 = vpop.f32.mrf.mxu0
      %v2323 = vadd.f32 0.0, %v2322
      %v2324 = vpop.f32.mrf.mxu0
      %2325 = vmatprep.mubr.f32.mxu0 0.0
      %2326 = vmatmul.mubr.f32.gmra.mxu0 %v2231
      %v2327 = vpop.f32.mrf.mxu0
      %v2328 = vadd.f32 0.0, %v2327
      %v2329 = vpop.f32.mrf.mxu0
      %2330 = vmatprep.mubr.f32.mxu0 0.0
      %2331 = vmatmul.mubr.f32.gmra.mxu0 %v2234
      %v2332 = vpop.f32.mrf.mxu0
      %v2333 = vadd.f32 0.0, %v2332
      %v2334 = vpop.f32.mrf.mxu0
      %2335 = vmatprep.mubr.f32.mxu0 0.0
      %2336 = vmatmul.mubr.f32.gmra.mxu0 %v2237
      %v2337 = vpop.f32.mrf.mxu0
      %v2338 = vadd.f32 0.0, %v2337
      %v2339 = vpop.f32.mrf.mxu0
      %2340 = vmatprep.mubr.f32.mxu0 0.0
      %2341 = vmatmul.mubr.f32.gmra.mxu0 %v2240
      %v2342 = vpop.f32.mrf.mxu0
      %v2343 = vadd.f32 0.0, %v2342
      %v2344 = vpop.f32.mrf.mxu0
      %2345 = vmatprep.mubr.f32.mxu0 0.0
      %2346 = vmatmul.mubr.f32.gmra.mxu0 %v2243
      %v2347 = vpop.f32.mrf.mxu0
      %v2348 = vadd.f32 0.0, %v2347
      %v2349 = vpop.f32.mrf.mxu0
      %2350 = vmatprep.mubr.f32.mxu0 0.0
      %2351 = vmatmul.mubr.f32.gmra.mxu0 %v2246
      %v2352 = vpop.f32.mrf.mxu0
      %v2353 = vadd.f32 0.0, %v2352
      %v2354 = vpop.f32.mrf.mxu0
      %2355 = vdwg.mxu0
      %2356 = vst.msk [vmem:[#allocation3 + $0x10] sm:$0xff] %vm496, %v2215
      %2357 = vst.msk [vmem:[#allocation3 + $0x18] sm:$0xff] %vm496, %v2216
      %2358 = vst.msk [vmem:[#allocation3 + $0x20] sm:$0xff] %vm496, %v2217
      %2359 = vst.msk [vmem:[#allocation3 + $0x28] sm:$0xff] %vm496, %v2218
      %2360 = vst.msk [vmem:[#allocation3 + $0x30] sm:$0xff] %vm496, %v2219
      %2361 = vst.msk [vmem:[#allocation3 + $0x38] sm:$0xff] %vm496, %v2220
      %2362 = vst.msk [vmem:[#allocation3 + $0x40] sm:$0xff] %vm496, %v2221
      %2363 = vst.msk [vmem:[#allocation3 + $0x48] sm:$0xff] %vm496, %v2222
      %v2364 = vld [vmem:[#allocation3 + $0x7] sm:$0xff]
      %v2365 = vld [vmem:[#allocation3 + $0xf] sm:$0xff]
      %v2366 = vld [vmem:[#allocation3 + $0x17] sm:$0xff]
      %v2367 = vld [vmem:[#allocation3 + $0x1f] sm:$0xff]
      %v2368 = vld [vmem:[#allocation3 + $0x27] sm:$0xff]
      %v2369 = vld [vmem:[#allocation3 + $0x2f] sm:$0xff]
      %v2370 = vld [vmem:[#allocation3 + $0x37] sm:$0xff]
      %v2371 = vld [vmem:[#allocation3 + $0x3f] sm:$0xff]
      %v2372 = vsel %vm807, %v2364, 0.0
      %v2373 = vsel %vm808, %v2365, 0.0
      %v2374 = vsel %vm809, %v2366, 0.0
      %v2375 = vsel %vm810, %v2367, 0.0
      %v2376 = vsel %vm811, %v2368, 0.0
      %v2377 = vsel %vm812, %v2369, 0.0
      %v2378 = vsel %vm813, %v2370, 0.0
      %v2379 = vsel %vm814, %v2371, 0.0
      %v2380 = vld [vmem:[%s10] sm:$0xff]
      %v2381 = vld [vmem:[#allocation3 + $0x8] sm:$0xff]
      %v2382 = vld [vmem:[#allocation3 + $0x10] sm:$0xff]
      %v2383 = vld [vmem:[#allocation3 + $0x18] sm:$0xff]
      %v2384 = vld [vmem:[#allocation3 + $0x20] sm:$0xff]
      %v2385 = vld [vmem:[#allocation3 + $0x28] sm:$0xff]
      %v2386 = vld [vmem:[#allocation3 + $0x30] sm:$0xff]
      %v2387 = vld [vmem:[#allocation3 + $0x38] sm:$0xff]
      %v2388 = vld [vmem:[#allocation3 + $0x40] sm:$0xff]
      %s2389 = scalar_lea.vmem %s10, 8
      %v2390 = vld [vmem:[%s2389] sm:$0xff]
      %v2392 = vsel %vm496, %v2381, 0
      %v2395 = vsel %vm496, %v2382, 0
      %v2398 = vsel %vm496, %v2383, 0
      %v2401 = vsel %vm496, %v2384, 0
      %v2404 = vsel %vm496, %v2385, 0
      %v2407 = vsel %vm496, %v2386, 0
      %v2410 = vsel %vm496, %v2387, 0
      %v2413 = vsel %vm496, %v2388, 0
      %2415 = vmatprep.subr.mxu0 0.0
      %2416 = vmatpush1.msra.mxu0 0.0
      %2417 = vmatprep.subr.mxu0 0.0
      %2418 = vmatpush1.msra.mxu0 0.0
      %2419 = vmatprep.subr.mxu0 0.0
      %2420 = vmatpush1.msra.mxu0 0.0
      %2421 = vmatprep.subr.mxu0 0.0
      %2422 = vmatpush1.msra.mxu0 0.0
      %2423 = vmatprep.subr.mxu0 0.0
      %2424 = vmatpush1.msra.mxu0 0.0
      %2425 = vmatprep.subr.mxu0 0.0
      %2426 = vmatpush1.msra.mxu0 0.0
      %2427 = vmatprep.subr.mxu0 0.0
      %2428 = vmatpush1.msra.mxu0 0.0
      %2429 = vmatprep.subr.mxu0 0.0
      %2430 = vmatpush1.msra.mxu0 0.0
      %2431 = vmatprep.subr.mxu0 0.0
      %2432 = vmatpush1.msra.mxu0 0.0
      %2433 = vmatprep.subr.mxu0 0.0
      %2434 = vmatpush1.msra.mxu0 0.0
      %2435 = vmatprep.subr.mxu0 0.0
      %2436 = vmatpush1.msra.mxu0 0.0
      %2437 = vmatprep.subr.mxu0 0.0
      %2438 = vmatpush1.msra.mxu0 0.0
      %2439 = vmatprep.subr.mxu0 0.0
      %2440 = vmatpush1.msra.mxu0 0.0
      %2441 = vmatprep.subr.mxu0 0.0
      %2442 = vmatpush1.msra.mxu0 0.0
      %2443 = vmatprep.subr.mxu0 0.0
      %2444 = vmatpush1.msra.mxu0 0.0
      %2445 = vmatprep.subr.mxu0 0.0
      %2446 = vmatpush1.msra.mxu0 %v2390
      %2447 = vmatprep.subr.mxu0 0.0
      %2448 = vmatpush2.msra.mxu0 0.0
      %2449 = vmatprep.subr.mxu0 0.0
      %2450 = vmatpush2.msra.mxu0 0.0
      %2451 = vmatprep.subr.mxu0 0.0
      %2452 = vmatpush2.msra.mxu0 0.0
      %2453 = vmatprep.subr.mxu0 0.0
      %2454 = vmatpush2.msra.mxu0 0.0
      %2455 = vmatprep.subr.mxu0 0.0
      %2456 = vmatpush2.msra.mxu0 0.0
      %2457 = vmatprep.subr.mxu0 0.0
      %2458 = vmatpush2.msra.mxu0 0.0
      %2459 = vmatprep.subr.mxu0 0.0
      %2460 = vmatpush2.msra.mxu0 0.0
      %2461 = vmatprep.subr.mxu0 0.0
      %2462 = vmatpush2.msra.mxu0 0.0
      %2463 = vmatprep.subr.mxu0 0.0
      %2464 = vmatpush2.msra.mxu0 0.0
      %2465 = vmatprep.subr.mxu0 0.0
      %2466 = vmatpush2.msra.mxu0 0.0
      %2467 = vmatprep.subr.mxu0 0.0
      %2468 = vmatpush2.msra.mxu0 0.0
      %2469 = vmatprep.subr.mxu0 0.0
      %2470 = vmatpush2.msra.mxu0 0.0
      %2471 = vmatprep.subr.mxu0 0.0
      %2472 = vmatpush2.msra.mxu0 0.0
      %2473 = vmatprep.subr.mxu0 0.0
      %2474 = vmatpush2.msra.mxu0 0.0
      %2475 = vmatprep.subr.mxu0 0.0
      %2476 = vmatpush2.msra.mxu0 0.0
      %2477 = vmatprep.subr.mxu0 0.0
      %2478 = vmatpush2.msra.mxu0 0.0
      %2479 = vmatprep.mubr.f32.mxu0 0.0
      %2480 = vmatmul.mubr.f32.gmra.mxu0 %v2392
      %v2481 = vpop.f32.mrf.mxu0
      %v2482 = vadd.f32 0.0, %v2481
      %v2483 = vpop.f32.mrf.mxu0
      %2484 = vmatprep.mubr.f32.mxu0 0.0
      %2485 = vmatmul.mubr.f32.gmra.mxu0 %v2395
      %v2486 = vpop.f32.mrf.mxu0
      %v2487 = vadd.f32 0.0, %v2486
      %v2488 = vpop.f32.mrf.mxu0
      %2489 = vmatprep.mubr.f32.mxu0 0.0
      %2490 = vmatmul.mubr.f32.gmra.mxu0 %v2398
      %v2491 = vpop.f32.mrf.mxu0
      %v2492 = vadd.f32 0.0, %v2491
      %v2493 = vpop.f32.mrf.mxu0
      %2494 = vmatprep.mubr.f32.mxu0 0.0
      %2495 = vmatmul.mubr.f32.gmra.mxu0 %v2401
      %v2496 = vpop.f32.mrf.mxu0
      %v2497 = vadd.f32 0.0, %v2496
      %v2498 = vpop.f32.mrf.mxu0
      %2499 = vmatprep.mubr.f32.mxu0 0.0
      %2500 = vmatmul.mubr.f32.gmra.mxu0 %v2404
      %v2501 = vpop.f32.mrf.mxu0
      %v2502 = vadd.f32 0.0, %v2501
      %v2503 = vpop.f32.mrf.mxu0
      %2504 = vmatprep.mubr.f32.mxu0 0.0
      %2505 = vmatmul.mubr.f32.gmra.mxu0 %v2407
      %v2506 = vpop.f32.mrf.mxu0
      %v2507 = vadd.f32 0.0, %v2506
      %v2508 = vpop.f32.mrf.mxu0
      %2509 = vmatprep.mubr.f32.mxu0 0.0
      %2510 = vmatmul.mubr.f32.gmra.mxu0 %v2410
      %v2511 = vpop.f32.mrf.mxu0
      %v2512 = vadd.f32 0.0, %v2511
      %v2513 = vpop.f32.mrf.mxu0
      %2514 = vmatprep.mubr.f32.mxu0 0.0
      %2515 = vmatmul.mubr.f32.gmra.mxu0 %v2413
      %v2516 = vpop.f32.mrf.mxu0
      %v2517 = vadd.f32 0.0, %v2516
      %v2518 = vpop.f32.mrf.mxu0
      %2519 = vdwg.mxu0
      %v2521 = vsel %vm496, %v2372, 0
      %v2524 = vsel %vm496, %v2373, 0
      %v2527 = vsel %vm496, %v2374, 0
      %v2530 = vsel %vm496, %v2375, 0
      %v2533 = vsel %vm496, %v2376, 0
      %v2536 = vsel %vm496, %v2377, 0
      %v2539 = vsel %vm496, %v2378, 0
      %v2542 = vsel %vm496, %v2379, 0
      %2544 = vmatprep.subr.mxu0 0.0
      %2545 = vmatpush1.msra.mxu0 0.0
      %2546 = vmatprep.subr.mxu0 0.0
      %2547 = vmatpush1.msra.mxu0 0.0
      %2548 = vmatprep.subr.mxu0 0.0
      %2549 = vmatpush1.msra.mxu0 0.0
      %2550 = vmatprep.subr.mxu0 0.0
      %2551 = vmatpush1.msra.mxu0 0.0
      %2552 = vmatprep.subr.mxu0 0.0
      %2553 = vmatpush1.msra.mxu0 0.0
      %2554 = vmatprep.subr.mxu0 0.0
      %2555 = vmatpush1.msra.mxu0 0.0
      %2556 = vmatprep.subr.mxu0 0.0
      %2557 = vmatpush1.msra.mxu0 0.0
      %2558 = vmatprep.subr.mxu0 0.0
      %2559 = vmatpush1.msra.mxu0 0.0
      %2560 = vmatprep.subr.mxu0 0.0
      %2561 = vmatpush1.msra.mxu0 0.0
      %2562 = vmatprep.subr.mxu0 0.0
      %2563 = vmatpush1.msra.mxu0 0.0
      %2564 = vmatprep.subr.mxu0 0.0
      %2565 = vmatpush1.msra.mxu0 0.0
      %2566 = vmatprep.subr.mxu0 0.0
      %2567 = vmatpush1.msra.mxu0 0.0
      %2568 = vmatprep.subr.mxu0 0.0
      %2569 = vmatpush1.msra.mxu0 0.0
      %2570 = vmatprep.subr.mxu0 0.0
      %2571 = vmatpush1.msra.mxu0 0.0
      %2572 = vmatprep.subr.mxu0 0.0
      %2573 = vmatpush1.msra.mxu0 0.0
      %2574 = vmatprep.subr.mxu0 0.0
      %2575 = vmatpush1.msra.mxu0 %v2380
      %2576 = vmatprep.subr.mxu0 0.0
      %2577 = vmatpush2.msra.mxu0 0.0
      %2578 = vmatprep.subr.mxu0 0.0
      %2579 = vmatpush2.msra.mxu0 0.0
      %2580 = vmatprep.subr.mxu0 0.0
      %2581 = vmatpush2.msra.mxu0 0.0
      %2582 = vmatprep.subr.mxu0 0.0
      %2583 = vmatpush2.msra.mxu0 0.0
      %2584 = vmatprep.subr.mxu0 0.0
      %2585 = vmatpush2.msra.mxu0 0.0
      %2586 = vmatprep.subr.mxu0 0.0
      %2587 = vmatpush2.msra.mxu0 0.0
      %2588 = vmatprep.subr.mxu0 0.0
      %2589 = vmatpush2.msra.mxu0 0.0
      %2590 = vmatprep.subr.mxu0 0.0
      %2591 = vmatpush2.msra.mxu0 0.0
      %2592 = vmatprep.subr.mxu0 0.0
      %2593 = vmatpush2.msra.mxu0 0.0
      %2594 = vmatprep.subr.mxu0 0.0
      %2595 = vmatpush2.msra.mxu0 0.0
      %2596 = vmatprep.subr.mxu0 0.0
      %2597 = vmatpush2.msra.mxu0 0.0
      %2598 = vmatprep.subr.mxu0 0.0
      %2599 = vmatpush2.msra.mxu0 0.0
      %2600 = vmatprep.subr.mxu0 0.0
      %2601 = vmatpush2.msra.mxu0 0.0
      %2602 = vmatprep.subr.mxu0 0.0
      %2603 = vmatpush2.msra.mxu0 0.0
      %2604 = vmatprep.subr.mxu0 0.0
      %2605 = vmatpush2.msra.mxu0 0.0
      %2606 = vmatprep.subr.mxu0 0.0
      %2607 = vmatpush2.msra.mxu0 0.0
      %2608 = vmatprep.mubr.f32.mxu0 0.0
      %2609 = vmatmul.mubr.f32.gmra.mxu0 %v2521
      %v2610 = vpop.f32.mrf.mxu0
      %v2611 = vadd.f32 %v2482, %v2610
      %v2612 = vpop.f32.mrf.mxu0
      %2613 = vmatprep.mubr.f32.mxu0 0.0
      %2614 = vmatmul.mubr.f32.gmra.mxu0 %v2524
      %v2615 = vpop.f32.mrf.mxu0
      %v2616 = vadd.f32 %v2487, %v2615
      %v2617 = vpop.f32.mrf.mxu0
      %2618 = vmatprep.mubr.f32.mxu0 0.0
      %2619 = vmatmul.mubr.f32.gmra.mxu0 %v2527
      %v2620 = vpop.f32.mrf.mxu0
      %v2621 = vadd.f32 %v2492, %v2620
      %v2622 = vpop.f32.mrf.mxu0
      %2623 = vmatprep.mubr.f32.mxu0 0.0
      %2624 = vmatmul.mubr.f32.gmra.mxu0 %v2530
      %v2625 = vpop.f32.mrf.mxu0
      %v2626 = vadd.f32 %v2497, %v2625
      %v2627 = vpop.f32.mrf.mxu0
      %2628 = vmatprep.mubr.f32.mxu0 0.0
      %2629 = vmatmul.mubr.f32.gmra.mxu0 %v2533
      %v2630 = vpop.f32.mrf.mxu0
      %v2631 = vadd.f32 %v2502, %v2630
      %v2632 = vpop.f32.mrf.mxu0
      %2633 = vmatprep.mubr.f32.mxu0 0.0
      %2634 = vmatmul.mubr.f32.gmra.mxu0 %v2536
      %v2635 = vpop.f32.mrf.mxu0
      %v2636 = vadd.f32 %v2507, %v2635
      %v2637 = vpop.f32.mrf.mxu0
      %2638 = vmatprep.mubr.f32.mxu0 0.0
      %2639 = vmatmul.mubr.f32.gmra.mxu0 %v2539
      %v2640 = vpop.f32.mrf.mxu0
      %v2641 = vadd.f32 %v2512, %v2640
      %v2642 = vpop.f32.mrf.mxu0
      %2643 = vmatprep.mubr.f32.mxu0 0.0
      %2644 = vmatmul.mubr.f32.gmra.mxu0 %v2542
      %v2645 = vpop.f32.mrf.mxu0
      %v2646 = vadd.f32 %v2517, %v2645
      %v2647 = vpop.f32.mrf.mxu0
      %2648 = vdwg.mxu0
      %v2649 = vld [vmem:[#allocation3 + $0x9] sm:$0xff]
      %v2650 = vld [vmem:[#allocation3 + $0x11] sm:$0xff]
      %v2651 = vld [vmem:[#allocation3 + $0x19] sm:$0xff]
      %v2652 = vld [vmem:[#allocation3 + $0x21] sm:$0xff]
      %v2653 = vld [vmem:[#allocation3 + $0x29] sm:$0xff]
      %v2654 = vld [vmem:[#allocation3 + $0x31] sm:$0xff]
      %v2655 = vld [vmem:[#allocation3 + $0x39] sm:$0xff]
      %v2656 = vld [vmem:[#allocation3 + $0x41] sm:$0xff]
      %v2657 = vsel %vm525, 1, 0
      %v2658 = vsel %vm526, 1, 0
      %v2659 = vsel %vm527, 1, 0
      %v2660 = vsel %vm528, 1, 0
      %v2661 = vsel %vm529, 1, 0
      %v2662 = vsel %vm530, 1, 0
      %v2663 = vsel %vm531, 1, 0
      %v2664 = vsel %vm532, 1, 0
      %2665 = vset.pattern.permute.xlu0 0
      %2666 = vperm.xlu0 %2665, %v2657
      %v2667 = vpop.permute.xlu0 %2666
      %2668 = vset.pattern.permute.xlu0 0
      %2669 = vperm.xlu0 %2668, %v2658
      %v2670 = vpop.permute.xlu0 %2669
      %2671 = vset.pattern.permute.xlu0 0
      %2672 = vperm.xlu0 %2671, %v2659
      %v2673 = vpop.permute.xlu0 %2672
      %2674 = vset.pattern.permute.xlu0 0
      %2675 = vperm.xlu0 %2674, %v2660
      %v2676 = vpop.permute.xlu0 %2675
      %2677 = vset.pattern.permute.xlu0 0
      %2678 = vperm.xlu0 %2677, %v2661
      %v2679 = vpop.permute.xlu0 %2678
      %2680 = vset.pattern.permute.xlu0 0
      %2681 = vperm.xlu0 %2680, %v2662
      %v2682 = vpop.permute.xlu0 %2681
      %2683 = vset.pattern.permute.xlu0 0
      %2684 = vperm.xlu0 %2683, %v2663
      %v2685 = vpop.permute.xlu0 %2684
      %2686 = vset.pattern.permute.xlu0 0
      %2687 = vperm.xlu0 %2686, %v2664
      %v2688 = vpop.permute.xlu0 %2687
      %vm2689 = vcmp.eq.s32.totalorder %v2667, 1
      %vm2690 = vcmp.eq.s32.totalorder %v2670, 1
      %vm2691 = vcmp.eq.s32.totalorder %v2673, 1
      %vm2692 = vcmp.eq.s32.totalorder %v2676, 1
      %vm2693 = vcmp.eq.s32.totalorder %v2679, 1
      %vm2694 = vcmp.eq.s32.totalorder %v2682, 1
      %vm2695 = vcmp.eq.s32.totalorder %v2685, 1
      %vm2696 = vcmp.eq.s32.totalorder %v2688, 1
      %v2697 = vsel %vm2689, %v2649, 0.0
      %v2698 = vsel %vm2690, %v2650, 0.0
      %v2699 = vsel %vm2691, %v2651, 0.0
      %v2700 = vsel %vm2692, %v2652, 0.0
      %v2701 = vsel %vm2693, %v2653, 0.0
      %v2702 = vsel %vm2694, %v2654, 0.0
      %v2703 = vsel %vm2695, %v2655, 0.0
      %v2704 = vsel %vm2696, %v2656, 0.0
      %s2705 = scalar_lea.vmem %s10, 16
      %v2706 = vld [vmem:[%s2705] sm:$0xff]
      %v2708 = vsel %vm496, %v2697, 0
      %v2711 = vsel %vm496, %v2698, 0
      %v2714 = vsel %vm496, %v2699, 0
      %v2717 = vsel %vm496, %v2700, 0
      %v2720 = vsel %vm496, %v2701, 0
      %v2723 = vsel %vm496, %v2702, 0
      %v2726 = vsel %vm496, %v2703, 0
      %v2729 = vsel %vm496, %v2704, 0
      %2731 = vmatprep.subr.mxu0 0.0
      %2732 = vmatpush1.msra.mxu0 0.0
      %2733 = vmatprep.subr.mxu0 0.0
      %2734 = vmatpush1.msra.mxu0 0.0
      %2735 = vmatprep.subr.mxu0 0.0
      %2736 = vmatpush1.msra.mxu0 0.0
      %2737 = vmatprep.subr.mxu0 0.0
      %2738 = vmatpush1.msra.mxu0 0.0
      %2739 = vmatprep.subr.mxu0 0.0
      %2740 = vmatpush1.msra.mxu0 0.0
      %2741 = vmatprep.subr.mxu0 0.0
      %2742 = vmatpush1.msra.mxu0 0.0
      %2743 = vmatprep.subr.mxu0 0.0
      %2744 = vmatpush1.msra.mxu0 0.0
      %2745 = vmatprep.subr.mxu0 0.0
      %2746 = vmatpush1.msra.mxu0 0.0
      %2747 = vmatprep.subr.mxu0 0.0
      %2748 = vmatpush1.msra.mxu0 0.0
      %2749 = vmatprep.subr.mxu0 0.0
      %2750 = vmatpush1.msra.mxu0 0.0
      %2751 = vmatprep.subr.mxu0 0.0
      %2752 = vmatpush1.msra.mxu0 0.0
      %2753 = vmatprep.subr.mxu0 0.0
      %2754 = vmatpush1.msra.mxu0 0.0
      %2755 = vmatprep.subr.mxu0 0.0
      %2756 = vmatpush1.msra.mxu0 0.0
      %2757 = vmatprep.subr.mxu0 0.0
      %2758 = vmatpush1.msra.mxu0 0.0
      %2759 = vmatprep.subr.mxu0 0.0
      %2760 = vmatpush1.msra.mxu0 0.0
      %2761 = vmatprep.subr.mxu0 0.0
      %2762 = vmatpush1.msra.mxu0 %v2706
      %2763 = vmatprep.subr.mxu0 0.0
      %2764 = vmatpush2.msra.mxu0 0.0
      %2765 = vmatprep.subr.mxu0 0.0
      %2766 = vmatpush2.msra.mxu0 0.0
      %2767 = vmatprep.subr.mxu0 0.0
      %2768 = vmatpush2.msra.mxu0 0.0
      %2769 = vmatprep.subr.mxu0 0.0
      %2770 = vmatpush2.msra.mxu0 0.0
      %2771 = vmatprep.subr.mxu0 0.0
      %2772 = vmatpush2.msra.mxu0 0.0
      %2773 = vmatprep.subr.mxu0 0.0
      %2774 = vmatpush2.msra.mxu0 0.0
      %2775 = vmatprep.subr.mxu0 0.0
      %2776 = vmatpush2.msra.mxu0 0.0
      %2777 = vmatprep.subr.mxu0 0.0
      %2778 = vmatpush2.msra.mxu0 0.0
      %2779 = vmatprep.subr.mxu0 0.0
      %2780 = vmatpush2.msra.mxu0 0.0
      %2781 = vmatprep.subr.mxu0 0.0
      %2782 = vmatpush2.msra.mxu0 0.0
      %2783 = vmatprep.subr.mxu0 0.0
      %2784 = vmatpush2.msra.mxu0 0.0
      %2785 = vmatprep.subr.mxu0 0.0
      %2786 = vmatpush2.msra.mxu0 0.0
      %2787 = vmatprep.subr.mxu0 0.0
      %2788 = vmatpush2.msra.mxu0 0.0
      %2789 = vmatprep.subr.mxu0 0.0
      %2790 = vmatpush2.msra.mxu0 0.0
      %2791 = vmatprep.subr.mxu0 0.0
      %2792 = vmatpush2.msra.mxu0 0.0
      %2793 = vmatprep.subr.mxu0 0.0
      %2794 = vmatpush2.msra.mxu0 0.0
      %2795 = vmatprep.mubr.f32.mxu0 0.0
      %2796 = vmatmul.mubr.f32.gmra.mxu0 %v2708
      %v2797 = vpop.f32.mrf.mxu0
      %v2798 = vadd.f32 0.0, %v2797
      %v2799 = vpop.f32.mrf.mxu0
      %2800 = vmatprep.mubr.f32.mxu0 0.0
      %2801 = vmatmul.mubr.f32.gmra.mxu0 %v2711
      %v2802 = vpop.f32.mrf.mxu0
      %v2803 = vadd.f32 0.0, %v2802
      %v2804 = vpop.f32.mrf.mxu0
      %2805 = vmatprep.mubr.f32.mxu0 0.0
      %2806 = vmatmul.mubr.f32.gmra.mxu0 %v2714
      %v2807 = vpop.f32.mrf.mxu0
      %v2808 = vadd.f32 0.0, %v2807
      %v2809 = vpop.f32.mrf.mxu0
      %2810 = vmatprep.mubr.f32.mxu0 0.0
      %2811 = vmatmul.mubr.f32.gmra.mxu0 %v2717
      %v2812 = vpop.f32.mrf.mxu0
      %v2813 = vadd.f32 0.0, %v2812
      %v2814 = vpop.f32.mrf.mxu0
      %2815 = vmatprep.mubr.f32.mxu0 0.0
      %2816 = vmatmul.mubr.f32.gmra.mxu0 %v2720
      %v2817 = vpop.f32.mrf.mxu0
      %v2818 = vadd.f32 0.0, %v2817
      %v2819 = vpop.f32.mrf.mxu0
      %2820 = vmatprep.mubr.f32.mxu0 0.0
      %2821 = vmatmul.mubr.f32.gmra.mxu0 %v2723
      %v2822 = vpop.f32.mrf.mxu0
      %v2823 = vadd.f32 0.0, %v2822
      %v2824 = vpop.f32.mrf.mxu0
      %2825 = vmatprep.mubr.f32.mxu0 0.0
      %2826 = vmatmul.mubr.f32.gmra.mxu0 %v2726
      %v2827 = vpop.f32.mrf.mxu0
      %v2828 = vadd.f32 0.0, %v2827
      %v2829 = vpop.f32.mrf.mxu0
      %2830 = vmatprep.mubr.f32.mxu0 0.0
      %2831 = vmatmul.mubr.f32.gmra.mxu0 %v2729
      %v2832 = vpop.f32.mrf.mxu0
      %v2833 = vadd.f32 0.0, %v2832
      %v2834 = vpop.f32.mrf.mxu0
      %2835 = vdwg.mxu0
      %v2836 = vadd.f32 %v2611, %v2798
      %v2837 = vadd.f32 %v2616, %v2803
      %v2838 = vadd.f32 %v2621, %v2808
      %v2839 = vadd.f32 %v2626, %v2813
      %v2840 = vadd.f32 %v2631, %v2818
      %v2841 = vadd.f32 %v2636, %v2823
      %v2842 = vadd.f32 %v2641, %v2828
      %v2843 = vadd.f32 %v2646, %v2833
      %v2844 = vld [vmem:[#allocation3 + $0xf] sm:$0xff]
      %v2845 = vld [vmem:[#allocation3 + $0x17] sm:$0xff]
      %v2846 = vld [vmem:[#allocation3 + $0x1f] sm:$0xff]
      %v2847 = vld [vmem:[#allocation3 + $0x27] sm:$0xff]
      %v2848 = vld [vmem:[#allocation3 + $0x2f] sm:$0xff]
      %v2849 = vld [vmem:[#allocation3 + $0x37] sm:$0xff]
      %v2850 = vld [vmem:[#allocation3 + $0x3f] sm:$0xff]
      %v2851 = vld [vmem:[#allocation3 + $0x47] sm:$0xff]
      %v2852 = vsel %vm807, %v2844, 0.0
      %v2853 = vsel %vm808, %v2845, 0.0
      %v2854 = vsel %vm809, %v2846, 0.0
      %v2855 = vsel %vm810, %v2847, 0.0
      %v2856 = vsel %vm811, %v2848, 0.0
      %v2857 = vsel %vm812, %v2849, 0.0
      %v2858 = vsel %vm813, %v2850, 0.0
      %v2859 = vsel %vm814, %v2851, 0.0
      %s2860 = scalar_lea.vmem %s10, 24
      %v2861 = vld [vmem:[%s2860] sm:$0xff]
      %v2863 = vsel %vm496, %v2852, 0
      %v2866 = vsel %vm496, %v2853, 0
      %v2869 = vsel %vm496, %v2854, 0
      %v2872 = vsel %vm496, %v2855, 0
      %v2875 = vsel %vm496, %v2856, 0
      %v2878 = vsel %vm496, %v2857, 0
      %v2881 = vsel %vm496, %v2858, 0
      %v2884 = vsel %vm496, %v2859, 0
      %2886 = vmatprep.subr.mxu0 0.0
      %2887 = vmatpush1.msra.mxu0 0.0
      %2888 = vmatprep.subr.mxu0 0.0
      %2889 = vmatpush1.msra.mxu0 0.0
      %2890 = vmatprep.subr.mxu0 0.0
      %2891 = vmatpush1.msra.mxu0 0.0
      %2892 = vmatprep.subr.mxu0 0.0
      %2893 = vmatpush1.msra.mxu0 0.0
      %2894 = vmatprep.subr.mxu0 0.0
      %2895 = vmatpush1.msra.mxu0 0.0
      %2896 = vmatprep.subr.mxu0 0.0
      %2897 = vmatpush1.msra.mxu0 0.0
      %2898 = vmatprep.subr.mxu0 0.0
      %2899 = vmatpush1.msra.mxu0 0.0
      %2900 = vmatprep.subr.mxu0 0.0
      %2901 = vmatpush1.msra.mxu0 0.0
      %2902 = vmatprep.subr.mxu0 0.0
      %2903 = vmatpush1.msra.mxu0 0.0
      %2904 = vmatprep.subr.mxu0 0.0
      %2905 = vmatpush1.msra.mxu0 0.0
      %2906 = vmatprep.subr.mxu0 0.0
      %2907 = vmatpush1.msra.mxu0 0.0
      %2908 = vmatprep.subr.mxu0 0.0
      %2909 = vmatpush1.msra.mxu0 0.0
      %2910 = vmatprep.subr.mxu0 0.0
      %2911 = vmatpush1.msra.mxu0 0.0
      %2912 = vmatprep.subr.mxu0 0.0
      %2913 = vmatpush1.msra.mxu0 0.0
      %2914 = vmatprep.subr.mxu0 0.0
      %2915 = vmatpush1.msra.mxu0 0.0
      %2916 = vmatprep.subr.mxu0 0.0
      %2917 = vmatpush1.msra.mxu0 %v2861
      %2918 = vmatprep.subr.mxu0 0.0
      %2919 = vmatpush2.msra.mxu0 0.0
      %2920 = vmatprep.subr.mxu0 0.0
      %2921 = vmatpush2.msra.mxu0 0.0
      %2922 = vmatprep.subr.mxu0 0.0
      %2923 = vmatpush2.msra.mxu0 0.0
      %2924 = vmatprep.subr.mxu0 0.0
      %2925 = vmatpush2.msra.mxu0 0.0
      %2926 = vmatprep.subr.mxu0 0.0
      %2927 = vmatpush2.msra.mxu0 0.0
      %2928 = vmatprep.subr.mxu0 0.0
      %2929 = vmatpush2.msra.mxu0 0.0
      %2930 = vmatprep.subr.mxu0 0.0
      %2931 = vmatpush2.msra.mxu0 0.0
      %2932 = vmatprep.subr.mxu0 0.0
      %2933 = vmatpush2.msra.mxu0 0.0
      %2934 = vmatprep.subr.mxu0 0.0
      %2935 = vmatpush2.msra.mxu0 0.0
      %2936 = vmatprep.subr.mxu0 0.0
      %2937 = vmatpush2.msra.mxu0 0.0
      %2938 = vmatprep.subr.mxu0 0.0
      %2939 = vmatpush2.msra.mxu0 0.0
      %2940 = vmatprep.subr.mxu0 0.0
      %2941 = vmatpush2.msra.mxu0 0.0
      %2942 = vmatprep.subr.mxu0 0.0
      %2943 = vmatpush2.msra.mxu0 0.0
      %2944 = vmatprep.subr.mxu0 0.0
      %2945 = vmatpush2.msra.mxu0 0.0
      %2946 = vmatprep.subr.mxu0 0.0
      %2947 = vmatpush2.msra.mxu0 0.0
      %2948 = vmatprep.subr.mxu0 0.0
      %2949 = vmatpush2.msra.mxu0 0.0
      %2950 = vmatprep.mubr.f32.mxu0 0.0
      %2951 = vmatmul.mubr.f32.gmra.mxu0 %v2863
      %v2952 = vpop.f32.mrf.mxu0
      %v2953 = vadd.f32 0.0, %v2952
      %v2954 = vpop.f32.mrf.mxu0
      %2955 = vmatprep.mubr.f32.mxu0 0.0
      %2956 = vmatmul.mubr.f32.gmra.mxu0 %v2866
      %v2957 = vpop.f32.mrf.mxu0
      %v2958 = vadd.f32 0.0, %v2957
      %v2959 = vpop.f32.mrf.mxu0
      %2960 = vmatprep.mubr.f32.mxu0 0.0
      %2961 = vmatmul.mubr.f32.gmra.mxu0 %v2869
      %v2962 = vpop.f32.mrf.mxu0
      %v2963 = vadd.f32 0.0, %v2962
      %v2964 = vpop.f32.mrf.mxu0
      %2965 = vmatprep.mubr.f32.mxu0 0.0
      %2966 = vmatmul.mubr.f32.gmra.mxu0 %v2872
      %v2967 = vpop.f32.mrf.mxu0
      %v2968 = vadd.f32 0.0, %v2967
      %v2969 = vpop.f32.mrf.mxu0
      %2970 = vmatprep.mubr.f32.mxu0 0.0
      %2971 = vmatmul.mubr.f32.gmra.mxu0 %v2875
      %v2972 = vpop.f32.mrf.mxu0
      %v2973 = vadd.f32 0.0, %v2972
      %v2974 = vpop.f32.mrf.mxu0
      %2975 = vmatprep.mubr.f32.mxu0 0.0
      %2976 = vmatmul.mubr.f32.gmra.mxu0 %v2878
      %v2977 = vpop.f32.mrf.mxu0
      %v2978 = vadd.f32 0.0, %v2977
      %v2979 = vpop.f32.mrf.mxu0
      %2980 = vmatprep.mubr.f32.mxu0 0.0
      %2981 = vmatmul.mubr.f32.gmra.mxu0 %v2881
      %v2982 = vpop.f32.mrf.mxu0
      %v2983 = vadd.f32 0.0, %v2982
      %v2984 = vpop.f32.mrf.mxu0
      %2985 = vmatprep.mubr.f32.mxu0 0.0
      %2986 = vmatmul.mubr.f32.gmra.mxu0 %v2884
      %v2987 = vpop.f32.mrf.mxu0
      %v2988 = vadd.f32 0.0, %v2987
      %v2989 = vpop.f32.mrf.mxu0
      %2990 = vdwg.mxu0
      %v2991 = vadd.f32 %v2836, %v2953
      %v2992 = vadd.f32 %v2837, %v2958
      %v2993 = vadd.f32 %v2838, %v2963
      %v2994 = vadd.f32 %v2839, %v2968
      %v2995 = vadd.f32 %v2840, %v2973
      %v2996 = vadd.f32 %v2841, %v2978
      %v2997 = vadd.f32 %v2842, %v2983
      %v2998 = vadd.f32 %v2843, %v2988
      %v2999 = vld [vmem:[#allocation3 + $0x10] sm:$0xff]
      %v3000 = vld [vmem:[#allocation3 + $0x18] sm:$0xff]
      %v3001 = vld [vmem:[#allocation3 + $0x20] sm:$0xff]
      %v3002 = vld [vmem:[#allocation3 + $0x28] sm:$0xff]
      %v3003 = vld [vmem:[#allocation3 + $0x30] sm:$0xff]
      %v3004 = vld [vmem:[#allocation3 + $0x38] sm:$0xff]
      %v3005 = vld [vmem:[#allocation3 + $0x40] sm:$0xff]
      %v3006 = vld [vmem:[#allocation3 + $0x48] sm:$0xff]
      %s3007 = scalar_lea.vmem %s10, 32
      %v3008 = vld [vmem:[%s3007] sm:$0xff]
      %v3010 = vsel %vm496, %v2999, 0
      %v3013 = vsel %vm496, %v3000, 0
      %v3016 = vsel %vm496, %v3001, 0
      %v3019 = vsel %vm496, %v3002, 0
      %v3022 = vsel %vm496, %v3003, 0
      %v3025 = vsel %vm496, %v3004, 0
      %v3028 = vsel %vm496, %v3005, 0
      %v3031 = vsel %vm496, %v3006, 0
      %3033 = vmatprep.subr.mxu0 0.0
      %3034 = vmatpush1.msra.mxu0 0.0
      %3035 = vmatprep.subr.mxu0 0.0
      %3036 = vmatpush1.msra.mxu0 0.0
      %3037 = vmatprep.subr.mxu0 0.0
      %3038 = vmatpush1.msra.mxu0 0.0
      %3039 = vmatprep.subr.mxu0 0.0
      %3040 = vmatpush1.msra.mxu0 0.0
      %3041 = vmatprep.subr.mxu0 0.0
      %3042 = vmatpush1.msra.mxu0 0.0
      %3043 = vmatprep.subr.mxu0 0.0
      %3044 = vmatpush1.msra.mxu0 0.0
      %3045 = vmatprep.subr.mxu0 0.0
      %3046 = vmatpush1.msra.mxu0 0.0
      %3047 = vmatprep.subr.mxu0 0.0
      %3048 = vmatpush1.msra.mxu0 0.0
      %3049 = vmatprep.subr.mxu0 0.0
      %3050 = vmatpush1.msra.mxu0 0.0
      %3051 = vmatprep.subr.mxu0 0.0
      %3052 = vmatpush1.msra.mxu0 0.0
      %3053 = vmatprep.subr.mxu0 0.0
      %3054 = vmatpush1.msra.mxu0 0.0
      %3055 = vmatprep.subr.mxu0 0.0
      %3056 = vmatpush1.msra.mxu0 0.0
      %3057 = vmatprep.subr.mxu0 0.0
      %3058 = vmatpush1.msra.mxu0 0.0
      %3059 = vmatprep.subr.mxu0 0.0
      %3060 = vmatpush1.msra.mxu0 0.0
      %3061 = vmatprep.subr.mxu0 0.0
      %3062 = vmatpush1.msra.mxu0 0.0
      %3063 = vmatprep.subr.mxu0 0.0
      %3064 = vmatpush1.msra.mxu0 %v3008
      %3065 = vmatprep.subr.mxu0 0.0
      %3066 = vmatpush2.msra.mxu0 0.0
      %3067 = vmatprep.subr.mxu0 0.0
      %3068 = vmatpush2.msra.mxu0 0.0
      %3069 = vmatprep.subr.mxu0 0.0
      %3070 = vmatpush2.msra.mxu0 0.0
      %3071 = vmatprep.subr.mxu0 0.0
      %3072 = vmatpush2.msra.mxu0 0.0
      %3073 = vmatprep.subr.mxu0 0.0
      %3074 = vmatpush2.msra.mxu0 0.0
      %3075 = vmatprep.subr.mxu0 0.0
      %3076 = vmatpush2.msra.mxu0 0.0
      %3077 = vmatprep.subr.mxu0 0.0
      %3078 = vmatpush2.msra.mxu0 0.0
      %3079 = vmatprep.subr.mxu0 0.0
      %3080 = vmatpush2.msra.mxu0 0.0
      %3081 = vmatprep.subr.mxu0 0.0
      %3082 = vmatpush2.msra.mxu0 0.0
      %3083 = vmatprep.subr.mxu0 0.0
      %3084 = vmatpush2.msra.mxu0 0.0
      %3085 = vmatprep.subr.mxu0 0.0
      %3086 = vmatpush2.msra.mxu0 0.0
      %3087 = vmatprep.subr.mxu0 0.0
      %3088 = vmatpush2.msra.mxu0 0.0
      %3089 = vmatprep.subr.mxu0 0.0
      %3090 = vmatpush2.msra.mxu0 0.0
      %3091 = vmatprep.subr.mxu0 0.0
      %3092 = vmatpush2.msra.mxu0 0.0
      %3093 = vmatprep.subr.mxu0 0.0
      %3094 = vmatpush2.msra.mxu0 0.0
      %3095 = vmatprep.subr.mxu0 0.0
      %3096 = vmatpush2.msra.mxu0 0.0
      %3097 = vmatprep.mubr.f32.mxu0 0.0
      %3098 = vmatmul.mubr.f32.gmra.mxu0 %v3010
      %v3099 = vpop.f32.mrf.mxu0
      %v3100 = vadd.f32 0.0, %v3099
      %v3101 = vpop.f32.mrf.mxu0
      %3102 = vmatprep.mubr.f32.mxu0 0.0
      %3103 = vmatmul.mubr.f32.gmra.mxu0 %v3013
      %v3104 = vpop.f32.mrf.mxu0
      %v3105 = vadd.f32 0.0, %v3104
      %v3106 = vpop.f32.mrf.mxu0
      %3107 = vmatprep.mubr.f32.mxu0 0.0
      %3108 = vmatmul.mubr.f32.gmra.mxu0 %v3016
      %v3109 = vpop.f32.mrf.mxu0
      %v3110 = vadd.f32 0.0, %v3109
      %v3111 = vpop.f32.mrf.mxu0
      %3112 = vmatprep.mubr.f32.mxu0 0.0
      %3113 = vmatmul.mubr.f32.gmra.mxu0 %v3019
      %v3114 = vpop.f32.mrf.mxu0
      %v3115 = vadd.f32 0.0, %v3114
      %v3116 = vpop.f32.mrf.mxu0
      %3117 = vmatprep.mubr.f32.mxu0 0.0
      %3118 = vmatmul.mubr.f32.gmra.mxu0 %v3022
      %v3119 = vpop.f32.mrf.mxu0
      %v3120 = vadd.f32 0.0, %v3119
      %v3121 = vpop.f32.mrf.mxu0
      %3122 = vmatprep.mubr.f32.mxu0 0.0
      %3123 = vmatmul.mubr.f32.gmra.mxu0 %v3025
      %v3124 = vpop.f32.mrf.mxu0
      %v3125 = vadd.f32 0.0, %v3124
      %v3126 = vpop.f32.mrf.mxu0
      %3127 = vmatprep.mubr.f32.mxu0 0.0
      %3128 = vmatmul.mubr.f32.gmra.mxu0 %v3028
      %v3129 = vpop.f32.mrf.mxu0
      %v3130 = vadd.f32 0.0, %v3129
      %v3131 = vpop.f32.mrf.mxu0
      %3132 = vmatprep.mubr.f32.mxu0 0.0
      %3133 = vmatmul.mubr.f32.gmra.mxu0 %v3031
      %v3134 = vpop.f32.mrf.mxu0
      %v3135 = vadd.f32 0.0, %v3134
      %v3136 = vpop.f32.mrf.mxu0
      %3137 = vdwg.mxu0
      %v3138 = vadd.f32 %v2991, %v3100
      %v3139 = vadd.f32 %v2992, %v3105
      %v3140 = vadd.f32 %v2993, %v3110
      %v3141 = vadd.f32 %v2994, %v3115
      %v3142 = vadd.f32 %v2995, %v3120
      %v3143 = vadd.f32 %v2996, %v3125
      %v3144 = vadd.f32 %v2997, %v3130
      %v3145 = vadd.f32 %v2998, %v3135
      %v3146 = vld [vmem:[#allocation3 + $0x11] sm:$0xff]
      %v3147 = vld [vmem:[#allocation3 + $0x19] sm:$0xff]
      %v3148 = vld [vmem:[#allocation3 + $0x21] sm:$0xff]
      %v3149 = vld [vmem:[#allocation3 + $0x29] sm:$0xff]
      %v3150 = vld [vmem:[#allocation3 + $0x31] sm:$0xff]
      %v3151 = vld [vmem:[#allocation3 + $0x39] sm:$0xff]
      %v3152 = vld [vmem:[#allocation3 + $0x41] sm:$0xff]
      %v3153 = vld [vmem:[#allocation3 + $0x49] sm:$0xff]
      %v3154 = vsel %vm2689, %v3146, 0.0
      %v3155 = vsel %vm2690, %v3147, 0.0
      %v3156 = vsel %vm2691, %v3148, 0.0
      %v3157 = vsel %vm2692, %v3149, 0.0
      %v3158 = vsel %vm2693, %v3150, 0.0
      %v3159 = vsel %vm2694, %v3151, 0.0
      %v3160 = vsel %vm2695, %v3152, 0.0
      %v3161 = vsel %vm2696, %v3153, 0.0
      %s3162 = scalar_lea.vmem %s10, 40
      %v3163 = vld [vmem:[%s3162] sm:$0xff]
      %v3165 = vsel %vm496, %v3154, 0
      %v3168 = vsel %vm496, %v3155, 0
      %v3171 = vsel %vm496, %v3156, 0
      %v3174 = vsel %vm496, %v3157, 0
      %v3177 = vsel %vm496, %v3158, 0
      %v3180 = vsel %vm496, %v3159, 0
      %v3183 = vsel %vm496, %v3160, 0
      %v3186 = vsel %vm496, %v3161, 0
      %3188 = vmatprep.subr.mxu0 0.0
      %3189 = vmatpush1.msra.mxu0 0.0
      %3190 = vmatprep.subr.mxu0 0.0
      %3191 = vmatpush1.msra.mxu0 0.0
      %3192 = vmatprep.subr.mxu0 0.0
      %3193 = vmatpush1.msra.mxu0 0.0
      %3194 = vmatprep.subr.mxu0 0.0
      %3195 = vmatpush1.msra.mxu0 0.0
      %3196 = vmatprep.subr.mxu0 0.0
      %3197 = vmatpush1.msra.mxu0 0.0
      %3198 = vmatprep.subr.mxu0 0.0
      %3199 = vmatpush1.msra.mxu0 0.0
      %3200 = vmatprep.subr.mxu0 0.0
      %3201 = vmatpush1.msra.mxu0 0.0
      %3202 = vmatprep.subr.mxu0 0.0
      %3203 = vmatpush1.msra.mxu0 0.0
      %3204 = vmatprep.subr.mxu0 0.0
      %3205 = vmatpush1.msra.mxu0 0.0
      %3206 = vmatprep.subr.mxu0 0.0
      %3207 = vmatpush1.msra.mxu0 0.0
      %3208 = vmatprep.subr.mxu0 0.0
      %3209 = vmatpush1.msra.mxu0 0.0
      %3210 = vmatprep.subr.mxu0 0.0
      %3211 = vmatpush1.msra.mxu0 0.0
      %3212 = vmatprep.subr.mxu0 0.0
      %3213 = vmatpush1.msra.mxu0 0.0
      %3214 = vmatprep.subr.mxu0 0.0
      %3215 = vmatpush1.msra.mxu0 0.0
      %3216 = vmatprep.subr.mxu0 0.0
      %3217 = vmatpush1.msra.mxu0 0.0
      %3218 = vmatprep.subr.mxu0 0.0
      %3219 = vmatpush1.msra.mxu0 %v3163
      %3220 = vmatprep.subr.mxu0 0.0
      %3221 = vmatpush2.msra.mxu0 0.0
      %3222 = vmatprep.subr.mxu0 0.0
      %3223 = vmatpush2.msra.mxu0 0.0
      %3224 = vmatprep.subr.mxu0 0.0
      %3225 = vmatpush2.msra.mxu0 0.0
      %3226 = vmatprep.subr.mxu0 0.0
      %3227 = vmatpush2.msra.mxu0 0.0
      %3228 = vmatprep.subr.mxu0 0.0
      %3229 = vmatpush2.msra.mxu0 0.0
      %3230 = vmatprep.subr.mxu0 0.0
      %3231 = vmatpush2.msra.mxu0 0.0
      %3232 = vmatprep.subr.mxu0 0.0
      %3233 = vmatpush2.msra.mxu0 0.0
      %3234 = vmatprep.subr.mxu0 0.0
      %3235 = vmatpush2.msra.mxu0 0.0
      %3236 = vmatprep.subr.mxu0 0.0
      %3237 = vmatpush2.msra.mxu0 0.0
      %3238 = vmatprep.subr.mxu0 0.0
      %3239 = vmatpush2.msra.mxu0 0.0
      %3240 = vmatprep.subr.mxu0 0.0
      %3241 = vmatpush2.msra.mxu0 0.0
      %3242 = vmatprep.subr.mxu0 0.0
      %3243 = vmatpush2.msra.mxu0 0.0
      %3244 = vmatprep.subr.mxu0 0.0
      %3245 = vmatpush2.msra.mxu0 0.0
      %3246 = vmatprep.subr.mxu0 0.0
      %3247 = vmatpush2.msra.mxu0 0.0
      %3248 = vmatprep.subr.mxu0 0.0
      %3249 = vmatpush2.msra.mxu0 0.0
      %3250 = vmatprep.subr.mxu0 0.0
      %3251 = vmatpush2.msra.mxu0 0.0
      %3252 = vmatprep.mubr.f32.mxu0 0.0
      %3253 = vmatmul.mubr.f32.gmra.mxu0 %v3165
      %v3254 = vpop.f32.mrf.mxu0
      %v3255 = vadd.f32 0.0, %v3254
      %v3256 = vpop.f32.mrf.mxu0
      %3257 = vmatprep.mubr.f32.mxu0 0.0
      %3258 = vmatmul.mubr.f32.gmra.mxu0 %v3168
      %v3259 = vpop.f32.mrf.mxu0
      %v3260 = vadd.f32 0.0, %v3259
      %v3261 = vpop.f32.mrf.mxu0
      %3262 = vmatprep.mubr.f32.mxu0 0.0
      %3263 = vmatmul.mubr.f32.gmra.mxu0 %v3171
      %v3264 = vpop.f32.mrf.mxu0
      %v3265 = vadd.f32 0.0, %v3264
      %v3266 = vpop.f32.mrf.mxu0
      %3267 = vmatprep.mubr.f32.mxu0 0.0
      %3268 = vmatmul.mubr.f32.gmra.mxu0 %v3174
      %v3269 = vpop.f32.mrf.mxu0
      %v3270 = vadd.f32 0.0, %v3269
      %v3271 = vpop.f32.mrf.mxu0
      %3272 = vmatprep.mubr.f32.mxu0 0.0
      %3273 = vmatmul.mubr.f32.gmra.mxu0 %v3177
      %v3274 = vpop.f32.mrf.mxu0
      %v3275 = vadd.f32 0.0, %v3274
      %v3276 = vpop.f32.mrf.mxu0
      %3277 = vmatprep.mubr.f32.mxu0 0.0
      %3278 = vmatmul.mubr.f32.gmra.mxu0 %v3180
      %v3279 = vpop.f32.mrf.mxu0
      %v3280 = vadd.f32 0.0, %v3279
      %v3281 = vpop.f32.mrf.mxu0
      %3282 = vmatprep.mubr.f32.mxu0 0.0
      %3283 = vmatmul.mubr.f32.gmra.mxu0 %v3183
      %v3284 = vpop.f32.mrf.mxu0
      %v3285 = vadd.f32 0.0, %v3284
      %v3286 = vpop.f32.mrf.mxu0
      %3287 = vmatprep.mubr.f32.mxu0 0.0
      %3288 = vmatmul.mubr.f32.gmra.mxu0 %v3186
      %v3289 = vpop.f32.mrf.mxu0
      %v3290 = vadd.f32 0.0, %v3289
      %v3291 = vpop.f32.mrf.mxu0
      %3292 = vdwg.mxu0
      %v3293 = vadd.f32 %v3138, %v3255
      %v3294 = vadd.f32 %v3139, %v3260
      %v3295 = vadd.f32 %v3140, %v3265
      %v3296 = vadd.f32 %v3141, %v3270
      %v3297 = vadd.f32 %v3142, %v3275
      %v3298 = vadd.f32 %v3143, %v3280
      %v3299 = vadd.f32 %v3144, %v3285
      %v3300 = vadd.f32 %v3145, %v3290
      %v3301 = vld [vmem:[#allocation3 + $0x17] sm:$0xff]
      %v3302 = vld [vmem:[#allocation3 + $0x1f] sm:$0xff]
      %v3303 = vld [vmem:[#allocation3 + $0x27] sm:$0xff]
      %v3304 = vld [vmem:[#allocation3 + $0x2f] sm:$0xff]
      %v3305 = vld [vmem:[#allocation3 + $0x37] sm:$0xff]
      %v3306 = vld [vmem:[#allocation3 + $0x3f] sm:$0xff]
      %v3307 = vld [vmem:[#allocation3 + $0x47] sm:$0xff]
      %v3308 = vld [vmem:[#allocation3 + $0x4f] sm:$0xff]
      %v3309 = vsel %vm807, %v3301, 0.0
      %v3310 = vsel %vm808, %v3302, 0.0
      %v3311 = vsel %vm809, %v3303, 0.0
      %v3312 = vsel %vm810, %v3304, 0.0
      %v3313 = vsel %vm811, %v3305, 0.0
      %v3314 = vsel %vm812, %v3306, 0.0
      %v3315 = vsel %vm813, %v3307, 0.0
      %v3316 = vsel %vm814, %v3308, 0.0
      %s3317 = scalar_lea.vmem %s10, 48
      %v3318 = vld [vmem:[%s3317] sm:$0xff]
      %v3320 = vsel %vm496, %v3309, 0
      %v3323 = vsel %vm496, %v3310, 0
      %v3326 = vsel %vm496, %v3311, 0
      %v3329 = vsel %vm496, %v3312, 0
      %v3332 = vsel %vm496, %v3313, 0
      %v3335 = vsel %vm496, %v3314, 0
      %v3338 = vsel %vm496, %v3315, 0
      %v3341 = vsel %vm496, %v3316, 0
      %3343 = vmatprep.subr.mxu0 0.0
      %3344 = vmatpush1.msra.mxu0 0.0
      %3345 = vmatprep.subr.mxu0 0.0
      %3346 = vmatpush1.msra.mxu0 0.0
      %3347 = vmatprep.subr.mxu0 0.0
      %3348 = vmatpush1.msra.mxu0 0.0
      %3349 = vmatprep.subr.mxu0 0.0
      %3350 = vmatpush1.msra.mxu0 0.0
      %3351 = vmatprep.subr.mxu0 0.0
      %3352 = vmatpush1.msra.mxu0 0.0
      %3353 = vmatprep.subr.mxu0 0.0
      %3354 = vmatpush1.msra.mxu0 0.0
      %3355 = vmatprep.subr.mxu0 0.0
      %3356 = vmatpush1.msra.mxu0 0.0
      %3357 = vmatprep.subr.mxu0 0.0
      %3358 = vmatpush1.msra.mxu0 0.0
      %3359 = vmatprep.subr.mxu0 0.0
      %3360 = vmatpush1.msra.mxu0 0.0
      %3361 = vmatprep.subr.mxu0 0.0
      %3362 = vmatpush1.msra.mxu0 0.0
      %3363 = vmatprep.subr.mxu0 0.0
      %3364 = vmatpush1.msra.mxu0 0.0
      %3365 = vmatprep.subr.mxu0 0.0
      %3366 = vmatpush1.msra.mxu0 0.0
      %3367 = vmatprep.subr.mxu0 0.0
      %3368 = vmatpush1.msra.mxu0 0.0
      %3369 = vmatprep.subr.mxu0 0.0
      %3370 = vmatpush1.msra.mxu0 0.0
      %3371 = vmatprep.subr.mxu0 0.0
      %3372 = vmatpush1.msra.mxu0 0.0
      %3373 = vmatprep.subr.mxu0 0.0
      %3374 = vmatpush1.msra.mxu0 %v3318
      %3375 = vmatprep.subr.mxu0 0.0
      %3376 = vmatpush2.msra.mxu0 0.0
      %3377 = vmatprep.subr.mxu0 0.0
      %3378 = vmatpush2.msra.mxu0 0.0
      %3379 = vmatprep.subr.mxu0 0.0
      %3380 = vmatpush2.msra.mxu0 0.0
      %3381 = vmatprep.subr.mxu0 0.0
      %3382 = vmatpush2.msra.mxu0 0.0
      %3383 = vmatprep.subr.mxu0 0.0
      %3384 = vmatpush2.msra.mxu0 0.0
      %3385 = vmatprep.subr.mxu0 0.0
      %3386 = vmatpush2.msra.mxu0 0.0
      %3387 = vmatprep.subr.mxu0 0.0
      %3388 = vmatpush2.msra.mxu0 0.0
      %3389 = vmatprep.subr.mxu0 0.0
      %3390 = vmatpush2.msra.mxu0 0.0
      %3391 = vmatprep.subr.mxu0 0.0
      %3392 = vmatpush2.msra.mxu0 0.0
      %3393 = vmatprep.subr.mxu0 0.0
      %3394 = vmatpush2.msra.mxu0 0.0
      %3395 = vmatprep.subr.mxu0 0.0
      %3396 = vmatpush2.msra.mxu0 0.0
      %3397 = vmatprep.subr.mxu0 0.0
      %3398 = vmatpush2.msra.mxu0 0.0
      %3399 = vmatprep.subr.mxu0 0.0
      %3400 = vmatpush2.msra.mxu0 0.0
      %3401 = vmatprep.subr.mxu0 0.0
      %3402 = vmatpush2.msra.mxu0 0.0
      %3403 = vmatprep.subr.mxu0 0.0
      %3404 = vmatpush2.msra.mxu0 0.0
      %3405 = vmatprep.subr.mxu0 0.0
      %3406 = vmatpush2.msra.mxu0 0.0
      %3407 = vmatprep.mubr.f32.mxu0 0.0
      %3408 = vmatmul.mubr.f32.gmra.mxu0 %v3320
      %v3409 = vpop.f32.mrf.mxu0
      %v3410 = vadd.f32 0.0, %v3409
      %v3411 = vpop.f32.mrf.mxu0
      %3412 = vmatprep.mubr.f32.mxu0 0.0
      %3413 = vmatmul.mubr.f32.gmra.mxu0 %v3323
      %v3414 = vpop.f32.mrf.mxu0
      %v3415 = vadd.f32 0.0, %v3414
      %v3416 = vpop.f32.mrf.mxu0
      %3417 = vmatprep.mubr.f32.mxu0 0.0
      %3418 = vmatmul.mubr.f32.gmra.mxu0 %v3326
      %v3419 = vpop.f32.mrf.mxu0
      %v3420 = vadd.f32 0.0, %v3419
      %v3421 = vpop.f32.mrf.mxu0
      %3422 = vmatprep.mubr.f32.mxu0 0.0
      %3423 = vmatmul.mubr.f32.gmra.mxu0 %v3329
      %v3424 = vpop.f32.mrf.mxu0
      %v3425 = vadd.f32 0.0, %v3424
      %v3426 = vpop.f32.mrf.mxu0
      %3427 = vmatprep.mubr.f32.mxu0 0.0
      %3428 = vmatmul.mubr.f32.gmra.mxu0 %v3332
      %v3429 = vpop.f32.mrf.mxu0
      %v3430 = vadd.f32 0.0, %v3429
      %v3431 = vpop.f32.mrf.mxu0
      %3432 = vmatprep.mubr.f32.mxu0 0.0
      %3433 = vmatmul.mubr.f32.gmra.mxu0 %v3335
      %v3434 = vpop.f32.mrf.mxu0
      %v3435 = vadd.f32 0.0, %v3434
      %v3436 = vpop.f32.mrf.mxu0
      %3437 = vmatprep.mubr.f32.mxu0 0.0
      %3438 = vmatmul.mubr.f32.gmra.mxu0 %v3338
      %v3439 = vpop.f32.mrf.mxu0
      %v3440 = vadd.f32 0.0, %v3439
      %v3441 = vpop.f32.mrf.mxu0
      %3442 = vmatprep.mubr.f32.mxu0 0.0
      %3443 = vmatmul.mubr.f32.gmra.mxu0 %v3341
      %v3444 = vpop.f32.mrf.mxu0
      %v3445 = vadd.f32 0.0, %v3444
      %v3446 = vpop.f32.mrf.mxu0
      %3447 = vdwg.mxu0
      %v3448 = vadd.f32 %v3293, %v3410
      %v3449 = vadd.f32 %v3294, %v3415
      %v3450 = vadd.f32 %v3295, %v3420
      %v3451 = vadd.f32 %v3296, %v3425
      %v3452 = vadd.f32 %v3297, %v3430
      %v3453 = vadd.f32 %v3298, %v3435
      %v3454 = vadd.f32 %v3299, %v3440
      %v3455 = vadd.f32 %v3300, %v3445
      %v3456 = vld [vmem:[#allocation3 + $0x18] sm:$0xff]
      %v3457 = vld [vmem:[#allocation3 + $0x20] sm:$0xff]
      %v3458 = vld [vmem:[#allocation3 + $0x28] sm:$0xff]
      %v3459 = vld [vmem:[#allocation3 + $0x30] sm:$0xff]
      %v3460 = vld [vmem:[#allocation3 + $0x38] sm:$0xff]
      %v3461 = vld [vmem:[#allocation3 + $0x40] sm:$0xff]
      %v3462 = vld [vmem:[#allocation3 + $0x48] sm:$0xff]
      %v3463 = vld [vmem:[#allocation3 + $0x50] sm:$0xff]
      %s3464 = scalar_lea.vmem %s10, 56
      %v3465 = vld [vmem:[%s3464] sm:$0xff]
      %v3467 = vsel %vm496, %v3456, 0
      %v3470 = vsel %vm496, %v3457, 0
      %v3473 = vsel %vm496, %v3458, 0
      %v3476 = vsel %vm496, %v3459, 0
      %v3479 = vsel %vm496, %v3460, 0
      %v3482 = vsel %vm496, %v3461, 0
      %v3485 = vsel %vm496, %v3462, 0
      %v3488 = vsel %vm496, %v3463, 0
      %3490 = vmatprep.subr.mxu0 0.0
      %3491 = vmatpush1.msra.mxu0 0.0
      %3492 = vmatprep.subr.mxu0 0.0
      %3493 = vmatpush1.msra.mxu0 0.0
      %3494 = vmatprep.subr.mxu0 0.0
      %3495 = vmatpush1.msra.mxu0 0.0
      %3496 = vmatprep.subr.mxu0 0.0
      %3497 = vmatpush1.msra.mxu0 0.0
      %3498 = vmatprep.subr.mxu0 0.0
      %3499 = vmatpush1.msra.mxu0 0.0
      %3500 = vmatprep.subr.mxu0 0.0
      %3501 = vmatpush1.msra.mxu0 0.0
      %3502 = vmatprep.subr.mxu0 0.0
      %3503 = vmatpush1.msra.mxu0 0.0
      %3504 = vmatprep.subr.mxu0 0.0
      %3505 = vmatpush1.msra.mxu0 0.0
      %3506 = vmatprep.subr.mxu0 0.0
      %3507 = vmatpush1.msra.mxu0 0.0
      %3508 = vmatprep.subr.mxu0 0.0
      %3509 = vmatpush1.msra.mxu0 0.0
      %3510 = vmatprep.subr.mxu0 0.0
      %3511 = vmatpush1.msra.mxu0 0.0
      %3512 = vmatprep.subr.mxu0 0.0
      %3513 = vmatpush1.msra.mxu0 0.0
      %3514 = vmatprep.subr.mxu0 0.0
      %3515 = vmatpush1.msra.mxu0 0.0
      %3516 = vmatprep.subr.mxu0 0.0
      %3517 = vmatpush1.msra.mxu0 0.0
      %3518 = vmatprep.subr.mxu0 0.0
      %3519 = vmatpush1.msra.mxu0 0.0
      %3520 = vmatprep.subr.mxu0 0.0
      %3521 = vmatpush1.msra.mxu0 %v3465
      %3522 = vmatprep.subr.mxu0 0.0
      %3523 = vmatpush2.msra.mxu0 0.0
      %3524 = vmatprep.subr.mxu0 0.0
      %3525 = vmatpush2.msra.mxu0 0.0
      %3526 = vmatprep.subr.mxu0 0.0
      %3527 = vmatpush2.msra.mxu0 0.0
      %3528 = vmatprep.subr.mxu0 0.0
      %3529 = vmatpush2.msra.mxu0 0.0
      %3530 = vmatprep.subr.mxu0 0.0
      %3531 = vmatpush2.msra.mxu0 0.0
      %3532 = vmatprep.subr.mxu0 0.0
      %3533 = vmatpush2.msra.mxu0 0.0
      %3534 = vmatprep.subr.mxu0 0.0
      %3535 = vmatpush2.msra.mxu0 0.0
      %3536 = vmatprep.subr.mxu0 0.0
      %3537 = vmatpush2.msra.mxu0 0.0
      %3538 = vmatprep.subr.mxu0 0.0
      %3539 = vmatpush2.msra.mxu0 0.0
      %3540 = vmatprep.subr.mxu0 0.0
      %3541 = vmatpush2.msra.mxu0 0.0
      %3542 = vmatprep.subr.mxu0 0.0
      %3543 = vmatpush2.msra.mxu0 0.0
      %3544 = vmatprep.subr.mxu0 0.0
      %3545 = vmatpush2.msra.mxu0 0.0
      %3546 = vmatprep.subr.mxu0 0.0
      %3547 = vmatpush2.msra.mxu0 0.0
      %3548 = vmatprep.subr.mxu0 0.0
      %3549 = vmatpush2.msra.mxu0 0.0
      %3550 = vmatprep.subr.mxu0 0.0
      %3551 = vmatpush2.msra.mxu0 0.0
      %3552 = vmatprep.subr.mxu0 0.0
      %3553 = vmatpush2.msra.mxu0 0.0
      %3554 = vmatprep.mubr.f32.mxu0 0.0
      %3555 = vmatmul.mubr.f32.gmra.mxu0 %v3467
      %v3556 = vpop.f32.mrf.mxu0
      %v3557 = vadd.f32 0.0, %v3556
      %v3558 = vpop.f32.mrf.mxu0
      %3559 = vmatprep.mubr.f32.mxu0 0.0
      %3560 = vmatmul.mubr.f32.gmra.mxu0 %v3470
      %v3561 = vpop.f32.mrf.mxu0
      %v3562 = vadd.f32 0.0, %v3561
      %v3563 = vpop.f32.mrf.mxu0
      %3564 = vmatprep.mubr.f32.mxu0 0.0
      %3565 = vmatmul.mubr.f32.gmra.mxu0 %v3473
      %v3566 = vpop.f32.mrf.mxu0
      %v3567 = vadd.f32 0.0, %v3566
      %v3568 = vpop.f32.mrf.mxu0
      %3569 = vmatprep.mubr.f32.mxu0 0.0
      %3570 = vmatmul.mubr.f32.gmra.mxu0 %v3476
      %v3571 = vpop.f32.mrf.mxu0
      %v3572 = vadd.f32 0.0, %v3571
      %v3573 = vpop.f32.mrf.mxu0
      %3574 = vmatprep.mubr.f32.mxu0 0.0
      %3575 = vmatmul.mubr.f32.gmra.mxu0 %v3479
      %v3576 = vpop.f32.mrf.mxu0
      %v3577 = vadd.f32 0.0, %v3576
      %v3578 = vpop.f32.mrf.mxu0
      %3579 = vmatprep.mubr.f32.mxu0 0.0
      %3580 = vmatmul.mubr.f32.gmra.mxu0 %v3482
      %v3581 = vpop.f32.mrf.mxu0
      %v3582 = vadd.f32 0.0, %v3581
      %v3583 = vpop.f32.mrf.mxu0
      %3584 = vmatprep.mubr.f32.mxu0 0.0
      %3585 = vmatmul.mubr.f32.gmra.mxu0 %v3485
      %v3586 = vpop.f32.mrf.mxu0
      %v3587 = vadd.f32 0.0, %v3586
      %v3588 = vpop.f32.mrf.mxu0
      %3589 = vmatprep.mubr.f32.mxu0 0.0
      %3590 = vmatmul.mubr.f32.gmra.mxu0 %v3488
      %v3591 = vpop.f32.mrf.mxu0
      %v3592 = vadd.f32 0.0, %v3591
      %v3593 = vpop.f32.mrf.mxu0
      %3594 = vdwg.mxu0
      %v3595 = vadd.f32 %v3448, %v3557
      %v3596 = vadd.f32 %v3449, %v3562
      %v3597 = vadd.f32 %v3450, %v3567
      %v3598 = vadd.f32 %v3451, %v3572
      %v3599 = vadd.f32 %v3452, %v3577
      %v3600 = vadd.f32 %v3453, %v3582
      %v3601 = vadd.f32 %v3454, %v3587
      %v3602 = vadd.f32 %v3455, %v3592
      %v3603 = vld [vmem:[#allocation3 + $0x19] sm:$0xff]
      %v3604 = vld [vmem:[#allocation3 + $0x21] sm:$0xff]
      %v3605 = vld [vmem:[#allocation3 + $0x29] sm:$0xff]
      %v3606 = vld [vmem:[#allocation3 + $0x31] sm:$0xff]
      %v3607 = vld [vmem:[#allocation3 + $0x39] sm:$0xff]
      %v3608 = vld [vmem:[#allocation3 + $0x41] sm:$0xff]
      %v3609 = vld [vmem:[#allocation3 + $0x49] sm:$0xff]
      %v3610 = vld [vmem:[#allocation3 + $0x51] sm:$0xff]
      %v3611 = vsel %vm2689, %v3603, 0.0
      %v3612 = vsel %vm2690, %v3604, 0.0
      %v3613 = vsel %vm2691, %v3605, 0.0
      %v3614 = vsel %vm2692, %v3606, 0.0
      %v3615 = vsel %vm2693, %v3607, 0.0
      %v3616 = vsel %vm2694, %v3608, 0.0
      %v3617 = vsel %vm2695, %v3609, 0.0
      %v3618 = vsel %vm2696, %v3610, 0.0
      %s3619 = scalar_lea.vmem %s10, 64
      %v3620 = vld [vmem:[%s3619] sm:$0xff]
      %v3622 = vsel %vm496, %v3611, 0
      %v3625 = vsel %vm496, %v3612, 0
      %v3628 = vsel %vm496, %v3613, 0
      %v3631 = vsel %vm496, %v3614, 0
      %v3634 = vsel %vm496, %v3615, 0
      %v3637 = vsel %vm496, %v3616, 0
      %v3640 = vsel %vm496, %v3617, 0
      %v3643 = vsel %vm496, %v3618, 0
      %3645 = vmatprep.subr.mxu0 0.0
      %3646 = vmatpush1.msra.mxu0 0.0
      %3647 = vmatprep.subr.mxu0 0.0
      %3648 = vmatpush1.msra.mxu0 0.0
      %3649 = vmatprep.subr.mxu0 0.0
      %3650 = vmatpush1.msra.mxu0 0.0
      %3651 = vmatprep.subr.mxu0 0.0
      %3652 = vmatpush1.msra.mxu0 0.0
      %3653 = vmatprep.subr.mxu0 0.0
      %3654 = vmatpush1.msra.mxu0 0.0
      %3655 = vmatprep.subr.mxu0 0.0
      %3656 = vmatpush1.msra.mxu0 0.0
      %3657 = vmatprep.subr.mxu0 0.0
      %3658 = vmatpush1.msra.mxu0 0.0
      %3659 = vmatprep.subr.mxu0 0.0
      %3660 = vmatpush1.msra.mxu0 0.0
      %3661 = vmatprep.subr.mxu0 0.0
      %3662 = vmatpush1.msra.mxu0 0.0
      %3663 = vmatprep.subr.mxu0 0.0
      %3664 = vmatpush1.msra.mxu0 0.0
      %3665 = vmatprep.subr.mxu0 0.0
      %3666 = vmatpush1.msra.mxu0 0.0
      %3667 = vmatprep.subr.mxu0 0.0
      %3668 = vmatpush1.msra.mxu0 0.0
      %3669 = vmatprep.subr.mxu0 0.0
      %3670 = vmatpush1.msra.mxu0 0.0
      %3671 = vmatprep.subr.mxu0 0.0
      %3672 = vmatpush1.msra.mxu0 0.0
      %3673 = vmatprep.subr.mxu0 0.0
      %3674 = vmatpush1.msra.mxu0 0.0
      %3675 = vmatprep.subr.mxu0 0.0
      %3676 = vmatpush1.msra.mxu0 %v3620
      %3677 = vmatprep.subr.mxu0 0.0
      %3678 = vmatpush2.msra.mxu0 0.0
      %3679 = vmatprep.subr.mxu0 0.0
      %3680 = vmatpush2.msra.mxu0 0.0
      %3681 = vmatprep.subr.mxu0 0.0
      %3682 = vmatpush2.msra.mxu0 0.0
      %3683 = vmatprep.subr.mxu0 0.0
      %3684 = vmatpush2.msra.mxu0 0.0
      %3685 = vmatprep.subr.mxu0 0.0
      %3686 = vmatpush2.msra.mxu0 0.0
      %3687 = vmatprep.subr.mxu0 0.0
      %3688 = vmatpush2.msra.mxu0 0.0
      %3689 = vmatprep.subr.mxu0 0.0
      %3690 = vmatpush2.msra.mxu0 0.0
      %3691 = vmatprep.subr.mxu0 0.0
      %3692 = vmatpush2.msra.mxu0 0.0
      %3693 = vmatprep.subr.mxu0 0.0
      %3694 = vmatpush2.msra.mxu0 0.0
      %3695 = vmatprep.subr.mxu0 0.0
      %3696 = vmatpush2.msra.mxu0 0.0
      %3697 = vmatprep.subr.mxu0 0.0
      %3698 = vmatpush2.msra.mxu0 0.0
      %3699 = vmatprep.subr.mxu0 0.0
      %3700 = vmatpush2.msra.mxu0 0.0
      %3701 = vmatprep.subr.mxu0 0.0
      %3702 = vmatpush2.msra.mxu0 0.0
      %3703 = vmatprep.subr.mxu0 0.0
      %3704 = vmatpush2.msra.mxu0 0.0
      %3705 = vmatprep.subr.mxu0 0.0
      %3706 = vmatpush2.msra.mxu0 0.0
      %3707 = vmatprep.subr.mxu0 0.0
      %3708 = vmatpush2.msra.mxu0 0.0
      %3709 = vmatprep.mubr.f32.mxu0 0.0
      %3710 = vmatmul.mubr.f32.gmra.mxu0 %v3622
      %v3711 = vpop.f32.mrf.mxu0
      %v3712 = vadd.f32 0.0, %v3711
      %v3713 = vpop.f32.mrf.mxu0
      %3714 = vmatprep.mubr.f32.mxu0 0.0
      %3715 = vmatmul.mubr.f32.gmra.mxu0 %v3625
      %v3716 = vpop.f32.mrf.mxu0
      %v3717 = vadd.f32 0.0, %v3716
      %v3718 = vpop.f32.mrf.mxu0
      %3719 = vmatprep.mubr.f32.mxu0 0.0
      %3720 = vmatmul.mubr.f32.gmra.mxu0 %v3628
      %v3721 = vpop.f32.mrf.mxu0
      %v3722 = vadd.f32 0.0, %v3721
      %v3723 = vpop.f32.mrf.mxu0
      %3724 = vmatprep.mubr.f32.mxu0 0.0
      %3725 = vmatmul.mubr.f32.gmra.mxu0 %v3631
      %v3726 = vpop.f32.mrf.mxu0
      %v3727 = vadd.f32 0.0, %v3726
      %v3728 = vpop.f32.mrf.mxu0
      %3729 = vmatprep.mubr.f32.mxu0 0.0
      %3730 = vmatmul.mubr.f32.gmra.mxu0 %v3634
      %v3731 = vpop.f32.mrf.mxu0
      %v3732 = vadd.f32 0.0, %v3731
      %v3733 = vpop.f32.mrf.mxu0
      %3734 = vmatprep.mubr.f32.mxu0 0.0
      %3735 = vmatmul.mubr.f32.gmra.mxu0 %v3637
      %v3736 = vpop.f32.mrf.mxu0
      %v3737 = vadd.f32 0.0, %v3736
      %v3738 = vpop.f32.mrf.mxu0
      %3739 = vmatprep.mubr.f32.mxu0 0.0
      %3740 = vmatmul.mubr.f32.gmra.mxu0 %v3640
      %v3741 = vpop.f32.mrf.mxu0
      %v3742 = vadd.f32 0.0, %v3741
      %v3743 = vpop.f32.mrf.mxu0
      %3744 = vmatprep.mubr.f32.mxu0 0.0
      %3745 = vmatmul.mubr.f32.gmra.mxu0 %v3643
      %v3746 = vpop.f32.mrf.mxu0
      %v3747 = vadd.f32 0.0, %v3746
      %v3748 = vpop.f32.mrf.mxu0
      %3749 = vdwg.mxu0
      %v3750 = vadd.f32 %v3595, %v3712
      %v3751 = vadd.f32 %v3596, %v3717
      %v3752 = vadd.f32 %v3597, %v3722
      %v3753 = vadd.f32 %v3598, %v3727
      %v3754 = vadd.f32 %v3599, %v3732
      %v3755 = vadd.f32 %v3600, %v3737
      %v3756 = vadd.f32 %v3601, %v3742
      %v3757 = vadd.f32 %v3602, %v3747
      %v3758 = vadd.f32 %v3750, %v2318
      %v3759 = vadd.f32 %v3751, %v2323
      %v3760 = vadd.f32 %v3752, %v2328
      %v3761 = vadd.f32 %v3753, %v2333
      %v3762 = vadd.f32 %v3754, %v2338
      %v3763 = vadd.f32 %v3755, %v2343
      %v3764 = vadd.f32 %v3756, %v2348
      %v3765 = vadd.f32 %v3757, %v2353
      %3766 = vst.msk [vmem:[%s481] sm:$0xff] %vm496, %v3758
      %3767 = vst.msk [vmem:[%s481 + $0x8] sm:$0xff] %vm496, %v3759
      %3768 = vst.msk [vmem:[%s481 + $0x10] sm:$0xff] %vm496, %v3760
      %3769 = vst.msk [vmem:[%s481 + $0x18] sm:$0xff] %vm496, %v3761
      %3770 = vst.msk [vmem:[%s481 + $0x20] sm:$0xff] %vm496, %v3762
      %3771 = vst.msk [vmem:[%s481 + $0x28] sm:$0xff] %vm496, %v3763
      %3772 = vst.msk [vmem:[%s481 + $0x30] sm:$0xff] %vm496, %v3764
      %3773 = vst.msk [vmem:[%s481 + $0x38] sm:$0xff] %vm496, %v3765
      %s3774 = smul.u32 8, %s23
      %p3775 = scmp.lt.s32.totalorder %s3774, 15
      %s3776 = scalar_select %p3775, %s3774, 15
      %s3777 = smul.addr %s3776, 8
      %s3778 = scalar_lea.vmem %s12, %s3777
      // Predicated region
      $region69: #{_lambda_.2} parent=67 // pred_check
        %p3779 = pneg %p313
      $region70: #{_lambda_.2} parent=67 // pred_check_branch
        %3781 = sbr.rel (%p3779) target = $region72
      $region71: #{_lambda_.2} parent=67 // pred_region
        %s3782 = smul.u32 8, %s23
      $region72: #{_lambda_.2} parent=67 // pred_fallthru
        _
    $region68: #{_lambda_.2} parent=5 // pred_fallthru
      _
    %p3783 = scmp.le.s32.totalorder 2, %s18
    // Predicated region
    $region73: #{_lambda_.2} parent=5 // pred_check
      %p3784 = pneg %p3783
    $region74: #{_lambda_.2} parent=5 // pred_check_branch
      %3786 = sbr.rel (%p3784) target = $region76
    $region75: #{_lambda_.2} parent=5 // pred_region
      %s3787 = ssub.s32 %s18, 2
      // Predicated region
      $region77: #{_lambda_.2} parent=75 // pred_check
        %p3788 = pneg %p319
      $region78: #{_lambda_.2} parent=75 // pred_check_branch
        %3790 = sbr.rel (%p3788) target = $region80
      $region79: #{_lambda_.2} parent=75 // pred_region
        %s3791 = smul.u32 8, %s24
        %p3792 = scmp.lt.s32.totalorder %s3791, 15
        %s3793 = scalar_select %p3792, %s3791, 15
        %s3794 = smul.addr %s3793, 8
        %s3795 = scalar_lea.vmem %s12, %s3794
      $region80: #{_lambda_.2} parent=75 // pred_fallthru
        _
    $region76: #{_lambda_.2} parent=5 // pred_fallthru
      _
  $region6: #{_lambda_.2} parent=0 // loop_footer
    %s22 = sadd.s32 1, %s18
  $region7: #{_lambda_.2} parent=0 // loop_footer_branch
    %17 = sbr.rel target = $region3
  $region8: #{_lambda_.2} parent=0 // loop_exit
    _

</llo_original>
